<compile_context>
chip_gen: v5e
topology: v5e:2x2
jax: 0.10.0
libtpu: 0.0.40
codegen_flags: <defaults>
</compile_context>

<pallas_src>
import math

import jax
import jax.numpy as jnp
from jax import lax
from jax.experimental import pallas as pl
from jax.experimental.pallas import tpu as pltpu

# MXU matmul input dtype (accumulation is always f32 via preferred_element_type).
MATMUL_DTYPE = jnp.bfloat16

_VMEM = pl.BlockSpec(memory_space=pltpu.MemorySpace.VMEM)


# ------------------------- in-kernel building blocks -------------------------

def _row_shift(a, s):
    """b[r, :] = a[r + s, :] (zero fill out of range); s is static.

    Rows index flattened (n, h, w) pixels, so a constant row shift is a
    spatial (dy, dx) shift.  Rows whose shifted source is invalid are always
    masked / dropped by the caller, so the zero fill only keeps values finite.
    """
    rows, cols = a.shape
    if s == 0:
        return a
    if abs(s) >= rows:
        return jnp.zeros_like(a)
    pad = jnp.zeros((abs(s), cols), a.dtype)
    if s > 0:
        return jnp.concatenate([a[s:, :], pad], axis=0)
    return jnp.concatenate([pad, a[:rows + s, :]], axis=0)


def _conv3x3_relu(a, w_ref, b_ref, m_ref, img_w):
    """3x3 conv (padding=1) + bias + ReLU on a (N*H*W, Cin) activation.

    Builds the im2col operand in VMEM from 9 masked row-shifted copies and
    issues a single MXU matmul with K = 9*Cin.
    """
    taps = []
    k = 0
    for dy in (-1, 0, 1):
        for dx in (-1, 0, 1):
            shifted = _row_shift(a, dy * img_w + dx)
            taps.append(shifted * m_ref[:, k:k + 1])   # zero outside the image
            k += 1
    patches = jnp.concatenate(taps, axis=1)            # (N*H*W, 9*Cin)
    acc = jnp.dot(patches.astype(w_ref.dtype), w_ref[...],
                  preferred_element_type=jnp.float32)
    return jnp.maximum(acc + b_ref[...], 0.0)


def _maxpool3x3(a, sel_ref, img_w):
    """3x3 max pool (VALID) on a (N*H*W, C) activation.

    Separable window max via row-shifted jnp.maximum; the stride-s
    subsampling is a host-precomputed 0/1 selection matrix applied as one
    matmul, so only the kept window positions propagate downstream.
    """
    m = jnp.maximum(jnp.maximum(a, _row_shift(a, 1)), _row_shift(a, 2))
    m = jnp.maximum(jnp.maximum(m, _row_shift(m, img_w)),
                    _row_shift(m, 2 * img_w))
    return jnp.dot(sel_ref[...], m, preferred_element_type=jnp.float32)


def _make_fused_kernel(plan, n_batch, p_spatial):
    """Whole-network kernel: conv/pool stack -> flatten -> linear, all in VMEM."""

    def kernel(*refs):
        o_ref = refs[-1]
        wl_ref, bl_ref = refs[-3], refs[-2]
        a = refs[0][...]                                 # (N*H0*W0, Cin) f32
        idx = 1
        for op in plan:
            if op['kind'] == 'conv':
                w_ref, b_ref, m_ref = refs[idx], refs[idx + 1], refs[idx + 2]
                idx += 3
                a = _conv3x3_relu(a, w_ref, b_ref, m_ref, op['W'])
            else:
                sel_ref = refs[idx]
                idx += 1
                a = _maxpool3x3(a, sel_ref, op['W'])
        # Flatten: PyTorch's Flatten() is NCHW-ordered; that reordering is
        # absorbed into the host-permuted linear weight, so here each sample's
        # (P, C) block is simply flattened row-major onto the lane axis.
        sample_rows = []
        for b in range(n_batch):
            base = b * p_spatial
            sample_rows.append(jnp.concatenate(
                [a[base + q:base + q + 1, :] for q in range(p_spatial)],
                axis=1))
        flat = jnp.concatenate(sample_rows, axis=0)      # (N, P*C)
        logits = jnp.dot(flat.astype(wl_ref.dtype), wl_ref[...],
                         preferred_element_type=jnp.float32)
        o_ref[...] = logits + bl_ref[...]

    return kernel


# ------------------------------ host-side prep ------------------------------

def make_plan(layers, n, h, w, c):
    """Static per-layer shape walk (replaces PyTorch's dummy-forward probe)."""
    plan = []
    for kind, *p in layers:
        if kind == 'conv':
            cin, cout = p
            assert cin == c, (cin, c)
            plan.append(dict(kind='conv', H=h, W=w, cin=cin, cout=cout,
                             rows=n * h * w))
            c = cout
        else:
            stride = p[0]
            ho, wo = (h - 3) // stride + 1, (w - 3) // stride + 1
            plan.append(dict(kind='pool', H=h, W=w, C=c, stride=stride,
                             Ho=ho, Wo=wo,
                             rows_in=n * h * w, rows_out=n * ho * wo))
            h, w = ho, wo
    return plan, (h, w, c)


def _conv_valid_mask(n, h, w):
    """(N*H*W, 9) f32: tap k=(dy,dx) is 1 where the shifted pixel is in-image."""
    r = jnp.arange(n * h * w)
    wi = r % w
    hi = (r // w) % h
    cols = []
    for dy in (-1, 0, 1):
        for dx in (-1, 0, 1):
            ok = ((hi + dy >= 0) & (hi + dy < h) &
                  (wi + dx >= 0) & (wi + dx < w))
            cols.append(ok)
    return jnp.stack(cols, axis=1).astype(jnp.float32)


def _pool_select_matrix(n, h, w, stride):
    """(rows_out, rows_in) 0/1 matrix picking the kept window-start rows."""
    ho = (h - 3) // stride + 1
    wo = (w - 3) // stride + 1
    ro = jnp.arange(n * ho * wo)
    ni = ro // (ho * wo)
    rem = ro % (ho * wo)
    ii = rem // wo
    jj = rem % wo
    ri = ni * h * w + (ii * stride) * w + (jj * stride)
    return jax.nn.one_hot(ri, n * h * w, dtype=jnp.float32)


def prepare_convn(layers, params, n, h, w, c, nclasses):
    """Build plan, constant kernel operands and the fused pallas_call (once)."""
    plan, (hf, wf, cf) = make_plan(layers, n, h, w, c)
    p_spatial = hf * wf

    consts, specs = [], []
    flops = 0
    ci = 0
    for op in plan:
        if op['kind'] == 'conv':
            wconv, bconv = params['convs'][ci]
            ci += 1
            w9 = wconv.reshape(9 * op['cin'], op['cout']).astype(MATMUL_DTYPE)
            consts += [w9, bconv.reshape(1, -1).astype(jnp.float32),
                       _conv_valid_mask(n, op['H'], op['W'])]
            specs += [_VMEM, _VMEM, _VMEM]
            flops += 2 * op['rows'] * 9 * op['cin'] * op['cout']
        else:
            consts += [_pool_select_matrix(n, op['H'], op['W'], op['stride'])]
            specs += [_VMEM]
            flops += 2 * op['rows_out'] * op['rows_in'] * op['C']

    wl, bl = params['lin']
    assert wl.shape[0] == cf * p_spatial, (wl.shape, cf, p_spatial)
    # Permute torch's NCHW-flatten row order (c*P + p) into the kernel's
    # (p*C + c) order so flatten+linear needs no in-kernel transpose.
    wl_perm = (wl.reshape(cf, p_spatial, nclasses)
                 .transpose(1, 0, 2)
                 .reshape(p_spatial * cf, nclasses)
                 .astype(MATMUL_DTYPE))
    consts += [wl_perm, bl.reshape(1, -1).astype(jnp.float32)]
    specs += [_VMEM, _VMEM]
    flops += 2 * n * p_spatial * cf * nclasses

    bytes_accessed = sum(int(a.size) * a.dtype.itemsize for a in consts)
    bytes_accessed += n * h * w * c * 4 + n * nclasses * 4

    call = pl.pallas_call(
        _make_fused_kernel(plan, n, p_spatial),
        out_shape=jax.ShapeDtypeStruct((n, nclasses), jnp.float32),
        in_specs=[_VMEM] + specs,
        out_specs=_VMEM,
        compiler_params=pltpu.CompilerParams(vmem_limit_bytes=32 * 1024 * 1024),
        cost_estimate=pl.CostEstimate(flops=int(flops), transcendentals=0,
                                      bytes_accessed=int(bytes_accessed)),
    )
    return dict(call=call, consts=consts)


def convn_forward(x_nchw, prep):
    """ConvN.forward: one fused Pallas kernel (conv stack + flatten + linear)."""
    n, c, h, w = x_nchw.shape
    x2d = (jnp.transpose(x_nchw, (0, 2, 3, 1))          # NCHW -> NHWC
           .reshape(n * h * w, c)
           .astype(jnp.float32))
    return prep['call'](x2d, *prep['consts'])


# --------------------------- ConvN architecture ----------------------------

def build_convn(cfgs, fold, channel_mult=None, do_fold=True):
    """Mirrors ConvN.__init__ layer construction (conv always followed by ReLU,
    fused in the kernel).  Returns layer descriptors + derived sizes."""
    sqrt_fold = fold ** 0.5
    cm = channel_mult if channel_mult is not None else sqrt_fold
    tmpl = cfgs['model-architecture']['template']
    arch = cfgs['model-architecture']['params']
    nclasses = cfgs['num-classes']
    in_ch = cfgs['chan-in']
    if do_fold:
        in_ch *= fold
        nclasses *= fold

    layers = []  # ('conv', cin, cout) | ('pool', stride)
    ic = int(arch['conv1_n_feature_maps'] * cm)
    layers.append(('conv', in_ch, ic))
    layers.append(('pool', 2))
    for _ in range(arch['n-conv-units']):
        nic = int(arch['convi_n_feature_maps'] * cm)
        layers.append(('conv', ic, nic))
        ic = nic
        if tmpl == '1_3s_1_convnet':
            layers.append(('conv', ic, ic))
            layers.append(('conv', ic, ic))
        layers.append(('pool', 1))
    layers.append(('conv', ic, int(arch['convn_n_feature_maps'] * cm)))
    layers.append(('pool', 2))

    # Flattened feature size computed analytically (instead of the dummy
    # forward): conv(pad=1) keeps HxW; pool3/stride s -> (d-3)//s + 1.
    h, w = cfgs['out-h'], cfgs['out-w']
    last_c = in_ch
    for kind, *p in layers:
        if kind == 'conv':
            last_c = p[1]
        else:
            s = p[0]
            h = (h - 3) // s + 1
            w = (w - 3) // s + 1
    feat = last_c * h * w
    return layers, nclasses, in_ch, feat


def init_params(key, layers, feat, nclasses):
    """Deterministic synthetic parameter init (not a checkpoint load)."""
    convs = []
    for kind, *p in layers:
        if kind != 'conv':
            continue
        cin, cout = p
        key, kw, kb = jax.random.split(key, 3)
        w = jax.random.normal(kw, (3, 3, cin, cout), jnp.float32) / math.sqrt(9 * cin)
        b = 0.01 * jax.random.normal(kb, (cout,), jnp.float32)
        convs.append((w, b))
    key, kw, kb = jax.random.split(key, 3)
    wl = jax.random.normal(kw, (feat, nclasses), jnp.float32) / math.sqrt(feat)
    bl = 0.01 * jax.random.normal(kb, (nclasses,), jnp.float32)
    return {'convs': convs, 'lin': (wl, bl)}


def convn_reference(x_nchw, layers, params):
    """Pure-JAX reference (lax.conv / reduce_window) with the same
    MATMUL_DTYPE casts for the matmul operands, f32 everywhere else."""
    x = jnp.transpose(x_nchw, (0, 2, 3, 1)).astype(jnp.float32)
    ci = 0
    for kind, *p in layers:
        if kind == 'conv':
            w, b = params['convs'][ci]
            ci += 1
            y = lax.conv_general_dilated(
                x.astype(MATMUL_DTYPE), w.astype(MATMUL_DTYPE),
                window_strides=(1, 1), padding=((1, 1), (1, 1)),
                dimension_numbers=('NHWC', 'HWIO', 'NHWC'),
                preferred_element_type=jnp.float32)
            x = jnp.maximum(y + b, 0.0)
        else:
            s = p[0]
            x = lax.reduce_window(x, -jnp.inf, lax.max,
                                  (1, 3, 3, 1), (1, s, s, 1), 'VALID')
    nb = x.shape[0]
    flat = jnp.transpose(x, (0, 3, 1, 2)).reshape(nb, -1)   # PyTorch view(N, -1)
    wl, bl = params['lin']
    return jnp.dot(flat.astype(MATMUL_DTYPE), wl.astype(MATMUL_DTYPE),
                   preferred_element_type=jnp.float32) + bl


# ----------------------------------- main -----------------------------------

if __name__ == "__main__":
    cfgs = {
        'model-architecture': {
            'template': 'plain_convnet',   # not '1_3s_1_convnet' -> 1 conv/unit
            'params': {
                'conv1_n_feature_maps': 8,
                'convi_n_feature_maps': 8,
                'convn_n_feature_maps': 8,
                'n-conv-units': 1,
            },
        },
        'num-classes': 4,
        'chan-in': 4,
        'out-h': 16,
        'out-w': 16,
    }
    fold = 1

    layers, nclasses, in_ch, feat = build_convn(cfgs, fold, channel_mult=None,
                                                do_fold=True)

    key = jax.random.PRNGKey(0)
    key, kx = jax.random.split(key)
    x = jax.random.normal(kx, (2, in_ch, cfgs['out-h'], cfgs['out-w']),
                          jnp.float32)  # NCHW, like the PyTorch module

    params = init_params(key, layers, feat, nclasses)

    prep = prepare_convn(layers, params, n=x.shape[0],
                         h=cfgs['out-h'], w=cfgs['out-w'], c=in_ch,
                         nclasses=nclasses)

    out = jax.block_until_ready(convn_forward(x, prep))
    assert out.shape == (2, nclasses), out.shape

    ref = jax.block_until_ready(convn_reference(x, layers, params))
    if not jnp.allclose(out, ref, atol=1e-2, rtol=1e-2):
        raise AssertionError("Pallas ConvN output mismatches JAX reference")

    print("KERNEL_OK")
</pallas_src>

<mosaic_0001>
module attributes {stable_mosaic.version = 11 : i64} {
  func.func @kernel(%arg0: memref<512x4xf32, #tpu.memory_space<vmem>>, %arg1: memref<36x8xbf16, #tpu.memory_space<vmem>>, %arg2: memref<1x8xf32, #tpu.memory_space<vmem>>, %arg3: memref<512x9xf32, #tpu.memory_space<vmem>>, %arg4: memref<98x512xf32, #tpu.memory_space<vmem>>, %arg5: memref<72x8xbf16, #tpu.memory_space<vmem>>, %arg6: memref<1x8xf32, #tpu.memory_space<vmem>>, %arg7: memref<98x9xf32, #tpu.memory_space<vmem>>, %arg8: memref<50x98xf32, #tpu.memory_space<vmem>>, %arg9: memref<72x8xbf16, #tpu.memory_space<vmem>>, %arg10: memref<1x8xf32, #tpu.memory_space<vmem>>, %arg11: memref<50x9xf32, #tpu.memory_space<vmem>>, %arg12: memref<8x50xf32, #tpu.memory_space<vmem>>, %arg13: memref<32x4xbf16, #tpu.memory_space<vmem>>, %arg14: memref<1x4xf32, #tpu.memory_space<vmem>>, %arg15: memref<2x4xf32, #tpu.memory_space<vmem>>) attributes {dimension_semantics = [], scalar_prefetch = 0 : i64, scratch_operands = 0 : i64, tpu.core_type = #tpu.core_type<tc>} {
    %c0 = arith.constant 0 : index
    %c0_0 = arith.constant 0 : index
    %0 = vector.load %arg0[%c0, %c0_0] : memref<512x4xf32, #tpu.memory_space<vmem>>, vector<512x4xf32>
    %cst = arith.constant 0.000000e+00 : f32
    %1 = vector.broadcast %cst : f32 to vector<17x4xf32>
    %2 = vector.extract_strided_slice %0 {offsets = [0, 0], sizes = [495, 4], strides = [1, 1]} : vector<512x4xf32> to vector<495x4xf32>
    %3 = tpu.concatenate %1, %2 in 0 : vector<17x4xf32>, vector<495x4xf32> -> vector<512x4xf32>
    %c0_1 = arith.constant 0 : index
    %c0_2 = arith.constant 0 : index
    %4 = vector.load %arg3[%c0_1, %c0_2] : memref<512x9xf32, #tpu.memory_space<vmem>>, vector<512x1xf32>
    %5 = vector.broadcast %4 : vector<512x1xf32> to vector<512x4xf32>
    %6 = arith.mulf %3, %5 : vector<512x4xf32>
    %cst_3 = arith.constant 0.000000e+00 : f32
    %7 = vector.broadcast %cst_3 : f32 to vector<16x4xf32>
    %8 = vector.extract_strided_slice %0 {offsets = [0, 0], sizes = [496, 4], strides = [1, 1]} : vector<512x4xf32> to vector<496x4xf32>
    %9 = tpu.concatenate %7, %8 in 0 : vector<16x4xf32>, vector<496x4xf32> -> vector<512x4xf32>
    %c0_4 = arith.constant 0 : index
    %c1 = arith.constant 1 : index
    %10 = vector.load %arg3[%c0_4, %c1] : memref<512x9xf32, #tpu.memory_space<vmem>>, vector<512x1xf32>
    %11 = vector.broadcast %10 : vector<512x1xf32> to vector<512x4xf32>
    %12 = arith.mulf %9, %11 : vector<512x4xf32>
    %cst_5 = arith.constant 0.000000e+00 : f32
    %13 = vector.broadcast %cst_5 : f32 to vector<15x4xf32>
    %14 = vector.extract_strided_slice %0 {offsets = [0, 0], sizes = [497, 4], strides = [1, 1]} : vector<512x4xf32> to vector<497x4xf32>
    %15 = tpu.concatenate %13, %14 in 0 : vector<15x4xf32>, vector<497x4xf32> -> vector<512x4xf32>
    %c0_6 = arith.constant 0 : index
    %c2 = arith.constant 2 : index
    %16 = vector.load %arg3[%c0_6, %c2] : memref<512x9xf32, #tpu.memory_space<vmem>>, vector<512x1xf32>
    %17 = vector.broadcast %16 : vector<512x1xf32> to vector<512x4xf32>
    %18 = arith.mulf %15, %17 : vector<512x4xf32>
    %cst_7 = arith.constant 0.000000e+00 : f32
    %19 = vector.broadcast %cst_7 : f32 to vector<1x4xf32>
    %20 = vector.extract_strided_slice %0 {offsets = [0, 0], sizes = [511, 4], strides = [1, 1]} : vector<512x4xf32> to vector<511x4xf32>
    %21 = tpu.concatenate %19, %20 in 0 : vector<1x4xf32>, vector<511x4xf32> -> vector<512x4xf32>
    %c0_8 = arith.constant 0 : index
    %c3 = arith.constant 3 : index
    %22 = vector.load %arg3[%c0_8, %c3] : memref<512x9xf32, #tpu.memory_space<vmem>>, vector<512x1xf32>
    %23 = vector.broadcast %22 : vector<512x1xf32> to vector<512x4xf32>
    %24 = arith.mulf %21, %23 : vector<512x4xf32>
    %c0_9 = arith.constant 0 : index
    %c4 = arith.constant 4 : index
    %25 = vector.load %arg3[%c0_9, %c4] : memref<512x9xf32, #tpu.memory_space<vmem>>, vector<512x1xf32>
    %26 = vector.broadcast %25 : vector<512x1xf32> to vector<512x4xf32>
    %27 = arith.mulf %0, %26 : vector<512x4xf32>
    %cst_10 = arith.constant 0.000000e+00 : f32
    %28 = vector.broadcast %cst_10 : f32 to vector<1x4xf32>
    %29 = vector.extract_strided_slice %0 {offsets = [1, 0], sizes = [511, 4], strides = [1, 1]} : vector<512x4xf32> to vector<511x4xf32>
    %30 = tpu.concatenate %29, %28 in 0 : vector<511x4xf32>, vector<1x4xf32> -> vector<512x4xf32>
    %c0_11 = arith.constant 0 : index
    %c5 = arith.constant 5 : index
    %31 = vector.load %arg3[%c0_11, %c5] : memref<512x9xf32, #tpu.memory_space<vmem>>, vector<512x1xf32>
    %32 = vector.broadcast %31 : vector<512x1xf32> to vector<512x4xf32>
    %33 = arith.mulf %30, %32 : vector<512x4xf32>
    %cst_12 = arith.constant 0.000000e+00 : f32
    %34 = vector.broadcast %cst_12 : f32 to vector<15x4xf32>
    %35 = vector.extract_strided_slice %0 {offsets = [15, 0], sizes = [497, 4], strides = [1, 1]} : vector<512x4xf32> to vector<497x4xf32>
    %36 = tpu.concatenate %35, %34 in 0 : vector<497x4xf32>, vector<15x4xf32> -> vector<512x4xf32>
    %c0_13 = arith.constant 0 : index
    %c6 = arith.constant 6 : index
    %37 = vector.load %arg3[%c0_13, %c6] : memref<512x9xf32, #tpu.memory_space<vmem>>, vector<512x1xf32>
    %38 = vector.broadcast %37 : vector<512x1xf32> to vector<512x4xf32>
    %39 = arith.mulf %36, %38 : vector<512x4xf32>
    %cst_14 = arith.constant 0.000000e+00 : f32
    %40 = vector.broadcast %cst_14 : f32 to vector<16x4xf32>
    %41 = vector.extract_strided_slice %0 {offsets = [16, 0], sizes = [496, 4], strides = [1, 1]} : vector<512x4xf32> to vector<496x4xf32>
    %42 = tpu.concatenate %41, %40 in 0 : vector<496x4xf32>, vector<16x4xf32> -> vector<512x4xf32>
    %c0_15 = arith.constant 0 : index
    %c7 = arith.constant 7 : index
    %43 = vector.load %arg3[%c0_15, %c7] : memref<512x9xf32, #tpu.memory_space<vmem>>, vector<512x1xf32>
    %44 = vector.broadcast %43 : vector<512x1xf32> to vector<512x4xf32>
    %45 = arith.mulf %42, %44 : vector<512x4xf32>
    %cst_16 = arith.constant 0.000000e+00 : f32
    %46 = vector.broadcast %cst_16 : f32 to vector<17x4xf32>
    %47 = vector.extract_strided_slice %0 {offsets = [17, 0], sizes = [495, 4], strides = [1, 1]} : vector<512x4xf32> to vector<495x4xf32>
    %48 = tpu.concatenate %47, %46 in 0 : vector<495x4xf32>, vector<17x4xf32> -> vector<512x4xf32>
    %c0_17 = arith.constant 0 : index
    %c8 = arith.constant 8 : index
    %49 = vector.load %arg3[%c0_17, %c8] : memref<512x9xf32, #tpu.memory_space<vmem>>, vector<512x1xf32>
    %50 = vector.broadcast %49 : vector<512x1xf32> to vector<512x4xf32>
    %51 = arith.mulf %48, %50 : vector<512x4xf32>
    %52 = tpu.concatenate %6, %12, %18, %24, %27, %33, %39, %45, %51 in 1 : vector<512x4xf32>, vector<512x4xf32>, vector<512x4xf32>, vector<512x4xf32>, vector<512x4xf32>, vector<512x4xf32>, vector<512x4xf32>, vector<512x4xf32>, vector<512x4xf32> -> vector<512x36xf32>
    %53 = arith.truncf %52 : vector<512x36xf32> to vector<512x36xbf16>
    %c0_18 = arith.constant 0 : index
    %c0_19 = arith.constant 0 : index
    %54 = vector.load %arg1[%c0_18, %c0_19] : memref<36x8xbf16, #tpu.memory_space<vmem>>, vector<36x8xbf16>
    %cst_20 = arith.constant dense<0.000000e+00> : vector<512x8xf32>
    %55 = tpu.matmul %53, %54, %cst_20 {dimension_numbers = #tpu.dot_dimension_numbers<[1], [0], [0], [1], [0, 0, 1, 1], [], []>} : vector<512x36xbf16>, vector<36x8xbf16>, vector<512x8xf32> -> vector<512x8xf32>
    %c0_21 = arith.constant 0 : index
    %c0_22 = arith.constant 0 : index
    %56 = vector.load %arg2[%c0_21, %c0_22] : memref<1x8xf32, #tpu.memory_space<vmem>>, vector<1x8xf32>
    %57 = vector.broadcast %56 : vector<1x8xf32> to vector<512x8xf32>
    %58 = arith.addf %55, %57 : vector<512x8xf32>
    %cst_23 = arith.constant 0.000000e+00 : f32
    %59 = vector.broadcast %cst_23 : f32 to vector<512x8xf32>
    %60 = arith.maximumf %58, %59 : vector<512x8xf32>
    %cst_24 = arith.constant 0.000000e+00 : f32
    %61 = vector.broadcast %cst_24 : f32 to vector<1x8xf32>
    %62 = vector.extract_strided_slice %60 {offsets = [1, 0], sizes = [511, 8], strides = [1, 1]} : vector<512x8xf32> to vector<511x8xf32>
    %63 = tpu.concatenate %62, %61 in 0 : vector<511x8xf32>, vector<1x8xf32> -> vector<512x8xf32>
    %64 = arith.maximumf %60, %63 : vector<512x8xf32>
    %cst_25 = arith.constant 0.000000e+00 : f32
    %65 = vector.broadcast %cst_25 : f32 to vector<2x8xf32>
    %66 = vector.extract_strided_slice %60 {offsets = [2, 0], sizes = [510, 8], strides = [1, 1]} : vector<512x8xf32> to vector<510x8xf32>
    %67 = tpu.concatenate %66, %65 in 0 : vector<510x8xf32>, vector<2x8xf32> -> vector<512x8xf32>
    %68 = arith.maximumf %64, %67 : vector<512x8xf32>
    %cst_26 = arith.constant 0.000000e+00 : f32
    %69 = vector.broadcast %cst_26 : f32 to vector<16x8xf32>
    %70 = vector.extract_strided_slice %68 {offsets = [16, 0], sizes = [496, 8], strides = [1, 1]} : vector<512x8xf32> to vector<496x8xf32>
    %71 = tpu.concatenate %70, %69 in 0 : vector<496x8xf32>, vector<16x8xf32> -> vector<512x8xf32>
    %72 = arith.maximumf %68, %71 : vector<512x8xf32>
    %cst_27 = arith.constant 0.000000e+00 : f32
    %73 = vector.broadcast %cst_27 : f32 to vector<32x8xf32>
    %74 = vector.extract_strided_slice %68 {offsets = [32, 0], sizes = [480, 8], strides = [1, 1]} : vector<512x8xf32> to vector<480x8xf32>
    %75 = tpu.concatenate %74, %73 in 0 : vector<480x8xf32>, vector<32x8xf32> -> vector<512x8xf32>
    %76 = arith.maximumf %72, %75 : vector<512x8xf32>
    %c0_28 = arith.constant 0 : index
    %c0_29 = arith.constant 0 : index
    %77 = vector.load %arg4[%c0_28, %c0_29] : memref<98x512xf32, #tpu.memory_space<vmem>>, vector<98x512xf32>
    %cst_30 = arith.constant dense<0.000000e+00> : vector<98x8xf32>
    %78 = tpu.matmul %77, %76, %cst_30 {dimension_numbers = #tpu.dot_dimension_numbers<[1], [0], [0], [1], [0, 0, 1, 1], [], []>} : vector<98x512xf32>, vector<512x8xf32>, vector<98x8xf32> -> vector<98x8xf32>
    %cst_31 = arith.constant 0.000000e+00 : f32
    %79 = vector.broadcast %cst_31 : f32 to vector<8x8xf32>
    %80 = vector.extract_strided_slice %78 {offsets = [0, 0], sizes = [90, 8], strides = [1, 1]} : vector<98x8xf32> to vector<90x8xf32>
    %81 = tpu.concatenate %79, %80 in 0 : vector<8x8xf32>, vector<90x8xf32> -> vector<98x8xf32>
    %c0_32 = arith.constant 0 : index
    %c0_33 = arith.constant 0 : index
    %82 = vector.load %arg7[%c0_32, %c0_33] : memref<98x9xf32, #tpu.memory_space<vmem>>, vector<98x1xf32>
    %83 = vector.broadcast %82 : vector<98x1xf32> to vector<98x8xf32>
    %84 = arith.mulf %81, %83 : vector<98x8xf32>
    %cst_34 = arith.constant 0.000000e+00 : f32
    %85 = vector.broadcast %cst_34 : f32 to vector<7x8xf32>
    %86 = vector.extract_strided_slice %78 {offsets = [0, 0], sizes = [91, 8], strides = [1, 1]} : vector<98x8xf32> to vector<91x8xf32>
    %87 = tpu.concatenate %85, %86 in 0 : vector<7x8xf32>, vector<91x8xf32> -> vector<98x8xf32>
    %c0_35 = arith.constant 0 : index
    %c1_36 = arith.constant 1 : index
    %88 = vector.load %arg7[%c0_35, %c1_36] : memref<98x9xf32, #tpu.memory_space<vmem>>, vector<98x1xf32>
    %89 = vector.broadcast %88 : vector<98x1xf32> to vector<98x8xf32>
    %90 = arith.mulf %87, %89 : vector<98x8xf32>
    %cst_37 = arith.constant 0.000000e+00 : f32
    %91 = vector.broadcast %cst_37 : f32 to vector<6x8xf32>
    %92 = vector.extract_strided_slice %78 {offsets = [0, 0], sizes = [92, 8], strides = [1, 1]} : vector<98x8xf32> to vector<92x8xf32>
    %93 = tpu.concatenate %91, %92 in 0 : vector<6x8xf32>, vector<92x8xf32> -> vector<98x8xf32>
    %c0_38 = arith.constant 0 : index
    %c2_39 = arith.constant 2 : index
    %94 = vector.load %arg7[%c0_38, %c2_39] : memref<98x9xf32, #tpu.memory_space<vmem>>, vector<98x1xf32>
    %95 = vector.broadcast %94 : vector<98x1xf32> to vector<98x8xf32>
    %96 = arith.mulf %93, %95 : vector<98x8xf32>
    %cst_40 = arith.constant 0.000000e+00 : f32
    %97 = vector.broadcast %cst_40 : f32 to vector<1x8xf32>
    %98 = vector.extract_strided_slice %78 {offsets = [0, 0], sizes = [97, 8], strides = [1, 1]} : vector<98x8xf32> to vector<97x8xf32>
    %99 = tpu.concatenate %97, %98 in 0 : vector<1x8xf32>, vector<97x8xf32> -> vector<98x8xf32>
    %c0_41 = arith.constant 0 : index
    %c3_42 = arith.constant 3 : index
    %100 = vector.load %arg7[%c0_41, %c3_42] : memref<98x9xf32, #tpu.memory_space<vmem>>, vector<98x1xf32>
    %101 = vector.broadcast %100 : vector<98x1xf32> to vector<98x8xf32>
    %102 = arith.mulf %99, %101 : vector<98x8xf32>
    %c0_43 = arith.constant 0 : index
    %c4_44 = arith.constant 4 : index
    %103 = vector.load %arg7[%c0_43, %c4_44] : memref<98x9xf32, #tpu.memory_space<vmem>>, vector<98x1xf32>
    %104 = vector.broadcast %103 : vector<98x1xf32> to vector<98x8xf32>
    %105 = arith.mulf %78, %104 : vector<98x8xf32>
    %cst_45 = arith.constant 0.000000e+00 : f32
    %106 = vector.broadcast %cst_45 : f32 to vector<1x8xf32>
    %107 = vector.extract_strided_slice %78 {offsets = [1, 0], sizes = [97, 8], strides = [1, 1]} : vector<98x8xf32> to vector<97x8xf32>
    %108 = tpu.concatenate %107, %106 in 0 : vector<97x8xf32>, vector<1x8xf32> -> vector<98x8xf32>
    %c0_46 = arith.constant 0 : index
    %c5_47 = arith.constant 5 : index
    %109 = vector.load %arg7[%c0_46, %c5_47] : memref<98x9xf32, #tpu.memory_space<vmem>>, vector<98x1xf32>
    %110 = vector.broadcast %109 : vector<98x1xf32> to vector<98x8xf32>
    %111 = arith.mulf %108, %110 : vector<98x8xf32>
    %cst_48 = arith.constant 0.000000e+00 : f32
    %112 = vector.broadcast %cst_48 : f32 to vector<6x8xf32>
    %113 = vector.extract_strided_slice %78 {offsets = [6, 0], sizes = [92, 8], strides = [1, 1]} : vector<98x8xf32> to vector<92x8xf32>
    %114 = tpu.concatenate %113, %112 in 0 : vector<92x8xf32>, vector<6x8xf32> -> vector<98x8xf32>
    %c0_49 = arith.constant 0 : index
    %c6_50 = arith.constant 6 : index
    %115 = vector.load %arg7[%c0_49, %c6_50] : memref<98x9xf32, #tpu.memory_space<vmem>>, vector<98x1xf32>
    %116 = vector.broadcast %115 : vector<98x1xf32> to vector<98x8xf32>
    %117 = arith.mulf %114, %116 : vector<98x8xf32>
    %cst_51 = arith.constant 0.000000e+00 : f32
    %118 = vector.broadcast %cst_51 : f32 to vector<7x8xf32>
    %119 = vector.extract_strided_slice %78 {offsets = [7, 0], sizes = [91, 8], strides = [1, 1]} : vector<98x8xf32> to vector<91x8xf32>
    %120 = tpu.concatenate %119, %118 in 0 : vector<91x8xf32>, vector<7x8xf32> -> vector<98x8xf32>
    %c0_52 = arith.constant 0 : index
    %c7_53 = arith.constant 7 : index
    %121 = vector.load %arg7[%c0_52, %c7_53] : memref<98x9xf32, #tpu.memory_space<vmem>>, vector<98x1xf32>
    %122 = vector.broadcast %121 : vector<98x1xf32> to vector<98x8xf32>
    %123 = arith.mulf %120, %122 : vector<98x8xf32>
    %cst_54 = arith.constant 0.000000e+00 : f32
    %124 = vector.broadcast %cst_54 : f32 to vector<8x8xf32>
    %125 = vector.extract_strided_slice %78 {offsets = [8, 0], sizes = [90, 8], strides = [1, 1]} : vector<98x8xf32> to vector<90x8xf32>
    %126 = tpu.concatenate %125, %124 in 0 : vector<90x8xf32>, vector<8x8xf32> -> vector<98x8xf32>
    %c0_55 = arith.constant 0 : index
    %c8_56 = arith.constant 8 : index
    %127 = vector.load %arg7[%c0_55, %c8_56] : memref<98x9xf32, #tpu.memory_space<vmem>>, vector<98x1xf32>
    %128 = vector.broadcast %127 : vector<98x1xf32> to vector<98x8xf32>
    %129 = arith.mulf %126, %128 : vector<98x8xf32>
    %130 = tpu.concatenate %84, %90, %96, %102, %105, %111, %117, %123, %129 in 1 : vector<98x8xf32>, vector<98x8xf32>, vector<98x8xf32>, vector<98x8xf32>, vector<98x8xf32>, vector<98x8xf32>, vector<98x8xf32>, vector<98x8xf32>, vector<98x8xf32> -> vector<98x72xf32>
    %131 = arith.truncf %130 : vector<98x72xf32> to vector<98x72xbf16>
    %c0_57 = arith.constant 0 : index
    %c0_58 = arith.constant 0 : index
    %132 = vector.load %arg5[%c0_57, %c0_58] : memref<72x8xbf16, #tpu.memory_space<vmem>>, vector<72x8xbf16>
    %cst_59 = arith.constant dense<0.000000e+00> : vector<98x8xf32>
    %133 = tpu.matmul %131, %132, %cst_59 {dimension_numbers = #tpu.dot_dimension_numbers<[1], [0], [0], [1], [0, 0, 1, 1], [], []>} : vector<98x72xbf16>, vector<72x8xbf16>, vector<98x8xf32> -> vector<98x8xf32>
    %c0_60 = arith.constant 0 : index
    %c0_61 = arith.constant 0 : index
    %134 = vector.load %arg6[%c0_60, %c0_61] : memref<1x8xf32, #tpu.memory_space<vmem>>, vector<1x8xf32>
    %135 = vector.broadcast %134 : vector<1x8xf32> to vector<98x8xf32>
    %136 = arith.addf %133, %135 : vector<98x8xf32>
    %cst_62 = arith.constant 0.000000e+00 : f32
    %137 = vector.broadcast %cst_62 : f32 to vector<98x8xf32>
    %138 = arith.maximumf %136, %137 : vector<98x8xf32>
    %cst_63 = arith.constant 0.000000e+00 : f32
    %139 = vector.broadcast %cst_63 : f32 to vector<1x8xf32>
    %140 = vector.extract_strided_slice %138 {offsets = [1, 0], sizes = [97, 8], strides = [1, 1]} : vector<98x8xf32> to vector<97x8xf32>
    %141 = tpu.concatenate %140, %139 in 0 : vector<97x8xf32>, vector<1x8xf32> -> vector<98x8xf32>
    %142 = arith.maximumf %138, %141 : vector<98x8xf32>
    %cst_64 = arith.constant 0.000000e+00 : f32
    %143 = vector.broadcast %cst_64 : f32 to vector<2x8xf32>
    %144 = vector.extract_strided_slice %138 {offsets = [2, 0], sizes = [96, 8], strides = [1, 1]} : vector<98x8xf32> to vector<96x8xf32>
    %145 = tpu.concatenate %144, %143 in 0 : vector<96x8xf32>, vector<2x8xf32> -> vector<98x8xf32>
    %146 = arith.maximumf %142, %145 : vector<98x8xf32>
    %cst_65 = arith.constant 0.000000e+00 : f32
    %147 = vector.broadcast %cst_65 : f32 to vector<7x8xf32>
    %148 = vector.extract_strided_slice %146 {offsets = [7, 0], sizes = [91, 8], strides = [1, 1]} : vector<98x8xf32> to vector<91x8xf32>
    %149 = tpu.concatenate %148, %147 in 0 : vector<91x8xf32>, vector<7x8xf32> -> vector<98x8xf32>
    %150 = arith.maximumf %146, %149 : vector<98x8xf32>
    %cst_66 = arith.constant 0.000000e+00 : f32
    %151 = vector.broadcast %cst_66 : f32 to vector<14x8xf32>
    %152 = vector.extract_strided_slice %146 {offsets = [14, 0], sizes = [84, 8], strides = [1, 1]} : vector<98x8xf32> to vector<84x8xf32>
    %153 = tpu.concatenate %152, %151 in 0 : vector<84x8xf32>, vector<14x8xf32> -> vector<98x8xf32>
    %154 = arith.maximumf %150, %153 : vector<98x8xf32>
    %c0_67 = arith.constant 0 : index
    %c0_68 = arith.constant 0 : index
    %155 = vector.load %arg8[%c0_67, %c0_68] : memref<50x98xf32, #tpu.memory_space<vmem>>, vector<50x98xf32>
    %cst_69 = arith.constant dense<0.000000e+00> : vector<50x8xf32>
    %156 = tpu.matmul %155, %154, %cst_69 {dimension_numbers = #tpu.dot_dimension_numbers<[1], [0], [0], [1], [0, 0, 1, 1], [], []>} : vector<50x98xf32>, vector<98x8xf32>, vector<50x8xf32> -> vector<50x8xf32>
    %cst_70 = arith.constant 0.000000e+00 : f32
    %157 = vector.broadcast %cst_70 : f32 to vector<6x8xf32>
    %158 = vector.extract_strided_slice %156 {offsets = [0, 0], sizes = [44, 8], strides = [1, 1]} : vector<50x8xf32> to vector<44x8xf32>
    %159 = tpu.concatenate %157, %158 in 0 : vector<6x8xf32>, vector<44x8xf32> -> vector<50x8xf32>
    %c0_71 = arith.constant 0 : index
    %c0_72 = arith.constant 0 : index
    %160 = vector.load %arg11[%c0_71, %c0_72] : memref<50x9xf32, #tpu.memory_space<vmem>>, vector<50x1xf32>
    %161 = vector.broadcast %160 : vector<50x1xf32> to vector<50x8xf32>
    %162 = arith.mulf %159, %161 : vector<50x8xf32>
    %cst_73 = arith.constant 0.000000e+00 : f32
    %163 = vector.broadcast %cst_73 : f32 to vector<5x8xf32>
    %164 = vector.extract_strided_slice %156 {offsets = [0, 0], sizes = [45, 8], strides = [1, 1]} : vector<50x8xf32> to vector<45x8xf32>
    %165 = tpu.concatenate %163, %164 in 0 : vector<5x8xf32>, vector<45x8xf32> -> vector<50x8xf32>
    %c0_74 = arith.constant 0 : index
    %c1_75 = arith.constant 1 : index
    %166 = vector.load %arg11[%c0_74, %c1_75] : memref<50x9xf32, #tpu.memory_space<vmem>>, vector<50x1xf32>
    %167 = vector.broadcast %166 : vector<50x1xf32> to vector<50x8xf32>
    %168 = arith.mulf %165, %167 : vector<50x8xf32>
    %cst_76 = arith.constant 0.000000e+00 : f32
    %169 = vector.broadcast %cst_76 : f32 to vector<4x8xf32>
    %170 = vector.extract_strided_slice %156 {offsets = [0, 0], sizes = [46, 8], strides = [1, 1]} : vector<50x8xf32> to vector<46x8xf32>
    %171 = tpu.concatenate %169, %170 in 0 : vector<4x8xf32>, vector<46x8xf32> -> vector<50x8xf32>
    %c0_77 = arith.constant 0 : index
    %c2_78 = arith.constant 2 : index
    %172 = vector.load %arg11[%c0_77, %c2_78] : memref<50x9xf32, #tpu.memory_space<vmem>>, vector<50x1xf32>
    %173 = vector.broadcast %172 : vector<50x1xf32> to vector<50x8xf32>
    %174 = arith.mulf %171, %173 : vector<50x8xf32>
    %cst_79 = arith.constant 0.000000e+00 : f32
    %175 = vector.broadcast %cst_79 : f32 to vector<1x8xf32>
    %176 = vector.extract_strided_slice %156 {offsets = [0, 0], sizes = [49, 8], strides = [1, 1]} : vector<50x8xf32> to vector<49x8xf32>
    %177 = tpu.concatenate %175, %176 in 0 : vector<1x8xf32>, vector<49x8xf32> -> vector<50x8xf32>
    %c0_80 = arith.constant 0 : index
    %c3_81 = arith.constant 3 : index
    %178 = vector.load %arg11[%c0_80, %c3_81] : memref<50x9xf32, #tpu.memory_space<vmem>>, vector<50x1xf32>
    %179 = vector.broadcast %178 : vector<50x1xf32> to vector<50x8xf32>
    %180 = arith.mulf %177, %179 : vector<50x8xf32>
    %c0_82 = arith.constant 0 : index
    %c4_83 = arith.constant 4 : index
    %181 = vector.load %arg11[%c0_82, %c4_83] : memref<50x9xf32, #tpu.memory_space<vmem>>, vector<50x1xf32>
    %182 = vector.broadcast %181 : vector<50x1xf32> to vector<50x8xf32>
    %183 = arith.mulf %156, %182 : vector<50x8xf32>
    %cst_84 = arith.constant 0.000000e+00 : f32
    %184 = vector.broadcast %cst_84 : f32 to vector<1x8xf32>
    %185 = vector.extract_strided_slice %156 {offsets = [1, 0], sizes = [49, 8], strides = [1, 1]} : vector<50x8xf32> to vector<49x8xf32>
    %186 = tpu.concatenate %185, %184 in 0 : vector<49x8xf32>, vector<1x8xf32> -> vector<50x8xf32>
    %c0_85 = arith.constant 0 : index
    %c5_86 = arith.constant 5 : index
    %187 = vector.load %arg11[%c0_85, %c5_86] : memref<50x9xf32, #tpu.memory_space<vmem>>, vector<50x1xf32>
    %188 = vector.broadcast %187 : vector<50x1xf32> to vector<50x8xf32>
    %189 = arith.mulf %186, %188 : vector<50x8xf32>
    %cst_87 = arith.constant 0.000000e+00 : f32
    %190 = vector.broadcast %cst_87 : f32 to vector<4x8xf32>
    %191 = vector.extract_strided_slice %156 {offsets = [4, 0], sizes = [46, 8], strides = [1, 1]} : vector<50x8xf32> to vector<46x8xf32>
    %192 = tpu.concatenate %191, %190 in 0 : vector<46x8xf32>, vector<4x8xf32> -> vector<50x8xf32>
    %c0_88 = arith.constant 0 : index
    %c6_89 = arith.constant 6 : index
    %193 = vector.load %arg11[%c0_88, %c6_89] : memref<50x9xf32, #tpu.memory_space<vmem>>, vector<50x1xf32>
    %194 = vector.broadcast %193 : vector<50x1xf32> to vector<50x8xf32>
    %195 = arith.mulf %192, %194 : vector<50x8xf32>
    %cst_90 = arith.constant 0.000000e+00 : f32
    %196 = vector.broadcast %cst_90 : f32 to vector<5x8xf32>
    %197 = vector.extract_strided_slice %156 {offsets = [5, 0], sizes = [45, 8], strides = [1, 1]} : vector<50x8xf32> to vector<45x8xf32>
    %198 = tpu.concatenate %197, %196 in 0 : vector<45x8xf32>, vector<5x8xf32> -> vector<50x8xf32>
    %c0_91 = arith.constant 0 : index
    %c7_92 = arith.constant 7 : index
    %199 = vector.load %arg11[%c0_91, %c7_92] : memref<50x9xf32, #tpu.memory_space<vmem>>, vector<50x1xf32>
    %200 = vector.broadcast %199 : vector<50x1xf32> to vector<50x8xf32>
    %201 = arith.mulf %198, %200 : vector<50x8xf32>
    %cst_93 = arith.constant 0.000000e+00 : f32
    %202 = vector.broadcast %cst_93 : f32 to vector<6x8xf32>
    %203 = vector.extract_strided_slice %156 {offsets = [6, 0], sizes = [44, 8], strides = [1, 1]} : vector<50x8xf32> to vector<44x8xf32>
    %204 = tpu.concatenate %203, %202 in 0 : vector<44x8xf32>, vector<6x8xf32> -> vector<50x8xf32>
    %c0_94 = arith.constant 0 : index
    %c8_95 = arith.constant 8 : index
    %205 = vector.load %arg11[%c0_94, %c8_95] : memref<50x9xf32, #tpu.memory_space<vmem>>, vector<50x1xf32>
    %206 = vector.broadcast %205 : vector<50x1xf32> to vector<50x8xf32>
    %207 = arith.mulf %204, %206 : vector<50x8xf32>
    %208 = tpu.concatenate %162, %168, %174, %180, %183, %189, %195, %201, %207 in 1 : vector<50x8xf32>, vector<50x8xf32>, vector<50x8xf32>, vector<50x8xf32>, vector<50x8xf32>, vector<50x8xf32>, vector<50x8xf32>, vector<50x8xf32>, vector<50x8xf32> -> vector<50x72xf32>
    %209 = arith.truncf %208 : vector<50x72xf32> to vector<50x72xbf16>
    %c0_96 = arith.constant 0 : index
    %c0_97 = arith.constant 0 : index
    %210 = vector.load %arg9[%c0_96, %c0_97] : memref<72x8xbf16, #tpu.memory_space<vmem>>, vector<72x8xbf16>
    %cst_98 = arith.constant dense<0.000000e+00> : vector<50x8xf32>
    %211 = tpu.matmul %209, %210, %cst_98 {dimension_numbers = #tpu.dot_dimension_numbers<[1], [0], [0], [1], [0, 0, 1, 1], [], []>} : vector<50x72xbf16>, vector<72x8xbf16>, vector<50x8xf32> -> vector<50x8xf32>
    %c0_99 = arith.constant 0 : index
    %c0_100 = arith.constant 0 : index
    %212 = vector.load %arg10[%c0_99, %c0_100] : memref<1x8xf32, #tpu.memory_space<vmem>>, vector<1x8xf32>
    %213 = vector.broadcast %212 : vector<1x8xf32> to vector<50x8xf32>
    %214 = arith.addf %211, %213 : vector<50x8xf32>
    %cst_101 = arith.constant 0.000000e+00 : f32
    %215 = vector.broadcast %cst_101 : f32 to vector<50x8xf32>
    %216 = arith.maximumf %214, %215 : vector<50x8xf32>
    %cst_102 = arith.constant 0.000000e+00 : f32
    %217 = vector.broadcast %cst_102 : f32 to vector<1x8xf32>
    %218 = vector.extract_strided_slice %216 {offsets = [1, 0], sizes = [49, 8], strides = [1, 1]} : vector<50x8xf32> to vector<49x8xf32>
    %219 = tpu.concatenate %218, %217 in 0 : vector<49x8xf32>, vector<1x8xf32> -> vector<50x8xf32>
    %220 = arith.maximumf %216, %219 : vector<50x8xf32>
    %cst_103 = arith.constant 0.000000e+00 : f32
    %221 = vector.broadcast %cst_103 : f32 to vector<2x8xf32>
    %222 = vector.extract_strided_slice %216 {offsets = [2, 0], sizes = [48, 8], strides = [1, 1]} : vector<50x8xf32> to vector<48x8xf32>
    %223 = tpu.concatenate %222, %221 in 0 : vector<48x8xf32>, vector<2x8xf32> -> vector<50x8xf32>
    %224 = arith.maximumf %220, %223 : vector<50x8xf32>
    %cst_104 = arith.constant 0.000000e+00 : f32
    %225 = vector.broadcast %cst_104 : f32 to vector<5x8xf32>
    %226 = vector.extract_strided_slice %224 {offsets = [5, 0], sizes = [45, 8], strides = [1, 1]} : vector<50x8xf32> to vector<45x8xf32>
    %227 = tpu.concatenate %226, %225 in 0 : vector<45x8xf32>, vector<5x8xf32> -> vector<50x8xf32>
    %228 = arith.maximumf %224, %227 : vector<50x8xf32>
    %cst_105 = arith.constant 0.000000e+00 : f32
    %229 = vector.broadcast %cst_105 : f32 to vector<10x8xf32>
    %230 = vector.extract_strided_slice %224 {offsets = [10, 0], sizes = [40, 8], strides = [1, 1]} : vector<50x8xf32> to vector<40x8xf32>
    %231 = tpu.concatenate %230, %229 in 0 : vector<40x8xf32>, vector<10x8xf32> -> vector<50x8xf32>
    %232 = arith.maximumf %228, %231 : vector<50x8xf32>
    %c0_106 = arith.constant 0 : index
    %c0_107 = arith.constant 0 : index
    %233 = vector.load %arg12[%c0_106, %c0_107] : memref<8x50xf32, #tpu.memory_space<vmem>>, vector<8x50xf32>
    %cst_108 = arith.constant dense<0.000000e+00> : vector<8x8xf32>
    %234 = tpu.matmul %233, %232, %cst_108 {dimension_numbers = #tpu.dot_dimension_numbers<[1], [0], [0], [1], [0, 0, 1, 1], [], []>} : vector<8x50xf32>, vector<50x8xf32>, vector<8x8xf32> -> vector<8x8xf32>
    %235 = vector.extract_strided_slice %234 {offsets = [0, 0], sizes = [1, 8], strides = [1, 1]} : vector<8x8xf32> to vector<1x8xf32>
    %236 = vector.extract_strided_slice %234 {offsets = [1, 0], sizes = [1, 8], strides = [1, 1]} : vector<8x8xf32> to vector<1x8xf32>
    %237 = vector.extract_strided_slice %234 {offsets = [2, 0], sizes = [1, 8], strides = [1, 1]} : vector<8x8xf32> to vector<1x8xf32>
    %238 = vector.extract_strided_slice %234 {offsets = [3, 0], sizes = [1, 8], strides = [1, 1]} : vector<8x8xf32> to vector<1x8xf32>
    %239 = tpu.concatenate %235, %236, %237, %238 in 1 : vector<1x8xf32>, vector<1x8xf32>, vector<1x8xf32>, vector<1x8xf32> -> vector<1x32xf32>
    %240 = vector.extract_strided_slice %234 {offsets = [4, 0], sizes = [1, 8], strides = [1, 1]} : vector<8x8xf32> to vector<1x8xf32>
    %241 = vector.extract_strided_slice %234 {offsets = [5, 0], sizes = [1, 8], strides = [1, 1]} : vector<8x8xf32> to vector<1x8xf32>
    %242 = vector.extract_strided_slice %234 {offsets = [6, 0], sizes = [1, 8], strides = [1, 1]} : vector<8x8xf32> to vector<1x8xf32>
    %243 = vector.extract_strided_slice %234 {offsets = [7, 0], sizes = [1, 8], strides = [1, 1]} : vector<8x8xf32> to vector<1x8xf32>
    %244 = tpu.concatenate %240, %241, %242, %243 in 1 : vector<1x8xf32>, vector<1x8xf32>, vector<1x8xf32>, vector<1x8xf32> -> vector<1x32xf32>
    %245 = tpu.concatenate %239, %244 in 0 : vector<1x32xf32>, vector<1x32xf32> -> vector<2x32xf32>
    %246 = arith.truncf %245 : vector<2x32xf32> to vector<2x32xbf16>
    %c0_109 = arith.constant 0 : index
    %c0_110 = arith.constant 0 : index
    %247 = vector.load %arg13[%c0_109, %c0_110] : memref<32x4xbf16, #tpu.memory_space<vmem>>, vector<32x4xbf16>
    %cst_111 = arith.constant dense<0.000000e+00> : vector<2x4xf32>
    %248 = tpu.matmul %246, %247, %cst_111 {dimension_numbers = #tpu.dot_dimension_numbers<[1], [0], [0], [1], [0, 0, 1, 1], [], []>} : vector<2x32xbf16>, vector<32x4xbf16>, vector<2x4xf32> -> vector<2x4xf32>
    %c0_112 = arith.constant 0 : index
    %c0_113 = arith.constant 0 : index
    %249 = vector.load %arg14[%c0_112, %c0_113] : memref<1x4xf32, #tpu.memory_space<vmem>>, vector<1x4xf32>
    %250 = vector.broadcast %249 : vector<1x4xf32> to vector<2x4xf32>
    %251 = arith.addf %248, %250 : vector<2x4xf32>
    %c0_114 = arith.constant 0 : index
    %c0_115 = arith.constant 0 : index
    %252 = vector.load %arg15[%c0_114, %c0_115] : memref<2x4xf32, #tpu.memory_space<vmem>>, vector<2x4xf32>
    tpu.vector_store %arg15[%c0_114, %c0_115], %251 {strides = array<i32>} : memref<2x4xf32, #tpu.memory_space<vmem>>, vector<2x4xf32>,
    return
  }
}

</mosaic_0001>

<llo_original>
// kernel: tpu_custom_call.1
$region0: #{tpu_custom_call.1}
  #allocation0 [shape = 'u32[]', space=smem, size = 0x4, offset = 0x4, fixed_abs, tag = 'smem constant byte address 0x4 - core index']
  #allocation1 [shape = 'u32[72,128]{1,0:T(1,128)}', space=vmem, size = 0x9000, scoped, tag = 'internal scratch']
  %s0 = inlined_call_operand.vmem [shape: f32[512,4], index: 0, kind: input, shape index: {}]
  %s1 = inlined_call_operand.vmem [shape: bf16[36,8], index: 1, kind: input, shape index: {}]
  %s2 = inlined_call_operand.vmem [shape: f32[1,8], index: 2, kind: input, shape index: {}]
  %s3 = inlined_call_operand.vmem [shape: f32[512,9], index: 3, kind: input, shape index: {}]
  %s4 = inlined_call_operand.vmem [shape: f32[98,512], index: 4, kind: input, shape index: {}]
  %s5 = inlined_call_operand.vmem [shape: bf16[72,8], index: 5, kind: input, shape index: {}]
  %s6 = inlined_call_operand.vmem [shape: f32[1,8], index: 6, kind: input, shape index: {}]
  %s7 = inlined_call_operand.vmem [shape: f32[98,9], index: 7, kind: input, shape index: {}]
  %s8 = inlined_call_operand.vmem [shape: f32[50,98], index: 8, kind: input, shape index: {}]
  %s9 = inlined_call_operand.vmem [shape: bf16[72,8], index: 9, kind: input, shape index: {}]
  %s10 = inlined_call_operand.vmem [shape: f32[1,8], index: 10, kind: input, shape index: {}]
  %s11 = inlined_call_operand.vmem [shape: f32[50,9], index: 11, kind: input, shape index: {}]
  %s12 = inlined_call_operand.vmem [shape: f32[8,50], index: 12, kind: input, shape index: {}]
  %s13 = inlined_call_operand.vmem [shape: bf16[32,4], index: 13, kind: input, shape index: {}]
  %s14 = inlined_call_operand.vmem [shape: f32[1,4], index: 14, kind: input, shape index: {}]
  %s15 = inlined_call_operand.hbm [shape: f32[2,4], index: 15, kind: output, shape index: {}]
  %s16 = sld [smem:[#allocation0]]
  $region70: #{tpu_custom_call.1} parent=0
    _
  %s18 = ssub.s32 1, %s16
  %s19 = scalar_select 0, %s18, %s16
  $region1: #{tpu_custom_call.1} parent=0
    #allocation2 [shape = 'u8[1024]{0}', space=vmem, size = 0x400, scoped, tag = 'output window, operand 0, single buffered']
    #allocation3 [shape = 's32[1]{0}', space=sflag, size = 0x4, scoped, tag = 'scoped memory for tpu_custom_call.1']
    %20 = vsyncpa [#allocation3], 0
    // Predicated region
    $region2: #{tpu_custom_call.1} parent=1 // pred_check
      _
    $region3: #{tpu_custom_call.1} parent=1 // pred_check_branch
      %22 = sbr.rel (0) target = $region5
    $region4: #{tpu_custom_call.1} parent=1 // pred_region
      _
    $region5: #{tpu_custom_call.1} parent=1 // pred_fallthru
      _
    // Predicated region
    $region6: #{tpu_custom_call.1} parent=1 // pred_check
      _
    $region7: #{tpu_custom_call.1} parent=1 // pred_check_branch
      %24 = sbr.rel (0) target = $region9
    $region8: #{tpu_custom_call.1} parent=1 // pred_region
      _
    $region9: #{tpu_custom_call.1} parent=1 // pred_fallthru
      _
    // Predicated region
    $region10: #{tpu_custom_call.1} parent=1 // pred_check
      _
    $region11: #{tpu_custom_call.1} parent=1 // pred_check_branch
      %26 = sbr.rel (0) target = $region13
    $region12: #{tpu_custom_call.1} parent=1 // pred_region
      _
    $region13: #{tpu_custom_call.1} parent=1 // pred_fallthru
      _
    // Predicated region
    $region14: #{tpu_custom_call.1} parent=1 // pred_check
      _
    $region15: #{tpu_custom_call.1} parent=1 // pred_check_branch
      %28 = sbr.rel (0) target = $region17
    $region16: #{tpu_custom_call.1} parent=1 // pred_region
      _
    $region17: #{tpu_custom_call.1} parent=1 // pred_fallthru
      _
    // Predicated region
    $region18: #{tpu_custom_call.1} parent=1 // pred_check
      _
    $region19: #{tpu_custom_call.1} parent=1 // pred_check_branch
      %30 = sbr.rel (0) target = $region21
    $region20: #{tpu_custom_call.1} parent=1 // pred_region
      _
    $region21: #{tpu_custom_call.1} parent=1 // pred_fallthru
      _
    // Predicated region
    $region22: #{tpu_custom_call.1} parent=1 // pred_check
      _
    $region23: #{tpu_custom_call.1} parent=1 // pred_check_branch
      %32 = sbr.rel (0) target = $region25
    $region24: #{tpu_custom_call.1} parent=1 // pred_region
      _
    $region25: #{tpu_custom_call.1} parent=1 // pred_fallthru
      _
    // Predicated region
    $region26: #{tpu_custom_call.1} parent=1 // pred_check
      _
    $region27: #{tpu_custom_call.1} parent=1 // pred_check_branch
      %34 = sbr.rel (0) target = $region29
    $region28: #{tpu_custom_call.1} parent=1 // pred_region
      _
    $region29: #{tpu_custom_call.1} parent=1 // pred_fallthru
      _
    // Predicated region
    $region30: #{tpu_custom_call.1} parent=1 // pred_check
      _
    $region31: #{tpu_custom_call.1} parent=1 // pred_check_branch
      %36 = sbr.rel (0) target = $region33
    $region32: #{tpu_custom_call.1} parent=1 // pred_region
      _
    $region33: #{tpu_custom_call.1} parent=1 // pred_fallthru
      _
    // Predicated region
    $region34: #{tpu_custom_call.1} parent=1 // pred_check
      _
    $region35: #{tpu_custom_call.1} parent=1 // pred_check_branch
      %38 = sbr.rel (0) target = $region37
    $region36: #{tpu_custom_call.1} parent=1 // pred_region
      _
    $region37: #{tpu_custom_call.1} parent=1 // pred_fallthru
      _
    // Predicated region
    $region38: #{tpu_custom_call.1} parent=1 // pred_check
      _
    $region39: #{tpu_custom_call.1} parent=1 // pred_check_branch
      %40 = sbr.rel (0) target = $region41
    $region40: #{tpu_custom_call.1} parent=1 // pred_region
      _
    $region41: #{tpu_custom_call.1} parent=1 // pred_fallthru
      _
    // Predicated region
    $region42: #{tpu_custom_call.1} parent=1 // pred_check
      _
    $region43: #{tpu_custom_call.1} parent=1 // pred_check_branch
      %42 = sbr.rel (0) target = $region45
    $region44: #{tpu_custom_call.1} parent=1 // pred_region
      _
    $region45: #{tpu_custom_call.1} parent=1 // pred_fallthru
      _
    // Predicated region
    $region46: #{tpu_custom_call.1} parent=1 // pred_check
      _
    $region47: #{tpu_custom_call.1} parent=1 // pred_check_branch
      %44 = sbr.rel (0) target = $region49
    $region48: #{tpu_custom_call.1} parent=1 // pred_region
      _
    $region49: #{tpu_custom_call.1} parent=1 // pred_fallthru
      _
    // Predicated region
    $region50: #{tpu_custom_call.1} parent=1 // pred_check
      _
    $region51: #{tpu_custom_call.1} parent=1 // pred_check_branch
      %46 = sbr.rel (0) target = $region53
    $region52: #{tpu_custom_call.1} parent=1 // pred_region
      _
    $region53: #{tpu_custom_call.1} parent=1 // pred_fallthru
      _
    // Predicated region
    $region54: #{tpu_custom_call.1} parent=1 // pred_check
      _
    $region55: #{tpu_custom_call.1} parent=1 // pred_check_branch
      %48 = sbr.rel (0) target = $region57
    $region56: #{tpu_custom_call.1} parent=1 // pred_region
      _
    $region57: #{tpu_custom_call.1} parent=1 // pred_fallthru
      _
    // Predicated region
    $region58: #{tpu_custom_call.1} parent=1 // pred_check
      _
    $region59: #{tpu_custom_call.1} parent=1 // pred_check_branch
      %50 = sbr.rel (0) target = $region61
    $region60: #{tpu_custom_call.1} parent=1 // pred_region
      _
    $region61: #{tpu_custom_call.1} parent=1 // pred_fallthru
      _
    %v52 = vld [vmem:[%s0] sm:$0xff]
    %v53 = vld [vmem:[%s0 + $0x8] sm:$0xff]
    %v54 = vld [vmem:[%s0 + $0x10] sm:$0xff]
    %v55 = vld [vmem:[%s0 + $0x18] sm:$0xff]
    %v56 = vld [vmem:[%s0 + $0x20] sm:$0xff]
    %v57 = vld [vmem:[%s0 + $0x28] sm:$0xff]
    %v58 = vld [vmem:[%s0 + $0x30] sm:$0xff]
    %v59 = vld [vmem:[%s0 + $0x38] sm:$0xff]
    %v60 = vld [vmem:[%s0 + $0x40] sm:$0xff]
    %v61 = vld [vmem:[%s0 + $0x48] sm:$0xff]
    %v62 = vld [vmem:[%s0 + $0x50] sm:$0xff]
    %v63 = vld [vmem:[%s0 + $0x58] sm:$0xff]
    %v64 = vld [vmem:[%s0 + $0x60] sm:$0xff]
    %v65 = vld [vmem:[%s0 + $0x68] sm:$0xff]
    %v66 = vld [vmem:[%s0 + $0x70] sm:$0xff]
    %v67 = vld [vmem:[%s0 + $0x78] sm:$0xff]
    %v68 = vld [vmem:[%s0 + $0x80] sm:$0xff]
    %v69 = vld [vmem:[%s0 + $0x88] sm:$0xff]
    %v70 = vld [vmem:[%s0 + $0x90] sm:$0xff]
    %v71 = vld [vmem:[%s0 + $0x98] sm:$0xff]
    %v72 = vld [vmem:[%s0 + $0xa0] sm:$0xff]
    %v73 = vld [vmem:[%s0 + $0xa8] sm:$0xff]
    %v74 = vld [vmem:[%s0 + $0xb0] sm:$0xff]
    %v75 = vld [vmem:[%s0 + $0xb8] sm:$0xff]
    %v76 = vld [vmem:[%s0 + $0xc0] sm:$0xff]
    %v77 = vld [vmem:[%s0 + $0xc8] sm:$0xff]
    %v78 = vld [vmem:[%s0 + $0xd0] sm:$0xff]
    %v79 = vld [vmem:[%s0 + $0xd8] sm:$0xff]
    %v80 = vld [vmem:[%s0 + $0xe0] sm:$0xff]
    %v81 = vld [vmem:[%s0 + $0xe8] sm:$0xff]
    %v82 = vld [vmem:[%s0 + $0xf0] sm:$0xff]
    %v83 = vld [vmem:[%s0 + $0xf8] sm:$0xff]
    %v84 = vld [vmem:[%s0 + $0x100] sm:$0xff]
    %v85 = vld [vmem:[%s0 + $0x108] sm:$0xff]
    %v86 = vld [vmem:[%s0 + $0x110] sm:$0xff]
    %v87 = vld [vmem:[%s0 + $0x118] sm:$0xff]
    %v88 = vld [vmem:[%s0 + $0x120] sm:$0xff]
    %v89 = vld [vmem:[%s0 + $0x128] sm:$0xff]
    %v90 = vld [vmem:[%s0 + $0x130] sm:$0xff]
    %v91 = vld [vmem:[%s0 + $0x138] sm:$0xff]
    %v92 = vld [vmem:[%s0 + $0x140] sm:$0xff]
    %v93 = vld [vmem:[%s0 + $0x148] sm:$0xff]
    %v94 = vld [vmem:[%s0 + $0x150] sm:$0xff]
    %v95 = vld [vmem:[%s0 + $0x158] sm:$0xff]
    %v96 = vld [vmem:[%s0 + $0x160] sm:$0xff]
    %v97 = vld [vmem:[%s0 + $0x168] sm:$0xff]
    %v98 = vld [vmem:[%s0 + $0x170] sm:$0xff]
    %v99 = vld [vmem:[%s0 + $0x178] sm:$0xff]
    %v100 = vld [vmem:[%s0 + $0x180] sm:$0xff]
    %v101 = vld [vmem:[%s0 + $0x188] sm:$0xff]
    %v102 = vld [vmem:[%s0 + $0x190] sm:$0xff]
    %v103 = vld [vmem:[%s0 + $0x198] sm:$0xff]
    %v104 = vld [vmem:[%s0 + $0x1a0] sm:$0xff]
    %v105 = vld [vmem:[%s0 + $0x1a8] sm:$0xff]
    %v106 = vld [vmem:[%s0 + $0x1b0] sm:$0xff]
    %v107 = vld [vmem:[%s0 + $0x1b8] sm:$0xff]
    %v108 = vld [vmem:[%s0 + $0x1c0] sm:$0xff]
    %v109 = vld [vmem:[%s0 + $0x1c8] sm:$0xff]
    %v110 = vld [vmem:[%s0 + $0x1d0] sm:$0xff]
    %v111 = vld [vmem:[%s0 + $0x1d8] sm:$0xff]
    %v112 = vld [vmem:[%s0 + $0x1e0] sm:$0xff]
    %v113 = vld [vmem:[%s0 + $0x1e8] sm:$0xff]
    %v114 = vld [vmem:[%s0 + $0x1f0] sm:$0xff]
    %v115 = vld [vmem:[%s0 + $0x1f8] sm:$0xff]
    %vm178 = vcmask 1040384
    %v179 = vrot.slane %v52, 7
    %v180 = vrot.slane %v53, 7
    %v181 = vsel %vm178, %v179, %v180
    %v182 = vrot.slane %v54, 7
    %v183 = vsel %vm178, %v180, %v182
    %v184 = vrot.slane %v55, 7
    %v185 = vsel %vm178, %v182, %v184
    %v186 = vrot.slane %v56, 7
    %v187 = vsel %vm178, %v184, %v186
    %v188 = vrot.slane %v57, 7
    %v189 = vsel %vm178, %v186, %v188
    %v190 = vrot.slane %v58, 7
    %v191 = vsel %vm178, %v188, %v190
    %v192 = vrot.slane %v59, 7
    %v193 = vsel %vm178, %v190, %v192
    %v194 = vrot.slane %v60, 7
    %v195 = vsel %vm178, %v192, %v194
    %v196 = vrot.slane %v61, 7
    %v197 = vsel %vm178, %v194, %v196
    %v198 = vrot.slane %v62, 7
    %v199 = vsel %vm178, %v196, %v198
    %v200 = vrot.slane %v63, 7
    %v201 = vsel %vm178, %v198, %v200
    %v202 = vrot.slane %v64, 7
    %v203 = vsel %vm178, %v200, %v202
    %v204 = vrot.slane %v65, 7
    %v205 = vsel %vm178, %v202, %v204
    %v206 = vrot.slane %v66, 7
    %v207 = vsel %vm178, %v204, %v206
    %v208 = vrot.slane %v67, 7
    %v209 = vsel %vm178, %v206, %v208
    %v210 = vrot.slane %v68, 7
    %v211 = vsel %vm178, %v208, %v210
    %v212 = vrot.slane %v69, 7
    %v213 = vsel %vm178, %v210, %v212
    %v214 = vrot.slane %v70, 7
    %v215 = vsel %vm178, %v212, %v214
    %v216 = vrot.slane %v71, 7
    %v217 = vsel %vm178, %v214, %v216
    %v218 = vrot.slane %v72, 7
    %v219 = vsel %vm178, %v216, %v218
    %v220 = vrot.slane %v73, 7
    %v221 = vsel %vm178, %v218, %v220
    %v222 = vrot.slane %v74, 7
    %v223 = vsel %vm178, %v220, %v222
    %v224 = vrot.slane %v75, 7
    %v225 = vsel %vm178, %v222, %v224
    %v226 = vrot.slane %v76, 7
    %v227 = vsel %vm178, %v224, %v226
    %v228 = vrot.slane %v77, 7
    %v229 = vsel %vm178, %v226, %v228
    %v230 = vrot.slane %v78, 7
    %v231 = vsel %vm178, %v228, %v230
    %v232 = vrot.slane %v79, 7
    %v233 = vsel %vm178, %v230, %v232
    %v234 = vrot.slane %v80, 7
    %v235 = vsel %vm178, %v232, %v234
    %v236 = vrot.slane %v81, 7
    %v237 = vsel %vm178, %v234, %v236
    %v238 = vrot.slane %v82, 7
    %v239 = vsel %vm178, %v236, %v238
    %v240 = vrot.slane %v83, 7
    %v241 = vsel %vm178, %v238, %v240
    %v242 = vrot.slane %v84, 7
    %v243 = vsel %vm178, %v240, %v242
    %v244 = vrot.slane %v85, 7
    %v245 = vsel %vm178, %v242, %v244
    %v246 = vrot.slane %v86, 7
    %v247 = vsel %vm178, %v244, %v246
    %v248 = vrot.slane %v87, 7
    %v249 = vsel %vm178, %v246, %v248
    %v250 = vrot.slane %v88, 7
    %v251 = vsel %vm178, %v248, %v250
    %v252 = vrot.slane %v89, 7
    %v253 = vsel %vm178, %v250, %v252
    %v254 = vrot.slane %v90, 7
    %v255 = vsel %vm178, %v252, %v254
    %v256 = vrot.slane %v91, 7
    %v257 = vsel %vm178, %v254, %v256
    %v258 = vrot.slane %v92, 7
    %v259 = vsel %vm178, %v256, %v258
    %v260 = vrot.slane %v93, 7
    %v261 = vsel %vm178, %v258, %v260
    %v262 = vrot.slane %v94, 7
    %v263 = vsel %vm178, %v260, %v262
    %v264 = vrot.slane %v95, 7
    %v265 = vsel %vm178, %v262, %v264
    %v266 = vrot.slane %v96, 7
    %v267 = vsel %vm178, %v264, %v266
    %v268 = vrot.slane %v97, 7
    %v269 = vsel %vm178, %v266, %v268
    %v270 = vrot.slane %v98, 7
    %v271 = vsel %vm178, %v268, %v270
    %v272 = vrot.slane %v99, 7
    %v273 = vsel %vm178, %v270, %v272
    %v274 = vrot.slane %v100, 7
    %v275 = vsel %vm178, %v272, %v274
    %v276 = vrot.slane %v101, 7
    %v277 = vsel %vm178, %v274, %v276
    %v278 = vrot.slane %v102, 7
    %v279 = vsel %vm178, %v276, %v278
    %v280 = vrot.slane %v103, 7
    %v281 = vsel %vm178, %v278, %v280
    %v282 = vrot.slane %v104, 7
    %v283 = vsel %vm178, %v280, %v282
    %v284 = vrot.slane %v105, 7
    %v285 = vsel %vm178, %v282, %v284
    %v286 = vrot.slane %v106, 7
    %v287 = vsel %vm178, %v284, %v286
    %v288 = vrot.slane %v107, 7
    %v289 = vsel %vm178, %v286, %v288
    %v290 = vrot.slane %v108, 7
    %v291 = vsel %vm178, %v288, %v290
    %v292 = vrot.slane %v109, 7
    %v293 = vsel %vm178, %v290, %v292
    %v294 = vrot.slane %v110, 7
    %v295 = vsel %vm178, %v292, %v294
    %v296 = vrot.slane %v111, 7
    %v297 = vsel %vm178, %v294, %v296
    %v298 = vrot.slane %v112, 7
    %v299 = vsel %vm178, %v296, %v298
    %v300 = vrot.slane %v113, 7
    %v301 = vsel %vm178, %v298, %v300
    %v364 = vsel %vm178, 0.0, %v179
    %v365 = vld [vmem:[%s3] sm:$0xff]
    %v366 = vld [vmem:[%s3 + $0x8] sm:$0xff]
    %v367 = vld [vmem:[%s3 + $0x10] sm:$0xff]
    %v368 = vld [vmem:[%s3 + $0x18] sm:$0xff]
    %v369 = vld [vmem:[%s3 + $0x20] sm:$0xff]
    %v370 = vld [vmem:[%s3 + $0x28] sm:$0xff]
    %v371 = vld [vmem:[%s3 + $0x30] sm:$0xff]
    %v372 = vld [vmem:[%s3 + $0x38] sm:$0xff]
    %v373 = vld [vmem:[%s3 + $0x40] sm:$0xff]
    %v374 = vld [vmem:[%s3 + $0x48] sm:$0xff]
    %v375 = vld [vmem:[%s3 + $0x50] sm:$0xff]
    %v376 = vld [vmem:[%s3 + $0x58] sm:$0xff]
    %v377 = vld [vmem:[%s3 + $0x60] sm:$0xff]
    %v378 = vld [vmem:[%s3 + $0x68] sm:$0xff]
    %v379 = vld [vmem:[%s3 + $0x70] sm:$0xff]
    %v380 = vld [vmem:[%s3 + $0x78] sm:$0xff]
    %v381 = vld [vmem:[%s3 + $0x80] sm:$0xff]
    %v382 = vld [vmem:[%s3 + $0x88] sm:$0xff]
    %v383 = vld [vmem:[%s3 + $0x90] sm:$0xff]
    %v384 = vld [vmem:[%s3 + $0x98] sm:$0xff]
    %v385 = vld [vmem:[%s3 + $0xa0] sm:$0xff]
    %v386 = vld [vmem:[%s3 + $0xa8] sm:$0xff]
    %v387 = vld [vmem:[%s3 + $0xb0] sm:$0xff]
    %v388 = vld [vmem:[%s3 + $0xb8] sm:$0xff]
    %v389 = vld [vmem:[%s3 + $0xc0] sm:$0xff]
    %v390 = vld [vmem:[%s3 + $0xc8] sm:$0xff]
    %v391 = vld [vmem:[%s3 + $0xd0] sm:$0xff]
    %v392 = vld [vmem:[%s3 + $0xd8] sm:$0xff]
    %v393 = vld [vmem:[%s3 + $0xe0] sm:$0xff]
    %v394 = vld [vmem:[%s3 + $0xe8] sm:$0xff]
    %v395 = vld [vmem:[%s3 + $0xf0] sm:$0xff]
    %v396 = vld [vmem:[%s3 + $0xf8] sm:$0xff]
    %v397 = vld [vmem:[%s3 + $0x100] sm:$0xff]
    %v398 = vld [vmem:[%s3 + $0x108] sm:$0xff]
    %v399 = vld [vmem:[%s3 + $0x110] sm:$0xff]
    %v400 = vld [vmem:[%s3 + $0x118] sm:$0xff]
    %v401 = vld [vmem:[%s3 + $0x120] sm:$0xff]
    %v402 = vld [vmem:[%s3 + $0x128] sm:$0xff]
    %v403 = vld [vmem:[%s3 + $0x130] sm:$0xff]
    %v404 = vld [vmem:[%s3 + $0x138] sm:$0xff]
    %v405 = vld [vmem:[%s3 + $0x140] sm:$0xff]
    %v406 = vld [vmem:[%s3 + $0x148] sm:$0xff]
    %v407 = vld [vmem:[%s3 + $0x150] sm:$0xff]
    %v408 = vld [vmem:[%s3 + $0x158] sm:$0xff]
    %v409 = vld [vmem:[%s3 + $0x160] sm:$0xff]
    %v410 = vld [vmem:[%s3 + $0x168] sm:$0xff]
    %v411 = vld [vmem:[%s3 + $0x170] sm:$0xff]
    %v412 = vld [vmem:[%s3 + $0x178] sm:$0xff]
    %v413 = vld [vmem:[%s3 + $0x180] sm:$0xff]
    %v414 = vld [vmem:[%s3 + $0x188] sm:$0xff]
    %v415 = vld [vmem:[%s3 + $0x190] sm:$0xff]
    %v416 = vld [vmem:[%s3 + $0x198] sm:$0xff]
    %v417 = vld [vmem:[%s3 + $0x1a0] sm:$0xff]
    %v418 = vld [vmem:[%s3 + $0x1a8] sm:$0xff]
    %v419 = vld [vmem:[%s3 + $0x1b0] sm:$0xff]
    %v420 = vld [vmem:[%s3 + $0x1b8] sm:$0xff]
    %v421 = vld [vmem:[%s3 + $0x1c0] sm:$0xff]
    %v422 = vld [vmem:[%s3 + $0x1c8] sm:$0xff]
    %v423 = vld [vmem:[%s3 + $0x1d0] sm:$0xff]
    %v424 = vld [vmem:[%s3 + $0x1d8] sm:$0xff]
    %v425 = vld [vmem:[%s3 + $0x1e0] sm:$0xff]
    %v426 = vld [vmem:[%s3 + $0x1e8] sm:$0xff]
    %v427 = vld [vmem:[%s3 + $0x1f0] sm:$0xff]
    %v428 = vld [vmem:[%s3 + $0x1f8] sm:$0xff]
    %430 = vset.pattern.permute.xlu0 0
    %431 = vperm.xlu0 %430, %v365
    %v432 = vpop.permute.xlu0 %431
    %435 = vset.pattern.permute.xlu0 0
    %436 = vperm.xlu0 %435, %v366
    %v437 = vpop.permute.xlu0 %436
    %440 = vset.pattern.permute.xlu0 0
    %441 = vperm.xlu0 %440, %v367
    %v442 = vpop.permute.xlu0 %441
    %445 = vset.pattern.permute.xlu0 0
    %446 = vperm.xlu0 %445, %v368
    %v447 = vpop.permute.xlu0 %446
    %450 = vset.pattern.permute.xlu0 0
    %451 = vperm.xlu0 %450, %v369
    %v452 = vpop.permute.xlu0 %451
    %455 = vset.pattern.permute.xlu0 0
    %456 = vperm.xlu0 %455, %v370
    %v457 = vpop.permute.xlu0 %456
    %460 = vset.pattern.permute.xlu0 0
    %461 = vperm.xlu0 %460, %v371
    %v462 = vpop.permute.xlu0 %461
    %465 = vset.pattern.permute.xlu0 0
    %466 = vperm.xlu0 %465, %v372
    %v467 = vpop.permute.xlu0 %466
    %470 = vset.pattern.permute.xlu0 0
    %471 = vperm.xlu0 %470, %v373
    %v472 = vpop.permute.xlu0 %471
    %475 = vset.pattern.permute.xlu0 0
    %476 = vperm.xlu0 %475, %v374
    %v477 = vpop.permute.xlu0 %476
    %480 = vset.pattern.permute.xlu0 0
    %481 = vperm.xlu0 %480, %v375
    %v482 = vpop.permute.xlu0 %481
    %485 = vset.pattern.permute.xlu0 0
    %486 = vperm.xlu0 %485, %v376
    %v487 = vpop.permute.xlu0 %486
    %490 = vset.pattern.permute.xlu0 0
    %491 = vperm.xlu0 %490, %v377
    %v492 = vpop.permute.xlu0 %491
    %495 = vset.pattern.permute.xlu0 0
    %496 = vperm.xlu0 %495, %v378
    %v497 = vpop.permute.xlu0 %496
    %500 = vset.pattern.permute.xlu0 0
    %501 = vperm.xlu0 %500, %v379
    %v502 = vpop.permute.xlu0 %501
    %505 = vset.pattern.permute.xlu0 0
    %506 = vperm.xlu0 %505, %v380
    %v507 = vpop.permute.xlu0 %506
    %510 = vset.pattern.permute.xlu0 0
    %511 = vperm.xlu0 %510, %v381
    %v512 = vpop.permute.xlu0 %511
    %515 = vset.pattern.permute.xlu0 0
    %516 = vperm.xlu0 %515, %v382
    %v517 = vpop.permute.xlu0 %516
    %520 = vset.pattern.permute.xlu0 0
    %521 = vperm.xlu0 %520, %v383
    %v522 = vpop.permute.xlu0 %521
    %525 = vset.pattern.permute.xlu0 0
    %526 = vperm.xlu0 %525, %v384
    %v527 = vpop.permute.xlu0 %526
    %530 = vset.pattern.permute.xlu0 0
    %531 = vperm.xlu0 %530, %v385
    %v532 = vpop.permute.xlu0 %531
    %535 = vset.pattern.permute.xlu0 0
    %536 = vperm.xlu0 %535, %v386
    %v537 = vpop.permute.xlu0 %536
    %540 = vset.pattern.permute.xlu0 0
    %541 = vperm.xlu0 %540, %v387
    %v542 = vpop.permute.xlu0 %541
    %545 = vset.pattern.permute.xlu0 0
    %546 = vperm.xlu0 %545, %v388
    %v547 = vpop.permute.xlu0 %546
    %550 = vset.pattern.permute.xlu0 0
    %551 = vperm.xlu0 %550, %v389
    %v552 = vpop.permute.xlu0 %551
    %555 = vset.pattern.permute.xlu0 0
    %556 = vperm.xlu0 %555, %v390
    %v557 = vpop.permute.xlu0 %556
    %560 = vset.pattern.permute.xlu0 0
    %561 = vperm.xlu0 %560, %v391
    %v562 = vpop.permute.xlu0 %561
    %565 = vset.pattern.permute.xlu0 0
    %566 = vperm.xlu0 %565, %v392
    %v567 = vpop.permute.xlu0 %566
    %570 = vset.pattern.permute.xlu0 0
    %571 = vperm.xlu0 %570, %v393
    %v572 = vpop.permute.xlu0 %571
    %575 = vset.pattern.permute.xlu0 0
    %576 = vperm.xlu0 %575, %v394
    %v577 = vpop.permute.xlu0 %576
    %580 = vset.pattern.permute.xlu0 0
    %581 = vperm.xlu0 %580, %v395
    %v582 = vpop.permute.xlu0 %581
    %585 = vset.pattern.permute.xlu0 0
    %586 = vperm.xlu0 %585, %v396
    %v587 = vpop.permute.xlu0 %586
    %590 = vset.pattern.permute.xlu0 0
    %591 = vperm.xlu0 %590, %v397
    %v592 = vpop.permute.xlu0 %591
    %595 = vset.pattern.permute.xlu0 0
    %596 = vperm.xlu0 %595, %v398
    %v597 = vpop.permute.xlu0 %596
    %600 = vset.pattern.permute.xlu0 0
    %601 = vperm.xlu0 %600, %v399
    %v602 = vpop.permute.xlu0 %601
    %605 = vset.pattern.permute.xlu0 0
    %606 = vperm.xlu0 %605, %v400
    %v607 = vpop.permute.xlu0 %606
    %610 = vset.pattern.permute.xlu0 0
    %611 = vperm.xlu0 %610, %v401
    %v612 = vpop.permute.xlu0 %611
    %615 = vset.pattern.permute.xlu0 0
    %616 = vperm.xlu0 %615, %v402
    %v617 = vpop.permute.xlu0 %616
    %620 = vset.pattern.permute.xlu0 0
    %621 = vperm.xlu0 %620, %v403
    %v622 = vpop.permute.xlu0 %621
    %625 = vset.pattern.permute.xlu0 0
    %626 = vperm.xlu0 %625, %v404
    %v627 = vpop.permute.xlu0 %626
    %630 = vset.pattern.permute.xlu0 0
    %631 = vperm.xlu0 %630, %v405
    %v632 = vpop.permute.xlu0 %631
    %635 = vset.pattern.permute.xlu0 0
    %636 = vperm.xlu0 %635, %v406
    %v637 = vpop.permute.xlu0 %636
    %640 = vset.pattern.permute.xlu0 0
    %641 = vperm.xlu0 %640, %v407
    %v642 = vpop.permute.xlu0 %641
    %645 = vset.pattern.permute.xlu0 0
    %646 = vperm.xlu0 %645, %v408
    %v647 = vpop.permute.xlu0 %646
    %650 = vset.pattern.permute.xlu0 0
    %651 = vperm.xlu0 %650, %v409
    %v652 = vpop.permute.xlu0 %651
    %655 = vset.pattern.permute.xlu0 0
    %656 = vperm.xlu0 %655, %v410
    %v657 = vpop.permute.xlu0 %656
    %660 = vset.pattern.permute.xlu0 0
    %661 = vperm.xlu0 %660, %v411
    %v662 = vpop.permute.xlu0 %661
    %665 = vset.pattern.permute.xlu0 0
    %666 = vperm.xlu0 %665, %v412
    %v667 = vpop.permute.xlu0 %666
    %670 = vset.pattern.permute.xlu0 0
    %671 = vperm.xlu0 %670, %v413
    %v672 = vpop.permute.xlu0 %671
    %675 = vset.pattern.permute.xlu0 0
    %676 = vperm.xlu0 %675, %v414
    %v677 = vpop.permute.xlu0 %676
    %680 = vset.pattern.permute.xlu0 0
    %681 = vperm.xlu0 %680, %v415
    %v682 = vpop.permute.xlu0 %681
    %685 = vset.pattern.permute.xlu0 0
    %686 = vperm.xlu0 %685, %v416
    %v687 = vpop.permute.xlu0 %686
    %690 = vset.pattern.permute.xlu0 0
    %691 = vperm.xlu0 %690, %v417
    %v692 = vpop.permute.xlu0 %691
    %695 = vset.pattern.permute.xlu0 0
    %696 = vperm.xlu0 %695, %v418
    %v697 = vpop.permute.xlu0 %696
    %700 = vset.pattern.permute.xlu0 0
    %701 = vperm.xlu0 %700, %v419
    %v702 = vpop.permute.xlu0 %701
    %705 = vset.pattern.permute.xlu0 0
    %706 = vperm.xlu0 %705, %v420
    %v707 = vpop.permute.xlu0 %706
    %710 = vset.pattern.permute.xlu0 0
    %711 = vperm.xlu0 %710, %v421
    %v712 = vpop.permute.xlu0 %711
    %715 = vset.pattern.permute.xlu0 0
    %716 = vperm.xlu0 %715, %v422
    %v717 = vpop.permute.xlu0 %716
    %720 = vset.pattern.permute.xlu0 0
    %721 = vperm.xlu0 %720, %v423
    %v722 = vpop.permute.xlu0 %721
    %725 = vset.pattern.permute.xlu0 0
    %726 = vperm.xlu0 %725, %v424
    %v727 = vpop.permute.xlu0 %726
    %730 = vset.pattern.permute.xlu0 0
    %731 = vperm.xlu0 %730, %v425
    %v732 = vpop.permute.xlu0 %731
    %735 = vset.pattern.permute.xlu0 0
    %736 = vperm.xlu0 %735, %v426
    %v737 = vpop.permute.xlu0 %736
    %740 = vset.pattern.permute.xlu0 0
    %741 = vperm.xlu0 %740, %v427
    %v742 = vpop.permute.xlu0 %741
    %745 = vset.pattern.permute.xlu0 0
    %746 = vperm.xlu0 %745, %v428
    %v747 = vpop.permute.xlu0 %746
    %v749 = vmul.f32 %v432, 0.0
    %v750 = vmul.f32 %v437, 0.0
    %v751 = vmul.f32 %v364, %v442
    %v752 = vmul.f32 %v181, %v447
    %v753 = vmul.f32 %v183, %v452
    %v754 = vmul.f32 %v185, %v457
    %v755 = vmul.f32 %v187, %v462
    %v756 = vmul.f32 %v189, %v467
    %v757 = vmul.f32 %v191, %v472
    %v758 = vmul.f32 %v193, %v477
    %v759 = vmul.f32 %v195, %v482
    %v760 = vmul.f32 %v197, %v487
    %v761 = vmul.f32 %v199, %v492
    %v762 = vmul.f32 %v201, %v497
    %v763 = vmul.f32 %v203, %v502
    %v764 = vmul.f32 %v205, %v507
    %v765 = vmul.f32 %v207, %v512
    %v766 = vmul.f32 %v209, %v517
    %v767 = vmul.f32 %v211, %v522
    %v768 = vmul.f32 %v213, %v527
    %v769 = vmul.f32 %v215, %v532
    %v770 = vmul.f32 %v217, %v537
    %v771 = vmul.f32 %v219, %v542
    %v772 = vmul.f32 %v221, %v547
    %v773 = vmul.f32 %v223, %v552
    %v774 = vmul.f32 %v225, %v557
    %v775 = vmul.f32 %v227, %v562
    %v776 = vmul.f32 %v229, %v567
    %v777 = vmul.f32 %v231, %v572
    %v778 = vmul.f32 %v233, %v577
    %v779 = vmul.f32 %v235, %v582
    %v780 = vmul.f32 %v237, %v587
    %v781 = vmul.f32 %v239, %v592
    %v782 = vmul.f32 %v241, %v597
    %v783 = vmul.f32 %v243, %v602
    %v784 = vmul.f32 %v245, %v607
    %v785 = vmul.f32 %v247, %v612
    %v786 = vmul.f32 %v249, %v617
    %v787 = vmul.f32 %v251, %v622
    %v788 = vmul.f32 %v253, %v627
    %v789 = vmul.f32 %v255, %v632
    %v790 = vmul.f32 %v257, %v637
    %v791 = vmul.f32 %v259, %v642
    %v792 = vmul.f32 %v261, %v647
    %v793 = vmul.f32 %v263, %v652
    %v794 = vmul.f32 %v265, %v657
    %v795 = vmul.f32 %v267, %v662
    %v796 = vmul.f32 %v269, %v667
    %v797 = vmul.f32 %v271, %v672
    %v798 = vmul.f32 %v273, %v677
    %v799 = vmul.f32 %v275, %v682
    %v800 = vmul.f32 %v277, %v687
    %v801 = vmul.f32 %v279, %v692
    %v802 = vmul.f32 %v281, %v697
    %v803 = vmul.f32 %v283, %v702
    %v804 = vmul.f32 %v285, %v707
    %v805 = vmul.f32 %v287, %v712
    %v806 = vmul.f32 %v289, %v717
    %v807 = vmul.f32 %v291, %v722
    %v808 = vmul.f32 %v293, %v727
    %v809 = vmul.f32 %v295, %v732
    %v810 = vmul.f32 %v297, %v737
    %v811 = vmul.f32 %v299, %v742
    %v812 = vmul.f32 %v301, %v747
    %813 = vset.pattern.permute.xlu0 1
    %814 = vperm.xlu0 %813, %v365
    %v815 = vpop.permute.xlu0 %814
    %817 = vset.pattern.permute.xlu0 1
    %818 = vperm.xlu0 %817, %v366
    %v819 = vpop.permute.xlu0 %818
    %821 = vset.pattern.permute.xlu0 1
    %822 = vperm.xlu0 %821, %v367
    %v823 = vpop.permute.xlu0 %822
    %825 = vset.pattern.permute.xlu0 1
    %826 = vperm.xlu0 %825, %v368
    %v827 = vpop.permute.xlu0 %826
    %829 = vset.pattern.permute.xlu0 1
    %830 = vperm.xlu0 %829, %v369
    %v831 = vpop.permute.xlu0 %830
    %833 = vset.pattern.permute.xlu0 1
    %834 = vperm.xlu0 %833, %v370
    %v835 = vpop.permute.xlu0 %834
    %837 = vset.pattern.permute.xlu0 1
    %838 = vperm.xlu0 %837, %v371
    %v839 = vpop.permute.xlu0 %838
    %841 = vset.pattern.permute.xlu0 1
    %842 = vperm.xlu0 %841, %v372
    %v843 = vpop.permute.xlu0 %842
    %845 = vset.pattern.permute.xlu0 1
    %846 = vperm.xlu0 %845, %v373
    %v847 = vpop.permute.xlu0 %846
    %849 = vset.pattern.permute.xlu0 1
    %850 = vperm.xlu0 %849, %v374
    %v851 = vpop.permute.xlu0 %850
    %853 = vset.pattern.permute.xlu0 1
    %854 = vperm.xlu0 %853, %v375
    %v855 = vpop.permute.xlu0 %854
    %857 = vset.pattern.permute.xlu0 1
    %858 = vperm.xlu0 %857, %v376
    %v859 = vpop.permute.xlu0 %858
    %861 = vset.pattern.permute.xlu0 1
    %862 = vperm.xlu0 %861, %v377
    %v863 = vpop.permute.xlu0 %862
    %865 = vset.pattern.permute.xlu0 1
    %866 = vperm.xlu0 %865, %v378
    %v867 = vpop.permute.xlu0 %866
    %869 = vset.pattern.permute.xlu0 1
    %870 = vperm.xlu0 %869, %v379
    %v871 = vpop.permute.xlu0 %870
    %873 = vset.pattern.permute.xlu0 1
    %874 = vperm.xlu0 %873, %v380
    %v875 = vpop.permute.xlu0 %874
    %877 = vset.pattern.permute.xlu0 1
    %878 = vperm.xlu0 %877, %v381
    %v879 = vpop.permute.xlu0 %878
    %881 = vset.pattern.permute.xlu0 1
    %882 = vperm.xlu0 %881, %v382
    %v883 = vpop.permute.xlu0 %882
    %885 = vset.pattern.permute.xlu0 1
    %886 = vperm.xlu0 %885, %v383
    %v887 = vpop.permute.xlu0 %886
    %889 = vset.pattern.permute.xlu0 1
    %890 = vperm.xlu0 %889, %v384
    %v891 = vpop.permute.xlu0 %890
    %893 = vset.pattern.permute.xlu0 1
    %894 = vperm.xlu0 %893, %v385
    %v895 = vpop.permute.xlu0 %894
    %897 = vset.pattern.permute.xlu0 1
    %898 = vperm.xlu0 %897, %v386
    %v899 = vpop.permute.xlu0 %898
    %901 = vset.pattern.permute.xlu0 1
    %902 = vperm.xlu0 %901, %v387
    %v903 = vpop.permute.xlu0 %902
    %905 = vset.pattern.permute.xlu0 1
    %906 = vperm.xlu0 %905, %v388
    %v907 = vpop.permute.xlu0 %906
    %909 = vset.pattern.permute.xlu0 1
    %910 = vperm.xlu0 %909, %v389
    %v911 = vpop.permute.xlu0 %910
    %913 = vset.pattern.permute.xlu0 1
    %914 = vperm.xlu0 %913, %v390
    %v915 = vpop.permute.xlu0 %914
    %917 = vset.pattern.permute.xlu0 1
    %918 = vperm.xlu0 %917, %v391
    %v919 = vpop.permute.xlu0 %918
    %921 = vset.pattern.permute.xlu0 1
    %922 = vperm.xlu0 %921, %v392
    %v923 = vpop.permute.xlu0 %922
    %925 = vset.pattern.permute.xlu0 1
    %926 = vperm.xlu0 %925, %v393
    %v927 = vpop.permute.xlu0 %926
    %929 = vset.pattern.permute.xlu0 1
    %930 = vperm.xlu0 %929, %v394
    %v931 = vpop.permute.xlu0 %930
    %933 = vset.pattern.permute.xlu0 1
    %934 = vperm.xlu0 %933, %v395
    %v935 = vpop.permute.xlu0 %934
    %937 = vset.pattern.permute.xlu0 1
    %938 = vperm.xlu0 %937, %v396
    %v939 = vpop.permute.xlu0 %938
    %941 = vset.pattern.permute.xlu0 1
    %942 = vperm.xlu0 %941, %v397
    %v943 = vpop.permute.xlu0 %942
    %945 = vset.pattern.permute.xlu0 1
    %946 = vperm.xlu0 %945, %v398
    %v947 = vpop.permute.xlu0 %946
    %949 = vset.pattern.permute.xlu0 1
    %950 = vperm.xlu0 %949, %v399
    %v951 = vpop.permute.xlu0 %950
    %953 = vset.pattern.permute.xlu0 1
    %954 = vperm.xlu0 %953, %v400
    %v955 = vpop.permute.xlu0 %954
    %957 = vset.pattern.permute.xlu0 1
    %958 = vperm.xlu0 %957, %v401
    %v959 = vpop.permute.xlu0 %958
    %961 = vset.pattern.permute.xlu0 1
    %962 = vperm.xlu0 %961, %v402
    %v963 = vpop.permute.xlu0 %962
    %965 = vset.pattern.permute.xlu0 1
    %966 = vperm.xlu0 %965, %v403
    %v967 = vpop.permute.xlu0 %966
    %969 = vset.pattern.permute.xlu0 1
    %970 = vperm.xlu0 %969, %v404
    %v971 = vpop.permute.xlu0 %970
    %973 = vset.pattern.permute.xlu0 1
    %974 = vperm.xlu0 %973, %v405
    %v975 = vpop.permute.xlu0 %974
    %977 = vset.pattern.permute.xlu0 1
    %978 = vperm.xlu0 %977, %v406
    %v979 = vpop.permute.xlu0 %978
    %981 = vset.pattern.permute.xlu0 1
    %982 = vperm.xlu0 %981, %v407
    %v983 = vpop.permute.xlu0 %982
    %985 = vset.pattern.permute.xlu0 1
    %986 = vperm.xlu0 %985, %v408
    %v987 = vpop.permute.xlu0 %986
    %989 = vset.pattern.permute.xlu0 1
    %990 = vperm.xlu0 %989, %v409
    %v991 = vpop.permute.xlu0 %990
    %993 = vset.pattern.permute.xlu0 1
    %994 = vperm.xlu0 %993, %v410
    %v995 = vpop.permute.xlu0 %994
    %997 = vset.pattern.permute.xlu0 1
    %998 = vperm.xlu0 %997, %v411
    %v999 = vpop.permute.xlu0 %998
    %1001 = vset.pattern.permute.xlu0 1
    %1002 = vperm.xlu0 %1001, %v412
    %v1003 = vpop.permute.xlu0 %1002
    %1005 = vset.pattern.permute.xlu0 1
    %1006 = vperm.xlu0 %1005, %v413
    %v1007 = vpop.permute.xlu0 %1006
    %1009 = vset.pattern.permute.xlu0 1
    %1010 = vperm.xlu0 %1009, %v414
    %v1011 = vpop.permute.xlu0 %1010
    %1013 = vset.pattern.permute.xlu0 1
    %1014 = vperm.xlu0 %1013, %v415
    %v1015 = vpop.permute.xlu0 %1014
    %1017 = vset.pattern.permute.xlu0 1
    %1018 = vperm.xlu0 %1017, %v416
    %v1019 = vpop.permute.xlu0 %1018
    %1021 = vset.pattern.permute.xlu0 1
    %1022 = vperm.xlu0 %1021, %v417
    %v1023 = vpop.permute.xlu0 %1022
    %1025 = vset.pattern.permute.xlu0 1
    %1026 = vperm.xlu0 %1025, %v418
    %v1027 = vpop.permute.xlu0 %1026
    %1029 = vset.pattern.permute.xlu0 1
    %1030 = vperm.xlu0 %1029, %v419
    %v1031 = vpop.permute.xlu0 %1030
    %1033 = vset.pattern.permute.xlu0 1
    %1034 = vperm.xlu0 %1033, %v420
    %v1035 = vpop.permute.xlu0 %1034
    %1037 = vset.pattern.permute.xlu0 1
    %1038 = vperm.xlu0 %1037, %v421
    %v1039 = vpop.permute.xlu0 %1038
    %1041 = vset.pattern.permute.xlu0 1
    %1042 = vperm.xlu0 %1041, %v422
    %v1043 = vpop.permute.xlu0 %1042
    %1045 = vset.pattern.permute.xlu0 1
    %1046 = vperm.xlu0 %1045, %v423
    %v1047 = vpop.permute.xlu0 %1046
    %1049 = vset.pattern.permute.xlu0 1
    %1050 = vperm.xlu0 %1049, %v424
    %v1051 = vpop.permute.xlu0 %1050
    %1053 = vset.pattern.permute.xlu0 1
    %1054 = vperm.xlu0 %1053, %v425
    %v1055 = vpop.permute.xlu0 %1054
    %1057 = vset.pattern.permute.xlu0 1
    %1058 = vperm.xlu0 %1057, %v426
    %v1059 = vpop.permute.xlu0 %1058
    %1061 = vset.pattern.permute.xlu0 1
    %1062 = vperm.xlu0 %1061, %v427
    %v1063 = vpop.permute.xlu0 %1062
    %1065 = vset.pattern.permute.xlu0 1
    %1066 = vperm.xlu0 %1065, %v428
    %v1067 = vpop.permute.xlu0 %1066
    %v1069 = vmul.f32 %v815, 0.0
    %v1070 = vmul.f32 %v819, 0.0
    %v1071 = vmul.f32 %v52, %v823
    %v1072 = vmul.f32 %v53, %v827
    %v1073 = vmul.f32 %v54, %v831
    %v1074 = vmul.f32 %v55, %v835
    %v1075 = vmul.f32 %v56, %v839
    %v1076 = vmul.f32 %v57, %v843
    %v1077 = vmul.f32 %v58, %v847
    %v1078 = vmul.f32 %v59, %v851
    %v1079 = vmul.f32 %v60, %v855
    %v1080 = vmul.f32 %v61, %v859
    %v1081 = vmul.f32 %v62, %v863
    %v1082 = vmul.f32 %v63, %v867
    %v1083 = vmul.f32 %v64, %v871
    %v1084 = vmul.f32 %v65, %v875
    %v1085 = vmul.f32 %v66, %v879
    %v1086 = vmul.f32 %v67, %v883
    %v1087 = vmul.f32 %v68, %v887
    %v1088 = vmul.f32 %v69, %v891
    %v1089 = vmul.f32 %v70, %v895
    %v1090 = vmul.f32 %v71, %v899
    %v1091 = vmul.f32 %v72, %v903
    %v1092 = vmul.f32 %v73, %v907
    %v1093 = vmul.f32 %v74, %v911
    %v1094 = vmul.f32 %v75, %v915
    %v1095 = vmul.f32 %v76, %v919
    %v1096 = vmul.f32 %v77, %v923
    %v1097 = vmul.f32 %v78, %v927
    %v1098 = vmul.f32 %v79, %v931
    %v1099 = vmul.f32 %v80, %v935
    %v1100 = vmul.f32 %v81, %v939
    %v1101 = vmul.f32 %v82, %v943
    %v1102 = vmul.f32 %v83, %v947
    %v1103 = vmul.f32 %v84, %v951
    %v1104 = vmul.f32 %v85, %v955
    %v1105 = vmul.f32 %v86, %v959
    %v1106 = vmul.f32 %v87, %v963
    %v1107 = vmul.f32 %v88, %v967
    %v1108 = vmul.f32 %v89, %v971
    %v1109 = vmul.f32 %v90, %v975
    %v1110 = vmul.f32 %v91, %v979
    %v1111 = vmul.f32 %v92, %v983
    %v1112 = vmul.f32 %v93, %v987
    %v1113 = vmul.f32 %v94, %v991
    %v1114 = vmul.f32 %v95, %v995
    %v1115 = vmul.f32 %v96, %v999
    %v1116 = vmul.f32 %v97, %v1003
    %v1117 = vmul.f32 %v98, %v1007
    %v1118 = vmul.f32 %v99, %v1011
    %v1119 = vmul.f32 %v100, %v1015
    %v1120 = vmul.f32 %v101, %v1019
    %v1121 = vmul.f32 %v102, %v1023
    %v1122 = vmul.f32 %v103, %v1027
    %v1123 = vmul.f32 %v104, %v1031
    %v1124 = vmul.f32 %v105, %v1035
    %v1125 = vmul.f32 %v106, %v1039
    %v1126 = vmul.f32 %v107, %v1043
    %v1127 = vmul.f32 %v108, %v1047
    %v1128 = vmul.f32 %v109, %v1051
    %v1129 = vmul.f32 %v110, %v1055
    %v1130 = vmul.f32 %v111, %v1059
    %v1131 = vmul.f32 %v112, %v1063
    %v1132 = vmul.f32 %v113, %v1067
    %vm1134 = vcmask 1046528
    %v1135 = vrot.slane %v52, 1
    %v1136 = vrot.slane %v53, 1
    %v1137 = vsel %vm1134, %v1135, %v1136
    %v1138 = vrot.slane %v54, 1
    %v1139 = vsel %vm1134, %v1136, %v1138
    %v1140 = vrot.slane %v55, 1
    %v1141 = vsel %vm1134, %v1138, %v1140
    %v1142 = vrot.slane %v56, 1
    %v1143 = vsel %vm1134, %v1140, %v1142
    %v1144 = vrot.slane %v57, 1
    %v1145 = vsel %vm1134, %v1142, %v1144
    %v1146 = vrot.slane %v58, 1
    %v1147 = vsel %vm1134, %v1144, %v1146
    %v1148 = vrot.slane %v59, 1
    %v1149 = vsel %vm1134, %v1146, %v1148
    %v1150 = vrot.slane %v60, 1
    %v1151 = vsel %vm1134, %v1148, %v1150
    %v1152 = vrot.slane %v61, 1
    %v1153 = vsel %vm1134, %v1150, %v1152
    %v1154 = vrot.slane %v62, 1
    %v1155 = vsel %vm1134, %v1152, %v1154
    %v1156 = vrot.slane %v63, 1
    %v1157 = vsel %vm1134, %v1154, %v1156
    %v1158 = vrot.slane %v64, 1
    %v1159 = vsel %vm1134, %v1156, %v1158
    %v1160 = vrot.slane %v65, 1
    %v1161 = vsel %vm1134, %v1158, %v1160
    %v1162 = vrot.slane %v66, 1
    %v1163 = vsel %vm1134, %v1160, %v1162
    %v1164 = vrot.slane %v67, 1
    %v1165 = vsel %vm1134, %v1162, %v1164
    %v1166 = vrot.slane %v68, 1
    %v1167 = vsel %vm1134, %v1164, %v1166
    %v1168 = vrot.slane %v69, 1
    %v1169 = vsel %vm1134, %v1166, %v1168
    %v1170 = vrot.slane %v70, 1
    %v1171 = vsel %vm1134, %v1168, %v1170
    %v1172 = vrot.slane %v71, 1
    %v1173 = vsel %vm1134, %v1170, %v1172
    %v1174 = vrot.slane %v72, 1
    %v1175 = vsel %vm1134, %v1172, %v1174
    %v1176 = vrot.slane %v73, 1
    %v1177 = vsel %vm1134, %v1174, %v1176
    %v1178 = vrot.slane %v74, 1
    %v1179 = vsel %vm1134, %v1176, %v1178
    %v1180 = vrot.slane %v75, 1
    %v1181 = vsel %vm1134, %v1178, %v1180
    %v1182 = vrot.slane %v76, 1
    %v1183 = vsel %vm1134, %v1180, %v1182
    %v1184 = vrot.slane %v77, 1
    %v1185 = vsel %vm1134, %v1182, %v1184
    %v1186 = vrot.slane %v78, 1
    %v1187 = vsel %vm1134, %v1184, %v1186
    %v1188 = vrot.slane %v79, 1
    %v1189 = vsel %vm1134, %v1186, %v1188
    %v1190 = vrot.slane %v80, 1
    %v1191 = vsel %vm1134, %v1188, %v1190
    %v1192 = vrot.slane %v81, 1
    %v1193 = vsel %vm1134, %v1190, %v1192
    %v1194 = vrot.slane %v82, 1
    %v1195 = vsel %vm1134, %v1192, %v1194
    %v1196 = vrot.slane %v83, 1
    %v1197 = vsel %vm1134, %v1194, %v1196
    %v1198 = vrot.slane %v84, 1
    %v1199 = vsel %vm1134, %v1196, %v1198
    %v1200 = vrot.slane %v85, 1
    %v1201 = vsel %vm1134, %v1198, %v1200
    %v1202 = vrot.slane %v86, 1
    %v1203 = vsel %vm1134, %v1200, %v1202
    %v1204 = vrot.slane %v87, 1
    %v1205 = vsel %vm1134, %v1202, %v1204
    %v1206 = vrot.slane %v88, 1
    %v1207 = vsel %vm1134, %v1204, %v1206
    %v1208 = vrot.slane %v89, 1
    %v1209 = vsel %vm1134, %v1206, %v1208
    %v1210 = vrot.slane %v90, 1
    %v1211 = vsel %vm1134, %v1208, %v1210
    %v1212 = vrot.slane %v91, 1
    %v1213 = vsel %vm1134, %v1210, %v1212
    %v1214 = vrot.slane %v92, 1
    %v1215 = vsel %vm1134, %v1212, %v1214
    %v1216 = vrot.slane %v93, 1
    %v1217 = vsel %vm1134, %v1214, %v1216
    %v1218 = vrot.slane %v94, 1
    %v1219 = vsel %vm1134, %v1216, %v1218
    %v1220 = vrot.slane %v95, 1
    %v1221 = vsel %vm1134, %v1218, %v1220
    %v1222 = vrot.slane %v96, 1
    %v1223 = vsel %vm1134, %v1220, %v1222
    %v1224 = vrot.slane %v97, 1
    %v1225 = vsel %vm1134, %v1222, %v1224
    %v1226 = vrot.slane %v98, 1
    %v1227 = vsel %vm1134, %v1224, %v1226
    %v1228 = vrot.slane %v99, 1
    %v1229 = vsel %vm1134, %v1226, %v1228
    %v1230 = vrot.slane %v100, 1
    %v1231 = vsel %vm1134, %v1228, %v1230
    %v1232 = vrot.slane %v101, 1
    %v1233 = vsel %vm1134, %v1230, %v1232
    %v1234 = vrot.slane %v102, 1
    %v1235 = vsel %vm1134, %v1232, %v1234
    %v1236 = vrot.slane %v103, 1
    %v1237 = vsel %vm1134, %v1234, %v1236
    %v1238 = vrot.slane %v104, 1
    %v1239 = vsel %vm1134, %v1236, %v1238
    %v1240 = vrot.slane %v105, 1
    %v1241 = vsel %vm1134, %v1238, %v1240
    %v1242 = vrot.slane %v106, 1
    %v1243 = vsel %vm1134, %v1240, %v1242
    %v1244 = vrot.slane %v107, 1
    %v1245 = vsel %vm1134, %v1242, %v1244
    %v1246 = vrot.slane %v108, 1
    %v1247 = vsel %vm1134, %v1244, %v1246
    %v1248 = vrot.slane %v109, 1
    %v1249 = vsel %vm1134, %v1246, %v1248
    %v1250 = vrot.slane %v110, 1
    %v1251 = vsel %vm1134, %v1248, %v1250
    %v1252 = vrot.slane %v111, 1
    %v1253 = vsel %vm1134, %v1250, %v1252
    %v1254 = vrot.slane %v112, 1
    %v1255 = vsel %vm1134, %v1252, %v1254
    %v1256 = vrot.slane %v113, 1
    %v1257 = vsel %vm1134, %v1254, %v1256
    %v1258 = vrot.slane %v114, 1
    %v1259 = vsel %vm1134, %v1256, %v1258
    %v1323 = vsel %vm1134, 0.0, %v1135
    %1324 = vset.pattern.permute.xlu0 2
    %1325 = vperm.xlu0 %1324, %v365
    %v1326 = vpop.permute.xlu0 %1325
    %1328 = vset.pattern.permute.xlu0 2
    %1329 = vperm.xlu0 %1328, %v366
    %v1330 = vpop.permute.xlu0 %1329
    %1332 = vset.pattern.permute.xlu0 2
    %1333 = vperm.xlu0 %1332, %v367
    %v1334 = vpop.permute.xlu0 %1333
    %1336 = vset.pattern.permute.xlu0 2
    %1337 = vperm.xlu0 %1336, %v368
    %v1338 = vpop.permute.xlu0 %1337
    %1340 = vset.pattern.permute.xlu0 2
    %1341 = vperm.xlu0 %1340, %v369
    %v1342 = vpop.permute.xlu0 %1341
    %1344 = vset.pattern.permute.xlu0 2
    %1345 = vperm.xlu0 %1344, %v370
    %v1346 = vpop.permute.xlu0 %1345
    %1348 = vset.pattern.permute.xlu0 2
    %1349 = vperm.xlu0 %1348, %v371
    %v1350 = vpop.permute.xlu0 %1349
    %1352 = vset.pattern.permute.xlu0 2
    %1353 = vperm.xlu0 %1352, %v372
    %v1354 = vpop.permute.xlu0 %1353
    %1356 = vset.pattern.permute.xlu0 2
    %1357 = vperm.xlu0 %1356, %v373
    %v1358 = vpop.permute.xlu0 %1357
    %1360 = vset.pattern.permute.xlu0 2
    %1361 = vperm.xlu0 %1360, %v374
    %v1362 = vpop.permute.xlu0 %1361
    %1364 = vset.pattern.permute.xlu0 2
    %1365 = vperm.xlu0 %1364, %v375
    %v1366 = vpop.permute.xlu0 %1365
    %1368 = vset.pattern.permute.xlu0 2
    %1369 = vperm.xlu0 %1368, %v376
    %v1370 = vpop.permute.xlu0 %1369
    %1372 = vset.pattern.permute.xlu0 2
    %1373 = vperm.xlu0 %1372, %v377
    %v1374 = vpop.permute.xlu0 %1373
    %1376 = vset.pattern.permute.xlu0 2
    %1377 = vperm.xlu0 %1376, %v378
    %v1378 = vpop.permute.xlu0 %1377
    %1380 = vset.pattern.permute.xlu0 2
    %1381 = vperm.xlu0 %1380, %v379
    %v1382 = vpop.permute.xlu0 %1381
    %1384 = vset.pattern.permute.xlu0 2
    %1385 = vperm.xlu0 %1384, %v380
    %v1386 = vpop.permute.xlu0 %1385
    %1388 = vset.pattern.permute.xlu0 2
    %1389 = vperm.xlu0 %1388, %v381
    %v1390 = vpop.permute.xlu0 %1389
    %1392 = vset.pattern.permute.xlu0 2
    %1393 = vperm.xlu0 %1392, %v382
    %v1394 = vpop.permute.xlu0 %1393
    %1396 = vset.pattern.permute.xlu0 2
    %1397 = vperm.xlu0 %1396, %v383
    %v1398 = vpop.permute.xlu0 %1397
    %1400 = vset.pattern.permute.xlu0 2
    %1401 = vperm.xlu0 %1400, %v384
    %v1402 = vpop.permute.xlu0 %1401
    %1404 = vset.pattern.permute.xlu0 2
    %1405 = vperm.xlu0 %1404, %v385
    %v1406 = vpop.permute.xlu0 %1405
    %1408 = vset.pattern.permute.xlu0 2
    %1409 = vperm.xlu0 %1408, %v386
    %v1410 = vpop.permute.xlu0 %1409
    %1412 = vset.pattern.permute.xlu0 2
    %1413 = vperm.xlu0 %1412, %v387
    %v1414 = vpop.permute.xlu0 %1413
    %1416 = vset.pattern.permute.xlu0 2
    %1417 = vperm.xlu0 %1416, %v388
    %v1418 = vpop.permute.xlu0 %1417
    %1420 = vset.pattern.permute.xlu0 2
    %1421 = vperm.xlu0 %1420, %v389
    %v1422 = vpop.permute.xlu0 %1421
    %1424 = vset.pattern.permute.xlu0 2
    %1425 = vperm.xlu0 %1424, %v390
    %v1426 = vpop.permute.xlu0 %1425
    %1428 = vset.pattern.permute.xlu0 2
    %1429 = vperm.xlu0 %1428, %v391
    %v1430 = vpop.permute.xlu0 %1429
    %1432 = vset.pattern.permute.xlu0 2
    %1433 = vperm.xlu0 %1432, %v392
    %v1434 = vpop.permute.xlu0 %1433
    %1436 = vset.pattern.permute.xlu0 2
    %1437 = vperm.xlu0 %1436, %v393
    %v1438 = vpop.permute.xlu0 %1437
    %1440 = vset.pattern.permute.xlu0 2
    %1441 = vperm.xlu0 %1440, %v394
    %v1442 = vpop.permute.xlu0 %1441
    %1444 = vset.pattern.permute.xlu0 2
    %1445 = vperm.xlu0 %1444, %v395
    %v1446 = vpop.permute.xlu0 %1445
    %1448 = vset.pattern.permute.xlu0 2
    %1449 = vperm.xlu0 %1448, %v396
    %v1450 = vpop.permute.xlu0 %1449
    %1452 = vset.pattern.permute.xlu0 2
    %1453 = vperm.xlu0 %1452, %v397
    %v1454 = vpop.permute.xlu0 %1453
    %1456 = vset.pattern.permute.xlu0 2
    %1457 = vperm.xlu0 %1456, %v398
    %v1458 = vpop.permute.xlu0 %1457
    %1460 = vset.pattern.permute.xlu0 2
    %1461 = vperm.xlu0 %1460, %v399
    %v1462 = vpop.permute.xlu0 %1461
    %1464 = vset.pattern.permute.xlu0 2
    %1465 = vperm.xlu0 %1464, %v400
    %v1466 = vpop.permute.xlu0 %1465
    %1468 = vset.pattern.permute.xlu0 2
    %1469 = vperm.xlu0 %1468, %v401
    %v1470 = vpop.permute.xlu0 %1469
    %1472 = vset.pattern.permute.xlu0 2
    %1473 = vperm.xlu0 %1472, %v402
    %v1474 = vpop.permute.xlu0 %1473
    %1476 = vset.pattern.permute.xlu0 2
    %1477 = vperm.xlu0 %1476, %v403
    %v1478 = vpop.permute.xlu0 %1477
    %1480 = vset.pattern.permute.xlu0 2
    %1481 = vperm.xlu0 %1480, %v404
    %v1482 = vpop.permute.xlu0 %1481
    %1484 = vset.pattern.permute.xlu0 2
    %1485 = vperm.xlu0 %1484, %v405
    %v1486 = vpop.permute.xlu0 %1485
    %1488 = vset.pattern.permute.xlu0 2
    %1489 = vperm.xlu0 %1488, %v406
    %v1490 = vpop.permute.xlu0 %1489
    %1492 = vset.pattern.permute.xlu0 2
    %1493 = vperm.xlu0 %1492, %v407
    %v1494 = vpop.permute.xlu0 %1493
    %1496 = vset.pattern.permute.xlu0 2
    %1497 = vperm.xlu0 %1496, %v408
    %v1498 = vpop.permute.xlu0 %1497
    %1500 = vset.pattern.permute.xlu0 2
    %1501 = vperm.xlu0 %1500, %v409
    %v1502 = vpop.permute.xlu0 %1501
    %1504 = vset.pattern.permute.xlu0 2
    %1505 = vperm.xlu0 %1504, %v410
    %v1506 = vpop.permute.xlu0 %1505
    %1508 = vset.pattern.permute.xlu0 2
    %1509 = vperm.xlu0 %1508, %v411
    %v1510 = vpop.permute.xlu0 %1509
    %1512 = vset.pattern.permute.xlu0 2
    %1513 = vperm.xlu0 %1512, %v412
    %v1514 = vpop.permute.xlu0 %1513
    %1516 = vset.pattern.permute.xlu0 2
    %1517 = vperm.xlu0 %1516, %v413
    %v1518 = vpop.permute.xlu0 %1517
    %1520 = vset.pattern.permute.xlu0 2
    %1521 = vperm.xlu0 %1520, %v414
    %v1522 = vpop.permute.xlu0 %1521
    %1524 = vset.pattern.permute.xlu0 2
    %1525 = vperm.xlu0 %1524, %v415
    %v1526 = vpop.permute.xlu0 %1525
    %1528 = vset.pattern.permute.xlu0 2
    %1529 = vperm.xlu0 %1528, %v416
    %v1530 = vpop.permute.xlu0 %1529
    %1532 = vset.pattern.permute.xlu0 2
    %1533 = vperm.xlu0 %1532, %v417
    %v1534 = vpop.permute.xlu0 %1533
    %1536 = vset.pattern.permute.xlu0 2
    %1537 = vperm.xlu0 %1536, %v418
    %v1538 = vpop.permute.xlu0 %1537
    %1540 = vset.pattern.permute.xlu0 2
    %1541 = vperm.xlu0 %1540, %v419
    %v1542 = vpop.permute.xlu0 %1541
    %1544 = vset.pattern.permute.xlu0 2
    %1545 = vperm.xlu0 %1544, %v420
    %v1546 = vpop.permute.xlu0 %1545
    %1548 = vset.pattern.permute.xlu0 2
    %1549 = vperm.xlu0 %1548, %v421
    %v1550 = vpop.permute.xlu0 %1549
    %1552 = vset.pattern.permute.xlu0 2
    %1553 = vperm.xlu0 %1552, %v422
    %v1554 = vpop.permute.xlu0 %1553
    %1556 = vset.pattern.permute.xlu0 2
    %1557 = vperm.xlu0 %1556, %v423
    %v1558 = vpop.permute.xlu0 %1557
    %1560 = vset.pattern.permute.xlu0 2
    %1561 = vperm.xlu0 %1560, %v424
    %v1562 = vpop.permute.xlu0 %1561
    %1564 = vset.pattern.permute.xlu0 2
    %1565 = vperm.xlu0 %1564, %v425
    %v1566 = vpop.permute.xlu0 %1565
    %1568 = vset.pattern.permute.xlu0 2
    %1569 = vperm.xlu0 %1568, %v426
    %v1570 = vpop.permute.xlu0 %1569
    %1572 = vset.pattern.permute.xlu0 2
    %1573 = vperm.xlu0 %1572, %v427
    %v1574 = vpop.permute.xlu0 %1573
    %1576 = vset.pattern.permute.xlu0 2
    %1577 = vperm.xlu0 %1576, %v428
    %v1578 = vpop.permute.xlu0 %1577
    %v1580 = vmul.f32 %v1326, 0.0
    %v1581 = vmul.f32 %v1323, %v1330
    %v1582 = vmul.f32 %v1137, %v1334
    %v1583 = vmul.f32 %v1139, %v1338
    %v1584 = vmul.f32 %v1141, %v1342
    %v1585 = vmul.f32 %v1143, %v1346
    %v1586 = vmul.f32 %v1145, %v1350
    %v1587 = vmul.f32 %v1147, %v1354
    %v1588 = vmul.f32 %v1149, %v1358
    %v1589 = vmul.f32 %v1151, %v1362
    %v1590 = vmul.f32 %v1153, %v1366
    %v1591 = vmul.f32 %v1155, %v1370
    %v1592 = vmul.f32 %v1157, %v1374
    %v1593 = vmul.f32 %v1159, %v1378
    %v1594 = vmul.f32 %v1161, %v1382
    %v1595 = vmul.f32 %v1163, %v1386
    %v1596 = vmul.f32 %v1165, %v1390
    %v1597 = vmul.f32 %v1167, %v1394
    %v1598 = vmul.f32 %v1169, %v1398
    %v1599 = vmul.f32 %v1171, %v1402
    %v1600 = vmul.f32 %v1173, %v1406
    %v1601 = vmul.f32 %v1175, %v1410
    %v1602 = vmul.f32 %v1177, %v1414
    %v1603 = vmul.f32 %v1179, %v1418
    %v1604 = vmul.f32 %v1181, %v1422
    %v1605 = vmul.f32 %v1183, %v1426
    %v1606 = vmul.f32 %v1185, %v1430
    %v1607 = vmul.f32 %v1187, %v1434
    %v1608 = vmul.f32 %v1189, %v1438
    %v1609 = vmul.f32 %v1191, %v1442
    %v1610 = vmul.f32 %v1193, %v1446
    %v1611 = vmul.f32 %v1195, %v1450
    %v1612 = vmul.f32 %v1197, %v1454
    %v1613 = vmul.f32 %v1199, %v1458
    %v1614 = vmul.f32 %v1201, %v1462
    %v1615 = vmul.f32 %v1203, %v1466
    %v1616 = vmul.f32 %v1205, %v1470
    %v1617 = vmul.f32 %v1207, %v1474
    %v1618 = vmul.f32 %v1209, %v1478
    %v1619 = vmul.f32 %v1211, %v1482
    %v1620 = vmul.f32 %v1213, %v1486
    %v1621 = vmul.f32 %v1215, %v1490
    %v1622 = vmul.f32 %v1217, %v1494
    %v1623 = vmul.f32 %v1219, %v1498
    %v1624 = vmul.f32 %v1221, %v1502
    %v1625 = vmul.f32 %v1223, %v1506
    %v1626 = vmul.f32 %v1225, %v1510
    %v1627 = vmul.f32 %v1227, %v1514
    %v1628 = vmul.f32 %v1229, %v1518
    %v1629 = vmul.f32 %v1231, %v1522
    %v1630 = vmul.f32 %v1233, %v1526
    %v1631 = vmul.f32 %v1235, %v1530
    %v1632 = vmul.f32 %v1237, %v1534
    %v1633 = vmul.f32 %v1239, %v1538
    %v1634 = vmul.f32 %v1241, %v1542
    %v1635 = vmul.f32 %v1243, %v1546
    %v1636 = vmul.f32 %v1245, %v1550
    %v1637 = vmul.f32 %v1247, %v1554
    %v1638 = vmul.f32 %v1249, %v1558
    %v1639 = vmul.f32 %v1251, %v1562
    %v1640 = vmul.f32 %v1253, %v1566
    %v1641 = vmul.f32 %v1255, %v1570
    %v1642 = vmul.f32 %v1257, %v1574
    %v1643 = vmul.f32 %v1259, %v1578
    %v1645 = vrot.slane %v114, 7
    %v1646 = vsel %vm178, %v300, %v1645
    %v1647 = vrot.slane %v115, 7
    %v1648 = vsel %vm178, %v1645, %v1647
    %1651 = vset.pattern.permute.xlu0 3
    %1652 = vperm.xlu0 %1651, %v365
    %v1653 = vpop.permute.xlu0 %1652
    %1655 = vset.pattern.permute.xlu0 3
    %1656 = vperm.xlu0 %1655, %v366
    %v1657 = vpop.permute.xlu0 %1656
    %1659 = vset.pattern.permute.xlu0 3
    %1660 = vperm.xlu0 %1659, %v367
    %v1661 = vpop.permute.xlu0 %1660
    %1663 = vset.pattern.permute.xlu0 3
    %1664 = vperm.xlu0 %1663, %v368
    %v1665 = vpop.permute.xlu0 %1664
    %1667 = vset.pattern.permute.xlu0 3
    %1668 = vperm.xlu0 %1667, %v369
    %v1669 = vpop.permute.xlu0 %1668
    %1671 = vset.pattern.permute.xlu0 3
    %1672 = vperm.xlu0 %1671, %v370
    %v1673 = vpop.permute.xlu0 %1672
    %1675 = vset.pattern.permute.xlu0 3
    %1676 = vperm.xlu0 %1675, %v371
    %v1677 = vpop.permute.xlu0 %1676
    %1679 = vset.pattern.permute.xlu0 3
    %1680 = vperm.xlu0 %1679, %v372
    %v1681 = vpop.permute.xlu0 %1680
    %1683 = vset.pattern.permute.xlu0 3
    %1684 = vperm.xlu0 %1683, %v373
    %v1685 = vpop.permute.xlu0 %1684
    %1687 = vset.pattern.permute.xlu0 3
    %1688 = vperm.xlu0 %1687, %v374
    %v1689 = vpop.permute.xlu0 %1688
    %1691 = vset.pattern.permute.xlu0 3
    %1692 = vperm.xlu0 %1691, %v375
    %v1693 = vpop.permute.xlu0 %1692
    %1695 = vset.pattern.permute.xlu0 3
    %1696 = vperm.xlu0 %1695, %v376
    %v1697 = vpop.permute.xlu0 %1696
    %1699 = vset.pattern.permute.xlu0 3
    %1700 = vperm.xlu0 %1699, %v377
    %v1701 = vpop.permute.xlu0 %1700
    %1703 = vset.pattern.permute.xlu0 3
    %1704 = vperm.xlu0 %1703, %v378
    %v1705 = vpop.permute.xlu0 %1704
    %1707 = vset.pattern.permute.xlu0 3
    %1708 = vperm.xlu0 %1707, %v379
    %v1709 = vpop.permute.xlu0 %1708
    %1711 = vset.pattern.permute.xlu0 3
    %1712 = vperm.xlu0 %1711, %v380
    %v1713 = vpop.permute.xlu0 %1712
    %1715 = vset.pattern.permute.xlu0 3
    %1716 = vperm.xlu0 %1715, %v381
    %v1717 = vpop.permute.xlu0 %1716
    %1719 = vset.pattern.permute.xlu0 3
    %1720 = vperm.xlu0 %1719, %v382
    %v1721 = vpop.permute.xlu0 %1720
    %1723 = vset.pattern.permute.xlu0 3
    %1724 = vperm.xlu0 %1723, %v383
    %v1725 = vpop.permute.xlu0 %1724
    %1727 = vset.pattern.permute.xlu0 3
    %1728 = vperm.xlu0 %1727, %v384
    %v1729 = vpop.permute.xlu0 %1728
    %1731 = vset.pattern.permute.xlu0 3
    %1732 = vperm.xlu0 %1731, %v385
    %v1733 = vpop.permute.xlu0 %1732
    %1735 = vset.pattern.permute.xlu0 3
    %1736 = vperm.xlu0 %1735, %v386
    %v1737 = vpop.permute.xlu0 %1736
    %1739 = vset.pattern.permute.xlu0 3
    %1740 = vperm.xlu0 %1739, %v387
    %v1741 = vpop.permute.xlu0 %1740
    %1743 = vset.pattern.permute.xlu0 3
    %1744 = vperm.xlu0 %1743, %v388
    %v1745 = vpop.permute.xlu0 %1744
    %1747 = vset.pattern.permute.xlu0 3
    %1748 = vperm.xlu0 %1747, %v389
    %v1749 = vpop.permute.xlu0 %1748
    %1751 = vset.pattern.permute.xlu0 3
    %1752 = vperm.xlu0 %1751, %v390
    %v1753 = vpop.permute.xlu0 %1752
    %1755 = vset.pattern.permute.xlu0 3
    %1756 = vperm.xlu0 %1755, %v391
    %v1757 = vpop.permute.xlu0 %1756
    %1759 = vset.pattern.permute.xlu0 3
    %1760 = vperm.xlu0 %1759, %v392
    %v1761 = vpop.permute.xlu0 %1760
    %1763 = vset.pattern.permute.xlu0 3
    %1764 = vperm.xlu0 %1763, %v393
    %v1765 = vpop.permute.xlu0 %1764
    %1767 = vset.pattern.permute.xlu0 3
    %1768 = vperm.xlu0 %1767, %v394
    %v1769 = vpop.permute.xlu0 %1768
    %1771 = vset.pattern.permute.xlu0 3
    %1772 = vperm.xlu0 %1771, %v395
    %v1773 = vpop.permute.xlu0 %1772
    %1775 = vset.pattern.permute.xlu0 3
    %1776 = vperm.xlu0 %1775, %v396
    %v1777 = vpop.permute.xlu0 %1776
    %1779 = vset.pattern.permute.xlu0 3
    %1780 = vperm.xlu0 %1779, %v397
    %v1781 = vpop.permute.xlu0 %1780
    %1783 = vset.pattern.permute.xlu0 3
    %1784 = vperm.xlu0 %1783, %v398
    %v1785 = vpop.permute.xlu0 %1784
    %1787 = vset.pattern.permute.xlu0 3
    %1788 = vperm.xlu0 %1787, %v399
    %v1789 = vpop.permute.xlu0 %1788
    %1791 = vset.pattern.permute.xlu0 3
    %1792 = vperm.xlu0 %1791, %v400
    %v1793 = vpop.permute.xlu0 %1792
    %1795 = vset.pattern.permute.xlu0 3
    %1796 = vperm.xlu0 %1795, %v401
    %v1797 = vpop.permute.xlu0 %1796
    %1799 = vset.pattern.permute.xlu0 3
    %1800 = vperm.xlu0 %1799, %v402
    %v1801 = vpop.permute.xlu0 %1800
    %1803 = vset.pattern.permute.xlu0 3
    %1804 = vperm.xlu0 %1803, %v403
    %v1805 = vpop.permute.xlu0 %1804
    %1807 = vset.pattern.permute.xlu0 3
    %1808 = vperm.xlu0 %1807, %v404
    %v1809 = vpop.permute.xlu0 %1808
    %1811 = vset.pattern.permute.xlu0 3
    %1812 = vperm.xlu0 %1811, %v405
    %v1813 = vpop.permute.xlu0 %1812
    %1815 = vset.pattern.permute.xlu0 3
    %1816 = vperm.xlu0 %1815, %v406
    %v1817 = vpop.permute.xlu0 %1816
    %1819 = vset.pattern.permute.xlu0 3
    %1820 = vperm.xlu0 %1819, %v407
    %v1821 = vpop.permute.xlu0 %1820
    %1823 = vset.pattern.permute.xlu0 3
    %1824 = vperm.xlu0 %1823, %v408
    %v1825 = vpop.permute.xlu0 %1824
    %1827 = vset.pattern.permute.xlu0 3
    %1828 = vperm.xlu0 %1827, %v409
    %v1829 = vpop.permute.xlu0 %1828
    %1831 = vset.pattern.permute.xlu0 3
    %1832 = vperm.xlu0 %1831, %v410
    %v1833 = vpop.permute.xlu0 %1832
    %1835 = vset.pattern.permute.xlu0 3
    %1836 = vperm.xlu0 %1835, %v411
    %v1837 = vpop.permute.xlu0 %1836
    %1839 = vset.pattern.permute.xlu0 3
    %1840 = vperm.xlu0 %1839, %v412
    %v1841 = vpop.permute.xlu0 %1840
    %1843 = vset.pattern.permute.xlu0 3
    %1844 = vperm.xlu0 %1843, %v413
    %v1845 = vpop.permute.xlu0 %1844
    %1847 = vset.pattern.permute.xlu0 3
    %1848 = vperm.xlu0 %1847, %v414
    %v1849 = vpop.permute.xlu0 %1848
    %1851 = vset.pattern.permute.xlu0 3
    %1852 = vperm.xlu0 %1851, %v415
    %v1853 = vpop.permute.xlu0 %1852
    %1855 = vset.pattern.permute.xlu0 3
    %1856 = vperm.xlu0 %1855, %v416
    %v1857 = vpop.permute.xlu0 %1856
    %1859 = vset.pattern.permute.xlu0 3
    %1860 = vperm.xlu0 %1859, %v417
    %v1861 = vpop.permute.xlu0 %1860
    %1863 = vset.pattern.permute.xlu0 3
    %1864 = vperm.xlu0 %1863, %v418
    %v1865 = vpop.permute.xlu0 %1864
    %1867 = vset.pattern.permute.xlu0 3
    %1868 = vperm.xlu0 %1867, %v419
    %v1869 = vpop.permute.xlu0 %1868
    %1871 = vset.pattern.permute.xlu0 3
    %1872 = vperm.xlu0 %1871, %v420
    %v1873 = vpop.permute.xlu0 %1872
    %1875 = vset.pattern.permute.xlu0 3
    %1876 = vperm.xlu0 %1875, %v421
    %v1877 = vpop.permute.xlu0 %1876
    %1879 = vset.pattern.permute.xlu0 3
    %1880 = vperm.xlu0 %1879, %v422
    %v1881 = vpop.permute.xlu0 %1880
    %1883 = vset.pattern.permute.xlu0 3
    %1884 = vperm.xlu0 %1883, %v423
    %v1885 = vpop.permute.xlu0 %1884
    %1887 = vset.pattern.permute.xlu0 3
    %1888 = vperm.xlu0 %1887, %v424
    %v1889 = vpop.permute.xlu0 %1888
    %1891 = vset.pattern.permute.xlu0 3
    %1892 = vperm.xlu0 %1891, %v425
    %v1893 = vpop.permute.xlu0 %1892
    %1895 = vset.pattern.permute.xlu0 3
    %1896 = vperm.xlu0 %1895, %v426
    %v1897 = vpop.permute.xlu0 %1896
    %1899 = vset.pattern.permute.xlu0 3
    %1900 = vperm.xlu0 %1899, %v427
    %v1901 = vpop.permute.xlu0 %1900
    %1903 = vset.pattern.permute.xlu0 3
    %1904 = vperm.xlu0 %1903, %v428
    %v1905 = vpop.permute.xlu0 %1904
    %v1907 = vmul.f32 %v364, %v1653
    %v1908 = vmul.f32 %v181, %v1657
    %v1909 = vmul.f32 %v183, %v1661
    %v1910 = vmul.f32 %v185, %v1665
    %v1911 = vmul.f32 %v187, %v1669
    %v1912 = vmul.f32 %v189, %v1673
    %v1913 = vmul.f32 %v191, %v1677
    %v1914 = vmul.f32 %v193, %v1681
    %v1915 = vmul.f32 %v195, %v1685
    %v1916 = vmul.f32 %v197, %v1689
    %v1917 = vmul.f32 %v199, %v1693
    %v1918 = vmul.f32 %v201, %v1697
    %v1919 = vmul.f32 %v203, %v1701
    %v1920 = vmul.f32 %v205, %v1705
    %v1921 = vmul.f32 %v207, %v1709
    %v1922 = vmul.f32 %v209, %v1713
    %v1923 = vmul.f32 %v211, %v1717
    %v1924 = vmul.f32 %v213, %v1721
    %v1925 = vmul.f32 %v215, %v1725
    %v1926 = vmul.f32 %v217, %v1729
    %v1927 = vmul.f32 %v219, %v1733
    %v1928 = vmul.f32 %v221, %v1737
    %v1929 = vmul.f32 %v223, %v1741
    %v1930 = vmul.f32 %v225, %v1745
    %v1931 = vmul.f32 %v227, %v1749
    %v1932 = vmul.f32 %v229, %v1753
    %v1933 = vmul.f32 %v231, %v1757
    %v1934 = vmul.f32 %v233, %v1761
    %v1935 = vmul.f32 %v235, %v1765
    %v1936 = vmul.f32 %v237, %v1769
    %v1937 = vmul.f32 %v239, %v1773
    %v1938 = vmul.f32 %v241, %v1777
    %v1939 = vmul.f32 %v243, %v1781
    %v1940 = vmul.f32 %v245, %v1785
    %v1941 = vmul.f32 %v247, %v1789
    %v1942 = vmul.f32 %v249, %v1793
    %v1943 = vmul.f32 %v251, %v1797
    %v1944 = vmul.f32 %v253, %v1801
    %v1945 = vmul.f32 %v255, %v1805
    %v1946 = vmul.f32 %v257, %v1809
    %v1947 = vmul.f32 %v259, %v1813
    %v1948 = vmul.f32 %v261, %v1817
    %v1949 = vmul.f32 %v263, %v1821
    %v1950 = vmul.f32 %v265, %v1825
    %v1951 = vmul.f32 %v267, %v1829
    %v1952 = vmul.f32 %v269, %v1833
    %v1953 = vmul.f32 %v271, %v1837
    %v1954 = vmul.f32 %v273, %v1841
    %v1955 = vmul.f32 %v275, %v1845
    %v1956 = vmul.f32 %v277, %v1849
    %v1957 = vmul.f32 %v279, %v1853
    %v1958 = vmul.f32 %v281, %v1857
    %v1959 = vmul.f32 %v283, %v1861
    %v1960 = vmul.f32 %v285, %v1865
    %v1961 = vmul.f32 %v287, %v1869
    %v1962 = vmul.f32 %v289, %v1873
    %v1963 = vmul.f32 %v291, %v1877
    %v1964 = vmul.f32 %v293, %v1881
    %v1965 = vmul.f32 %v295, %v1885
    %v1966 = vmul.f32 %v297, %v1889
    %v1967 = vmul.f32 %v299, %v1893
    %v1968 = vmul.f32 %v301, %v1897
    %v1969 = vmul.f32 %v1646, %v1901
    %v1970 = vmul.f32 %v1648, %v1905
    %1971 = vset.pattern.permute.xlu0 4
    %1972 = vperm.xlu0 %1971, %v365
    %v1973 = vpop.permute.xlu0 %1972
    %1975 = vset.pattern.permute.xlu0 4
    %1976 = vperm.xlu0 %1975, %v366
    %v1977 = vpop.permute.xlu0 %1976
    %1979 = vset.pattern.permute.xlu0 4
    %1980 = vperm.xlu0 %1979, %v367
    %v1981 = vpop.permute.xlu0 %1980
    %1983 = vset.pattern.permute.xlu0 4
    %1984 = vperm.xlu0 %1983, %v368
    %v1985 = vpop.permute.xlu0 %1984
    %1987 = vset.pattern.permute.xlu0 4
    %1988 = vperm.xlu0 %1987, %v369
    %v1989 = vpop.permute.xlu0 %1988
    %1991 = vset.pattern.permute.xlu0 4
    %1992 = vperm.xlu0 %1991, %v370
    %v1993 = vpop.permute.xlu0 %1992
    %1995 = vset.pattern.permute.xlu0 4
    %1996 = vperm.xlu0 %1995, %v371
    %v1997 = vpop.permute.xlu0 %1996
    %1999 = vset.pattern.permute.xlu0 4
    %2000 = vperm.xlu0 %1999, %v372
    %v2001 = vpop.permute.xlu0 %2000
    %2003 = vset.pattern.permute.xlu0 4
    %2004 = vperm.xlu0 %2003, %v373
    %v2005 = vpop.permute.xlu0 %2004
    %2007 = vset.pattern.permute.xlu0 4
    %2008 = vperm.xlu0 %2007, %v374
    %v2009 = vpop.permute.xlu0 %2008
    %2011 = vset.pattern.permute.xlu0 4
    %2012 = vperm.xlu0 %2011, %v375
    %v2013 = vpop.permute.xlu0 %2012
    %2015 = vset.pattern.permute.xlu0 4
    %2016 = vperm.xlu0 %2015, %v376
    %v2017 = vpop.permute.xlu0 %2016
    %2019 = vset.pattern.permute.xlu0 4
    %2020 = vperm.xlu0 %2019, %v377
    %v2021 = vpop.permute.xlu0 %2020
    %2023 = vset.pattern.permute.xlu0 4
    %2024 = vperm.xlu0 %2023, %v378
    %v2025 = vpop.permute.xlu0 %2024
    %2027 = vset.pattern.permute.xlu0 4
    %2028 = vperm.xlu0 %2027, %v379
    %v2029 = vpop.permute.xlu0 %2028
    %2031 = vset.pattern.permute.xlu0 4
    %2032 = vperm.xlu0 %2031, %v380
    %v2033 = vpop.permute.xlu0 %2032
    %2035 = vset.pattern.permute.xlu0 4
    %2036 = vperm.xlu0 %2035, %v381
    %v2037 = vpop.permute.xlu0 %2036
    %2039 = vset.pattern.permute.xlu0 4
    %2040 = vperm.xlu0 %2039, %v382
    %v2041 = vpop.permute.xlu0 %2040
    %2043 = vset.pattern.permute.xlu0 4
    %2044 = vperm.xlu0 %2043, %v383
    %v2045 = vpop.permute.xlu0 %2044
    %2047 = vset.pattern.permute.xlu0 4
    %2048 = vperm.xlu0 %2047, %v384
    %v2049 = vpop.permute.xlu0 %2048
    %2051 = vset.pattern.permute.xlu0 4
    %2052 = vperm.xlu0 %2051, %v385
    %v2053 = vpop.permute.xlu0 %2052
    %2055 = vset.pattern.permute.xlu0 4
    %2056 = vperm.xlu0 %2055, %v386
    %v2057 = vpop.permute.xlu0 %2056
    %2059 = vset.pattern.permute.xlu0 4
    %2060 = vperm.xlu0 %2059, %v387
    %v2061 = vpop.permute.xlu0 %2060
    %2063 = vset.pattern.permute.xlu0 4
    %2064 = vperm.xlu0 %2063, %v388
    %v2065 = vpop.permute.xlu0 %2064
    %2067 = vset.pattern.permute.xlu0 4
    %2068 = vperm.xlu0 %2067, %v389
    %v2069 = vpop.permute.xlu0 %2068
    %2071 = vset.pattern.permute.xlu0 4
    %2072 = vperm.xlu0 %2071, %v390
    %v2073 = vpop.permute.xlu0 %2072
    %2075 = vset.pattern.permute.xlu0 4
    %2076 = vperm.xlu0 %2075, %v391
    %v2077 = vpop.permute.xlu0 %2076
    %2079 = vset.pattern.permute.xlu0 4
    %2080 = vperm.xlu0 %2079, %v392
    %v2081 = vpop.permute.xlu0 %2080
    %2083 = vset.pattern.permute.xlu0 4
    %2084 = vperm.xlu0 %2083, %v393
    %v2085 = vpop.permute.xlu0 %2084
    %2087 = vset.pattern.permute.xlu0 4
    %2088 = vperm.xlu0 %2087, %v394
    %v2089 = vpop.permute.xlu0 %2088
    %2091 = vset.pattern.permute.xlu0 4
    %2092 = vperm.xlu0 %2091, %v395
    %v2093 = vpop.permute.xlu0 %2092
    %2095 = vset.pattern.permute.xlu0 4
    %2096 = vperm.xlu0 %2095, %v396
    %v2097 = vpop.permute.xlu0 %2096
    %2099 = vset.pattern.permute.xlu0 4
    %2100 = vperm.xlu0 %2099, %v397
    %v2101 = vpop.permute.xlu0 %2100
    %2103 = vset.pattern.permute.xlu0 4
    %2104 = vperm.xlu0 %2103, %v398
    %v2105 = vpop.permute.xlu0 %2104
    %2107 = vset.pattern.permute.xlu0 4
    %2108 = vperm.xlu0 %2107, %v399
    %v2109 = vpop.permute.xlu0 %2108
    %2111 = vset.pattern.permute.xlu0 4
    %2112 = vperm.xlu0 %2111, %v400
    %v2113 = vpop.permute.xlu0 %2112
    %2115 = vset.pattern.permute.xlu0 4
    %2116 = vperm.xlu0 %2115, %v401
    %v2117 = vpop.permute.xlu0 %2116
    %2119 = vset.pattern.permute.xlu0 4
    %2120 = vperm.xlu0 %2119, %v402
    %v2121 = vpop.permute.xlu0 %2120
    %2123 = vset.pattern.permute.xlu0 4
    %2124 = vperm.xlu0 %2123, %v403
    %v2125 = vpop.permute.xlu0 %2124
    %2127 = vset.pattern.permute.xlu0 4
    %2128 = vperm.xlu0 %2127, %v404
    %v2129 = vpop.permute.xlu0 %2128
    %2131 = vset.pattern.permute.xlu0 4
    %2132 = vperm.xlu0 %2131, %v405
    %v2133 = vpop.permute.xlu0 %2132
    %2135 = vset.pattern.permute.xlu0 4
    %2136 = vperm.xlu0 %2135, %v406
    %v2137 = vpop.permute.xlu0 %2136
    %2139 = vset.pattern.permute.xlu0 4
    %2140 = vperm.xlu0 %2139, %v407
    %v2141 = vpop.permute.xlu0 %2140
    %2143 = vset.pattern.permute.xlu0 4
    %2144 = vperm.xlu0 %2143, %v408
    %v2145 = vpop.permute.xlu0 %2144
    %2147 = vset.pattern.permute.xlu0 4
    %2148 = vperm.xlu0 %2147, %v409
    %v2149 = vpop.permute.xlu0 %2148
    %2151 = vset.pattern.permute.xlu0 4
    %2152 = vperm.xlu0 %2151, %v410
    %v2153 = vpop.permute.xlu0 %2152
    %2155 = vset.pattern.permute.xlu0 4
    %2156 = vperm.xlu0 %2155, %v411
    %v2157 = vpop.permute.xlu0 %2156
    %2159 = vset.pattern.permute.xlu0 4
    %2160 = vperm.xlu0 %2159, %v412
    %v2161 = vpop.permute.xlu0 %2160
    %2163 = vset.pattern.permute.xlu0 4
    %2164 = vperm.xlu0 %2163, %v413
    %v2165 = vpop.permute.xlu0 %2164
    %2167 = vset.pattern.permute.xlu0 4
    %2168 = vperm.xlu0 %2167, %v414
    %v2169 = vpop.permute.xlu0 %2168
    %2171 = vset.pattern.permute.xlu0 4
    %2172 = vperm.xlu0 %2171, %v415
    %v2173 = vpop.permute.xlu0 %2172
    %2175 = vset.pattern.permute.xlu0 4
    %2176 = vperm.xlu0 %2175, %v416
    %v2177 = vpop.permute.xlu0 %2176
    %2179 = vset.pattern.permute.xlu0 4
    %2180 = vperm.xlu0 %2179, %v417
    %v2181 = vpop.permute.xlu0 %2180
    %2183 = vset.pattern.permute.xlu0 4
    %2184 = vperm.xlu0 %2183, %v418
    %v2185 = vpop.permute.xlu0 %2184
    %2187 = vset.pattern.permute.xlu0 4
    %2188 = vperm.xlu0 %2187, %v419
    %v2189 = vpop.permute.xlu0 %2188
    %2191 = vset.pattern.permute.xlu0 4
    %2192 = vperm.xlu0 %2191, %v420
    %v2193 = vpop.permute.xlu0 %2192
    %2195 = vset.pattern.permute.xlu0 4
    %2196 = vperm.xlu0 %2195, %v421
    %v2197 = vpop.permute.xlu0 %2196
    %2199 = vset.pattern.permute.xlu0 4
    %2200 = vperm.xlu0 %2199, %v422
    %v2201 = vpop.permute.xlu0 %2200
    %2203 = vset.pattern.permute.xlu0 4
    %2204 = vperm.xlu0 %2203, %v423
    %v2205 = vpop.permute.xlu0 %2204
    %2207 = vset.pattern.permute.xlu0 4
    %2208 = vperm.xlu0 %2207, %v424
    %v2209 = vpop.permute.xlu0 %2208
    %2211 = vset.pattern.permute.xlu0 4
    %2212 = vperm.xlu0 %2211, %v425
    %v2213 = vpop.permute.xlu0 %2212
    %2215 = vset.pattern.permute.xlu0 4
    %2216 = vperm.xlu0 %2215, %v426
    %v2217 = vpop.permute.xlu0 %2216
    %2219 = vset.pattern.permute.xlu0 4
    %2220 = vperm.xlu0 %2219, %v427
    %v2221 = vpop.permute.xlu0 %2220
    %2223 = vset.pattern.permute.xlu0 4
    %2224 = vperm.xlu0 %2223, %v428
    %v2225 = vpop.permute.xlu0 %2224
    %v2227 = vmul.f32 %v52, %v1973
    %v2228 = vmul.f32 %v53, %v1977
    %v2229 = vmul.f32 %v54, %v1981
    %v2230 = vmul.f32 %v55, %v1985
    %v2231 = vmul.f32 %v56, %v1989
    %v2232 = vmul.f32 %v57, %v1993
    %v2233 = vmul.f32 %v58, %v1997
    %v2234 = vmul.f32 %v59, %v2001
    %v2235 = vmul.f32 %v60, %v2005
    %v2236 = vmul.f32 %v61, %v2009
    %v2237 = vmul.f32 %v62, %v2013
    %v2238 = vmul.f32 %v63, %v2017
    %v2239 = vmul.f32 %v64, %v2021
    %v2240 = vmul.f32 %v65, %v2025
    %v2241 = vmul.f32 %v66, %v2029
    %v2242 = vmul.f32 %v67, %v2033
    %v2243 = vmul.f32 %v68, %v2037
    %v2244 = vmul.f32 %v69, %v2041
    %v2245 = vmul.f32 %v70, %v2045
    %v2246 = vmul.f32 %v71, %v2049
    %v2247 = vmul.f32 %v72, %v2053
    %v2248 = vmul.f32 %v73, %v2057
    %v2249 = vmul.f32 %v74, %v2061
    %v2250 = vmul.f32 %v75, %v2065
    %v2251 = vmul.f32 %v76, %v2069
    %v2252 = vmul.f32 %v77, %v2073
    %v2253 = vmul.f32 %v78, %v2077
    %v2254 = vmul.f32 %v79, %v2081
    %v2255 = vmul.f32 %v80, %v2085
    %v2256 = vmul.f32 %v81, %v2089
    %v2257 = vmul.f32 %v82, %v2093
    %v2258 = vmul.f32 %v83, %v2097
    %v2259 = vmul.f32 %v84, %v2101
    %v2260 = vmul.f32 %v85, %v2105
    %v2261 = vmul.f32 %v86, %v2109
    %v2262 = vmul.f32 %v87, %v2113
    %v2263 = vmul.f32 %v88, %v2117
    %v2264 = vmul.f32 %v89, %v2121
    %v2265 = vmul.f32 %v90, %v2125
    %v2266 = vmul.f32 %v91, %v2129
    %v2267 = vmul.f32 %v92, %v2133
    %v2268 = vmul.f32 %v93, %v2137
    %v2269 = vmul.f32 %v94, %v2141
    %v2270 = vmul.f32 %v95, %v2145
    %v2271 = vmul.f32 %v96, %v2149
    %v2272 = vmul.f32 %v97, %v2153
    %v2273 = vmul.f32 %v98, %v2157
    %v2274 = vmul.f32 %v99, %v2161
    %v2275 = vmul.f32 %v100, %v2165
    %v2276 = vmul.f32 %v101, %v2169
    %v2277 = vmul.f32 %v102, %v2173
    %v2278 = vmul.f32 %v103, %v2177
    %v2279 = vmul.f32 %v104, %v2181
    %v2280 = vmul.f32 %v105, %v2185
    %v2281 = vmul.f32 %v106, %v2189
    %v2282 = vmul.f32 %v107, %v2193
    %v2283 = vmul.f32 %v108, %v2197
    %v2284 = vmul.f32 %v109, %v2201
    %v2285 = vmul.f32 %v110, %v2205
    %v2286 = vmul.f32 %v111, %v2209
    %v2287 = vmul.f32 %v112, %v2213
    %v2288 = vmul.f32 %v113, %v2217
    %v2289 = vmul.f32 %v114, %v2221
    %v2290 = vmul.f32 %v115, %v2225
    %v2291 = vrot.slane %v115, 1
    %v2292 = vsel %vm1134, %v1258, %v2291
    %v2295 = vsel %vm1134, %v2291, 0.0
    %2296 = vset.pattern.permute.xlu0 5
    %2297 = vperm.xlu0 %2296, %v365
    %v2298 = vpop.permute.xlu0 %2297
    %2300 = vset.pattern.permute.xlu0 5
    %2301 = vperm.xlu0 %2300, %v366
    %v2302 = vpop.permute.xlu0 %2301
    %2304 = vset.pattern.permute.xlu0 5
    %2305 = vperm.xlu0 %2304, %v367
    %v2306 = vpop.permute.xlu0 %2305
    %2308 = vset.pattern.permute.xlu0 5
    %2309 = vperm.xlu0 %2308, %v368
    %v2310 = vpop.permute.xlu0 %2309
    %2312 = vset.pattern.permute.xlu0 5
    %2313 = vperm.xlu0 %2312, %v369
    %v2314 = vpop.permute.xlu0 %2313
    %2316 = vset.pattern.permute.xlu0 5
    %2317 = vperm.xlu0 %2316, %v370
    %v2318 = vpop.permute.xlu0 %2317
    %2320 = vset.pattern.permute.xlu0 5
    %2321 = vperm.xlu0 %2320, %v371
    %v2322 = vpop.permute.xlu0 %2321
    %2324 = vset.pattern.permute.xlu0 5
    %2325 = vperm.xlu0 %2324, %v372
    %v2326 = vpop.permute.xlu0 %2325
    %2328 = vset.pattern.permute.xlu0 5
    %2329 = vperm.xlu0 %2328, %v373
    %v2330 = vpop.permute.xlu0 %2329
    %2332 = vset.pattern.permute.xlu0 5
    %2333 = vperm.xlu0 %2332, %v374
    %v2334 = vpop.permute.xlu0 %2333
    %2336 = vset.pattern.permute.xlu0 5
    %2337 = vperm.xlu0 %2336, %v375
    %v2338 = vpop.permute.xlu0 %2337
    %2340 = vset.pattern.permute.xlu0 5
    %2341 = vperm.xlu0 %2340, %v376
    %v2342 = vpop.permute.xlu0 %2341
    %2344 = vset.pattern.permute.xlu0 5
    %2345 = vperm.xlu0 %2344, %v377
    %v2346 = vpop.permute.xlu0 %2345
    %2348 = vset.pattern.permute.xlu0 5
    %2349 = vperm.xlu0 %2348, %v378
    %v2350 = vpop.permute.xlu0 %2349
    %2352 = vset.pattern.permute.xlu0 5
    %2353 = vperm.xlu0 %2352, %v379
    %v2354 = vpop.permute.xlu0 %2353
    %2356 = vset.pattern.permute.xlu0 5
    %2357 = vperm.xlu0 %2356, %v380
    %v2358 = vpop.permute.xlu0 %2357
    %2360 = vset.pattern.permute.xlu0 5
    %2361 = vperm.xlu0 %2360, %v381
    %v2362 = vpop.permute.xlu0 %2361
    %2364 = vset.pattern.permute.xlu0 5
    %2365 = vperm.xlu0 %2364, %v382
    %v2366 = vpop.permute.xlu0 %2365
    %2368 = vset.pattern.permute.xlu0 5
    %2369 = vperm.xlu0 %2368, %v383
    %v2370 = vpop.permute.xlu0 %2369
    %2372 = vset.pattern.permute.xlu0 5
    %2373 = vperm.xlu0 %2372, %v384
    %v2374 = vpop.permute.xlu0 %2373
    %2376 = vset.pattern.permute.xlu0 5
    %2377 = vperm.xlu0 %2376, %v385
    %v2378 = vpop.permute.xlu0 %2377
    %2380 = vset.pattern.permute.xlu0 5
    %2381 = vperm.xlu0 %2380, %v386
    %v2382 = vpop.permute.xlu0 %2381
    %2384 = vset.pattern.permute.xlu0 5
    %2385 = vperm.xlu0 %2384, %v387
    %v2386 = vpop.permute.xlu0 %2385
    %2388 = vset.pattern.permute.xlu0 5
    %2389 = vperm.xlu0 %2388, %v388
    %v2390 = vpop.permute.xlu0 %2389
    %2392 = vset.pattern.permute.xlu0 5
    %2393 = vperm.xlu0 %2392, %v389
    %v2394 = vpop.permute.xlu0 %2393
    %2396 = vset.pattern.permute.xlu0 5
    %2397 = vperm.xlu0 %2396, %v390
    %v2398 = vpop.permute.xlu0 %2397
    %2400 = vset.pattern.permute.xlu0 5
    %2401 = vperm.xlu0 %2400, %v391
    %v2402 = vpop.permute.xlu0 %2401
    %2404 = vset.pattern.permute.xlu0 5
    %2405 = vperm.xlu0 %2404, %v392
    %v2406 = vpop.permute.xlu0 %2405
    %2408 = vset.pattern.permute.xlu0 5
    %2409 = vperm.xlu0 %2408, %v393
    %v2410 = vpop.permute.xlu0 %2409
    %2412 = vset.pattern.permute.xlu0 5
    %2413 = vperm.xlu0 %2412, %v394
    %v2414 = vpop.permute.xlu0 %2413
    %2416 = vset.pattern.permute.xlu0 5
    %2417 = vperm.xlu0 %2416, %v395
    %v2418 = vpop.permute.xlu0 %2417
    %2420 = vset.pattern.permute.xlu0 5
    %2421 = vperm.xlu0 %2420, %v396
    %v2422 = vpop.permute.xlu0 %2421
    %2424 = vset.pattern.permute.xlu0 5
    %2425 = vperm.xlu0 %2424, %v397
    %v2426 = vpop.permute.xlu0 %2425
    %2428 = vset.pattern.permute.xlu0 5
    %2429 = vperm.xlu0 %2428, %v398
    %v2430 = vpop.permute.xlu0 %2429
    %2432 = vset.pattern.permute.xlu0 5
    %2433 = vperm.xlu0 %2432, %v399
    %v2434 = vpop.permute.xlu0 %2433
    %2436 = vset.pattern.permute.xlu0 5
    %2437 = vperm.xlu0 %2436, %v400
    %v2438 = vpop.permute.xlu0 %2437
    %2440 = vset.pattern.permute.xlu0 5
    %2441 = vperm.xlu0 %2440, %v401
    %v2442 = vpop.permute.xlu0 %2441
    %2444 = vset.pattern.permute.xlu0 5
    %2445 = vperm.xlu0 %2444, %v402
    %v2446 = vpop.permute.xlu0 %2445
    %2448 = vset.pattern.permute.xlu0 5
    %2449 = vperm.xlu0 %2448, %v403
    %v2450 = vpop.permute.xlu0 %2449
    %2452 = vset.pattern.permute.xlu0 5
    %2453 = vperm.xlu0 %2452, %v404
    %v2454 = vpop.permute.xlu0 %2453
    %2456 = vset.pattern.permute.xlu0 5
    %2457 = vperm.xlu0 %2456, %v405
    %v2458 = vpop.permute.xlu0 %2457
    %2460 = vset.pattern.permute.xlu0 5
    %2461 = vperm.xlu0 %2460, %v406
    %v2462 = vpop.permute.xlu0 %2461
    %2464 = vset.pattern.permute.xlu0 5
    %2465 = vperm.xlu0 %2464, %v407
    %v2466 = vpop.permute.xlu0 %2465
    %2468 = vset.pattern.permute.xlu0 5
    %2469 = vperm.xlu0 %2468, %v408
    %v2470 = vpop.permute.xlu0 %2469
    %2472 = vset.pattern.permute.xlu0 5
    %2473 = vperm.xlu0 %2472, %v409
    %v2474 = vpop.permute.xlu0 %2473
    %2476 = vset.pattern.permute.xlu0 5
    %2477 = vperm.xlu0 %2476, %v410
    %v2478 = vpop.permute.xlu0 %2477
    %2480 = vset.pattern.permute.xlu0 5
    %2481 = vperm.xlu0 %2480, %v411
    %v2482 = vpop.permute.xlu0 %2481
    %2484 = vset.pattern.permute.xlu0 5
    %2485 = vperm.xlu0 %2484, %v412
    %v2486 = vpop.permute.xlu0 %2485
    %2488 = vset.pattern.permute.xlu0 5
    %2489 = vperm.xlu0 %2488, %v413
    %v2490 = vpop.permute.xlu0 %2489
    %2492 = vset.pattern.permute.xlu0 5
    %2493 = vperm.xlu0 %2492, %v414
    %v2494 = vpop.permute.xlu0 %2493
    %2496 = vset.pattern.permute.xlu0 5
    %2497 = vperm.xlu0 %2496, %v415
    %v2498 = vpop.permute.xlu0 %2497
    %2500 = vset.pattern.permute.xlu0 5
    %2501 = vperm.xlu0 %2500, %v416
    %v2502 = vpop.permute.xlu0 %2501
    %2504 = vset.pattern.permute.xlu0 5
    %2505 = vperm.xlu0 %2504, %v417
    %v2506 = vpop.permute.xlu0 %2505
    %2508 = vset.pattern.permute.xlu0 5
    %2509 = vperm.xlu0 %2508, %v418
    %v2510 = vpop.permute.xlu0 %2509
    %2512 = vset.pattern.permute.xlu0 5
    %2513 = vperm.xlu0 %2512, %v419
    %v2514 = vpop.permute.xlu0 %2513
    %2516 = vset.pattern.permute.xlu0 5
    %2517 = vperm.xlu0 %2516, %v420
    %v2518 = vpop.permute.xlu0 %2517
    %2520 = vset.pattern.permute.xlu0 5
    %2521 = vperm.xlu0 %2520, %v421
    %v2522 = vpop.permute.xlu0 %2521
    %2524 = vset.pattern.permute.xlu0 5
    %2525 = vperm.xlu0 %2524, %v422
    %v2526 = vpop.permute.xlu0 %2525
    %2528 = vset.pattern.permute.xlu0 5
    %2529 = vperm.xlu0 %2528, %v423
    %v2530 = vpop.permute.xlu0 %2529
    %2532 = vset.pattern.permute.xlu0 5
    %2533 = vperm.xlu0 %2532, %v424
    %v2534 = vpop.permute.xlu0 %2533
    %2536 = vset.pattern.permute.xlu0 5
    %2537 = vperm.xlu0 %2536, %v425
    %v2538 = vpop.permute.xlu0 %2537
    %2540 = vset.pattern.permute.xlu0 5
    %2541 = vperm.xlu0 %2540, %v426
    %v2542 = vpop.permute.xlu0 %2541
    %2544 = vset.pattern.permute.xlu0 5
    %2545 = vperm.xlu0 %2544, %v427
    %v2546 = vpop.permute.xlu0 %2545
    %2548 = vset.pattern.permute.xlu0 5
    %2549 = vperm.xlu0 %2548, %v428
    %v2550 = vpop.permute.xlu0 %2549
    %v2552 = vmul.f32 %v1137, %v2298
    %v2553 = vmul.f32 %v1139, %v2302
    %v2554 = vmul.f32 %v1141, %v2306
    %v2555 = vmul.f32 %v1143, %v2310
    %v2556 = vmul.f32 %v1145, %v2314
    %v2557 = vmul.f32 %v1147, %v2318
    %v2558 = vmul.f32 %v1149, %v2322
    %v2559 = vmul.f32 %v1151, %v2326
    %v2560 = vmul.f32 %v1153, %v2330
    %v2561 = vmul.f32 %v1155, %v2334
    %v2562 = vmul.f32 %v1157, %v2338
    %v2563 = vmul.f32 %v1159, %v2342
    %v2564 = vmul.f32 %v1161, %v2346
    %v2565 = vmul.f32 %v1163, %v2350
    %v2566 = vmul.f32 %v1165, %v2354
    %v2567 = vmul.f32 %v1167, %v2358
    %v2568 = vmul.f32 %v1169, %v2362
    %v2569 = vmul.f32 %v1171, %v2366
    %v2570 = vmul.f32 %v1173, %v2370
    %v2571 = vmul.f32 %v1175, %v2374
    %v2572 = vmul.f32 %v1177, %v2378
    %v2573 = vmul.f32 %v1179, %v2382
    %v2574 = vmul.f32 %v1181, %v2386
    %v2575 = vmul.f32 %v1183, %v2390
    %v2576 = vmul.f32 %v1185, %v2394
    %v2577 = vmul.f32 %v1187, %v2398
    %v2578 = vmul.f32 %v1189, %v2402
    %v2579 = vmul.f32 %v1191, %v2406
    %v2580 = vmul.f32 %v1193, %v2410
    %v2581 = vmul.f32 %v1195, %v2414
    %v2582 = vmul.f32 %v1197, %v2418
    %v2583 = vmul.f32 %v1199, %v2422
    %v2584 = vmul.f32 %v1201, %v2426
    %v2585 = vmul.f32 %v1203, %v2430
    %v2586 = vmul.f32 %v1205, %v2434
    %v2587 = vmul.f32 %v1207, %v2438
    %v2588 = vmul.f32 %v1209, %v2442
    %v2589 = vmul.f32 %v1211, %v2446
    %v2590 = vmul.f32 %v1213, %v2450
    %v2591 = vmul.f32 %v1215, %v2454
    %v2592 = vmul.f32 %v1217, %v2458
    %v2593 = vmul.f32 %v1219, %v2462
    %v2594 = vmul.f32 %v1221, %v2466
    %v2595 = vmul.f32 %v1223, %v2470
    %v2596 = vmul.f32 %v1225, %v2474
    %v2597 = vmul.f32 %v1227, %v2478
    %v2598 = vmul.f32 %v1229, %v2482
    %v2599 = vmul.f32 %v1231, %v2486
    %v2600 = vmul.f32 %v1233, %v2490
    %v2601 = vmul.f32 %v1235, %v2494
    %v2602 = vmul.f32 %v1237, %v2498
    %v2603 = vmul.f32 %v1239, %v2502
    %v2604 = vmul.f32 %v1241, %v2506
    %v2605 = vmul.f32 %v1243, %v2510
    %v2606 = vmul.f32 %v1245, %v2514
    %v2607 = vmul.f32 %v1247, %v2518
    %v2608 = vmul.f32 %v1249, %v2522
    %v2609 = vmul.f32 %v1251, %v2526
    %v2610 = vmul.f32 %v1253, %v2530
    %v2611 = vmul.f32 %v1255, %v2534
    %v2612 = vmul.f32 %v1257, %v2538
    %v2613 = vmul.f32 %v1259, %v2542
    %v2614 = vmul.f32 %v2292, %v2546
    %v2615 = vmul.f32 %v2295, %v2550
    %v2617 = vsel %vm178, %v1647, 0.0
    %2618 = vset.pattern.permute.xlu0 6
    %2619 = vperm.xlu0 %2618, %v365
    %v2620 = vpop.permute.xlu0 %2619
    %2622 = vset.pattern.permute.xlu0 6
    %2623 = vperm.xlu0 %2622, %v366
    %v2624 = vpop.permute.xlu0 %2623
    %2626 = vset.pattern.permute.xlu0 6
    %2627 = vperm.xlu0 %2626, %v367
    %v2628 = vpop.permute.xlu0 %2627
    %2630 = vset.pattern.permute.xlu0 6
    %2631 = vperm.xlu0 %2630, %v368
    %v2632 = vpop.permute.xlu0 %2631
    %2634 = vset.pattern.permute.xlu0 6
    %2635 = vperm.xlu0 %2634, %v369
    %v2636 = vpop.permute.xlu0 %2635
    %2638 = vset.pattern.permute.xlu0 6
    %2639 = vperm.xlu0 %2638, %v370
    %v2640 = vpop.permute.xlu0 %2639
    %2642 = vset.pattern.permute.xlu0 6
    %2643 = vperm.xlu0 %2642, %v371
    %v2644 = vpop.permute.xlu0 %2643
    %2646 = vset.pattern.permute.xlu0 6
    %2647 = vperm.xlu0 %2646, %v372
    %v2648 = vpop.permute.xlu0 %2647
    %2650 = vset.pattern.permute.xlu0 6
    %2651 = vperm.xlu0 %2650, %v373
    %v2652 = vpop.permute.xlu0 %2651
    %2654 = vset.pattern.permute.xlu0 6
    %2655 = vperm.xlu0 %2654, %v374
    %v2656 = vpop.permute.xlu0 %2655
    %2658 = vset.pattern.permute.xlu0 6
    %2659 = vperm.xlu0 %2658, %v375
    %v2660 = vpop.permute.xlu0 %2659
    %2662 = vset.pattern.permute.xlu0 6
    %2663 = vperm.xlu0 %2662, %v376
    %v2664 = vpop.permute.xlu0 %2663
    %2666 = vset.pattern.permute.xlu0 6
    %2667 = vperm.xlu0 %2666, %v377
    %v2668 = vpop.permute.xlu0 %2667
    %2670 = vset.pattern.permute.xlu0 6
    %2671 = vperm.xlu0 %2670, %v378
    %v2672 = vpop.permute.xlu0 %2671
    %2674 = vset.pattern.permute.xlu0 6
    %2675 = vperm.xlu0 %2674, %v379
    %v2676 = vpop.permute.xlu0 %2675
    %2678 = vset.pattern.permute.xlu0 6
    %2679 = vperm.xlu0 %2678, %v380
    %v2680 = vpop.permute.xlu0 %2679
    %2682 = vset.pattern.permute.xlu0 6
    %2683 = vperm.xlu0 %2682, %v381
    %v2684 = vpop.permute.xlu0 %2683
    %2686 = vset.pattern.permute.xlu0 6
    %2687 = vperm.xlu0 %2686, %v382
    %v2688 = vpop.permute.xlu0 %2687
    %2690 = vset.pattern.permute.xlu0 6
    %2691 = vperm.xlu0 %2690, %v383
    %v2692 = vpop.permute.xlu0 %2691
    %2694 = vset.pattern.permute.xlu0 6
    %2695 = vperm.xlu0 %2694, %v384
    %v2696 = vpop.permute.xlu0 %2695
    %2698 = vset.pattern.permute.xlu0 6
    %2699 = vperm.xlu0 %2698, %v385
    %v2700 = vpop.permute.xlu0 %2699
    %2702 = vset.pattern.permute.xlu0 6
    %2703 = vperm.xlu0 %2702, %v386
    %v2704 = vpop.permute.xlu0 %2703
    %2706 = vset.pattern.permute.xlu0 6
    %2707 = vperm.xlu0 %2706, %v387
    %v2708 = vpop.permute.xlu0 %2707
    %2710 = vset.pattern.permute.xlu0 6
    %2711 = vperm.xlu0 %2710, %v388
    %v2712 = vpop.permute.xlu0 %2711
    %2714 = vset.pattern.permute.xlu0 6
    %2715 = vperm.xlu0 %2714, %v389
    %v2716 = vpop.permute.xlu0 %2715
    %2718 = vset.pattern.permute.xlu0 6
    %2719 = vperm.xlu0 %2718, %v390
    %v2720 = vpop.permute.xlu0 %2719
    %2722 = vset.pattern.permute.xlu0 6
    %2723 = vperm.xlu0 %2722, %v391
    %v2724 = vpop.permute.xlu0 %2723
    %2726 = vset.pattern.permute.xlu0 6
    %2727 = vperm.xlu0 %2726, %v392
    %v2728 = vpop.permute.xlu0 %2727
    %2730 = vset.pattern.permute.xlu0 6
    %2731 = vperm.xlu0 %2730, %v393
    %v2732 = vpop.permute.xlu0 %2731
    %2734 = vset.pattern.permute.xlu0 6
    %2735 = vperm.xlu0 %2734, %v394
    %v2736 = vpop.permute.xlu0 %2735
    %2738 = vset.pattern.permute.xlu0 6
    %2739 = vperm.xlu0 %2738, %v395
    %v2740 = vpop.permute.xlu0 %2739
    %2742 = vset.pattern.permute.xlu0 6
    %2743 = vperm.xlu0 %2742, %v396
    %v2744 = vpop.permute.xlu0 %2743
    %2746 = vset.pattern.permute.xlu0 6
    %2747 = vperm.xlu0 %2746, %v397
    %v2748 = vpop.permute.xlu0 %2747
    %2750 = vset.pattern.permute.xlu0 6
    %2751 = vperm.xlu0 %2750, %v398
    %v2752 = vpop.permute.xlu0 %2751
    %2754 = vset.pattern.permute.xlu0 6
    %2755 = vperm.xlu0 %2754, %v399
    %v2756 = vpop.permute.xlu0 %2755
    %2758 = vset.pattern.permute.xlu0 6
    %2759 = vperm.xlu0 %2758, %v400
    %v2760 = vpop.permute.xlu0 %2759
    %2762 = vset.pattern.permute.xlu0 6
    %2763 = vperm.xlu0 %2762, %v401
    %v2764 = vpop.permute.xlu0 %2763
    %2766 = vset.pattern.permute.xlu0 6
    %2767 = vperm.xlu0 %2766, %v402
    %v2768 = vpop.permute.xlu0 %2767
    %2770 = vset.pattern.permute.xlu0 6
    %2771 = vperm.xlu0 %2770, %v403
    %v2772 = vpop.permute.xlu0 %2771
    %2774 = vset.pattern.permute.xlu0 6
    %2775 = vperm.xlu0 %2774, %v404
    %v2776 = vpop.permute.xlu0 %2775
    %2778 = vset.pattern.permute.xlu0 6
    %2779 = vperm.xlu0 %2778, %v405
    %v2780 = vpop.permute.xlu0 %2779
    %2782 = vset.pattern.permute.xlu0 6
    %2783 = vperm.xlu0 %2782, %v406
    %v2784 = vpop.permute.xlu0 %2783
    %2786 = vset.pattern.permute.xlu0 6
    %2787 = vperm.xlu0 %2786, %v407
    %v2788 = vpop.permute.xlu0 %2787
    %2790 = vset.pattern.permute.xlu0 6
    %2791 = vperm.xlu0 %2790, %v408
    %v2792 = vpop.permute.xlu0 %2791
    %2794 = vset.pattern.permute.xlu0 6
    %2795 = vperm.xlu0 %2794, %v409
    %v2796 = vpop.permute.xlu0 %2795
    %2798 = vset.pattern.permute.xlu0 6
    %2799 = vperm.xlu0 %2798, %v410
    %v2800 = vpop.permute.xlu0 %2799
    %2802 = vset.pattern.permute.xlu0 6
    %2803 = vperm.xlu0 %2802, %v411
    %v2804 = vpop.permute.xlu0 %2803
    %2806 = vset.pattern.permute.xlu0 6
    %2807 = vperm.xlu0 %2806, %v412
    %v2808 = vpop.permute.xlu0 %2807
    %2810 = vset.pattern.permute.xlu0 6
    %2811 = vperm.xlu0 %2810, %v413
    %v2812 = vpop.permute.xlu0 %2811
    %2814 = vset.pattern.permute.xlu0 6
    %2815 = vperm.xlu0 %2814, %v414
    %v2816 = vpop.permute.xlu0 %2815
    %2818 = vset.pattern.permute.xlu0 6
    %2819 = vperm.xlu0 %2818, %v415
    %v2820 = vpop.permute.xlu0 %2819
    %2822 = vset.pattern.permute.xlu0 6
    %2823 = vperm.xlu0 %2822, %v416
    %v2824 = vpop.permute.xlu0 %2823
    %2826 = vset.pattern.permute.xlu0 6
    %2827 = vperm.xlu0 %2826, %v417
    %v2828 = vpop.permute.xlu0 %2827
    %2830 = vset.pattern.permute.xlu0 6
    %2831 = vperm.xlu0 %2830, %v418
    %v2832 = vpop.permute.xlu0 %2831
    %2834 = vset.pattern.permute.xlu0 6
    %2835 = vperm.xlu0 %2834, %v419
    %v2836 = vpop.permute.xlu0 %2835
    %2838 = vset.pattern.permute.xlu0 6
    %2839 = vperm.xlu0 %2838, %v420
    %v2840 = vpop.permute.xlu0 %2839
    %2842 = vset.pattern.permute.xlu0 6
    %2843 = vperm.xlu0 %2842, %v421
    %v2844 = vpop.permute.xlu0 %2843
    %2846 = vset.pattern.permute.xlu0 6
    %2847 = vperm.xlu0 %2846, %v422
    %v2848 = vpop.permute.xlu0 %2847
    %2850 = vset.pattern.permute.xlu0 6
    %2851 = vperm.xlu0 %2850, %v423
    %v2852 = vpop.permute.xlu0 %2851
    %2854 = vset.pattern.permute.xlu0 6
    %2855 = vperm.xlu0 %2854, %v424
    %v2856 = vpop.permute.xlu0 %2855
    %2858 = vset.pattern.permute.xlu0 6
    %2859 = vperm.xlu0 %2858, %v425
    %v2860 = vpop.permute.xlu0 %2859
    %2862 = vset.pattern.permute.xlu0 6
    %2863 = vperm.xlu0 %2862, %v426
    %v2864 = vpop.permute.xlu0 %2863
    %2866 = vset.pattern.permute.xlu0 6
    %2867 = vperm.xlu0 %2866, %v427
    %v2868 = vpop.permute.xlu0 %2867
    %2870 = vset.pattern.permute.xlu0 6
    %2871 = vperm.xlu0 %2870, %v428
    %v2872 = vpop.permute.xlu0 %2871
    %v2874 = vmul.f32 %v183, %v2620
    %v2875 = vmul.f32 %v185, %v2624
    %v2876 = vmul.f32 %v187, %v2628
    %v2877 = vmul.f32 %v189, %v2632
    %v2878 = vmul.f32 %v191, %v2636
    %v2879 = vmul.f32 %v193, %v2640
    %v2880 = vmul.f32 %v195, %v2644
    %v2881 = vmul.f32 %v197, %v2648
    %v2882 = vmul.f32 %v199, %v2652
    %v2883 = vmul.f32 %v201, %v2656
    %v2884 = vmul.f32 %v203, %v2660
    %v2885 = vmul.f32 %v205, %v2664
    %v2886 = vmul.f32 %v207, %v2668
    %v2887 = vmul.f32 %v209, %v2672
    %v2888 = vmul.f32 %v211, %v2676
    %v2889 = vmul.f32 %v213, %v2680
    %v2890 = vmul.f32 %v215, %v2684
    %v2891 = vmul.f32 %v217, %v2688
    %v2892 = vmul.f32 %v219, %v2692
    %v2893 = vmul.f32 %v221, %v2696
    %v2894 = vmul.f32 %v223, %v2700
    %v2895 = vmul.f32 %v225, %v2704
    %v2896 = vmul.f32 %v227, %v2708
    %v2897 = vmul.f32 %v229, %v2712
    %v2898 = vmul.f32 %v231, %v2716
    %v2899 = vmul.f32 %v233, %v2720
    %v2900 = vmul.f32 %v235, %v2724
    %v2901 = vmul.f32 %v237, %v2728
    %v2902 = vmul.f32 %v239, %v2732
    %v2903 = vmul.f32 %v241, %v2736
    %v2904 = vmul.f32 %v243, %v2740
    %v2905 = vmul.f32 %v245, %v2744
    %v2906 = vmul.f32 %v247, %v2748
    %v2907 = vmul.f32 %v249, %v2752
    %v2908 = vmul.f32 %v251, %v2756
    %v2909 = vmul.f32 %v253, %v2760
    %v2910 = vmul.f32 %v255, %v2764
    %v2911 = vmul.f32 %v257, %v2768
    %v2912 = vmul.f32 %v259, %v2772
    %v2913 = vmul.f32 %v261, %v2776
    %v2914 = vmul.f32 %v263, %v2780
    %v2915 = vmul.f32 %v265, %v2784
    %v2916 = vmul.f32 %v267, %v2788
    %v2917 = vmul.f32 %v269, %v2792
    %v2918 = vmul.f32 %v271, %v2796
    %v2919 = vmul.f32 %v273, %v2800
    %v2920 = vmul.f32 %v275, %v2804
    %v2921 = vmul.f32 %v277, %v2808
    %v2922 = vmul.f32 %v279, %v2812
    %v2923 = vmul.f32 %v281, %v2816
    %v2924 = vmul.f32 %v283, %v2820
    %v2925 = vmul.f32 %v285, %v2824
    %v2926 = vmul.f32 %v287, %v2828
    %v2927 = vmul.f32 %v289, %v2832
    %v2928 = vmul.f32 %v291, %v2836
    %v2929 = vmul.f32 %v293, %v2840
    %v2930 = vmul.f32 %v295, %v2844
    %v2931 = vmul.f32 %v297, %v2848
    %v2932 = vmul.f32 %v299, %v2852
    %v2933 = vmul.f32 %v301, %v2856
    %v2934 = vmul.f32 %v1646, %v2860
    %v2935 = vmul.f32 %v1648, %v2864
    %v2936 = vmul.f32 %v2617, %v2868
    %v2937 = vmul.f32 %v2872, 0.0
    %2938 = vset.pattern.permute.xlu0 7
    %2939 = vperm.xlu0 %2938, %v365
    %v2940 = vpop.permute.xlu0 %2939
    %2942 = vset.pattern.permute.xlu0 7
    %2943 = vperm.xlu0 %2942, %v366
    %v2944 = vpop.permute.xlu0 %2943
    %2946 = vset.pattern.permute.xlu0 7
    %2947 = vperm.xlu0 %2946, %v367
    %v2948 = vpop.permute.xlu0 %2947
    %2950 = vset.pattern.permute.xlu0 7
    %2951 = vperm.xlu0 %2950, %v368
    %v2952 = vpop.permute.xlu0 %2951
    %2954 = vset.pattern.permute.xlu0 7
    %2955 = vperm.xlu0 %2954, %v369
    %v2956 = vpop.permute.xlu0 %2955
    %2958 = vset.pattern.permute.xlu0 7
    %2959 = vperm.xlu0 %2958, %v370
    %v2960 = vpop.permute.xlu0 %2959
    %2962 = vset.pattern.permute.xlu0 7
    %2963 = vperm.xlu0 %2962, %v371
    %v2964 = vpop.permute.xlu0 %2963
    %2966 = vset.pattern.permute.xlu0 7
    %2967 = vperm.xlu0 %2966, %v372
    %v2968 = vpop.permute.xlu0 %2967
    %2970 = vset.pattern.permute.xlu0 7
    %2971 = vperm.xlu0 %2970, %v373
    %v2972 = vpop.permute.xlu0 %2971
    %2974 = vset.pattern.permute.xlu0 7
    %2975 = vperm.xlu0 %2974, %v374
    %v2976 = vpop.permute.xlu0 %2975
    %2978 = vset.pattern.permute.xlu0 7
    %2979 = vperm.xlu0 %2978, %v375
    %v2980 = vpop.permute.xlu0 %2979
    %2982 = vset.pattern.permute.xlu0 7
    %2983 = vperm.xlu0 %2982, %v376
    %v2984 = vpop.permute.xlu0 %2983
    %2986 = vset.pattern.permute.xlu0 7
    %2987 = vperm.xlu0 %2986, %v377
    %v2988 = vpop.permute.xlu0 %2987
    %2990 = vset.pattern.permute.xlu0 7
    %2991 = vperm.xlu0 %2990, %v378
    %v2992 = vpop.permute.xlu0 %2991
    %2994 = vset.pattern.permute.xlu0 7
    %2995 = vperm.xlu0 %2994, %v379
    %v2996 = vpop.permute.xlu0 %2995
    %2998 = vset.pattern.permute.xlu0 7
    %2999 = vperm.xlu0 %2998, %v380
    %v3000 = vpop.permute.xlu0 %2999
    %3002 = vset.pattern.permute.xlu0 7
    %3003 = vperm.xlu0 %3002, %v381
    %v3004 = vpop.permute.xlu0 %3003
    %3006 = vset.pattern.permute.xlu0 7
    %3007 = vperm.xlu0 %3006, %v382
    %v3008 = vpop.permute.xlu0 %3007
    %3010 = vset.pattern.permute.xlu0 7
    %3011 = vperm.xlu0 %3010, %v383
    %v3012 = vpop.permute.xlu0 %3011
    %3014 = vset.pattern.permute.xlu0 7
    %3015 = vperm.xlu0 %3014, %v384
    %v3016 = vpop.permute.xlu0 %3015
    %3018 = vset.pattern.permute.xlu0 7
    %3019 = vperm.xlu0 %3018, %v385
    %v3020 = vpop.permute.xlu0 %3019
    %3022 = vset.pattern.permute.xlu0 7
    %3023 = vperm.xlu0 %3022, %v386
    %v3024 = vpop.permute.xlu0 %3023
    %3026 = vset.pattern.permute.xlu0 7
    %3027 = vperm.xlu0 %3026, %v387
    %v3028 = vpop.permute.xlu0 %3027
    %3030 = vset.pattern.permute.xlu0 7
    %3031 = vperm.xlu0 %3030, %v388
    %v3032 = vpop.permute.xlu0 %3031
    %3034 = vset.pattern.permute.xlu0 7
    %3035 = vperm.xlu0 %3034, %v389
    %v3036 = vpop.permute.xlu0 %3035
    %3038 = vset.pattern.permute.xlu0 7
    %3039 = vperm.xlu0 %3038, %v390
    %v3040 = vpop.permute.xlu0 %3039
    %3042 = vset.pattern.permute.xlu0 7
    %3043 = vperm.xlu0 %3042, %v391
    %v3044 = vpop.permute.xlu0 %3043
    %3046 = vset.pattern.permute.xlu0 7
    %3047 = vperm.xlu0 %3046, %v392
    %v3048 = vpop.permute.xlu0 %3047
    %3050 = vset.pattern.permute.xlu0 7
    %3051 = vperm.xlu0 %3050, %v393
    %v3052 = vpop.permute.xlu0 %3051
    %3054 = vset.pattern.permute.xlu0 7
    %3055 = vperm.xlu0 %3054, %v394
    %v3056 = vpop.permute.xlu0 %3055
    %3058 = vset.pattern.permute.xlu0 7
    %3059 = vperm.xlu0 %3058, %v395
    %v3060 = vpop.permute.xlu0 %3059
    %3062 = vset.pattern.permute.xlu0 7
    %3063 = vperm.xlu0 %3062, %v396
    %v3064 = vpop.permute.xlu0 %3063
    %3066 = vset.pattern.permute.xlu0 7
    %3067 = vperm.xlu0 %3066, %v397
    %v3068 = vpop.permute.xlu0 %3067
    %3070 = vset.pattern.permute.xlu0 7
    %3071 = vperm.xlu0 %3070, %v398
    %v3072 = vpop.permute.xlu0 %3071
    %3074 = vset.pattern.permute.xlu0 7
    %3075 = vperm.xlu0 %3074, %v399
    %v3076 = vpop.permute.xlu0 %3075
    %3078 = vset.pattern.permute.xlu0 7
    %3079 = vperm.xlu0 %3078, %v400
    %v3080 = vpop.permute.xlu0 %3079
    %3082 = vset.pattern.permute.xlu0 7
    %3083 = vperm.xlu0 %3082, %v401
    %v3084 = vpop.permute.xlu0 %3083
    %3086 = vset.pattern.permute.xlu0 7
    %3087 = vperm.xlu0 %3086, %v402
    %v3088 = vpop.permute.xlu0 %3087
    %3090 = vset.pattern.permute.xlu0 7
    %3091 = vperm.xlu0 %3090, %v403
    %v3092 = vpop.permute.xlu0 %3091
    %3094 = vset.pattern.permute.xlu0 7
    %3095 = vperm.xlu0 %3094, %v404
    %v3096 = vpop.permute.xlu0 %3095
    %3098 = vset.pattern.permute.xlu0 7
    %3099 = vperm.xlu0 %3098, %v405
    %v3100 = vpop.permute.xlu0 %3099
    %3102 = vset.pattern.permute.xlu0 7
    %3103 = vperm.xlu0 %3102, %v406
    %v3104 = vpop.permute.xlu0 %3103
    %3106 = vset.pattern.permute.xlu0 7
    %3107 = vperm.xlu0 %3106, %v407
    %v3108 = vpop.permute.xlu0 %3107
    %3110 = vset.pattern.permute.xlu0 7
    %3111 = vperm.xlu0 %3110, %v408
    %v3112 = vpop.permute.xlu0 %3111
    %3114 = vset.pattern.permute.xlu0 7
    %3115 = vperm.xlu0 %3114, %v409
    %v3116 = vpop.permute.xlu0 %3115
    %3118 = vset.pattern.permute.xlu0 7
    %3119 = vperm.xlu0 %3118, %v410
    %v3120 = vpop.permute.xlu0 %3119
    %3122 = vset.pattern.permute.xlu0 7
    %3123 = vperm.xlu0 %3122, %v411
    %v3124 = vpop.permute.xlu0 %3123
    %3126 = vset.pattern.permute.xlu0 7
    %3127 = vperm.xlu0 %3126, %v412
    %v3128 = vpop.permute.xlu0 %3127
    %3130 = vset.pattern.permute.xlu0 7
    %3131 = vperm.xlu0 %3130, %v413
    %v3132 = vpop.permute.xlu0 %3131
    %3134 = vset.pattern.permute.xlu0 7
    %3135 = vperm.xlu0 %3134, %v414
    %v3136 = vpop.permute.xlu0 %3135
    %3138 = vset.pattern.permute.xlu0 7
    %3139 = vperm.xlu0 %3138, %v415
    %v3140 = vpop.permute.xlu0 %3139
    %3142 = vset.pattern.permute.xlu0 7
    %3143 = vperm.xlu0 %3142, %v416
    %v3144 = vpop.permute.xlu0 %3143
    %3146 = vset.pattern.permute.xlu0 7
    %3147 = vperm.xlu0 %3146, %v417
    %v3148 = vpop.permute.xlu0 %3147
    %3150 = vset.pattern.permute.xlu0 7
    %3151 = vperm.xlu0 %3150, %v418
    %v3152 = vpop.permute.xlu0 %3151
    %3154 = vset.pattern.permute.xlu0 7
    %3155 = vperm.xlu0 %3154, %v419
    %v3156 = vpop.permute.xlu0 %3155
    %3158 = vset.pattern.permute.xlu0 7
    %3159 = vperm.xlu0 %3158, %v420
    %v3160 = vpop.permute.xlu0 %3159
    %3162 = vset.pattern.permute.xlu0 7
    %3163 = vperm.xlu0 %3162, %v421
    %v3164 = vpop.permute.xlu0 %3163
    %3166 = vset.pattern.permute.xlu0 7
    %3167 = vperm.xlu0 %3166, %v422
    %v3168 = vpop.permute.xlu0 %3167
    %3170 = vset.pattern.permute.xlu0 7
    %3171 = vperm.xlu0 %3170, %v423
    %v3172 = vpop.permute.xlu0 %3171
    %3174 = vset.pattern.permute.xlu0 7
    %3175 = vperm.xlu0 %3174, %v424
    %v3176 = vpop.permute.xlu0 %3175
    %3178 = vset.pattern.permute.xlu0 7
    %3179 = vperm.xlu0 %3178, %v425
    %v3180 = vpop.permute.xlu0 %3179
    %3182 = vset.pattern.permute.xlu0 7
    %3183 = vperm.xlu0 %3182, %v426
    %v3184 = vpop.permute.xlu0 %3183
    %3186 = vset.pattern.permute.xlu0 7
    %3187 = vperm.xlu0 %3186, %v427
    %v3188 = vpop.permute.xlu0 %3187
    %3190 = vset.pattern.permute.xlu0 7
    %3191 = vperm.xlu0 %3190, %v428
    %v3192 = vpop.permute.xlu0 %3191
    %v3194 = vmul.f32 %v54, %v2940
    %v3195 = vmul.f32 %v55, %v2944
    %v3196 = vmul.f32 %v56, %v2948
    %v3197 = vmul.f32 %v57, %v2952
    %v3198 = vmul.f32 %v58, %v2956
    %v3199 = vmul.f32 %v59, %v2960
    %v3200 = vmul.f32 %v60, %v2964
    %v3201 = vmul.f32 %v61, %v2968
    %v3202 = vmul.f32 %v62, %v2972
    %v3203 = vmul.f32 %v63, %v2976
    %v3204 = vmul.f32 %v64, %v2980
    %v3205 = vmul.f32 %v65, %v2984
    %v3206 = vmul.f32 %v66, %v2988
    %v3207 = vmul.f32 %v67, %v2992
    %v3208 = vmul.f32 %v68, %v2996
    %v3209 = vmul.f32 %v69, %v3000
    %v3210 = vmul.f32 %v70, %v3004
    %v3211 = vmul.f32 %v71, %v3008
    %v3212 = vmul.f32 %v72, %v3012
    %v3213 = vmul.f32 %v73, %v3016
    %v3214 = vmul.f32 %v74, %v3020
    %v3215 = vmul.f32 %v75, %v3024
    %v3216 = vmul.f32 %v76, %v3028
    %v3217 = vmul.f32 %v77, %v3032
    %v3218 = vmul.f32 %v78, %v3036
    %v3219 = vmul.f32 %v79, %v3040
    %v3220 = vmul.f32 %v80, %v3044
    %v3221 = vmul.f32 %v81, %v3048
    %v3222 = vmul.f32 %v82, %v3052
    %v3223 = vmul.f32 %v83, %v3056
    %v3224 = vmul.f32 %v84, %v3060
    %v3225 = vmul.f32 %v85, %v3064
    %v3226 = vmul.f32 %v86, %v3068
    %v3227 = vmul.f32 %v87, %v3072
    %v3228 = vmul.f32 %v88, %v3076
    %v3229 = vmul.f32 %v89, %v3080
    %v3230 = vmul.f32 %v90, %v3084
    %v3231 = vmul.f32 %v91, %v3088
    %v3232 = vmul.f32 %v92, %v3092
    %v3233 = vmul.f32 %v93, %v3096
    %v3234 = vmul.f32 %v94, %v3100
    %v3235 = vmul.f32 %v95, %v3104
    %v3236 = vmul.f32 %v96, %v3108
    %v3237 = vmul.f32 %v97, %v3112
    %v3238 = vmul.f32 %v98, %v3116
    %v3239 = vmul.f32 %v99, %v3120
    %v3240 = vmul.f32 %v100, %v3124
    %v3241 = vmul.f32 %v101, %v3128
    %v3242 = vmul.f32 %v102, %v3132
    %v3243 = vmul.f32 %v103, %v3136
    %v3244 = vmul.f32 %v104, %v3140
    %v3245 = vmul.f32 %v105, %v3144
    %v3246 = vmul.f32 %v106, %v3148
    %v3247 = vmul.f32 %v107, %v3152
    %v3248 = vmul.f32 %v108, %v3156
    %v3249 = vmul.f32 %v109, %v3160
    %v3250 = vmul.f32 %v110, %v3164
    %v3251 = vmul.f32 %v111, %v3168
    %v3252 = vmul.f32 %v112, %v3172
    %v3253 = vmul.f32 %v113, %v3176
    %v3254 = vmul.f32 %v114, %v3180
    %v3255 = vmul.f32 %v115, %v3184
    %v3256 = vmul.f32 %v3188, 0.0
    %v3257 = vmul.f32 %v3192, 0.0
    %3258 = vset.pattern.permute.xlu0 8
    %3259 = vperm.xlu0 %3258, %v365
    %v3260 = vpop.permute.xlu0 %3259
    %3262 = vset.pattern.permute.xlu0 8
    %3263 = vperm.xlu0 %3262, %v366
    %v3264 = vpop.permute.xlu0 %3263
    %3266 = vset.pattern.permute.xlu0 8
    %3267 = vperm.xlu0 %3266, %v367
    %v3268 = vpop.permute.xlu0 %3267
    %3270 = vset.pattern.permute.xlu0 8
    %3271 = vperm.xlu0 %3270, %v368
    %v3272 = vpop.permute.xlu0 %3271
    %3274 = vset.pattern.permute.xlu0 8
    %3275 = vperm.xlu0 %3274, %v369
    %v3276 = vpop.permute.xlu0 %3275
    %3278 = vset.pattern.permute.xlu0 8
    %3279 = vperm.xlu0 %3278, %v370
    %v3280 = vpop.permute.xlu0 %3279
    %3282 = vset.pattern.permute.xlu0 8
    %3283 = vperm.xlu0 %3282, %v371
    %v3284 = vpop.permute.xlu0 %3283
    %3286 = vset.pattern.permute.xlu0 8
    %3287 = vperm.xlu0 %3286, %v372
    %v3288 = vpop.permute.xlu0 %3287
    %3290 = vset.pattern.permute.xlu0 8
    %3291 = vperm.xlu0 %3290, %v373
    %v3292 = vpop.permute.xlu0 %3291
    %3294 = vset.pattern.permute.xlu0 8
    %3295 = vperm.xlu0 %3294, %v374
    %v3296 = vpop.permute.xlu0 %3295
    %3298 = vset.pattern.permute.xlu0 8
    %3299 = vperm.xlu0 %3298, %v375
    %v3300 = vpop.permute.xlu0 %3299
    %3302 = vset.pattern.permute.xlu0 8
    %3303 = vperm.xlu0 %3302, %v376
    %v3304 = vpop.permute.xlu0 %3303
    %3306 = vset.pattern.permute.xlu0 8
    %3307 = vperm.xlu0 %3306, %v377
    %v3308 = vpop.permute.xlu0 %3307
    %3310 = vset.pattern.permute.xlu0 8
    %3311 = vperm.xlu0 %3310, %v378
    %v3312 = vpop.permute.xlu0 %3311
    %3314 = vset.pattern.permute.xlu0 8
    %3315 = vperm.xlu0 %3314, %v379
    %v3316 = vpop.permute.xlu0 %3315
    %3318 = vset.pattern.permute.xlu0 8
    %3319 = vperm.xlu0 %3318, %v380
    %v3320 = vpop.permute.xlu0 %3319
    %3322 = vset.pattern.permute.xlu0 8
    %3323 = vperm.xlu0 %3322, %v381
    %v3324 = vpop.permute.xlu0 %3323
    %3326 = vset.pattern.permute.xlu0 8
    %3327 = vperm.xlu0 %3326, %v382
    %v3328 = vpop.permute.xlu0 %3327
    %3330 = vset.pattern.permute.xlu0 8
    %3331 = vperm.xlu0 %3330, %v383
    %v3332 = vpop.permute.xlu0 %3331
    %3334 = vset.pattern.permute.xlu0 8
    %3335 = vperm.xlu0 %3334, %v384
    %v3336 = vpop.permute.xlu0 %3335
    %3338 = vset.pattern.permute.xlu0 8
    %3339 = vperm.xlu0 %3338, %v385
    %v3340 = vpop.permute.xlu0 %3339
    %3342 = vset.pattern.permute.xlu0 8
    %3343 = vperm.xlu0 %3342, %v386
    %v3344 = vpop.permute.xlu0 %3343
    %3346 = vset.pattern.permute.xlu0 8
    %3347 = vperm.xlu0 %3346, %v387
    %v3348 = vpop.permute.xlu0 %3347
    %3350 = vset.pattern.permute.xlu0 8
    %3351 = vperm.xlu0 %3350, %v388
    %v3352 = vpop.permute.xlu0 %3351
    %3354 = vset.pattern.permute.xlu0 8
    %3355 = vperm.xlu0 %3354, %v389
    %v3356 = vpop.permute.xlu0 %3355
    %3358 = vset.pattern.permute.xlu0 8
    %3359 = vperm.xlu0 %3358, %v390
    %v3360 = vpop.permute.xlu0 %3359
    %3362 = vset.pattern.permute.xlu0 8
    %3363 = vperm.xlu0 %3362, %v391
    %v3364 = vpop.permute.xlu0 %3363
    %3366 = vset.pattern.permute.xlu0 8
    %3367 = vperm.xlu0 %3366, %v392
    %v3368 = vpop.permute.xlu0 %3367
    %3370 = vset.pattern.permute.xlu0 8
    %3371 = vperm.xlu0 %3370, %v393
    %v3372 = vpop.permute.xlu0 %3371
    %3374 = vset.pattern.permute.xlu0 8
    %3375 = vperm.xlu0 %3374, %v394
    %v3376 = vpop.permute.xlu0 %3375
    %3378 = vset.pattern.permute.xlu0 8
    %3379 = vperm.xlu0 %3378, %v395
    %v3380 = vpop.permute.xlu0 %3379
    %3382 = vset.pattern.permute.xlu0 8
    %3383 = vperm.xlu0 %3382, %v396
    %v3384 = vpop.permute.xlu0 %3383
    %3386 = vset.pattern.permute.xlu0 8
    %3387 = vperm.xlu0 %3386, %v397
    %v3388 = vpop.permute.xlu0 %3387
    %3390 = vset.pattern.permute.xlu0 8
    %3391 = vperm.xlu0 %3390, %v398
    %v3392 = vpop.permute.xlu0 %3391
    %3394 = vset.pattern.permute.xlu0 8
    %3395 = vperm.xlu0 %3394, %v399
    %v3396 = vpop.permute.xlu0 %3395
    %3398 = vset.pattern.permute.xlu0 8
    %3399 = vperm.xlu0 %3398, %v400
    %v3400 = vpop.permute.xlu0 %3399
    %3402 = vset.pattern.permute.xlu0 8
    %3403 = vperm.xlu0 %3402, %v401
    %v3404 = vpop.permute.xlu0 %3403
    %3406 = vset.pattern.permute.xlu0 8
    %3407 = vperm.xlu0 %3406, %v402
    %v3408 = vpop.permute.xlu0 %3407
    %3410 = vset.pattern.permute.xlu0 8
    %3411 = vperm.xlu0 %3410, %v403
    %v3412 = vpop.permute.xlu0 %3411
    %3414 = vset.pattern.permute.xlu0 8
    %3415 = vperm.xlu0 %3414, %v404
    %v3416 = vpop.permute.xlu0 %3415
    %3418 = vset.pattern.permute.xlu0 8
    %3419 = vperm.xlu0 %3418, %v405
    %v3420 = vpop.permute.xlu0 %3419
    %3422 = vset.pattern.permute.xlu0 8
    %3423 = vperm.xlu0 %3422, %v406
    %v3424 = vpop.permute.xlu0 %3423
    %3426 = vset.pattern.permute.xlu0 8
    %3427 = vperm.xlu0 %3426, %v407
    %v3428 = vpop.permute.xlu0 %3427
    %3430 = vset.pattern.permute.xlu0 8
    %3431 = vperm.xlu0 %3430, %v408
    %v3432 = vpop.permute.xlu0 %3431
    %3434 = vset.pattern.permute.xlu0 8
    %3435 = vperm.xlu0 %3434, %v409
    %v3436 = vpop.permute.xlu0 %3435
    %3438 = vset.pattern.permute.xlu0 8
    %3439 = vperm.xlu0 %3438, %v410
    %v3440 = vpop.permute.xlu0 %3439
    %3442 = vset.pattern.permute.xlu0 8
    %3443 = vperm.xlu0 %3442, %v411
    %v3444 = vpop.permute.xlu0 %3443
    %3446 = vset.pattern.permute.xlu0 8
    %3447 = vperm.xlu0 %3446, %v412
    %v3448 = vpop.permute.xlu0 %3447
    %3450 = vset.pattern.permute.xlu0 8
    %3451 = vperm.xlu0 %3450, %v413
    %v3452 = vpop.permute.xlu0 %3451
    %3454 = vset.pattern.permute.xlu0 8
    %3455 = vperm.xlu0 %3454, %v414
    %v3456 = vpop.permute.xlu0 %3455
    %3458 = vset.pattern.permute.xlu0 8
    %3459 = vperm.xlu0 %3458, %v415
    %v3460 = vpop.permute.xlu0 %3459
    %3462 = vset.pattern.permute.xlu0 8
    %3463 = vperm.xlu0 %3462, %v416
    %v3464 = vpop.permute.xlu0 %3463
    %3466 = vset.pattern.permute.xlu0 8
    %3467 = vperm.xlu0 %3466, %v417
    %v3468 = vpop.permute.xlu0 %3467
    %3470 = vset.pattern.permute.xlu0 8
    %3471 = vperm.xlu0 %3470, %v418
    %v3472 = vpop.permute.xlu0 %3471
    %3474 = vset.pattern.permute.xlu0 8
    %3475 = vperm.xlu0 %3474, %v419
    %v3476 = vpop.permute.xlu0 %3475
    %3478 = vset.pattern.permute.xlu0 8
    %3479 = vperm.xlu0 %3478, %v420
    %v3480 = vpop.permute.xlu0 %3479
    %3482 = vset.pattern.permute.xlu0 8
    %3483 = vperm.xlu0 %3482, %v421
    %v3484 = vpop.permute.xlu0 %3483
    %3486 = vset.pattern.permute.xlu0 8
    %3487 = vperm.xlu0 %3486, %v422
    %v3488 = vpop.permute.xlu0 %3487
    %3490 = vset.pattern.permute.xlu0 8
    %3491 = vperm.xlu0 %3490, %v423
    %v3492 = vpop.permute.xlu0 %3491
    %3494 = vset.pattern.permute.xlu0 8
    %3495 = vperm.xlu0 %3494, %v424
    %v3496 = vpop.permute.xlu0 %3495
    %3498 = vset.pattern.permute.xlu0 8
    %3499 = vperm.xlu0 %3498, %v425
    %v3500 = vpop.permute.xlu0 %3499
    %3502 = vset.pattern.permute.xlu0 8
    %3503 = vperm.xlu0 %3502, %v426
    %v3504 = vpop.permute.xlu0 %3503
    %3506 = vset.pattern.permute.xlu0 8
    %3507 = vperm.xlu0 %3506, %v427
    %v3508 = vpop.permute.xlu0 %3507
    %3510 = vset.pattern.permute.xlu0 8
    %3511 = vperm.xlu0 %3510, %v428
    %v3512 = vpop.permute.xlu0 %3511
    %v3514 = vmul.f32 %v1141, %v3260
    %v3515 = vmul.f32 %v1143, %v3264
    %v3516 = vmul.f32 %v1145, %v3268
    %v3517 = vmul.f32 %v1147, %v3272
    %v3518 = vmul.f32 %v1149, %v3276
    %v3519 = vmul.f32 %v1151, %v3280
    %v3520 = vmul.f32 %v1153, %v3284
    %v3521 = vmul.f32 %v1155, %v3288
    %v3522 = vmul.f32 %v1157, %v3292
    %v3523 = vmul.f32 %v1159, %v3296
    %v3524 = vmul.f32 %v1161, %v3300
    %v3525 = vmul.f32 %v1163, %v3304
    %v3526 = vmul.f32 %v1165, %v3308
    %v3527 = vmul.f32 %v1167, %v3312
    %v3528 = vmul.f32 %v1169, %v3316
    %v3529 = vmul.f32 %v1171, %v3320
    %v3530 = vmul.f32 %v1173, %v3324
    %v3531 = vmul.f32 %v1175, %v3328
    %v3532 = vmul.f32 %v1177, %v3332
    %v3533 = vmul.f32 %v1179, %v3336
    %v3534 = vmul.f32 %v1181, %v3340
    %v3535 = vmul.f32 %v1183, %v3344
    %v3536 = vmul.f32 %v1185, %v3348
    %v3537 = vmul.f32 %v1187, %v3352
    %v3538 = vmul.f32 %v1189, %v3356
    %v3539 = vmul.f32 %v1191, %v3360
    %v3540 = vmul.f32 %v1193, %v3364
    %v3541 = vmul.f32 %v1195, %v3368
    %v3542 = vmul.f32 %v1197, %v3372
    %v3543 = vmul.f32 %v1199, %v3376
    %v3544 = vmul.f32 %v1201, %v3380
    %v3545 = vmul.f32 %v1203, %v3384
    %v3546 = vmul.f32 %v1205, %v3388
    %v3547 = vmul.f32 %v1207, %v3392
    %v3548 = vmul.f32 %v1209, %v3396
    %v3549 = vmul.f32 %v1211, %v3400
    %v3550 = vmul.f32 %v1213, %v3404
    %v3551 = vmul.f32 %v1215, %v3408
    %v3552 = vmul.f32 %v1217, %v3412
    %v3553 = vmul.f32 %v1219, %v3416
    %v3554 = vmul.f32 %v1221, %v3420
    %v3555 = vmul.f32 %v1223, %v3424
    %v3556 = vmul.f32 %v1225, %v3428
    %v3557 = vmul.f32 %v1227, %v3432
    %v3558 = vmul.f32 %v1229, %v3436
    %v3559 = vmul.f32 %v1231, %v3440
    %v3560 = vmul.f32 %v1233, %v3444
    %v3561 = vmul.f32 %v1235, %v3448
    %v3562 = vmul.f32 %v1237, %v3452
    %v3563 = vmul.f32 %v1239, %v3456
    %v3564 = vmul.f32 %v1241, %v3460
    %v3565 = vmul.f32 %v1243, %v3464
    %v3566 = vmul.f32 %v1245, %v3468
    %v3567 = vmul.f32 %v1247, %v3472
    %v3568 = vmul.f32 %v1249, %v3476
    %v3569 = vmul.f32 %v1251, %v3480
    %v3570 = vmul.f32 %v1253, %v3484
    %v3571 = vmul.f32 %v1255, %v3488
    %v3572 = vmul.f32 %v1257, %v3492
    %v3573 = vmul.f32 %v1259, %v3496
    %v3574 = vmul.f32 %v2292, %v3500
    %v3575 = vmul.f32 %v2295, %v3504
    %v3576 = vmul.f32 %v3508, 0.0
    %v3577 = vmul.f32 %v3512, 0.0
    %3642 = vrot.lane.b32.xlu0 %v1069, 4
    %v3643 = vpop.permute.xlu0 %3642
    %3644 = vrot.lane.b32.xlu0 %v1070, 4
    %v3645 = vpop.permute.xlu0 %3644
    %3646 = vrot.lane.b32.xlu0 %v1071, 4
    %v3647 = vpop.permute.xlu0 %3646
    %3648 = vrot.lane.b32.xlu0 %v1072, 4
    %v3649 = vpop.permute.xlu0 %3648
    %3650 = vrot.lane.b32.xlu0 %v1073, 4
    %v3651 = vpop.permute.xlu0 %3650
    %3652 = vrot.lane.b32.xlu0 %v1074, 4
    %v3653 = vpop.permute.xlu0 %3652
    %3654 = vrot.lane.b32.xlu0 %v1075, 4
    %v3655 = vpop.permute.xlu0 %3654
    %3656 = vrot.lane.b32.xlu0 %v1076, 4
    %v3657 = vpop.permute.xlu0 %3656
    %3658 = vrot.lane.b32.xlu0 %v1077, 4
    %v3659 = vpop.permute.xlu0 %3658
    %3660 = vrot.lane.b32.xlu0 %v1078, 4
    %v3661 = vpop.permute.xlu0 %3660
    %3662 = vrot.lane.b32.xlu0 %v1079, 4
    %v3663 = vpop.permute.xlu0 %3662
    %3664 = vrot.lane.b32.xlu0 %v1080, 4
    %v3665 = vpop.permute.xlu0 %3664
    %3666 = vrot.lane.b32.xlu0 %v1081, 4
    %v3667 = vpop.permute.xlu0 %3666
    %3668 = vrot.lane.b32.xlu0 %v1082, 4
    %v3669 = vpop.permute.xlu0 %3668
    %3670 = vrot.lane.b32.xlu0 %v1083, 4
    %v3671 = vpop.permute.xlu0 %3670
    %3672 = vrot.lane.b32.xlu0 %v1084, 4
    %v3673 = vpop.permute.xlu0 %3672
    %3674 = vrot.lane.b32.xlu0 %v1085, 4
    %v3675 = vpop.permute.xlu0 %3674
    %3676 = vrot.lane.b32.xlu0 %v1086, 4
    %v3677 = vpop.permute.xlu0 %3676
    %3678 = vrot.lane.b32.xlu0 %v1087, 4
    %v3679 = vpop.permute.xlu0 %3678
    %3680 = vrot.lane.b32.xlu0 %v1088, 4
    %v3681 = vpop.permute.xlu0 %3680
    %3682 = vrot.lane.b32.xlu0 %v1089, 4
    %v3683 = vpop.permute.xlu0 %3682
    %3684 = vrot.lane.b32.xlu0 %v1090, 4
    %v3685 = vpop.permute.xlu0 %3684
    %3686 = vrot.lane.b32.xlu0 %v1091, 4
    %v3687 = vpop.permute.xlu0 %3686
    %3688 = vrot.lane.b32.xlu0 %v1092, 4
    %v3689 = vpop.permute.xlu0 %3688
    %3690 = vrot.lane.b32.xlu0 %v1093, 4
    %v3691 = vpop.permute.xlu0 %3690
    %3692 = vrot.lane.b32.xlu0 %v1094, 4
    %v3693 = vpop.permute.xlu0 %3692
    %3694 = vrot.lane.b32.xlu0 %v1095, 4
    %v3695 = vpop.permute.xlu0 %3694
    %3696 = vrot.lane.b32.xlu0 %v1096, 4
    %v3697 = vpop.permute.xlu0 %3696
    %3698 = vrot.lane.b32.xlu0 %v1097, 4
    %v3699 = vpop.permute.xlu0 %3698
    %3700 = vrot.lane.b32.xlu0 %v1098, 4
    %v3701 = vpop.permute.xlu0 %3700
    %3702 = vrot.lane.b32.xlu0 %v1099, 4
    %v3703 = vpop.permute.xlu0 %3702
    %3704 = vrot.lane.b32.xlu0 %v1100, 4
    %v3705 = vpop.permute.xlu0 %3704
    %3706 = vrot.lane.b32.xlu0 %v1101, 4
    %v3707 = vpop.permute.xlu0 %3706
    %3708 = vrot.lane.b32.xlu0 %v1102, 4
    %v3709 = vpop.permute.xlu0 %3708
    %3710 = vrot.lane.b32.xlu0 %v1103, 4
    %v3711 = vpop.permute.xlu0 %3710
    %3712 = vrot.lane.b32.xlu0 %v1104, 4
    %v3713 = vpop.permute.xlu0 %3712
    %3714 = vrot.lane.b32.xlu0 %v1105, 4
    %v3715 = vpop.permute.xlu0 %3714
    %3716 = vrot.lane.b32.xlu0 %v1106, 4
    %v3717 = vpop.permute.xlu0 %3716
    %3718 = vrot.lane.b32.xlu0 %v1107, 4
    %v3719 = vpop.permute.xlu0 %3718
    %3720 = vrot.lane.b32.xlu0 %v1108, 4
    %v3721 = vpop.permute.xlu0 %3720
    %3722 = vrot.lane.b32.xlu0 %v1109, 4
    %v3723 = vpop.permute.xlu0 %3722
    %3724 = vrot.lane.b32.xlu0 %v1110, 4
    %v3725 = vpop.permute.xlu0 %3724
    %3726 = vrot.lane.b32.xlu0 %v1111, 4
    %v3727 = vpop.permute.xlu0 %3726
    %3728 = vrot.lane.b32.xlu0 %v1112, 4
    %v3729 = vpop.permute.xlu0 %3728
    %3730 = vrot.lane.b32.xlu0 %v1113, 4
    %v3731 = vpop.permute.xlu0 %3730
    %3732 = vrot.lane.b32.xlu0 %v1114, 4
    %v3733 = vpop.permute.xlu0 %3732
    %3734 = vrot.lane.b32.xlu0 %v1115, 4
    %v3735 = vpop.permute.xlu0 %3734
    %3736 = vrot.lane.b32.xlu0 %v1116, 4
    %v3737 = vpop.permute.xlu0 %3736
    %3738 = vrot.lane.b32.xlu0 %v1117, 4
    %v3739 = vpop.permute.xlu0 %3738
    %3740 = vrot.lane.b32.xlu0 %v1118, 4
    %v3741 = vpop.permute.xlu0 %3740
    %3742 = vrot.lane.b32.xlu0 %v1119, 4
    %v3743 = vpop.permute.xlu0 %3742
    %3744 = vrot.lane.b32.xlu0 %v1120, 4
    %v3745 = vpop.permute.xlu0 %3744
    %3746 = vrot.lane.b32.xlu0 %v1121, 4
    %v3747 = vpop.permute.xlu0 %3746
    %3748 = vrot.lane.b32.xlu0 %v1122, 4
    %v3749 = vpop.permute.xlu0 %3748
    %3750 = vrot.lane.b32.xlu0 %v1123, 4
    %v3751 = vpop.permute.xlu0 %3750
    %3752 = vrot.lane.b32.xlu0 %v1124, 4
    %v3753 = vpop.permute.xlu0 %3752
    %3754 = vrot.lane.b32.xlu0 %v1125, 4
    %v3755 = vpop.permute.xlu0 %3754
    %3756 = vrot.lane.b32.xlu0 %v1126, 4
    %v3757 = vpop.permute.xlu0 %3756
    %3758 = vrot.lane.b32.xlu0 %v1127, 4
    %v3759 = vpop.permute.xlu0 %3758
    %3760 = vrot.lane.b32.xlu0 %v1128, 4
    %v3761 = vpop.permute.xlu0 %3760
    %3762 = vrot.lane.b32.xlu0 %v1129, 4
    %v3763 = vpop.permute.xlu0 %3762
    %3764 = vrot.lane.b32.xlu0 %v1130, 4
    %v3765 = vpop.permute.xlu0 %3764
    %3766 = vrot.lane.b32.xlu0 %v1131, 4
    %v3767 = vpop.permute.xlu0 %3766
    %3768 = vrot.lane.b32.xlu0 %v1132, 4
    %v3769 = vpop.permute.xlu0 %3768
    %3898 = vrot.lane.b32.xlu0 %v1580, 8
    %v3899 = vpop.permute.xlu0 %3898
    %3900 = vrot.lane.b32.xlu0 %v1581, 8
    %v3901 = vpop.permute.xlu0 %3900
    %3902 = vrot.lane.b32.xlu0 %v1582, 8
    %v3903 = vpop.permute.xlu0 %3902
    %3904 = vrot.lane.b32.xlu0 %v1583, 8
    %v3905 = vpop.permute.xlu0 %3904
    %3906 = vrot.lane.b32.xlu0 %v1584, 8
    %v3907 = vpop.permute.xlu0 %3906
    %3908 = vrot.lane.b32.xlu0 %v1585, 8
    %v3909 = vpop.permute.xlu0 %3908
    %3910 = vrot.lane.b32.xlu0 %v1586, 8
    %v3911 = vpop.permute.xlu0 %3910
    %3912 = vrot.lane.b32.xlu0 %v1587, 8
    %v3913 = vpop.permute.xlu0 %3912
    %3914 = vrot.lane.b32.xlu0 %v1588, 8
    %v3915 = vpop.permute.xlu0 %3914
    %3916 = vrot.lane.b32.xlu0 %v1589, 8
    %v3917 = vpop.permute.xlu0 %3916
    %3918 = vrot.lane.b32.xlu0 %v1590, 8
    %v3919 = vpop.permute.xlu0 %3918
    %3920 = vrot.lane.b32.xlu0 %v1591, 8
    %v3921 = vpop.permute.xlu0 %3920
    %3922 = vrot.lane.b32.xlu0 %v1592, 8
    %v3923 = vpop.permute.xlu0 %3922
    %3924 = vrot.lane.b32.xlu0 %v1593, 8
    %v3925 = vpop.permute.xlu0 %3924
    %3926 = vrot.lane.b32.xlu0 %v1594, 8
    %v3927 = vpop.permute.xlu0 %3926
    %3928 = vrot.lane.b32.xlu0 %v1595, 8
    %v3929 = vpop.permute.xlu0 %3928
    %3930 = vrot.lane.b32.xlu0 %v1596, 8
    %v3931 = vpop.permute.xlu0 %3930
    %3932 = vrot.lane.b32.xlu0 %v1597, 8
    %v3933 = vpop.permute.xlu0 %3932
    %3934 = vrot.lane.b32.xlu0 %v1598, 8
    %v3935 = vpop.permute.xlu0 %3934
    %3936 = vrot.lane.b32.xlu0 %v1599, 8
    %v3937 = vpop.permute.xlu0 %3936
    %3938 = vrot.lane.b32.xlu0 %v1600, 8
    %v3939 = vpop.permute.xlu0 %3938
    %3940 = vrot.lane.b32.xlu0 %v1601, 8
    %v3941 = vpop.permute.xlu0 %3940
    %3942 = vrot.lane.b32.xlu0 %v1602, 8
    %v3943 = vpop.permute.xlu0 %3942
    %3944 = vrot.lane.b32.xlu0 %v1603, 8
    %v3945 = vpop.permute.xlu0 %3944
    %3946 = vrot.lane.b32.xlu0 %v1604, 8
    %v3947 = vpop.permute.xlu0 %3946
    %3948 = vrot.lane.b32.xlu0 %v1605, 8
    %v3949 = vpop.permute.xlu0 %3948
    %3950 = vrot.lane.b32.xlu0 %v1606, 8
    %v3951 = vpop.permute.xlu0 %3950
    %3952 = vrot.lane.b32.xlu0 %v1607, 8
    %v3953 = vpop.permute.xlu0 %3952
    %3954 = vrot.lane.b32.xlu0 %v1608, 8
    %v3955 = vpop.permute.xlu0 %3954
    %3956 = vrot.lane.b32.xlu0 %v1609, 8
    %v3957 = vpop.permute.xlu0 %3956
    %3958 = vrot.lane.b32.xlu0 %v1610, 8
    %v3959 = vpop.permute.xlu0 %3958
    %3960 = vrot.lane.b32.xlu0 %v1611, 8
    %v3961 = vpop.permute.xlu0 %3960
    %3962 = vrot.lane.b32.xlu0 %v1612, 8
    %v3963 = vpop.permute.xlu0 %3962
    %3964 = vrot.lane.b32.xlu0 %v1613, 8
    %v3965 = vpop.permute.xlu0 %3964
    %3966 = vrot.lane.b32.xlu0 %v1614, 8
    %v3967 = vpop.permute.xlu0 %3966
    %3968 = vrot.lane.b32.xlu0 %v1615, 8
    %v3969 = vpop.permute.xlu0 %3968
    %3970 = vrot.lane.b32.xlu0 %v1616, 8
    %v3971 = vpop.permute.xlu0 %3970
    %3972 = vrot.lane.b32.xlu0 %v1617, 8
    %v3973 = vpop.permute.xlu0 %3972
    %3974 = vrot.lane.b32.xlu0 %v1618, 8
    %v3975 = vpop.permute.xlu0 %3974
    %3976 = vrot.lane.b32.xlu0 %v1619, 8
    %v3977 = vpop.permute.xlu0 %3976
    %3978 = vrot.lane.b32.xlu0 %v1620, 8
    %v3979 = vpop.permute.xlu0 %3978
    %3980 = vrot.lane.b32.xlu0 %v1621, 8
    %v3981 = vpop.permute.xlu0 %3980
    %3982 = vrot.lane.b32.xlu0 %v1622, 8
    %v3983 = vpop.permute.xlu0 %3982
    %3984 = vrot.lane.b32.xlu0 %v1623, 8
    %v3985 = vpop.permute.xlu0 %3984
    %3986 = vrot.lane.b32.xlu0 %v1624, 8
    %v3987 = vpop.permute.xlu0 %3986
    %3988 = vrot.lane.b32.xlu0 %v1625, 8
    %v3989 = vpop.permute.xlu0 %3988
    %3990 = vrot.lane.b32.xlu0 %v1626, 8
    %v3991 = vpop.permute.xlu0 %3990
    %3992 = vrot.lane.b32.xlu0 %v1627, 8
    %v3993 = vpop.permute.xlu0 %3992
    %3994 = vrot.lane.b32.xlu0 %v1628, 8
    %v3995 = vpop.permute.xlu0 %3994
    %3996 = vrot.lane.b32.xlu0 %v1629, 8
    %v3997 = vpop.permute.xlu0 %3996
    %3998 = vrot.lane.b32.xlu0 %v1630, 8
    %v3999 = vpop.permute.xlu0 %3998
    %4000 = vrot.lane.b32.xlu0 %v1631, 8
    %v4001 = vpop.permute.xlu0 %4000
    %4002 = vrot.lane.b32.xlu0 %v1632, 8
    %v4003 = vpop.permute.xlu0 %4002
    %4004 = vrot.lane.b32.xlu0 %v1633, 8
    %v4005 = vpop.permute.xlu0 %4004
    %4006 = vrot.lane.b32.xlu0 %v1634, 8
    %v4007 = vpop.permute.xlu0 %4006
    %4008 = vrot.lane.b32.xlu0 %v1635, 8
    %v4009 = vpop.permute.xlu0 %4008
    %4010 = vrot.lane.b32.xlu0 %v1636, 8
    %v4011 = vpop.permute.xlu0 %4010
    %4012 = vrot.lane.b32.xlu0 %v1637, 8
    %v4013 = vpop.permute.xlu0 %4012
    %4014 = vrot.lane.b32.xlu0 %v1638, 8
    %v4015 = vpop.permute.xlu0 %4014
    %4016 = vrot.lane.b32.xlu0 %v1639, 8
    %v4017 = vpop.permute.xlu0 %4016
    %4018 = vrot.lane.b32.xlu0 %v1640, 8
    %v4019 = vpop.permute.xlu0 %4018
    %4020 = vrot.lane.b32.xlu0 %v1641, 8
    %v4021 = vpop.permute.xlu0 %4020
    %4022 = vrot.lane.b32.xlu0 %v1642, 8
    %v4023 = vpop.permute.xlu0 %4022
    %4024 = vrot.lane.b32.xlu0 %v1643, 8
    %v4025 = vpop.permute.xlu0 %4024
    %4154 = vrot.lane.b32.xlu0 %v1907, 12
    %v4155 = vpop.permute.xlu0 %4154
    %4156 = vrot.lane.b32.xlu0 %v1908, 12
    %v4157 = vpop.permute.xlu0 %4156
    %4158 = vrot.lane.b32.xlu0 %v1909, 12
    %v4159 = vpop.permute.xlu0 %4158
    %4160 = vrot.lane.b32.xlu0 %v1910, 12
    %v4161 = vpop.permute.xlu0 %4160
    %4162 = vrot.lane.b32.xlu0 %v1911, 12
    %v4163 = vpop.permute.xlu0 %4162
    %4164 = vrot.lane.b32.xlu0 %v1912, 12
    %v4165 = vpop.permute.xlu0 %4164
    %4166 = vrot.lane.b32.xlu0 %v1913, 12
    %v4167 = vpop.permute.xlu0 %4166
    %4168 = vrot.lane.b32.xlu0 %v1914, 12
    %v4169 = vpop.permute.xlu0 %4168
    %4170 = vrot.lane.b32.xlu0 %v1915, 12
    %v4171 = vpop.permute.xlu0 %4170
    %4172 = vrot.lane.b32.xlu0 %v1916, 12
    %v4173 = vpop.permute.xlu0 %4172
    %4174 = vrot.lane.b32.xlu0 %v1917, 12
    %v4175 = vpop.permute.xlu0 %4174
    %4176 = vrot.lane.b32.xlu0 %v1918, 12
    %v4177 = vpop.permute.xlu0 %4176
    %4178 = vrot.lane.b32.xlu0 %v1919, 12
    %v4179 = vpop.permute.xlu0 %4178
    %4180 = vrot.lane.b32.xlu0 %v1920, 12
    %v4181 = vpop.permute.xlu0 %4180
    %4182 = vrot.lane.b32.xlu0 %v1921, 12
    %v4183 = vpop.permute.xlu0 %4182
    %4184 = vrot.lane.b32.xlu0 %v1922, 12
    %v4185 = vpop.permute.xlu0 %4184
    %4186 = vrot.lane.b32.xlu0 %v1923, 12
    %v4187 = vpop.permute.xlu0 %4186
    %4188 = vrot.lane.b32.xlu0 %v1924, 12
    %v4189 = vpop.permute.xlu0 %4188
    %4190 = vrot.lane.b32.xlu0 %v1925, 12
    %v4191 = vpop.permute.xlu0 %4190
    %4192 = vrot.lane.b32.xlu0 %v1926, 12
    %v4193 = vpop.permute.xlu0 %4192
    %4194 = vrot.lane.b32.xlu0 %v1927, 12
    %v4195 = vpop.permute.xlu0 %4194
    %4196 = vrot.lane.b32.xlu0 %v1928, 12
    %v4197 = vpop.permute.xlu0 %4196
    %4198 = vrot.lane.b32.xlu0 %v1929, 12
    %v4199 = vpop.permute.xlu0 %4198
    %4200 = vrot.lane.b32.xlu0 %v1930, 12
    %v4201 = vpop.permute.xlu0 %4200
    %4202 = vrot.lane.b32.xlu0 %v1931, 12
    %v4203 = vpop.permute.xlu0 %4202
    %4204 = vrot.lane.b32.xlu0 %v1932, 12
    %v4205 = vpop.permute.xlu0 %4204
    %4206 = vrot.lane.b32.xlu0 %v1933, 12
    %v4207 = vpop.permute.xlu0 %4206
    %4208 = vrot.lane.b32.xlu0 %v1934, 12
    %v4209 = vpop.permute.xlu0 %4208
    %4210 = vrot.lane.b32.xlu0 %v1935, 12
    %v4211 = vpop.permute.xlu0 %4210
    %4212 = vrot.lane.b32.xlu0 %v1936, 12
    %v4213 = vpop.permute.xlu0 %4212
    %4214 = vrot.lane.b32.xlu0 %v1937, 12
    %v4215 = vpop.permute.xlu0 %4214
    %4216 = vrot.lane.b32.xlu0 %v1938, 12
    %v4217 = vpop.permute.xlu0 %4216
    %4218 = vrot.lane.b32.xlu0 %v1939, 12
    %v4219 = vpop.permute.xlu0 %4218
    %4220 = vrot.lane.b32.xlu0 %v1940, 12
    %v4221 = vpop.permute.xlu0 %4220
    %4222 = vrot.lane.b32.xlu0 %v1941, 12
    %v4223 = vpop.permute.xlu0 %4222
    %4224 = vrot.lane.b32.xlu0 %v1942, 12
    %v4225 = vpop.permute.xlu0 %4224
    %4226 = vrot.lane.b32.xlu0 %v1943, 12
    %v4227 = vpop.permute.xlu0 %4226
    %4228 = vrot.lane.b32.xlu0 %v1944, 12
    %v4229 = vpop.permute.xlu0 %4228
    %4230 = vrot.lane.b32.xlu0 %v1945, 12
    %v4231 = vpop.permute.xlu0 %4230
    %4232 = vrot.lane.b32.xlu0 %v1946, 12
    %v4233 = vpop.permute.xlu0 %4232
    %4234 = vrot.lane.b32.xlu0 %v1947, 12
    %v4235 = vpop.permute.xlu0 %4234
    %4236 = vrot.lane.b32.xlu0 %v1948, 12
    %v4237 = vpop.permute.xlu0 %4236
    %4238 = vrot.lane.b32.xlu0 %v1949, 12
    %v4239 = vpop.permute.xlu0 %4238
    %4240 = vrot.lane.b32.xlu0 %v1950, 12
    %v4241 = vpop.permute.xlu0 %4240
    %4242 = vrot.lane.b32.xlu0 %v1951, 12
    %v4243 = vpop.permute.xlu0 %4242
    %4244 = vrot.lane.b32.xlu0 %v1952, 12
    %v4245 = vpop.permute.xlu0 %4244
    %4246 = vrot.lane.b32.xlu0 %v1953, 12
    %v4247 = vpop.permute.xlu0 %4246
    %4248 = vrot.lane.b32.xlu0 %v1954, 12
    %v4249 = vpop.permute.xlu0 %4248
    %4250 = vrot.lane.b32.xlu0 %v1955, 12
    %v4251 = vpop.permute.xlu0 %4250
    %4252 = vrot.lane.b32.xlu0 %v1956, 12
    %v4253 = vpop.permute.xlu0 %4252
    %4254 = vrot.lane.b32.xlu0 %v1957, 12
    %v4255 = vpop.permute.xlu0 %4254
    %4256 = vrot.lane.b32.xlu0 %v1958, 12
    %v4257 = vpop.permute.xlu0 %4256
    %4258 = vrot.lane.b32.xlu0 %v1959, 12
    %v4259 = vpop.permute.xlu0 %4258
    %4260 = vrot.lane.b32.xlu0 %v1960, 12
    %v4261 = vpop.permute.xlu0 %4260
    %4262 = vrot.lane.b32.xlu0 %v1961, 12
    %v4263 = vpop.permute.xlu0 %4262
    %4264 = vrot.lane.b32.xlu0 %v1962, 12
    %v4265 = vpop.permute.xlu0 %4264
    %4266 = vrot.lane.b32.xlu0 %v1963, 12
    %v4267 = vpop.permute.xlu0 %4266
    %4268 = vrot.lane.b32.xlu0 %v1964, 12
    %v4269 = vpop.permute.xlu0 %4268
    %4270 = vrot.lane.b32.xlu0 %v1965, 12
    %v4271 = vpop.permute.xlu0 %4270
    %4272 = vrot.lane.b32.xlu0 %v1966, 12
    %v4273 = vpop.permute.xlu0 %4272
    %4274 = vrot.lane.b32.xlu0 %v1967, 12
    %v4275 = vpop.permute.xlu0 %4274
    %4276 = vrot.lane.b32.xlu0 %v1968, 12
    %v4277 = vpop.permute.xlu0 %4276
    %4278 = vrot.lane.b32.xlu0 %v1969, 12
    %v4279 = vpop.permute.xlu0 %4278
    %4280 = vrot.lane.b32.xlu0 %v1970, 12
    %v4281 = vpop.permute.xlu0 %4280
    %4410 = vrot.lane.b32.xlu0 %v2227, 16
    %v4411 = vpop.permute.xlu0 %4410
    %4412 = vrot.lane.b32.xlu0 %v2228, 16
    %v4413 = vpop.permute.xlu0 %4412
    %4414 = vrot.lane.b32.xlu0 %v2229, 16
    %v4415 = vpop.permute.xlu0 %4414
    %4416 = vrot.lane.b32.xlu0 %v2230, 16
    %v4417 = vpop.permute.xlu0 %4416
    %4418 = vrot.lane.b32.xlu0 %v2231, 16
    %v4419 = vpop.permute.xlu0 %4418
    %4420 = vrot.lane.b32.xlu0 %v2232, 16
    %v4421 = vpop.permute.xlu0 %4420
    %4422 = vrot.lane.b32.xlu0 %v2233, 16
    %v4423 = vpop.permute.xlu0 %4422
    %4424 = vrot.lane.b32.xlu0 %v2234, 16
    %v4425 = vpop.permute.xlu0 %4424
    %4426 = vrot.lane.b32.xlu0 %v2235, 16
    %v4427 = vpop.permute.xlu0 %4426
    %4428 = vrot.lane.b32.xlu0 %v2236, 16
    %v4429 = vpop.permute.xlu0 %4428
    %4430 = vrot.lane.b32.xlu0 %v2237, 16
    %v4431 = vpop.permute.xlu0 %4430
    %4432 = vrot.lane.b32.xlu0 %v2238, 16
    %v4433 = vpop.permute.xlu0 %4432
    %4434 = vrot.lane.b32.xlu0 %v2239, 16
    %v4435 = vpop.permute.xlu0 %4434
    %4436 = vrot.lane.b32.xlu0 %v2240, 16
    %v4437 = vpop.permute.xlu0 %4436
    %4438 = vrot.lane.b32.xlu0 %v2241, 16
    %v4439 = vpop.permute.xlu0 %4438
    %4440 = vrot.lane.b32.xlu0 %v2242, 16
    %v4441 = vpop.permute.xlu0 %4440
    %4442 = vrot.lane.b32.xlu0 %v2243, 16
    %v4443 = vpop.permute.xlu0 %4442
    %4444 = vrot.lane.b32.xlu0 %v2244, 16
    %v4445 = vpop.permute.xlu0 %4444
    %4446 = vrot.lane.b32.xlu0 %v2245, 16
    %v4447 = vpop.permute.xlu0 %4446
    %4448 = vrot.lane.b32.xlu0 %v2246, 16
    %v4449 = vpop.permute.xlu0 %4448
    %4450 = vrot.lane.b32.xlu0 %v2247, 16
    %v4451 = vpop.permute.xlu0 %4450
    %4452 = vrot.lane.b32.xlu0 %v2248, 16
    %v4453 = vpop.permute.xlu0 %4452
    %4454 = vrot.lane.b32.xlu0 %v2249, 16
    %v4455 = vpop.permute.xlu0 %4454
    %4456 = vrot.lane.b32.xlu0 %v2250, 16
    %v4457 = vpop.permute.xlu0 %4456
    %4458 = vrot.lane.b32.xlu0 %v2251, 16
    %v4459 = vpop.permute.xlu0 %4458
    %4460 = vrot.lane.b32.xlu0 %v2252, 16
    %v4461 = vpop.permute.xlu0 %4460
    %4462 = vrot.lane.b32.xlu0 %v2253, 16
    %v4463 = vpop.permute.xlu0 %4462
    %4464 = vrot.lane.b32.xlu0 %v2254, 16
    %v4465 = vpop.permute.xlu0 %4464
    %4466 = vrot.lane.b32.xlu0 %v2255, 16
    %v4467 = vpop.permute.xlu0 %4466
    %4468 = vrot.lane.b32.xlu0 %v2256, 16
    %v4469 = vpop.permute.xlu0 %4468
    %4470 = vrot.lane.b32.xlu0 %v2257, 16
    %v4471 = vpop.permute.xlu0 %4470
    %4472 = vrot.lane.b32.xlu0 %v2258, 16
    %v4473 = vpop.permute.xlu0 %4472
    %4474 = vrot.lane.b32.xlu0 %v2259, 16
    %v4475 = vpop.permute.xlu0 %4474
    %4476 = vrot.lane.b32.xlu0 %v2260, 16
    %v4477 = vpop.permute.xlu0 %4476
    %4478 = vrot.lane.b32.xlu0 %v2261, 16
    %v4479 = vpop.permute.xlu0 %4478
    %4480 = vrot.lane.b32.xlu0 %v2262, 16
    %v4481 = vpop.permute.xlu0 %4480
    %4482 = vrot.lane.b32.xlu0 %v2263, 16
    %v4483 = vpop.permute.xlu0 %4482
    %4484 = vrot.lane.b32.xlu0 %v2264, 16
    %v4485 = vpop.permute.xlu0 %4484
    %4486 = vrot.lane.b32.xlu0 %v2265, 16
    %v4487 = vpop.permute.xlu0 %4486
    %4488 = vrot.lane.b32.xlu0 %v2266, 16
    %v4489 = vpop.permute.xlu0 %4488
    %4490 = vrot.lane.b32.xlu0 %v2267, 16
    %v4491 = vpop.permute.xlu0 %4490
    %4492 = vrot.lane.b32.xlu0 %v2268, 16
    %v4493 = vpop.permute.xlu0 %4492
    %4494 = vrot.lane.b32.xlu0 %v2269, 16
    %v4495 = vpop.permute.xlu0 %4494
    %4496 = vrot.lane.b32.xlu0 %v2270, 16
    %v4497 = vpop.permute.xlu0 %4496
    %4498 = vrot.lane.b32.xlu0 %v2271, 16
    %v4499 = vpop.permute.xlu0 %4498
    %4500 = vrot.lane.b32.xlu0 %v2272, 16
    %v4501 = vpop.permute.xlu0 %4500
    %4502 = vrot.lane.b32.xlu0 %v2273, 16
    %v4503 = vpop.permute.xlu0 %4502
    %4504 = vrot.lane.b32.xlu0 %v2274, 16
    %v4505 = vpop.permute.xlu0 %4504
    %4506 = vrot.lane.b32.xlu0 %v2275, 16
    %v4507 = vpop.permute.xlu0 %4506
    %4508 = vrot.lane.b32.xlu0 %v2276, 16
    %v4509 = vpop.permute.xlu0 %4508
    %4510 = vrot.lane.b32.xlu0 %v2277, 16
    %v4511 = vpop.permute.xlu0 %4510
    %4512 = vrot.lane.b32.xlu0 %v2278, 16
    %v4513 = vpop.permute.xlu0 %4512
    %4514 = vrot.lane.b32.xlu0 %v2279, 16
    %v4515 = vpop.permute.xlu0 %4514
    %4516 = vrot.lane.b32.xlu0 %v2280, 16
    %v4517 = vpop.permute.xlu0 %4516
    %4518 = vrot.lane.b32.xlu0 %v2281, 16
    %v4519 = vpop.permute.xlu0 %4518
    %4520 = vrot.lane.b32.xlu0 %v2282, 16
    %v4521 = vpop.permute.xlu0 %4520
    %4522 = vrot.lane.b32.xlu0 %v2283, 16
    %v4523 = vpop.permute.xlu0 %4522
    %4524 = vrot.lane.b32.xlu0 %v2284, 16
    %v4525 = vpop.permute.xlu0 %4524
    %4526 = vrot.lane.b32.xlu0 %v2285, 16
    %v4527 = vpop.permute.xlu0 %4526
    %4528 = vrot.lane.b32.xlu0 %v2286, 16
    %v4529 = vpop.permute.xlu0 %4528
    %4530 = vrot.lane.b32.xlu0 %v2287, 16
    %v4531 = vpop.permute.xlu0 %4530
    %4532 = vrot.lane.b32.xlu0 %v2288, 16
    %v4533 = vpop.permute.xlu0 %4532
    %4534 = vrot.lane.b32.xlu0 %v2289, 16
    %v4535 = vpop.permute.xlu0 %4534
    %4536 = vrot.lane.b32.xlu0 %v2290, 16
    %v4537 = vpop.permute.xlu0 %4536
    %4666 = vrot.lane.b32.xlu0 %v2552, 20
    %v4667 = vpop.permute.xlu0 %4666
    %4668 = vrot.lane.b32.xlu0 %v2553, 20
    %v4669 = vpop.permute.xlu0 %4668
    %4670 = vrot.lane.b32.xlu0 %v2554, 20
    %v4671 = vpop.permute.xlu0 %4670
    %4672 = vrot.lane.b32.xlu0 %v2555, 20
    %v4673 = vpop.permute.xlu0 %4672
    %4674 = vrot.lane.b32.xlu0 %v2556, 20
    %v4675 = vpop.permute.xlu0 %4674
    %4676 = vrot.lane.b32.xlu0 %v2557, 20
    %v4677 = vpop.permute.xlu0 %4676
    %4678 = vrot.lane.b32.xlu0 %v2558, 20
    %v4679 = vpop.permute.xlu0 %4678
    %4680 = vrot.lane.b32.xlu0 %v2559, 20
    %v4681 = vpop.permute.xlu0 %4680
    %4682 = vrot.lane.b32.xlu0 %v2560, 20
    %v4683 = vpop.permute.xlu0 %4682
    %4684 = vrot.lane.b32.xlu0 %v2561, 20
    %v4685 = vpop.permute.xlu0 %4684
    %4686 = vrot.lane.b32.xlu0 %v2562, 20
    %v4687 = vpop.permute.xlu0 %4686
    %4688 = vrot.lane.b32.xlu0 %v2563, 20
    %v4689 = vpop.permute.xlu0 %4688
    %4690 = vrot.lane.b32.xlu0 %v2564, 20
    %v4691 = vpop.permute.xlu0 %4690
    %4692 = vrot.lane.b32.xlu0 %v2565, 20
    %v4693 = vpop.permute.xlu0 %4692
    %4694 = vrot.lane.b32.xlu0 %v2566, 20
    %v4695 = vpop.permute.xlu0 %4694
    %4696 = vrot.lane.b32.xlu0 %v2567, 20
    %v4697 = vpop.permute.xlu0 %4696
    %4698 = vrot.lane.b32.xlu0 %v2568, 20
    %v4699 = vpop.permute.xlu0 %4698
    %4700 = vrot.lane.b32.xlu0 %v2569, 20
    %v4701 = vpop.permute.xlu0 %4700
    %4702 = vrot.lane.b32.xlu0 %v2570, 20
    %v4703 = vpop.permute.xlu0 %4702
    %4704 = vrot.lane.b32.xlu0 %v2571, 20
    %v4705 = vpop.permute.xlu0 %4704
    %4706 = vrot.lane.b32.xlu0 %v2572, 20
    %v4707 = vpop.permute.xlu0 %4706
    %4708 = vrot.lane.b32.xlu0 %v2573, 20
    %v4709 = vpop.permute.xlu0 %4708
    %4710 = vrot.lane.b32.xlu0 %v2574, 20
    %v4711 = vpop.permute.xlu0 %4710
    %4712 = vrot.lane.b32.xlu0 %v2575, 20
    %v4713 = vpop.permute.xlu0 %4712
    %4714 = vrot.lane.b32.xlu0 %v2576, 20
    %v4715 = vpop.permute.xlu0 %4714
    %4716 = vrot.lane.b32.xlu0 %v2577, 20
    %v4717 = vpop.permute.xlu0 %4716
    %4718 = vrot.lane.b32.xlu0 %v2578, 20
    %v4719 = vpop.permute.xlu0 %4718
    %4720 = vrot.lane.b32.xlu0 %v2579, 20
    %v4721 = vpop.permute.xlu0 %4720
    %4722 = vrot.lane.b32.xlu0 %v2580, 20
    %v4723 = vpop.permute.xlu0 %4722
    %4724 = vrot.lane.b32.xlu0 %v2581, 20
    %v4725 = vpop.permute.xlu0 %4724
    %4726 = vrot.lane.b32.xlu0 %v2582, 20
    %v4727 = vpop.permute.xlu0 %4726
    %4728 = vrot.lane.b32.xlu0 %v2583, 20
    %v4729 = vpop.permute.xlu0 %4728
    %4730 = vrot.lane.b32.xlu0 %v2584, 20
    %v4731 = vpop.permute.xlu0 %4730
    %4732 = vrot.lane.b32.xlu0 %v2585, 20
    %v4733 = vpop.permute.xlu0 %4732
    %4734 = vrot.lane.b32.xlu0 %v2586, 20
    %v4735 = vpop.permute.xlu0 %4734
    %4736 = vrot.lane.b32.xlu0 %v2587, 20
    %v4737 = vpop.permute.xlu0 %4736
    %4738 = vrot.lane.b32.xlu0 %v2588, 20
    %v4739 = vpop.permute.xlu0 %4738
    %4740 = vrot.lane.b32.xlu0 %v2589, 20
    %v4741 = vpop.permute.xlu0 %4740
    %4742 = vrot.lane.b32.xlu0 %v2590, 20
    %v4743 = vpop.permute.xlu0 %4742
    %4744 = vrot.lane.b32.xlu0 %v2591, 20
    %v4745 = vpop.permute.xlu0 %4744
    %4746 = vrot.lane.b32.xlu0 %v2592, 20
    %v4747 = vpop.permute.xlu0 %4746
    %4748 = vrot.lane.b32.xlu0 %v2593, 20
    %v4749 = vpop.permute.xlu0 %4748
    %4750 = vrot.lane.b32.xlu0 %v2594, 20
    %v4751 = vpop.permute.xlu0 %4750
    %4752 = vrot.lane.b32.xlu0 %v2595, 20
    %v4753 = vpop.permute.xlu0 %4752
    %4754 = vrot.lane.b32.xlu0 %v2596, 20
    %v4755 = vpop.permute.xlu0 %4754
    %4756 = vrot.lane.b32.xlu0 %v2597, 20
    %v4757 = vpop.permute.xlu0 %4756
    %4758 = vrot.lane.b32.xlu0 %v2598, 20
    %v4759 = vpop.permute.xlu0 %4758
    %4760 = vrot.lane.b32.xlu0 %v2599, 20
    %v4761 = vpop.permute.xlu0 %4760
    %4762 = vrot.lane.b32.xlu0 %v2600, 20
    %v4763 = vpop.permute.xlu0 %4762
    %4764 = vrot.lane.b32.xlu0 %v2601, 20
    %v4765 = vpop.permute.xlu0 %4764
    %4766 = vrot.lane.b32.xlu0 %v2602, 20
    %v4767 = vpop.permute.xlu0 %4766
    %4768 = vrot.lane.b32.xlu0 %v2603, 20
    %v4769 = vpop.permute.xlu0 %4768
    %4770 = vrot.lane.b32.xlu0 %v2604, 20
    %v4771 = vpop.permute.xlu0 %4770
    %4772 = vrot.lane.b32.xlu0 %v2605, 20
    %v4773 = vpop.permute.xlu0 %4772
    %4774 = vrot.lane.b32.xlu0 %v2606, 20
    %v4775 = vpop.permute.xlu0 %4774
    %4776 = vrot.lane.b32.xlu0 %v2607, 20
    %v4777 = vpop.permute.xlu0 %4776
    %4778 = vrot.lane.b32.xlu0 %v2608, 20
    %v4779 = vpop.permute.xlu0 %4778
    %4780 = vrot.lane.b32.xlu0 %v2609, 20
    %v4781 = vpop.permute.xlu0 %4780
    %4782 = vrot.lane.b32.xlu0 %v2610, 20
    %v4783 = vpop.permute.xlu0 %4782
    %4784 = vrot.lane.b32.xlu0 %v2611, 20
    %v4785 = vpop.permute.xlu0 %4784
    %4786 = vrot.lane.b32.xlu0 %v2612, 20
    %v4787 = vpop.permute.xlu0 %4786
    %4788 = vrot.lane.b32.xlu0 %v2613, 20
    %v4789 = vpop.permute.xlu0 %4788
    %4790 = vrot.lane.b32.xlu0 %v2614, 20
    %v4791 = vpop.permute.xlu0 %4790
    %4792 = vrot.lane.b32.xlu0 %v2615, 20
    %v4793 = vpop.permute.xlu0 %4792
    %4922 = vrot.lane.b32.xlu0 %v2874, 24
    %v4923 = vpop.permute.xlu0 %4922
    %4924 = vrot.lane.b32.xlu0 %v2875, 24
    %v4925 = vpop.permute.xlu0 %4924
    %4926 = vrot.lane.b32.xlu0 %v2876, 24
    %v4927 = vpop.permute.xlu0 %4926
    %4928 = vrot.lane.b32.xlu0 %v2877, 24
    %v4929 = vpop.permute.xlu0 %4928
    %4930 = vrot.lane.b32.xlu0 %v2878, 24
    %v4931 = vpop.permute.xlu0 %4930
    %4932 = vrot.lane.b32.xlu0 %v2879, 24
    %v4933 = vpop.permute.xlu0 %4932
    %4934 = vrot.lane.b32.xlu0 %v2880, 24
    %v4935 = vpop.permute.xlu0 %4934
    %4936 = vrot.lane.b32.xlu0 %v2881, 24
    %v4937 = vpop.permute.xlu0 %4936
    %4938 = vrot.lane.b32.xlu0 %v2882, 24
    %v4939 = vpop.permute.xlu0 %4938
    %4940 = vrot.lane.b32.xlu0 %v2883, 24
    %v4941 = vpop.permute.xlu0 %4940
    %4942 = vrot.lane.b32.xlu0 %v2884, 24
    %v4943 = vpop.permute.xlu0 %4942
    %4944 = vrot.lane.b32.xlu0 %v2885, 24
    %v4945 = vpop.permute.xlu0 %4944
    %4946 = vrot.lane.b32.xlu0 %v2886, 24
    %v4947 = vpop.permute.xlu0 %4946
    %4948 = vrot.lane.b32.xlu0 %v2887, 24
    %v4949 = vpop.permute.xlu0 %4948
    %4950 = vrot.lane.b32.xlu0 %v2888, 24
    %v4951 = vpop.permute.xlu0 %4950
    %4952 = vrot.lane.b32.xlu0 %v2889, 24
    %v4953 = vpop.permute.xlu0 %4952
    %4954 = vrot.lane.b32.xlu0 %v2890, 24
    %v4955 = vpop.permute.xlu0 %4954
    %4956 = vrot.lane.b32.xlu0 %v2891, 24
    %v4957 = vpop.permute.xlu0 %4956
    %4958 = vrot.lane.b32.xlu0 %v2892, 24
    %v4959 = vpop.permute.xlu0 %4958
    %4960 = vrot.lane.b32.xlu0 %v2893, 24
    %v4961 = vpop.permute.xlu0 %4960
    %4962 = vrot.lane.b32.xlu0 %v2894, 24
    %v4963 = vpop.permute.xlu0 %4962
    %4964 = vrot.lane.b32.xlu0 %v2895, 24
    %v4965 = vpop.permute.xlu0 %4964
    %4966 = vrot.lane.b32.xlu0 %v2896, 24
    %v4967 = vpop.permute.xlu0 %4966
    %4968 = vrot.lane.b32.xlu0 %v2897, 24
    %v4969 = vpop.permute.xlu0 %4968
    %4970 = vrot.lane.b32.xlu0 %v2898, 24
    %v4971 = vpop.permute.xlu0 %4970
    %4972 = vrot.lane.b32.xlu0 %v2899, 24
    %v4973 = vpop.permute.xlu0 %4972
    %4974 = vrot.lane.b32.xlu0 %v2900, 24
    %v4975 = vpop.permute.xlu0 %4974
    %4976 = vrot.lane.b32.xlu0 %v2901, 24
    %v4977 = vpop.permute.xlu0 %4976
    %4978 = vrot.lane.b32.xlu0 %v2902, 24
    %v4979 = vpop.permute.xlu0 %4978
    %4980 = vrot.lane.b32.xlu0 %v2903, 24
    %v4981 = vpop.permute.xlu0 %4980
    %4982 = vrot.lane.b32.xlu0 %v2904, 24
    %v4983 = vpop.permute.xlu0 %4982
    %4984 = vrot.lane.b32.xlu0 %v2905, 24
    %v4985 = vpop.permute.xlu0 %4984
    %4986 = vrot.lane.b32.xlu0 %v2906, 24
    %v4987 = vpop.permute.xlu0 %4986
    %4988 = vrot.lane.b32.xlu0 %v2907, 24
    %v4989 = vpop.permute.xlu0 %4988
    %4990 = vrot.lane.b32.xlu0 %v2908, 24
    %v4991 = vpop.permute.xlu0 %4990
    %4992 = vrot.lane.b32.xlu0 %v2909, 24
    %v4993 = vpop.permute.xlu0 %4992
    %4994 = vrot.lane.b32.xlu0 %v2910, 24
    %v4995 = vpop.permute.xlu0 %4994
    %4996 = vrot.lane.b32.xlu0 %v2911, 24
    %v4997 = vpop.permute.xlu0 %4996
    %4998 = vrot.lane.b32.xlu0 %v2912, 24
    %v4999 = vpop.permute.xlu0 %4998
    %5000 = vrot.lane.b32.xlu0 %v2913, 24
    %v5001 = vpop.permute.xlu0 %5000
    %5002 = vrot.lane.b32.xlu0 %v2914, 24
    %v5003 = vpop.permute.xlu0 %5002
    %5004 = vrot.lane.b32.xlu0 %v2915, 24
    %v5005 = vpop.permute.xlu0 %5004
    %5006 = vrot.lane.b32.xlu0 %v2916, 24
    %v5007 = vpop.permute.xlu0 %5006
    %5008 = vrot.lane.b32.xlu0 %v2917, 24
    %v5009 = vpop.permute.xlu0 %5008
    %5010 = vrot.lane.b32.xlu0 %v2918, 24
    %v5011 = vpop.permute.xlu0 %5010
    %5012 = vrot.lane.b32.xlu0 %v2919, 24
    %v5013 = vpop.permute.xlu0 %5012
    %5014 = vrot.lane.b32.xlu0 %v2920, 24
    %v5015 = vpop.permute.xlu0 %5014
    %5016 = vrot.lane.b32.xlu0 %v2921, 24
    %v5017 = vpop.permute.xlu0 %5016
    %5018 = vrot.lane.b32.xlu0 %v2922, 24
    %v5019 = vpop.permute.xlu0 %5018
    %5020 = vrot.lane.b32.xlu0 %v2923, 24
    %v5021 = vpop.permute.xlu0 %5020
    %5022 = vrot.lane.b32.xlu0 %v2924, 24
    %v5023 = vpop.permute.xlu0 %5022
    %5024 = vrot.lane.b32.xlu0 %v2925, 24
    %v5025 = vpop.permute.xlu0 %5024
    %5026 = vrot.lane.b32.xlu0 %v2926, 24
    %v5027 = vpop.permute.xlu0 %5026
    %5028 = vrot.lane.b32.xlu0 %v2927, 24
    %v5029 = vpop.permute.xlu0 %5028
    %5030 = vrot.lane.b32.xlu0 %v2928, 24
    %v5031 = vpop.permute.xlu0 %5030
    %5032 = vrot.lane.b32.xlu0 %v2929, 24
    %v5033 = vpop.permute.xlu0 %5032
    %5034 = vrot.lane.b32.xlu0 %v2930, 24
    %v5035 = vpop.permute.xlu0 %5034
    %5036 = vrot.lane.b32.xlu0 %v2931, 24
    %v5037 = vpop.permute.xlu0 %5036
    %5038 = vrot.lane.b32.xlu0 %v2932, 24
    %v5039 = vpop.permute.xlu0 %5038
    %5040 = vrot.lane.b32.xlu0 %v2933, 24
    %v5041 = vpop.permute.xlu0 %5040
    %5042 = vrot.lane.b32.xlu0 %v2934, 24
    %v5043 = vpop.permute.xlu0 %5042
    %5044 = vrot.lane.b32.xlu0 %v2935, 24
    %v5045 = vpop.permute.xlu0 %5044
    %5046 = vrot.lane.b32.xlu0 %v2936, 24
    %v5047 = vpop.permute.xlu0 %5046
    %5048 = vrot.lane.b32.xlu0 %v2937, 24
    %v5049 = vpop.permute.xlu0 %5048
    %5178 = vrot.lane.b32.xlu0 %v3194, 28
    %v5179 = vpop.permute.xlu0 %5178
    %5180 = vrot.lane.b32.xlu0 %v3195, 28
    %v5181 = vpop.permute.xlu0 %5180
    %5182 = vrot.lane.b32.xlu0 %v3196, 28
    %v5183 = vpop.permute.xlu0 %5182
    %5184 = vrot.lane.b32.xlu0 %v3197, 28
    %v5185 = vpop.permute.xlu0 %5184
    %5186 = vrot.lane.b32.xlu0 %v3198, 28
    %v5187 = vpop.permute.xlu0 %5186
    %5188 = vrot.lane.b32.xlu0 %v3199, 28
    %v5189 = vpop.permute.xlu0 %5188
    %5190 = vrot.lane.b32.xlu0 %v3200, 28
    %v5191 = vpop.permute.xlu0 %5190
    %5192 = vrot.lane.b32.xlu0 %v3201, 28
    %v5193 = vpop.permute.xlu0 %5192
    %5194 = vrot.lane.b32.xlu0 %v3202, 28
    %v5195 = vpop.permute.xlu0 %5194
    %5196 = vrot.lane.b32.xlu0 %v3203, 28
    %v5197 = vpop.permute.xlu0 %5196
    %5198 = vrot.lane.b32.xlu0 %v3204, 28
    %v5199 = vpop.permute.xlu0 %5198
    %5200 = vrot.lane.b32.xlu0 %v3205, 28
    %v5201 = vpop.permute.xlu0 %5200
    %5202 = vrot.lane.b32.xlu0 %v3206, 28
    %v5203 = vpop.permute.xlu0 %5202
    %5204 = vrot.lane.b32.xlu0 %v3207, 28
    %v5205 = vpop.permute.xlu0 %5204
    %5206 = vrot.lane.b32.xlu0 %v3208, 28
    %v5207 = vpop.permute.xlu0 %5206
    %5208 = vrot.lane.b32.xlu0 %v3209, 28
    %v5209 = vpop.permute.xlu0 %5208
    %5210 = vrot.lane.b32.xlu0 %v3210, 28
    %v5211 = vpop.permute.xlu0 %5210
    %5212 = vrot.lane.b32.xlu0 %v3211, 28
    %v5213 = vpop.permute.xlu0 %5212
    %5214 = vrot.lane.b32.xlu0 %v3212, 28
    %v5215 = vpop.permute.xlu0 %5214
    %5216 = vrot.lane.b32.xlu0 %v3213, 28
    %v5217 = vpop.permute.xlu0 %5216
    %5218 = vrot.lane.b32.xlu0 %v3214, 28
    %v5219 = vpop.permute.xlu0 %5218
    %5220 = vrot.lane.b32.xlu0 %v3215, 28
    %v5221 = vpop.permute.xlu0 %5220
    %5222 = vrot.lane.b32.xlu0 %v3216, 28
    %v5223 = vpop.permute.xlu0 %5222
    %5224 = vrot.lane.b32.xlu0 %v3217, 28
    %v5225 = vpop.permute.xlu0 %5224
    %5226 = vrot.lane.b32.xlu0 %v3218, 28
    %v5227 = vpop.permute.xlu0 %5226
    %5228 = vrot.lane.b32.xlu0 %v3219, 28
    %v5229 = vpop.permute.xlu0 %5228
    %5230 = vrot.lane.b32.xlu0 %v3220, 28
    %v5231 = vpop.permute.xlu0 %5230
    %5232 = vrot.lane.b32.xlu0 %v3221, 28
    %v5233 = vpop.permute.xlu0 %5232
    %5234 = vrot.lane.b32.xlu0 %v3222, 28
    %v5235 = vpop.permute.xlu0 %5234
    %5236 = vrot.lane.b32.xlu0 %v3223, 28
    %v5237 = vpop.permute.xlu0 %5236
    %5238 = vrot.lane.b32.xlu0 %v3224, 28
    %v5239 = vpop.permute.xlu0 %5238
    %5240 = vrot.lane.b32.xlu0 %v3225, 28
    %v5241 = vpop.permute.xlu0 %5240
    %5242 = vrot.lane.b32.xlu0 %v3226, 28
    %v5243 = vpop.permute.xlu0 %5242
    %5244 = vrot.lane.b32.xlu0 %v3227, 28
    %v5245 = vpop.permute.xlu0 %5244
    %5246 = vrot.lane.b32.xlu0 %v3228, 28
    %v5247 = vpop.permute.xlu0 %5246
    %5248 = vrot.lane.b32.xlu0 %v3229, 28
    %v5249 = vpop.permute.xlu0 %5248
    %5250 = vrot.lane.b32.xlu0 %v3230, 28
    %v5251 = vpop.permute.xlu0 %5250
    %5252 = vrot.lane.b32.xlu0 %v3231, 28
    %v5253 = vpop.permute.xlu0 %5252
    %5254 = vrot.lane.b32.xlu0 %v3232, 28
    %v5255 = vpop.permute.xlu0 %5254
    %5256 = vrot.lane.b32.xlu0 %v3233, 28
    %v5257 = vpop.permute.xlu0 %5256
    %5258 = vrot.lane.b32.xlu0 %v3234, 28
    %v5259 = vpop.permute.xlu0 %5258
    %5260 = vrot.lane.b32.xlu0 %v3235, 28
    %v5261 = vpop.permute.xlu0 %5260
    %5262 = vrot.lane.b32.xlu0 %v3236, 28
    %v5263 = vpop.permute.xlu0 %5262
    %5264 = vrot.lane.b32.xlu0 %v3237, 28
    %v5265 = vpop.permute.xlu0 %5264
    %5266 = vrot.lane.b32.xlu0 %v3238, 28
    %v5267 = vpop.permute.xlu0 %5266
    %5268 = vrot.lane.b32.xlu0 %v3239, 28
    %v5269 = vpop.permute.xlu0 %5268
    %5270 = vrot.lane.b32.xlu0 %v3240, 28
    %v5271 = vpop.permute.xlu0 %5270
    %5272 = vrot.lane.b32.xlu0 %v3241, 28
    %v5273 = vpop.permute.xlu0 %5272
    %5274 = vrot.lane.b32.xlu0 %v3242, 28
    %v5275 = vpop.permute.xlu0 %5274
    %5276 = vrot.lane.b32.xlu0 %v3243, 28
    %v5277 = vpop.permute.xlu0 %5276
    %5278 = vrot.lane.b32.xlu0 %v3244, 28
    %v5279 = vpop.permute.xlu0 %5278
    %5280 = vrot.lane.b32.xlu0 %v3245, 28
    %v5281 = vpop.permute.xlu0 %5280
    %5282 = vrot.lane.b32.xlu0 %v3246, 28
    %v5283 = vpop.permute.xlu0 %5282
    %5284 = vrot.lane.b32.xlu0 %v3247, 28
    %v5285 = vpop.permute.xlu0 %5284
    %5286 = vrot.lane.b32.xlu0 %v3248, 28
    %v5287 = vpop.permute.xlu0 %5286
    %5288 = vrot.lane.b32.xlu0 %v3249, 28
    %v5289 = vpop.permute.xlu0 %5288
    %5290 = vrot.lane.b32.xlu0 %v3250, 28
    %v5291 = vpop.permute.xlu0 %5290
    %5292 = vrot.lane.b32.xlu0 %v3251, 28
    %v5293 = vpop.permute.xlu0 %5292
    %5294 = vrot.lane.b32.xlu0 %v3252, 28
    %v5295 = vpop.permute.xlu0 %5294
    %5296 = vrot.lane.b32.xlu0 %v3253, 28
    %v5297 = vpop.permute.xlu0 %5296
    %5298 = vrot.lane.b32.xlu0 %v3254, 28
    %v5299 = vpop.permute.xlu0 %5298
    %5300 = vrot.lane.b32.xlu0 %v3255, 28
    %v5301 = vpop.permute.xlu0 %5300
    %5302 = vrot.lane.b32.xlu0 %v3256, 28
    %v5303 = vpop.permute.xlu0 %5302
    %5304 = vrot.lane.b32.xlu0 %v3257, 28
    %v5305 = vpop.permute.xlu0 %5304
    %5434 = vrot.lane.b32.xlu0 %v3514, 32
    %v5435 = vpop.permute.xlu0 %5434
    %5436 = vrot.lane.b32.xlu0 %v3515, 32
    %v5437 = vpop.permute.xlu0 %5436
    %5438 = vrot.lane.b32.xlu0 %v3516, 32
    %v5439 = vpop.permute.xlu0 %5438
    %5440 = vrot.lane.b32.xlu0 %v3517, 32
    %v5441 = vpop.permute.xlu0 %5440
    %5442 = vrot.lane.b32.xlu0 %v3518, 32
    %v5443 = vpop.permute.xlu0 %5442
    %5444 = vrot.lane.b32.xlu0 %v3519, 32
    %v5445 = vpop.permute.xlu0 %5444
    %5446 = vrot.lane.b32.xlu0 %v3520, 32
    %v5447 = vpop.permute.xlu0 %5446
    %5448 = vrot.lane.b32.xlu0 %v3521, 32
    %v5449 = vpop.permute.xlu0 %5448
    %5450 = vrot.lane.b32.xlu0 %v3522, 32
    %v5451 = vpop.permute.xlu0 %5450
    %5452 = vrot.lane.b32.xlu0 %v3523, 32
    %v5453 = vpop.permute.xlu0 %5452
    %5454 = vrot.lane.b32.xlu0 %v3524, 32
    %v5455 = vpop.permute.xlu0 %5454
    %5456 = vrot.lane.b32.xlu0 %v3525, 32
    %v5457 = vpop.permute.xlu0 %5456
    %5458 = vrot.lane.b32.xlu0 %v3526, 32
    %v5459 = vpop.permute.xlu0 %5458
    %5460 = vrot.lane.b32.xlu0 %v3527, 32
    %v5461 = vpop.permute.xlu0 %5460
    %5462 = vrot.lane.b32.xlu0 %v3528, 32
    %v5463 = vpop.permute.xlu0 %5462
    %5464 = vrot.lane.b32.xlu0 %v3529, 32
    %v5465 = vpop.permute.xlu0 %5464
    %5466 = vrot.lane.b32.xlu0 %v3530, 32
    %v5467 = vpop.permute.xlu0 %5466
    %5468 = vrot.lane.b32.xlu0 %v3531, 32
    %v5469 = vpop.permute.xlu0 %5468
    %5470 = vrot.lane.b32.xlu0 %v3532, 32
    %v5471 = vpop.permute.xlu0 %5470
    %5472 = vrot.lane.b32.xlu0 %v3533, 32
    %v5473 = vpop.permute.xlu0 %5472
    %5474 = vrot.lane.b32.xlu0 %v3534, 32
    %v5475 = vpop.permute.xlu0 %5474
    %5476 = vrot.lane.b32.xlu0 %v3535, 32
    %v5477 = vpop.permute.xlu0 %5476
    %5478 = vrot.lane.b32.xlu0 %v3536, 32
    %v5479 = vpop.permute.xlu0 %5478
    %5480 = vrot.lane.b32.xlu0 %v3537, 32
    %v5481 = vpop.permute.xlu0 %5480
    %5482 = vrot.lane.b32.xlu0 %v3538, 32
    %v5483 = vpop.permute.xlu0 %5482
    %5484 = vrot.lane.b32.xlu0 %v3539, 32
    %v5485 = vpop.permute.xlu0 %5484
    %5486 = vrot.lane.b32.xlu0 %v3540, 32
    %v5487 = vpop.permute.xlu0 %5486
    %5488 = vrot.lane.b32.xlu0 %v3541, 32
    %v5489 = vpop.permute.xlu0 %5488
    %5490 = vrot.lane.b32.xlu0 %v3542, 32
    %v5491 = vpop.permute.xlu0 %5490
    %5492 = vrot.lane.b32.xlu0 %v3543, 32
    %v5493 = vpop.permute.xlu0 %5492
    %5494 = vrot.lane.b32.xlu0 %v3544, 32
    %v5495 = vpop.permute.xlu0 %5494
    %5496 = vrot.lane.b32.xlu0 %v3545, 32
    %v5497 = vpop.permute.xlu0 %5496
    %5498 = vrot.lane.b32.xlu0 %v3546, 32
    %v5499 = vpop.permute.xlu0 %5498
    %5500 = vrot.lane.b32.xlu0 %v3547, 32
    %v5501 = vpop.permute.xlu0 %5500
    %5502 = vrot.lane.b32.xlu0 %v3548, 32
    %v5503 = vpop.permute.xlu0 %5502
    %5504 = vrot.lane.b32.xlu0 %v3549, 32
    %v5505 = vpop.permute.xlu0 %5504
    %5506 = vrot.lane.b32.xlu0 %v3550, 32
    %v5507 = vpop.permute.xlu0 %5506
    %5508 = vrot.lane.b32.xlu0 %v3551, 32
    %v5509 = vpop.permute.xlu0 %5508
    %5510 = vrot.lane.b32.xlu0 %v3552, 32
    %v5511 = vpop.permute.xlu0 %5510
    %5512 = vrot.lane.b32.xlu0 %v3553, 32
    %v5513 = vpop.permute.xlu0 %5512
    %5514 = vrot.lane.b32.xlu0 %v3554, 32
    %v5515 = vpop.permute.xlu0 %5514
    %5516 = vrot.lane.b32.xlu0 %v3555, 32
    %v5517 = vpop.permute.xlu0 %5516
    %5518 = vrot.lane.b32.xlu0 %v3556, 32
    %v5519 = vpop.permute.xlu0 %5518
    %5520 = vrot.lane.b32.xlu0 %v3557, 32
    %v5521 = vpop.permute.xlu0 %5520
    %5522 = vrot.lane.b32.xlu0 %v3558, 32
    %v5523 = vpop.permute.xlu0 %5522
    %5524 = vrot.lane.b32.xlu0 %v3559, 32
    %v5525 = vpop.permute.xlu0 %5524
    %5526 = vrot.lane.b32.xlu0 %v3560, 32
    %v5527 = vpop.permute.xlu0 %5526
    %5528 = vrot.lane.b32.xlu0 %v3561, 32
    %v5529 = vpop.permute.xlu0 %5528
    %5530 = vrot.lane.b32.xlu0 %v3562, 32
    %v5531 = vpop.permute.xlu0 %5530
    %5532 = vrot.lane.b32.xlu0 %v3563, 32
    %v5533 = vpop.permute.xlu0 %5532
    %5534 = vrot.lane.b32.xlu0 %v3564, 32
    %v5535 = vpop.permute.xlu0 %5534
    %5536 = vrot.lane.b32.xlu0 %v3565, 32
    %v5537 = vpop.permute.xlu0 %5536
    %5538 = vrot.lane.b32.xlu0 %v3566, 32
    %v5539 = vpop.permute.xlu0 %5538
    %5540 = vrot.lane.b32.xlu0 %v3567, 32
    %v5541 = vpop.permute.xlu0 %5540
    %5542 = vrot.lane.b32.xlu0 %v3568, 32
    %v5543 = vpop.permute.xlu0 %5542
    %5544 = vrot.lane.b32.xlu0 %v3569, 32
    %v5545 = vpop.permute.xlu0 %5544
    %5546 = vrot.lane.b32.xlu0 %v3570, 32
    %v5547 = vpop.permute.xlu0 %5546
    %5548 = vrot.lane.b32.xlu0 %v3571, 32
    %v5549 = vpop.permute.xlu0 %5548
    %5550 = vrot.lane.b32.xlu0 %v3572, 32
    %v5551 = vpop.permute.xlu0 %5550
    %5552 = vrot.lane.b32.xlu0 %v3573, 32
    %v5553 = vpop.permute.xlu0 %5552
    %5554 = vrot.lane.b32.xlu0 %v3574, 32
    %v5555 = vpop.permute.xlu0 %5554
    %5556 = vrot.lane.b32.xlu0 %v3575, 32
    %v5557 = vpop.permute.xlu0 %5556
    %5558 = vrot.lane.b32.xlu0 %v3576, 32
    %v5559 = vpop.permute.xlu0 %5558
    %5560 = vrot.lane.b32.xlu0 %v3577, 32
    %v5561 = vpop.permute.xlu0 %5560
    %vm5626 = vcmask 31744
    %v5627 = vsel %vm5626, %v749, %v3643
    %v5628 = vsel %vm5626, %v750, %v3645
    %v5629 = vsel %vm5626, %v751, %v3647
    %v5630 = vsel %vm5626, %v752, %v3649
    %v5631 = vsel %vm5626, %v753, %v3651
    %v5632 = vsel %vm5626, %v754, %v3653
    %v5633 = vsel %vm5626, %v755, %v3655
    %v5634 = vsel %vm5626, %v756, %v3657
    %v5635 = vsel %vm5626, %v757, %v3659
    %v5636 = vsel %vm5626, %v758, %v3661
    %v5637 = vsel %vm5626, %v759, %v3663
    %v5638 = vsel %vm5626, %v760, %v3665
    %v5639 = vsel %vm5626, %v761, %v3667
    %v5640 = vsel %vm5626, %v762, %v3669
    %v5641 = vsel %vm5626, %v763, %v3671
    %v5642 = vsel %vm5626, %v764, %v3673
    %v5643 = vsel %vm5626, %v765, %v3675
    %v5644 = vsel %vm5626, %v766, %v3677
    %v5645 = vsel %vm5626, %v767, %v3679
    %v5646 = vsel %vm5626, %v768, %v3681
    %v5647 = vsel %vm5626, %v769, %v3683
    %v5648 = vsel %vm5626, %v770, %v3685
    %v5649 = vsel %vm5626, %v771, %v3687
    %v5650 = vsel %vm5626, %v772, %v3689
    %v5651 = vsel %vm5626, %v773, %v3691
    %v5652 = vsel %vm5626, %v774, %v3693
    %v5653 = vsel %vm5626, %v775, %v3695
    %v5654 = vsel %vm5626, %v776, %v3697
    %v5655 = vsel %vm5626, %v777, %v3699
    %v5656 = vsel %vm5626, %v778, %v3701
    %v5657 = vsel %vm5626, %v779, %v3703
    %v5658 = vsel %vm5626, %v780, %v3705
    %v5659 = vsel %vm5626, %v781, %v3707
    %v5660 = vsel %vm5626, %v782, %v3709
    %v5661 = vsel %vm5626, %v783, %v3711
    %v5662 = vsel %vm5626, %v784, %v3713
    %v5663 = vsel %vm5626, %v785, %v3715
    %v5664 = vsel %vm5626, %v786, %v3717
    %v5665 = vsel %vm5626, %v787, %v3719
    %v5666 = vsel %vm5626, %v788, %v3721
    %v5667 = vsel %vm5626, %v789, %v3723
    %v5668 = vsel %vm5626, %v790, %v3725
    %v5669 = vsel %vm5626, %v791, %v3727
    %v5670 = vsel %vm5626, %v792, %v3729
    %v5671 = vsel %vm5626, %v793, %v3731
    %v5672 = vsel %vm5626, %v794, %v3733
    %v5673 = vsel %vm5626, %v795, %v3735
    %v5674 = vsel %vm5626, %v796, %v3737
    %v5675 = vsel %vm5626, %v797, %v3739
    %v5676 = vsel %vm5626, %v798, %v3741
    %v5677 = vsel %vm5626, %v799, %v3743
    %v5678 = vsel %vm5626, %v800, %v3745
    %v5679 = vsel %vm5626, %v801, %v3747
    %v5680 = vsel %vm5626, %v802, %v3749
    %v5681 = vsel %vm5626, %v803, %v3751
    %v5682 = vsel %vm5626, %v804, %v3753
    %v5683 = vsel %vm5626, %v805, %v3755
    %v5684 = vsel %vm5626, %v806, %v3757
    %v5685 = vsel %vm5626, %v807, %v3759
    %v5686 = vsel %vm5626, %v808, %v3761
    %v5687 = vsel %vm5626, %v809, %v3763
    %v5688 = vsel %vm5626, %v810, %v3765
    %v5689 = vsel %vm5626, %v811, %v3767
    %v5690 = vsel %vm5626, %v812, %v3769
    %vm5691 = vcmask 64512
    %v5692 = vsel %vm5691, %v5627, %v3899
    %v5693 = vsel %vm5691, %v5628, %v3901
    %v5694 = vsel %vm5691, %v5629, %v3903
    %v5695 = vsel %vm5691, %v5630, %v3905
    %v5696 = vsel %vm5691, %v5631, %v3907
    %v5697 = vsel %vm5691, %v5632, %v3909
    %v5698 = vsel %vm5691, %v5633, %v3911
    %v5699 = vsel %vm5691, %v5634, %v3913
    %v5700 = vsel %vm5691, %v5635, %v3915
    %v5701 = vsel %vm5691, %v5636, %v3917
    %v5702 = vsel %vm5691, %v5637, %v3919
    %v5703 = vsel %vm5691, %v5638, %v3921
    %v5704 = vsel %vm5691, %v5639, %v3923
    %v5705 = vsel %vm5691, %v5640, %v3925
    %v5706 = vsel %vm5691, %v5641, %v3927
    %v5707 = vsel %vm5691, %v5642, %v3929
    %v5708 = vsel %vm5691, %v5643, %v3931
    %v5709 = vsel %vm5691, %v5644, %v3933
    %v5710 = vsel %vm5691, %v5645, %v3935
    %v5711 = vsel %vm5691, %v5646, %v3937
    %v5712 = vsel %vm5691, %v5647, %v3939
    %v5713 = vsel %vm5691, %v5648, %v3941
    %v5714 = vsel %vm5691, %v5649, %v3943
    %v5715 = vsel %vm5691, %v5650, %v3945
    %v5716 = vsel %vm5691, %v5651, %v3947
    %v5717 = vsel %vm5691, %v5652, %v3949
    %v5718 = vsel %vm5691, %v5653, %v3951
    %v5719 = vsel %vm5691, %v5654, %v3953
    %v5720 = vsel %vm5691, %v5655, %v3955
    %v5721 = vsel %vm5691, %v5656, %v3957
    %v5722 = vsel %vm5691, %v5657, %v3959
    %v5723 = vsel %vm5691, %v5658, %v3961
    %v5724 = vsel %vm5691, %v5659, %v3963
    %v5725 = vsel %vm5691, %v5660, %v3965
    %v5726 = vsel %vm5691, %v5661, %v3967
    %v5727 = vsel %vm5691, %v5662, %v3969
    %v5728 = vsel %vm5691, %v5663, %v3971
    %v5729 = vsel %vm5691, %v5664, %v3973
    %v5730 = vsel %vm5691, %v5665, %v3975
    %v5731 = vsel %vm5691, %v5666, %v3977
    %v5732 = vsel %vm5691, %v5667, %v3979
    %v5733 = vsel %vm5691, %v5668, %v3981
    %v5734 = vsel %vm5691, %v5669, %v3983
    %v5735 = vsel %vm5691, %v5670, %v3985
    %v5736 = vsel %vm5691, %v5671, %v3987
    %v5737 = vsel %vm5691, %v5672, %v3989
    %v5738 = vsel %vm5691, %v5673, %v3991
    %v5739 = vsel %vm5691, %v5674, %v3993
    %v5740 = vsel %vm5691, %v5675, %v3995
    %v5741 = vsel %vm5691, %v5676, %v3997
    %v5742 = vsel %vm5691, %v5677, %v3999
    %v5743 = vsel %vm5691, %v5678, %v4001
    %v5744 = vsel %vm5691, %v5679, %v4003
    %v5745 = vsel %vm5691, %v5680, %v4005
    %v5746 = vsel %vm5691, %v5681, %v4007
    %v5747 = vsel %vm5691, %v5682, %v4009
    %v5748 = vsel %vm5691, %v5683, %v4011
    %v5749 = vsel %vm5691, %v5684, %v4013
    %v5750 = vsel %vm5691, %v5685, %v4015
    %v5751 = vsel %vm5691, %v5686, %v4017
    %v5752 = vsel %vm5691, %v5687, %v4019
    %v5753 = vsel %vm5691, %v5688, %v4021
    %v5754 = vsel %vm5691, %v5689, %v4023
    %v5755 = vsel %vm5691, %v5690, %v4025
    %vm5756 = vcmask 97280
    %v5757 = vsel %vm5756, %v5692, %v4155
    %v5758 = vsel %vm5756, %v5693, %v4157
    %v5759 = vsel %vm5756, %v5694, %v4159
    %v5760 = vsel %vm5756, %v5695, %v4161
    %v5761 = vsel %vm5756, %v5696, %v4163
    %v5762 = vsel %vm5756, %v5697, %v4165
    %v5763 = vsel %vm5756, %v5698, %v4167
    %v5764 = vsel %vm5756, %v5699, %v4169
    %v5765 = vsel %vm5756, %v5700, %v4171
    %v5766 = vsel %vm5756, %v5701, %v4173
    %v5767 = vsel %vm5756, %v5702, %v4175
    %v5768 = vsel %vm5756, %v5703, %v4177
    %v5769 = vsel %vm5756, %v5704, %v4179
    %v5770 = vsel %vm5756, %v5705, %v4181
    %v5771 = vsel %vm5756, %v5706, %v4183
    %v5772 = vsel %vm5756, %v5707, %v4185
    %v5773 = vsel %vm5756, %v5708, %v4187
    %v5774 = vsel %vm5756, %v5709, %v4189
    %v5775 = vsel %vm5756, %v5710, %v4191
    %v5776 = vsel %vm5756, %v5711, %v4193
    %v5777 = vsel %vm5756, %v5712, %v4195
    %v5778 = vsel %vm5756, %v5713, %v4197
    %v5779 = vsel %vm5756, %v5714, %v4199
    %v5780 = vsel %vm5756, %v5715, %v4201
    %v5781 = vsel %vm5756, %v5716, %v4203
    %v5782 = vsel %vm5756, %v5717, %v4205
    %v5783 = vsel %vm5756, %v5718, %v4207
    %v5784 = vsel %vm5756, %v5719, %v4209
    %v5785 = vsel %vm5756, %v5720, %v4211
    %v5786 = vsel %vm5756, %v5721, %v4213
    %v5787 = vsel %vm5756, %v5722, %v4215
    %v5788 = vsel %vm5756, %v5723, %v4217
    %v5789 = vsel %vm5756, %v5724, %v4219
    %v5790 = vsel %vm5756, %v5725, %v4221
    %v5791 = vsel %vm5756, %v5726, %v4223
    %v5792 = vsel %vm5756, %v5727, %v4225
    %v5793 = vsel %vm5756, %v5728, %v4227
    %v5794 = vsel %vm5756, %v5729, %v4229
    %v5795 = vsel %vm5756, %v5730, %v4231
    %v5796 = vsel %vm5756, %v5731, %v4233
    %v5797 = vsel %vm5756, %v5732, %v4235
    %v5798 = vsel %vm5756, %v5733, %v4237
    %v5799 = vsel %vm5756, %v5734, %v4239
    %v5800 = vsel %vm5756, %v5735, %v4241
    %v5801 = vsel %vm5756, %v5736, %v4243
    %v5802 = vsel %vm5756, %v5737, %v4245
    %v5803 = vsel %vm5756, %v5738, %v4247
    %v5804 = vsel %vm5756, %v5739, %v4249
    %v5805 = vsel %vm5756, %v5740, %v4251
    %v5806 = vsel %vm5756, %v5741, %v4253
    %v5807 = vsel %vm5756, %v5742, %v4255
    %v5808 = vsel %vm5756, %v5743, %v4257
    %v5809 = vsel %vm5756, %v5744, %v4259
    %v5810 = vsel %vm5756, %v5745, %v4261
    %v5811 = vsel %vm5756, %v5746, %v4263
    %v5812 = vsel %vm5756, %v5747, %v4265
    %v5813 = vsel %vm5756, %v5748, %v4267
    %v5814 = vsel %vm5756, %v5749, %v4269
    %v5815 = vsel %vm5756, %v5750, %v4271
    %v5816 = vsel %vm5756, %v5751, %v4273
    %v5817 = vsel %vm5756, %v5752, %v4275
    %v5818 = vsel %vm5756, %v5753, %v4277
    %v5819 = vsel %vm5756, %v5754, %v4279
    %v5820 = vsel %vm5756, %v5755, %v4281
    %vm5821 = vcmask 130048
    %v5822 = vsel %vm5821, %v5757, %v4411
    %v5823 = vsel %vm5821, %v5758, %v4413
    %v5824 = vsel %vm5821, %v5759, %v4415
    %v5825 = vsel %vm5821, %v5760, %v4417
    %v5826 = vsel %vm5821, %v5761, %v4419
    %v5827 = vsel %vm5821, %v5762, %v4421
    %v5828 = vsel %vm5821, %v5763, %v4423
    %v5829 = vsel %vm5821, %v5764, %v4425
    %v5830 = vsel %vm5821, %v5765, %v4427
    %v5831 = vsel %vm5821, %v5766, %v4429
    %v5832 = vsel %vm5821, %v5767, %v4431
    %v5833 = vsel %vm5821, %v5768, %v4433
    %v5834 = vsel %vm5821, %v5769, %v4435
    %v5835 = vsel %vm5821, %v5770, %v4437
    %v5836 = vsel %vm5821, %v5771, %v4439
    %v5837 = vsel %vm5821, %v5772, %v4441
    %v5838 = vsel %vm5821, %v5773, %v4443
    %v5839 = vsel %vm5821, %v5774, %v4445
    %v5840 = vsel %vm5821, %v5775, %v4447
    %v5841 = vsel %vm5821, %v5776, %v4449
    %v5842 = vsel %vm5821, %v5777, %v4451
    %v5843 = vsel %vm5821, %v5778, %v4453
    %v5844 = vsel %vm5821, %v5779, %v4455
    %v5845 = vsel %vm5821, %v5780, %v4457
    %v5846 = vsel %vm5821, %v5781, %v4459
    %v5847 = vsel %vm5821, %v5782, %v4461
    %v5848 = vsel %vm5821, %v5783, %v4463
    %v5849 = vsel %vm5821, %v5784, %v4465
    %v5850 = vsel %vm5821, %v5785, %v4467
    %v5851 = vsel %vm5821, %v5786, %v4469
    %v5852 = vsel %vm5821, %v5787, %v4471
    %v5853 = vsel %vm5821, %v5788, %v4473
    %v5854 = vsel %vm5821, %v5789, %v4475
    %v5855 = vsel %vm5821, %v5790, %v4477
    %v5856 = vsel %vm5821, %v5791, %v4479
    %v5857 = vsel %vm5821, %v5792, %v4481
    %v5858 = vsel %vm5821, %v5793, %v4483
    %v5859 = vsel %vm5821, %v5794, %v4485
    %v5860 = vsel %vm5821, %v5795, %v4487
    %v5861 = vsel %vm5821, %v5796, %v4489
    %v5862 = vsel %vm5821, %v5797, %v4491
    %v5863 = vsel %vm5821, %v5798, %v4493
    %v5864 = vsel %vm5821, %v5799, %v4495
    %v5865 = vsel %vm5821, %v5800, %v4497
    %v5866 = vsel %vm5821, %v5801, %v4499
    %v5867 = vsel %vm5821, %v5802, %v4501
    %v5868 = vsel %vm5821, %v5803, %v4503
    %v5869 = vsel %vm5821, %v5804, %v4505
    %v5870 = vsel %vm5821, %v5805, %v4507
    %v5871 = vsel %vm5821, %v5806, %v4509
    %v5872 = vsel %vm5821, %v5807, %v4511
    %v5873 = vsel %vm5821, %v5808, %v4513
    %v5874 = vsel %vm5821, %v5809, %v4515
    %v5875 = vsel %vm5821, %v5810, %v4517
    %v5876 = vsel %vm5821, %v5811, %v4519
    %v5877 = vsel %vm5821, %v5812, %v4521
    %v5878 = vsel %vm5821, %v5813, %v4523
    %v5879 = vsel %vm5821, %v5814, %v4525
    %v5880 = vsel %vm5821, %v5815, %v4527
    %v5881 = vsel %vm5821, %v5816, %v4529
    %v5882 = vsel %vm5821, %v5817, %v4531
    %v5883 = vsel %vm5821, %v5818, %v4533
    %v5884 = vsel %vm5821, %v5819, %v4535
    %v5885 = vsel %vm5821, %v5820, %v4537
    %vm5886 = vcmask 162816
    %v5887 = vsel %vm5886, %v5822, %v4667
    %v5888 = vsel %vm5886, %v5823, %v4669
    %v5889 = vsel %vm5886, %v5824, %v4671
    %v5890 = vsel %vm5886, %v5825, %v4673
    %v5891 = vsel %vm5886, %v5826, %v4675
    %v5892 = vsel %vm5886, %v5827, %v4677
    %v5893 = vsel %vm5886, %v5828, %v4679
    %v5894 = vsel %vm5886, %v5829, %v4681
    %v5895 = vsel %vm5886, %v5830, %v4683
    %v5896 = vsel %vm5886, %v5831, %v4685
    %v5897 = vsel %vm5886, %v5832, %v4687
    %v5898 = vsel %vm5886, %v5833, %v4689
    %v5899 = vsel %vm5886, %v5834, %v4691
    %v5900 = vsel %vm5886, %v5835, %v4693
    %v5901 = vsel %vm5886, %v5836, %v4695
    %v5902 = vsel %vm5886, %v5837, %v4697
    %v5903 = vsel %vm5886, %v5838, %v4699
    %v5904 = vsel %vm5886, %v5839, %v4701
    %v5905 = vsel %vm5886, %v5840, %v4703
    %v5906 = vsel %vm5886, %v5841, %v4705
    %v5907 = vsel %vm5886, %v5842, %v4707
    %v5908 = vsel %vm5886, %v5843, %v4709
    %v5909 = vsel %vm5886, %v5844, %v4711
    %v5910 = vsel %vm5886, %v5845, %v4713
    %v5911 = vsel %vm5886, %v5846, %v4715
    %v5912 = vsel %vm5886, %v5847, %v4717
    %v5913 = vsel %vm5886, %v5848, %v4719
    %v5914 = vsel %vm5886, %v5849, %v4721
    %v5915 = vsel %vm5886, %v5850, %v4723
    %v5916 = vsel %vm5886, %v5851, %v4725
    %v5917 = vsel %vm5886, %v5852, %v4727
    %v5918 = vsel %vm5886, %v5853, %v4729
    %v5919 = vsel %vm5886, %v5854, %v4731
    %v5920 = vsel %vm5886, %v5855, %v4733
    %v5921 = vsel %vm5886, %v5856, %v4735
    %v5922 = vsel %vm5886, %v5857, %v4737
    %v5923 = vsel %vm5886, %v5858, %v4739
    %v5924 = vsel %vm5886, %v5859, %v4741
    %v5925 = vsel %vm5886, %v5860, %v4743
    %v5926 = vsel %vm5886, %v5861, %v4745
    %v5927 = vsel %vm5886, %v5862, %v4747
    %v5928 = vsel %vm5886, %v5863, %v4749
    %v5929 = vsel %vm5886, %v5864, %v4751
    %v5930 = vsel %vm5886, %v5865, %v4753
    %v5931 = vsel %vm5886, %v5866, %v4755
    %v5932 = vsel %vm5886, %v5867, %v4757
    %v5933 = vsel %vm5886, %v5868, %v4759
    %v5934 = vsel %vm5886, %v5869, %v4761
    %v5935 = vsel %vm5886, %v5870, %v4763
    %v5936 = vsel %vm5886, %v5871, %v4765
    %v5937 = vsel %vm5886, %v5872, %v4767
    %v5938 = vsel %vm5886, %v5873, %v4769
    %v5939 = vsel %vm5886, %v5874, %v4771
    %v5940 = vsel %vm5886, %v5875, %v4773
    %v5941 = vsel %vm5886, %v5876, %v4775
    %v5942 = vsel %vm5886, %v5877, %v4777
    %v5943 = vsel %vm5886, %v5878, %v4779
    %v5944 = vsel %vm5886, %v5879, %v4781
    %v5945 = vsel %vm5886, %v5880, %v4783
    %v5946 = vsel %vm5886, %v5881, %v4785
    %v5947 = vsel %vm5886, %v5882, %v4787
    %v5948 = vsel %vm5886, %v5883, %v4789
    %v5949 = vsel %vm5886, %v5884, %v4791
    %v5950 = vsel %vm5886, %v5885, %v4793
    %vm5951 = vcmask 195584
    %v5952 = vsel %vm5951, %v5887, %v4923
    %v5953 = vsel %vm5951, %v5888, %v4925
    %v5954 = vsel %vm5951, %v5889, %v4927
    %v5955 = vsel %vm5951, %v5890, %v4929
    %v5956 = vsel %vm5951, %v5891, %v4931
    %v5957 = vsel %vm5951, %v5892, %v4933
    %v5958 = vsel %vm5951, %v5893, %v4935
    %v5959 = vsel %vm5951, %v5894, %v4937
    %v5960 = vsel %vm5951, %v5895, %v4939
    %v5961 = vsel %vm5951, %v5896, %v4941
    %v5962 = vsel %vm5951, %v5897, %v4943
    %v5963 = vsel %vm5951, %v5898, %v4945
    %v5964 = vsel %vm5951, %v5899, %v4947
    %v5965 = vsel %vm5951, %v5900, %v4949
    %v5966 = vsel %vm5951, %v5901, %v4951
    %v5967 = vsel %vm5951, %v5902, %v4953
    %v5968 = vsel %vm5951, %v5903, %v4955
    %v5969 = vsel %vm5951, %v5904, %v4957
    %v5970 = vsel %vm5951, %v5905, %v4959
    %v5971 = vsel %vm5951, %v5906, %v4961
    %v5972 = vsel %vm5951, %v5907, %v4963
    %v5973 = vsel %vm5951, %v5908, %v4965
    %v5974 = vsel %vm5951, %v5909, %v4967
    %v5975 = vsel %vm5951, %v5910, %v4969
    %v5976 = vsel %vm5951, %v5911, %v4971
    %v5977 = vsel %vm5951, %v5912, %v4973
    %v5978 = vsel %vm5951, %v5913, %v4975
    %v5979 = vsel %vm5951, %v5914, %v4977
    %v5980 = vsel %vm5951, %v5915, %v4979
    %v5981 = vsel %vm5951, %v5916, %v4981
    %v5982 = vsel %vm5951, %v5917, %v4983
    %v5983 = vsel %vm5951, %v5918, %v4985
    %v5984 = vsel %vm5951, %v5919, %v4987
    %v5985 = vsel %vm5951, %v5920, %v4989
    %v5986 = vsel %vm5951, %v5921, %v4991
    %v5987 = vsel %vm5951, %v5922, %v4993
    %v5988 = vsel %vm5951, %v5923, %v4995
    %v5989 = vsel %vm5951, %v5924, %v4997
    %v5990 = vsel %vm5951, %v5925, %v4999
    %v5991 = vsel %vm5951, %v5926, %v5001
    %v5992 = vsel %vm5951, %v5927, %v5003
    %v5993 = vsel %vm5951, %v5928, %v5005
    %v5994 = vsel %vm5951, %v5929, %v5007
    %v5995 = vsel %vm5951, %v5930, %v5009
    %v5996 = vsel %vm5951, %v5931, %v5011
    %v5997 = vsel %vm5951, %v5932, %v5013
    %v5998 = vsel %vm5951, %v5933, %v5015
    %v5999 = vsel %vm5951, %v5934, %v5017
    %v6000 = vsel %vm5951, %v5935, %v5019
    %v6001 = vsel %vm5951, %v5936, %v5021
    %v6002 = vsel %vm5951, %v5937, %v5023
    %v6003 = vsel %vm5951, %v5938, %v5025
    %v6004 = vsel %vm5951, %v5939, %v5027
    %v6005 = vsel %vm5951, %v5940, %v5029
    %v6006 = vsel %vm5951, %v5941, %v5031
    %v6007 = vsel %vm5951, %v5942, %v5033
    %v6008 = vsel %vm5951, %v5943, %v5035
    %v6009 = vsel %vm5951, %v5944, %v5037
    %v6010 = vsel %vm5951, %v5945, %v5039
    %v6011 = vsel %vm5951, %v5946, %v5041
    %v6012 = vsel %vm5951, %v5947, %v5043
    %v6013 = vsel %vm5951, %v5948, %v5045
    %v6014 = vsel %vm5951, %v5949, %v5047
    %v6015 = vsel %vm5951, %v5950, %v5049
    %vm6016 = vcmask 228352
    %v6017 = vsel %vm6016, %v5952, %v5179
    %v6018 = vsel %vm6016, %v5953, %v5181
    %v6019 = vsel %vm6016, %v5954, %v5183
    %v6020 = vsel %vm6016, %v5955, %v5185
    %v6021 = vsel %vm6016, %v5956, %v5187
    %v6022 = vsel %vm6016, %v5957, %v5189
    %v6023 = vsel %vm6016, %v5958, %v5191
    %v6024 = vsel %vm6016, %v5959, %v5193
    %v6025 = vsel %vm6016, %v5960, %v5195
    %v6026 = vsel %vm6016, %v5961, %v5197
    %v6027 = vsel %vm6016, %v5962, %v5199
    %v6028 = vsel %vm6016, %v5963, %v5201
    %v6029 = vsel %vm6016, %v5964, %v5203
    %v6030 = vsel %vm6016, %v5965, %v5205
    %v6031 = vsel %vm6016, %v5966, %v5207
    %v6032 = vsel %vm6016, %v5967, %v5209
    %v6033 = vsel %vm6016, %v5968, %v5211
    %v6034 = vsel %vm6016, %v5969, %v5213
    %v6035 = vsel %vm6016, %v5970, %v5215
    %v6036 = vsel %vm6016, %v5971, %v5217
    %v6037 = vsel %vm6016, %v5972, %v5219
    %v6038 = vsel %vm6016, %v5973, %v5221
    %v6039 = vsel %vm6016, %v5974, %v5223
    %v6040 = vsel %vm6016, %v5975, %v5225
    %v6041 = vsel %vm6016, %v5976, %v5227
    %v6042 = vsel %vm6016, %v5977, %v5229
    %v6043 = vsel %vm6016, %v5978, %v5231
    %v6044 = vsel %vm6016, %v5979, %v5233
    %v6045 = vsel %vm6016, %v5980, %v5235
    %v6046 = vsel %vm6016, %v5981, %v5237
    %v6047 = vsel %vm6016, %v5982, %v5239
    %v6048 = vsel %vm6016, %v5983, %v5241
    %v6049 = vsel %vm6016, %v5984, %v5243
    %v6050 = vsel %vm6016, %v5985, %v5245
    %v6051 = vsel %vm6016, %v5986, %v5247
    %v6052 = vsel %vm6016, %v5987, %v5249
    %v6053 = vsel %vm6016, %v5988, %v5251
    %v6054 = vsel %vm6016, %v5989, %v5253
    %v6055 = vsel %vm6016, %v5990, %v5255
    %v6056 = vsel %vm6016, %v5991, %v5257
    %v6057 = vsel %vm6016, %v5992, %v5259
    %v6058 = vsel %vm6016, %v5993, %v5261
    %v6059 = vsel %vm6016, %v5994, %v5263
    %v6060 = vsel %vm6016, %v5995, %v5265
    %v6061 = vsel %vm6016, %v5996, %v5267
    %v6062 = vsel %vm6016, %v5997, %v5269
    %v6063 = vsel %vm6016, %v5998, %v5271
    %v6064 = vsel %vm6016, %v5999, %v5273
    %v6065 = vsel %vm6016, %v6000, %v5275
    %v6066 = vsel %vm6016, %v6001, %v5277
    %v6067 = vsel %vm6016, %v6002, %v5279
    %v6068 = vsel %vm6016, %v6003, %v5281
    %v6069 = vsel %vm6016, %v6004, %v5283
    %v6070 = vsel %vm6016, %v6005, %v5285
    %v6071 = vsel %vm6016, %v6006, %v5287
    %v6072 = vsel %vm6016, %v6007, %v5289
    %v6073 = vsel %vm6016, %v6008, %v5291
    %v6074 = vsel %vm6016, %v6009, %v5293
    %v6075 = vsel %vm6016, %v6010, %v5295
    %v6076 = vsel %vm6016, %v6011, %v5297
    %v6077 = vsel %vm6016, %v6012, %v5299
    %v6078 = vsel %vm6016, %v6013, %v5301
    %v6079 = vsel %vm6016, %v6014, %v5303
    %v6080 = vsel %vm6016, %v6015, %v5305
    %vm6081 = vcmask 261120
    %v6082 = vsel %vm6081, %v6017, %v5435
    %v6083 = vsel %vm6081, %v6018, %v5437
    %v6084 = vsel %vm6081, %v6019, %v5439
    %v6085 = vsel %vm6081, %v6020, %v5441
    %v6086 = vsel %vm6081, %v6021, %v5443
    %v6087 = vsel %vm6081, %v6022, %v5445
    %v6088 = vsel %vm6081, %v6023, %v5447
    %v6089 = vsel %vm6081, %v6024, %v5449
    %v6090 = vsel %vm6081, %v6025, %v5451
    %v6091 = vsel %vm6081, %v6026, %v5453
    %v6092 = vsel %vm6081, %v6027, %v5455
    %v6093 = vsel %vm6081, %v6028, %v5457
    %v6094 = vsel %vm6081, %v6029, %v5459
    %v6095 = vsel %vm6081, %v6030, %v5461
    %v6096 = vsel %vm6081, %v6031, %v5463
    %v6097 = vsel %vm6081, %v6032, %v5465
    %v6098 = vsel %vm6081, %v6033, %v5467
    %v6099 = vsel %vm6081, %v6034, %v5469
    %v6100 = vsel %vm6081, %v6035, %v5471
    %v6101 = vsel %vm6081, %v6036, %v5473
    %v6102 = vsel %vm6081, %v6037, %v5475
    %v6103 = vsel %vm6081, %v6038, %v5477
    %v6104 = vsel %vm6081, %v6039, %v5479
    %v6105 = vsel %vm6081, %v6040, %v5481
    %v6106 = vsel %vm6081, %v6041, %v5483
    %v6107 = vsel %vm6081, %v6042, %v5485
    %v6108 = vsel %vm6081, %v6043, %v5487
    %v6109 = vsel %vm6081, %v6044, %v5489
    %v6110 = vsel %vm6081, %v6045, %v5491
    %v6111 = vsel %vm6081, %v6046, %v5493
    %v6112 = vsel %vm6081, %v6047, %v5495
    %v6113 = vsel %vm6081, %v6048, %v5497
    %v6114 = vsel %vm6081, %v6049, %v5499
    %v6115 = vsel %vm6081, %v6050, %v5501
    %v6116 = vsel %vm6081, %v6051, %v5503
    %v6117 = vsel %vm6081, %v6052, %v5505
    %v6118 = vsel %vm6081, %v6053, %v5507
    %v6119 = vsel %vm6081, %v6054, %v5509
    %v6120 = vsel %vm6081, %v6055, %v5511
    %v6121 = vsel %vm6081, %v6056, %v5513
    %v6122 = vsel %vm6081, %v6057, %v5515
    %v6123 = vsel %vm6081, %v6058, %v5517
    %v6124 = vsel %vm6081, %v6059, %v5519
    %v6125 = vsel %vm6081, %v6060, %v5521
    %v6126 = vsel %vm6081, %v6061, %v5523
    %v6127 = vsel %vm6081, %v6062, %v5525
    %v6128 = vsel %vm6081, %v6063, %v5527
    %v6129 = vsel %vm6081, %v6064, %v5529
    %v6130 = vsel %vm6081, %v6065, %v5531
    %v6131 = vsel %vm6081, %v6066, %v5533
    %v6132 = vsel %vm6081, %v6067, %v5535
    %v6133 = vsel %vm6081, %v6068, %v5537
    %v6134 = vsel %vm6081, %v6069, %v5539
    %v6135 = vsel %vm6081, %v6070, %v5541
    %v6136 = vsel %vm6081, %v6071, %v5543
    %v6137 = vsel %vm6081, %v6072, %v5545
    %v6138 = vsel %vm6081, %v6073, %v5547
    %v6139 = vsel %vm6081, %v6074, %v5549
    %v6140 = vsel %vm6081, %v6075, %v5551
    %v6141 = vsel %vm6081, %v6076, %v5553
    %v6142 = vsel %vm6081, %v6077, %v5555
    %v6143 = vsel %vm6081, %v6078, %v5557
    %v6144 = vsel %vm6081, %v6079, %v5559
    %v6145 = vsel %vm6081, %v6080, %v5561
    %v6146 = vpack.c.bf16 %v6083, %v6082
    %v6147 = vpack.c.bf16 %v6085, %v6084
    %v6148 = vpack.c.bf16 %v6087, %v6086
    %v6149 = vpack.c.bf16 %v6089, %v6088
    %v6150 = vpack.c.bf16 %v6091, %v6090
    %v6151 = vpack.c.bf16 %v6093, %v6092
    %v6152 = vpack.c.bf16 %v6095, %v6094
    %v6153 = vpack.c.bf16 %v6097, %v6096
    %v6154 = vpack.c.bf16 %v6099, %v6098
    %v6155 = vpack.c.bf16 %v6101, %v6100
    %v6156 = vpack.c.bf16 %v6103, %v6102
    %v6157 = vpack.c.bf16 %v6105, %v6104
    %v6158 = vpack.c.bf16 %v6107, %v6106
    %v6159 = vpack.c.bf16 %v6109, %v6108
    %v6160 = vpack.c.bf16 %v6111, %v6110
    %v6161 = vpack.c.bf16 %v6113, %v6112
    %v6162 = vpack.c.bf16 %v6115, %v6114
    %v6163 = vpack.c.bf16 %v6117, %v6116
    %v6164 = vpack.c.bf16 %v6119, %v6118
    %v6165 = vpack.c.bf16 %v6121, %v6120
    %v6166 = vpack.c.bf16 %v6123, %v6122
    %v6167 = vpack.c.bf16 %v6125, %v6124
    %v6168 = vpack.c.bf16 %v6127, %v6126
    %v6169 = vpack.c.bf16 %v6129, %v6128
    %v6170 = vpack.c.bf16 %v6131, %v6130
    %v6171 = vpack.c.bf16 %v6133, %v6132
    %v6172 = vpack.c.bf16 %v6135, %v6134
    %v6173 = vpack.c.bf16 %v6137, %v6136
    %v6174 = vpack.c.bf16 %v6139, %v6138
    %v6175 = vpack.c.bf16 %v6141, %v6140
    %v6176 = vpack.c.bf16 %v6143, %v6142
    %v6177 = vpack.c.bf16 %v6145, %v6144
    %v6178 = vld [vmem:[%s1] sm:$0xf]
    %v6179 = vld [vmem:[%s1 + $0x4] sm:$0xf]
    %v6180 = vld [vmem:[%s1 + $0x8] sm:$0xf]
    %v6181 = vld [vmem:[%s1 + $0xc] sm:$0xf]
    %v6182 = vld [vmem:[%s1 + $0x10] sm:$0x3]
    %v6183 = vld [vmem:[%s2] sm:$0x1]
    %v6185 = vperm.slane %v6183, 0
    %v6192 = vunpack.c.l.b16 %v6178
    %v6193 = vunpack.c.l.b16 %v6179
    %v6194 = vunpack.c.l.b16 %v6180
    %v6195 = vunpack.c.l.b16 %v6181
    %v6196 = vunpack.c.l.b16 %v6182
    %v6197 = vpack.c.b16 %v6193, %v6192
    %v6198 = vpack.c.b16 %v6195, %v6194
    %v6199 = vpack.c.b16 %v6196, %v6196
    %vm6202 = vcmask 293888
    %v6204 = vsel %vm6202, %v6146, 0
    %v6207 = vsel %vm6202, %v6147, 0
    %v6210 = vsel %vm6202, %v6148, 0
    %v6213 = vsel %vm6202, %v6149, 0
    %v6216 = vsel %vm6202, %v6150, 0
    %v6219 = vsel %vm6202, %v6151, 0
    %v6222 = vsel %vm6202, %v6152, 0
    %v6225 = vsel %vm6202, %v6153, 0
    %v6228 = vsel %vm6202, %v6154, 0
    %v6231 = vsel %vm6202, %v6155, 0
    %v6234 = vsel %vm6202, %v6156, 0
    %v6237 = vsel %vm6202, %v6157, 0
    %v6240 = vsel %vm6202, %v6158, 0
    %v6243 = vsel %vm6202, %v6159, 0
    %v6246 = vsel %vm6202, %v6160, 0
    %v6249 = vsel %vm6202, %v6161, 0
    %v6252 = vsel %vm6202, %v6162, 0
    %v6255 = vsel %vm6202, %v6163, 0
    %v6258 = vsel %vm6202, %v6164, 0
    %v6261 = vsel %vm6202, %v6165, 0
    %v6264 = vsel %vm6202, %v6166, 0
    %v6267 = vsel %vm6202, %v6167, 0
    %v6270 = vsel %vm6202, %v6168, 0
    %v6273 = vsel %vm6202, %v6169, 0
    %v6276 = vsel %vm6202, %v6170, 0
    %v6279 = vsel %vm6202, %v6171, 0
    %v6282 = vsel %vm6202, %v6172, 0
    %v6285 = vsel %vm6202, %v6173, 0
    %v6288 = vsel %vm6202, %v6174, 0
    %v6291 = vsel %vm6202, %v6175, 0
    %v6294 = vsel %vm6202, %v6176, 0
    %v6297 = vsel %vm6202, %v6177, 0
    %vm6299 = vcmask 1041408
    %v6301 = vsel %vm6299, %v6199, 0
    %6303 = vmatpush.bf16.msra.mxu0 0
    %6304 = vmatpush.bf16.msra.mxu0 0
    %6305 = vmatpush.bf16.msra.mxu0 0
    %6306 = vmatpush.bf16.msra.mxu0 0
    %6307 = vmatpush.bf16.msra.mxu0 0
    %6308 = vmatpush.bf16.msra.mxu0 %v6301
    %6309 = vmatpush.bf16.msra.mxu0 %v6198
    %6310 = vmatpush.bf16.msra.mxu0 %v6197
    %6311 = vmatmul.bf16.gmra.mxu0 %v6204
    %v6312 = vpop.f32.mrf.mxu0
    %v6313 = vadd.f32 %v6185, %v6312
    %v6314 = vpop.f32.mrf.mxu0
    %v6315 = vadd.f32 %v6185, %v6314
    %6316 = vmatmul.bf16.gmra.mxu0 %v6207
    %v6317 = vpop.f32.mrf.mxu0
    %v6318 = vadd.f32 %v6185, %v6317
    %v6319 = vpop.f32.mrf.mxu0
    %v6320 = vadd.f32 %v6185, %v6319
    %6321 = vmatmul.bf16.gmra.mxu0 %v6210
    %v6322 = vpop.f32.mrf.mxu0
    %v6323 = vadd.f32 %v6185, %v6322
    %v6324 = vpop.f32.mrf.mxu0
    %v6325 = vadd.f32 %v6185, %v6324
    %6326 = vmatmul.bf16.gmra.mxu0 %v6213
    %v6327 = vpop.f32.mrf.mxu0
    %v6328 = vadd.f32 %v6185, %v6327
    %v6329 = vpop.f32.mrf.mxu0
    %v6330 = vadd.f32 %v6185, %v6329
    %6331 = vmatmul.bf16.gmra.mxu0 %v6216
    %v6332 = vpop.f32.mrf.mxu0
    %v6333 = vadd.f32 %v6185, %v6332
    %v6334 = vpop.f32.mrf.mxu0
    %v6335 = vadd.f32 %v6185, %v6334
    %6336 = vmatmul.bf16.gmra.mxu0 %v6219
    %v6337 = vpop.f32.mrf.mxu0
    %v6338 = vadd.f32 %v6185, %v6337
    %v6339 = vpop.f32.mrf.mxu0
    %v6340 = vadd.f32 %v6185, %v6339
    %6341 = vmatmul.bf16.gmra.mxu0 %v6222
    %v6342 = vpop.f32.mrf.mxu0
    %v6343 = vadd.f32 %v6185, %v6342
    %v6344 = vpop.f32.mrf.mxu0
    %v6345 = vadd.f32 %v6185, %v6344
    %6346 = vmatmul.bf16.gmra.mxu0 %v6225
    %v6347 = vpop.f32.mrf.mxu0
    %v6348 = vadd.f32 %v6185, %v6347
    %v6349 = vpop.f32.mrf.mxu0
    %v6350 = vadd.f32 %v6185, %v6349
    %6351 = vmatmul.bf16.gmra.mxu0 %v6228
    %v6352 = vpop.f32.mrf.mxu0
    %v6353 = vadd.f32 %v6185, %v6352
    %v6354 = vpop.f32.mrf.mxu0
    %v6355 = vadd.f32 %v6185, %v6354
    %6356 = vmatmul.bf16.gmra.mxu0 %v6231
    %v6357 = vpop.f32.mrf.mxu0
    %v6358 = vadd.f32 %v6185, %v6357
    %v6359 = vpop.f32.mrf.mxu0
    %v6360 = vadd.f32 %v6185, %v6359
    %6361 = vmatmul.bf16.gmra.mxu0 %v6234
    %v6362 = vpop.f32.mrf.mxu0
    %v6363 = vadd.f32 %v6185, %v6362
    %v6364 = vpop.f32.mrf.mxu0
    %v6365 = vadd.f32 %v6185, %v6364
    %6366 = vmatmul.bf16.gmra.mxu0 %v6237
    %v6367 = vpop.f32.mrf.mxu0
    %v6368 = vadd.f32 %v6185, %v6367
    %v6369 = vpop.f32.mrf.mxu0
    %v6370 = vadd.f32 %v6185, %v6369
    %6371 = vmatmul.bf16.gmra.mxu0 %v6240
    %v6372 = vpop.f32.mrf.mxu0
    %v6373 = vadd.f32 %v6185, %v6372
    %v6374 = vpop.f32.mrf.mxu0
    %v6375 = vadd.f32 %v6185, %v6374
    %6376 = vmatmul.bf16.gmra.mxu0 %v6243
    %v6377 = vpop.f32.mrf.mxu0
    %v6378 = vadd.f32 %v6185, %v6377
    %v6379 = vpop.f32.mrf.mxu0
    %v6380 = vadd.f32 %v6185, %v6379
    %6381 = vmatmul.bf16.gmra.mxu0 %v6246
    %v6382 = vpop.f32.mrf.mxu0
    %v6383 = vadd.f32 %v6185, %v6382
    %v6384 = vpop.f32.mrf.mxu0
    %v6385 = vadd.f32 %v6185, %v6384
    %6386 = vmatmul.bf16.gmra.mxu0 %v6249
    %v6387 = vpop.f32.mrf.mxu0
    %v6388 = vadd.f32 %v6185, %v6387
    %v6389 = vpop.f32.mrf.mxu0
    %v6390 = vadd.f32 %v6185, %v6389
    %6391 = vmatmul.bf16.gmra.mxu0 %v6252
    %v6392 = vpop.f32.mrf.mxu0
    %v6393 = vadd.f32 %v6185, %v6392
    %v6394 = vpop.f32.mrf.mxu0
    %v6395 = vadd.f32 %v6185, %v6394
    %6396 = vmatmul.bf16.gmra.mxu0 %v6255
    %v6397 = vpop.f32.mrf.mxu0
    %v6398 = vadd.f32 %v6185, %v6397
    %v6399 = vpop.f32.mrf.mxu0
    %v6400 = vadd.f32 %v6185, %v6399
    %6401 = vmatmul.bf16.gmra.mxu0 %v6258
    %v6402 = vpop.f32.mrf.mxu0
    %v6403 = vadd.f32 %v6185, %v6402
    %v6404 = vpop.f32.mrf.mxu0
    %v6405 = vadd.f32 %v6185, %v6404
    %6406 = vmatmul.bf16.gmra.mxu0 %v6261
    %v6407 = vpop.f32.mrf.mxu0
    %v6408 = vadd.f32 %v6185, %v6407
    %v6409 = vpop.f32.mrf.mxu0
    %v6410 = vadd.f32 %v6185, %v6409
    %6411 = vmatmul.bf16.gmra.mxu0 %v6264
    %v6412 = vpop.f32.mrf.mxu0
    %v6413 = vadd.f32 %v6185, %v6412
    %v6414 = vpop.f32.mrf.mxu0
    %v6415 = vadd.f32 %v6185, %v6414
    %6416 = vmatmul.bf16.gmra.mxu0 %v6267
    %v6417 = vpop.f32.mrf.mxu0
    %v6418 = vadd.f32 %v6185, %v6417
    %v6419 = vpop.f32.mrf.mxu0
    %v6420 = vadd.f32 %v6185, %v6419
    %6421 = vmatmul.bf16.gmra.mxu0 %v6270
    %v6422 = vpop.f32.mrf.mxu0
    %v6423 = vadd.f32 %v6185, %v6422
    %v6424 = vpop.f32.mrf.mxu0
    %v6425 = vadd.f32 %v6185, %v6424
    %6426 = vmatmul.bf16.gmra.mxu0 %v6273
    %v6427 = vpop.f32.mrf.mxu0
    %v6428 = vadd.f32 %v6185, %v6427
    %v6429 = vpop.f32.mrf.mxu0
    %v6430 = vadd.f32 %v6185, %v6429
    %6431 = vmatmul.bf16.gmra.mxu0 %v6276
    %v6432 = vpop.f32.mrf.mxu0
    %v6433 = vadd.f32 %v6185, %v6432
    %v6434 = vpop.f32.mrf.mxu0
    %v6435 = vadd.f32 %v6185, %v6434
    %6436 = vmatmul.bf16.gmra.mxu0 %v6279
    %v6437 = vpop.f32.mrf.mxu0
    %v6438 = vadd.f32 %v6185, %v6437
    %v6439 = vpop.f32.mrf.mxu0
    %v6440 = vadd.f32 %v6185, %v6439
    %6441 = vmatmul.bf16.gmra.mxu0 %v6282
    %v6442 = vpop.f32.mrf.mxu0
    %v6443 = vadd.f32 %v6185, %v6442
    %v6444 = vpop.f32.mrf.mxu0
    %v6445 = vadd.f32 %v6185, %v6444
    %6446 = vmatmul.bf16.gmra.mxu0 %v6285
    %v6447 = vpop.f32.mrf.mxu0
    %v6448 = vadd.f32 %v6185, %v6447
    %v6449 = vpop.f32.mrf.mxu0
    %v6450 = vadd.f32 %v6185, %v6449
    %6451 = vmatmul.bf16.gmra.mxu0 %v6288
    %v6452 = vpop.f32.mrf.mxu0
    %v6453 = vadd.f32 %v6185, %v6452
    %v6454 = vpop.f32.mrf.mxu0
    %v6455 = vadd.f32 %v6185, %v6454
    %6456 = vmatmul.bf16.gmra.mxu0 %v6291
    %v6457 = vpop.f32.mrf.mxu0
    %v6458 = vadd.f32 %v6185, %v6457
    %v6459 = vpop.f32.mrf.mxu0
    %v6460 = vadd.f32 %v6185, %v6459
    %6461 = vmatmul.bf16.gmra.mxu0 %v6294
    %v6462 = vpop.f32.mrf.mxu0
    %v6463 = vadd.f32 %v6185, %v6462
    %v6464 = vpop.f32.mrf.mxu0
    %v6465 = vadd.f32 %v6185, %v6464
    %6466 = vmatmul.bf16.gmra.mxu0 %v6297
    %v6467 = vpop.f32.mrf.mxu0
    %v6468 = vadd.f32 %v6185, %v6467
    %v6469 = vpop.f32.mrf.mxu0
    %v6470 = vadd.f32 %v6185, %v6469
    %6471 = vdwg.mxu0
    %v6472 = vmax.f32 %v6313, 0.0
    %v6473 = vmax.f32 %v6315, 0.0
    %v6474 = vmax.f32 %v6318, 0.0
    %v6475 = vmax.f32 %v6320, 0.0
    %v6476 = vmax.f32 %v6323, 0.0
    %v6477 = vmax.f32 %v6325, 0.0
    %v6478 = vmax.f32 %v6328, 0.0
    %v6479 = vmax.f32 %v6330, 0.0
    %v6480 = vmax.f32 %v6333, 0.0
    %v6481 = vmax.f32 %v6335, 0.0
    %v6482 = vmax.f32 %v6338, 0.0
    %v6483 = vmax.f32 %v6340, 0.0
    %v6484 = vmax.f32 %v6343, 0.0
    %v6485 = vmax.f32 %v6345, 0.0
    %v6486 = vmax.f32 %v6348, 0.0
    %v6487 = vmax.f32 %v6350, 0.0
    %v6488 = vmax.f32 %v6353, 0.0
    %v6489 = vmax.f32 %v6355, 0.0
    %v6490 = vmax.f32 %v6358, 0.0
    %v6491 = vmax.f32 %v6360, 0.0
    %v6492 = vmax.f32 %v6363, 0.0
    %v6493 = vmax.f32 %v6365, 0.0
    %v6494 = vmax.f32 %v6368, 0.0
    %v6495 = vmax.f32 %v6370, 0.0
    %v6496 = vmax.f32 %v6373, 0.0
    %v6497 = vmax.f32 %v6375, 0.0
    %v6498 = vmax.f32 %v6378, 0.0
    %v6499 = vmax.f32 %v6380, 0.0
    %v6500 = vmax.f32 %v6383, 0.0
    %v6501 = vmax.f32 %v6385, 0.0
    %v6502 = vmax.f32 %v6388, 0.0
    %v6503 = vmax.f32 %v6390, 0.0
    %v6504 = vmax.f32 %v6393, 0.0
    %v6505 = vmax.f32 %v6395, 0.0
    %v6506 = vmax.f32 %v6398, 0.0
    %v6507 = vmax.f32 %v6400, 0.0
    %v6508 = vmax.f32 %v6403, 0.0
    %v6509 = vmax.f32 %v6405, 0.0
    %v6510 = vmax.f32 %v6408, 0.0
    %v6511 = vmax.f32 %v6410, 0.0
    %v6512 = vmax.f32 %v6413, 0.0
    %v6513 = vmax.f32 %v6415, 0.0
    %v6514 = vmax.f32 %v6418, 0.0
    %v6515 = vmax.f32 %v6420, 0.0
    %v6516 = vmax.f32 %v6423, 0.0
    %v6517 = vmax.f32 %v6425, 0.0
    %v6518 = vmax.f32 %v6428, 0.0
    %v6519 = vmax.f32 %v6430, 0.0
    %v6520 = vmax.f32 %v6433, 0.0
    %v6521 = vmax.f32 %v6435, 0.0
    %v6522 = vmax.f32 %v6438, 0.0
    %v6523 = vmax.f32 %v6440, 0.0
    %v6524 = vmax.f32 %v6443, 0.0
    %v6525 = vmax.f32 %v6445, 0.0
    %v6526 = vmax.f32 %v6448, 0.0
    %v6527 = vmax.f32 %v6450, 0.0
    %v6528 = vmax.f32 %v6453, 0.0
    %v6529 = vmax.f32 %v6455, 0.0
    %v6530 = vmax.f32 %v6458, 0.0
    %v6531 = vmax.f32 %v6460, 0.0
    %v6532 = vmax.f32 %v6463, 0.0
    %v6533 = vmax.f32 %v6465, 0.0
    %v6534 = vmax.f32 %v6468, 0.0
    %v6535 = vmax.f32 %v6470, 0.0
    %v6600 = vrot.slane %v6472, 1
    %v6601 = vrot.slane %v6473, 1
    %v6602 = vsel %vm1134, %v6600, %v6601
    %v6603 = vrot.slane %v6474, 1
    %v6604 = vsel %vm1134, %v6601, %v6603
    %v6605 = vrot.slane %v6475, 1
    %v6606 = vsel %vm1134, %v6603, %v6605
    %v6607 = vrot.slane %v6476, 1
    %v6608 = vsel %vm1134, %v6605, %v6607
    %v6609 = vrot.slane %v6477, 1
    %v6610 = vsel %vm1134, %v6607, %v6609
    %v6611 = vrot.slane %v6478, 1
    %v6612 = vsel %vm1134, %v6609, %v6611
    %v6613 = vrot.slane %v6479, 1
    %v6614 = vsel %vm1134, %v6611, %v6613
    %v6615 = vrot.slane %v6480, 1
    %v6616 = vsel %vm1134, %v6613, %v6615
    %v6617 = vrot.slane %v6481, 1
    %v6618 = vsel %vm1134, %v6615, %v6617
    %v6619 = vrot.slane %v6482, 1
    %v6620 = vsel %vm1134, %v6617, %v6619
    %v6621 = vrot.slane %v6483, 1
    %v6622 = vsel %vm1134, %v6619, %v6621
    %v6623 = vrot.slane %v6484, 1
    %v6624 = vsel %vm1134, %v6621, %v6623
    %v6625 = vrot.slane %v6485, 1
    %v6626 = vsel %vm1134, %v6623, %v6625
    %v6627 = vrot.slane %v6486, 1
    %v6628 = vsel %vm1134, %v6625, %v6627
    %v6629 = vrot.slane %v6487, 1
    %v6630 = vsel %vm1134, %v6627, %v6629
    %v6631 = vrot.slane %v6488, 1
    %v6632 = vsel %vm1134, %v6629, %v6631
    %v6633 = vrot.slane %v6489, 1
    %v6634 = vsel %vm1134, %v6631, %v6633
    %v6635 = vrot.slane %v6490, 1
    %v6636 = vsel %vm1134, %v6633, %v6635
    %v6637 = vrot.slane %v6491, 1
    %v6638 = vsel %vm1134, %v6635, %v6637
    %v6639 = vrot.slane %v6492, 1
    %v6640 = vsel %vm1134, %v6637, %v6639
    %v6641 = vrot.slane %v6493, 1
    %v6642 = vsel %vm1134, %v6639, %v6641
    %v6643 = vrot.slane %v6494, 1
    %v6644 = vsel %vm1134, %v6641, %v6643
    %v6645 = vrot.slane %v6495, 1
    %v6646 = vsel %vm1134, %v6643, %v6645
    %v6647 = vrot.slane %v6496, 1
    %v6648 = vsel %vm1134, %v6645, %v6647
    %v6649 = vrot.slane %v6497, 1
    %v6650 = vsel %vm1134, %v6647, %v6649
    %v6651 = vrot.slane %v6498, 1
    %v6652 = vsel %vm1134, %v6649, %v6651
    %v6653 = vrot.slane %v6499, 1
    %v6654 = vsel %vm1134, %v6651, %v6653
    %v6655 = vrot.slane %v6500, 1
    %v6656 = vsel %vm1134, %v6653, %v6655
    %v6657 = vrot.slane %v6501, 1
    %v6658 = vsel %vm1134, %v6655, %v6657
    %v6659 = vrot.slane %v6502, 1
    %v6660 = vsel %vm1134, %v6657, %v6659
    %v6661 = vrot.slane %v6503, 1
    %v6662 = vsel %vm1134, %v6659, %v6661
    %v6663 = vrot.slane %v6504, 1
    %v6664 = vsel %vm1134, %v6661, %v6663
    %v6665 = vrot.slane %v6505, 1
    %v6666 = vsel %vm1134, %v6663, %v6665
    %v6667 = vrot.slane %v6506, 1
    %v6668 = vsel %vm1134, %v6665, %v6667
    %v6669 = vrot.slane %v6507, 1
    %v6670 = vsel %vm1134, %v6667, %v6669
    %v6671 = vrot.slane %v6508, 1
    %v6672 = vsel %vm1134, %v6669, %v6671
    %v6673 = vrot.slane %v6509, 1
    %v6674 = vsel %vm1134, %v6671, %v6673
    %v6675 = vrot.slane %v6510, 1
    %v6676 = vsel %vm1134, %v6673, %v6675
    %v6677 = vrot.slane %v6511, 1
    %v6678 = vsel %vm1134, %v6675, %v6677
    %v6679 = vrot.slane %v6512, 1
    %v6680 = vsel %vm1134, %v6677, %v6679
    %v6681 = vrot.slane %v6513, 1
    %v6682 = vsel %vm1134, %v6679, %v6681
    %v6683 = vrot.slane %v6514, 1
    %v6684 = vsel %vm1134, %v6681, %v6683
    %v6685 = vrot.slane %v6515, 1
    %v6686 = vsel %vm1134, %v6683, %v6685
    %v6687 = vrot.slane %v6516, 1
    %v6688 = vsel %vm1134, %v6685, %v6687
    %v6689 = vrot.slane %v6517, 1
    %v6690 = vsel %vm1134, %v6687, %v6689
    %v6691 = vrot.slane %v6518, 1
    %v6692 = vsel %vm1134, %v6689, %v6691
    %v6693 = vrot.slane %v6519, 1
    %v6694 = vsel %vm1134, %v6691, %v6693
    %v6695 = vrot.slane %v6520, 1
    %v6696 = vsel %vm1134, %v6693, %v6695
    %v6697 = vrot.slane %v6521, 1
    %v6698 = vsel %vm1134, %v6695, %v6697
    %v6699 = vrot.slane %v6522, 1
    %v6700 = vsel %vm1134, %v6697, %v6699
    %v6701 = vrot.slane %v6523, 1
    %v6702 = vsel %vm1134, %v6699, %v6701
    %v6703 = vrot.slane %v6524, 1
    %v6704 = vsel %vm1134, %v6701, %v6703
    %v6705 = vrot.slane %v6525, 1
    %v6706 = vsel %vm1134, %v6703, %v6705
    %v6707 = vrot.slane %v6526, 1
    %v6708 = vsel %vm1134, %v6705, %v6707
    %v6709 = vrot.slane %v6527, 1
    %v6710 = vsel %vm1134, %v6707, %v6709
    %v6711 = vrot.slane %v6528, 1
    %v6712 = vsel %vm1134, %v6709, %v6711
    %v6713 = vrot.slane %v6529, 1
    %v6714 = vsel %vm1134, %v6711, %v6713
    %v6715 = vrot.slane %v6530, 1
    %v6716 = vsel %vm1134, %v6713, %v6715
    %v6717 = vrot.slane %v6531, 1
    %v6718 = vsel %vm1134, %v6715, %v6717
    %v6719 = vrot.slane %v6532, 1
    %v6720 = vsel %vm1134, %v6717, %v6719
    %v6721 = vrot.slane %v6533, 1
    %v6722 = vsel %vm1134, %v6719, %v6721
    %v6723 = vrot.slane %v6534, 1
    %v6724 = vsel %vm1134, %v6721, %v6723
    %v6725 = vrot.slane %v6535, 1
    %v6726 = vsel %vm1134, %v6723, %v6725
    %v6791 = vsel %vm1134, %v6725, 0.0
    %v6792 = vmax.f32 %v6472, %v6602
    %v6793 = vmax.f32 %v6473, %v6604
    %v6794 = vmax.f32 %v6474, %v6606
    %v6795 = vmax.f32 %v6475, %v6608
    %v6796 = vmax.f32 %v6476, %v6610
    %v6797 = vmax.f32 %v6477, %v6612
    %v6798 = vmax.f32 %v6478, %v6614
    %v6799 = vmax.f32 %v6479, %v6616
    %v6800 = vmax.f32 %v6480, %v6618
    %v6801 = vmax.f32 %v6481, %v6620
    %v6802 = vmax.f32 %v6482, %v6622
    %v6803 = vmax.f32 %v6483, %v6624
    %v6804 = vmax.f32 %v6484, %v6626
    %v6805 = vmax.f32 %v6485, %v6628
    %v6806 = vmax.f32 %v6486, %v6630
    %v6807 = vmax.f32 %v6487, %v6632
    %v6808 = vmax.f32 %v6488, %v6634
    %v6809 = vmax.f32 %v6489, %v6636
    %v6810 = vmax.f32 %v6490, %v6638
    %v6811 = vmax.f32 %v6491, %v6640
    %v6812 = vmax.f32 %v6492, %v6642
    %v6813 = vmax.f32 %v6493, %v6644
    %v6814 = vmax.f32 %v6494, %v6646
    %v6815 = vmax.f32 %v6495, %v6648
    %v6816 = vmax.f32 %v6496, %v6650
    %v6817 = vmax.f32 %v6497, %v6652
    %v6818 = vmax.f32 %v6498, %v6654
    %v6819 = vmax.f32 %v6499, %v6656
    %v6820 = vmax.f32 %v6500, %v6658
    %v6821 = vmax.f32 %v6501, %v6660
    %v6822 = vmax.f32 %v6502, %v6662
    %v6823 = vmax.f32 %v6503, %v6664
    %v6824 = vmax.f32 %v6504, %v6666
    %v6825 = vmax.f32 %v6505, %v6668
    %v6826 = vmax.f32 %v6506, %v6670
    %v6827 = vmax.f32 %v6507, %v6672
    %v6828 = vmax.f32 %v6508, %v6674
    %v6829 = vmax.f32 %v6509, %v6676
    %v6830 = vmax.f32 %v6510, %v6678
    %v6831 = vmax.f32 %v6511, %v6680
    %v6832 = vmax.f32 %v6512, %v6682
    %v6833 = vmax.f32 %v6513, %v6684
    %v6834 = vmax.f32 %v6514, %v6686
    %v6835 = vmax.f32 %v6515, %v6688
    %v6836 = vmax.f32 %v6516, %v6690
    %v6837 = vmax.f32 %v6517, %v6692
    %v6838 = vmax.f32 %v6518, %v6694
    %v6839 = vmax.f32 %v6519, %v6696
    %v6840 = vmax.f32 %v6520, %v6698
    %v6841 = vmax.f32 %v6521, %v6700
    %v6842 = vmax.f32 %v6522, %v6702
    %v6843 = vmax.f32 %v6523, %v6704
    %v6844 = vmax.f32 %v6524, %v6706
    %v6845 = vmax.f32 %v6525, %v6708
    %v6846 = vmax.f32 %v6526, %v6710
    %v6847 = vmax.f32 %v6527, %v6712
    %v6848 = vmax.f32 %v6528, %v6714
    %v6849 = vmax.f32 %v6529, %v6716
    %v6850 = vmax.f32 %v6530, %v6718
    %v6851 = vmax.f32 %v6531, %v6720
    %v6852 = vmax.f32 %v6532, %v6722
    %v6853 = vmax.f32 %v6533, %v6724
    %v6854 = vmax.f32 %v6534, %v6726
    %v6855 = vmax.f32 %v6535, %v6791
    %vm6856 = vcmask 1045504
    %v6857 = vrot.slane %v6472, 2
    %v6858 = vrot.slane %v6473, 2
    %v6859 = vsel %vm6856, %v6857, %v6858
    %v6860 = vrot.slane %v6474, 2
    %v6861 = vsel %vm6856, %v6858, %v6860
    %v6862 = vrot.slane %v6475, 2
    %v6863 = vsel %vm6856, %v6860, %v6862
    %v6864 = vrot.slane %v6476, 2
    %v6865 = vsel %vm6856, %v6862, %v6864
    %v6866 = vrot.slane %v6477, 2
    %v6867 = vsel %vm6856, %v6864, %v6866
    %v6868 = vrot.slane %v6478, 2
    %v6869 = vsel %vm6856, %v6866, %v6868
    %v6870 = vrot.slane %v6479, 2
    %v6871 = vsel %vm6856, %v6868, %v6870
    %v6872 = vrot.slane %v6480, 2
    %v6873 = vsel %vm6856, %v6870, %v6872
    %v6874 = vrot.slane %v6481, 2
    %v6875 = vsel %vm6856, %v6872, %v6874
    %v6876 = vrot.slane %v6482, 2
    %v6877 = vsel %vm6856, %v6874, %v6876
    %v6878 = vrot.slane %v6483, 2
    %v6879 = vsel %vm6856, %v6876, %v6878
    %v6880 = vrot.slane %v6484, 2
    %v6881 = vsel %vm6856, %v6878, %v6880
    %v6882 = vrot.slane %v6485, 2
    %v6883 = vsel %vm6856, %v6880, %v6882
    %v6884 = vrot.slane %v6486, 2
    %v6885 = vsel %vm6856, %v6882, %v6884
    %v6886 = vrot.slane %v6487, 2
    %v6887 = vsel %vm6856, %v6884, %v6886
    %v6888 = vrot.slane %v6488, 2
    %v6889 = vsel %vm6856, %v6886, %v6888
    %v6890 = vrot.slane %v6489, 2
    %v6891 = vsel %vm6856, %v6888, %v6890
    %v6892 = vrot.slane %v6490, 2
    %v6893 = vsel %vm6856, %v6890, %v6892
    %v6894 = vrot.slane %v6491, 2
    %v6895 = vsel %vm6856, %v6892, %v6894
    %v6896 = vrot.slane %v6492, 2
    %v6897 = vsel %vm6856, %v6894, %v6896
    %v6898 = vrot.slane %v6493, 2
    %v6899 = vsel %vm6856, %v6896, %v6898
    %v6900 = vrot.slane %v6494, 2
    %v6901 = vsel %vm6856, %v6898, %v6900
    %v6902 = vrot.slane %v6495, 2
    %v6903 = vsel %vm6856, %v6900, %v6902
    %v6904 = vrot.slane %v6496, 2
    %v6905 = vsel %vm6856, %v6902, %v6904
    %v6906 = vrot.slane %v6497, 2
    %v6907 = vsel %vm6856, %v6904, %v6906
    %v6908 = vrot.slane %v6498, 2
    %v6909 = vsel %vm6856, %v6906, %v6908
    %v6910 = vrot.slane %v6499, 2
    %v6911 = vsel %vm6856, %v6908, %v6910
    %v6912 = vrot.slane %v6500, 2
    %v6913 = vsel %vm6856, %v6910, %v6912
    %v6914 = vrot.slane %v6501, 2
    %v6915 = vsel %vm6856, %v6912, %v6914
    %v6916 = vrot.slane %v6502, 2
    %v6917 = vsel %vm6856, %v6914, %v6916
    %v6918 = vrot.slane %v6503, 2
    %v6919 = vsel %vm6856, %v6916, %v6918
    %v6920 = vrot.slane %v6504, 2
    %v6921 = vsel %vm6856, %v6918, %v6920
    %v6922 = vrot.slane %v6505, 2
    %v6923 = vsel %vm6856, %v6920, %v6922
    %v6924 = vrot.slane %v6506, 2
    %v6925 = vsel %vm6856, %v6922, %v6924
    %v6926 = vrot.slane %v6507, 2
    %v6927 = vsel %vm6856, %v6924, %v6926
    %v6928 = vrot.slane %v6508, 2
    %v6929 = vsel %vm6856, %v6926, %v6928
    %v6930 = vrot.slane %v6509, 2
    %v6931 = vsel %vm6856, %v6928, %v6930
    %v6932 = vrot.slane %v6510, 2
    %v6933 = vsel %vm6856, %v6930, %v6932
    %v6934 = vrot.slane %v6511, 2
    %v6935 = vsel %vm6856, %v6932, %v6934
    %v6936 = vrot.slane %v6512, 2
    %v6937 = vsel %vm6856, %v6934, %v6936
    %v6938 = vrot.slane %v6513, 2
    %v6939 = vsel %vm6856, %v6936, %v6938
    %v6940 = vrot.slane %v6514, 2
    %v6941 = vsel %vm6856, %v6938, %v6940
    %v6942 = vrot.slane %v6515, 2
    %v6943 = vsel %vm6856, %v6940, %v6942
    %v6944 = vrot.slane %v6516, 2
    %v6945 = vsel %vm6856, %v6942, %v6944
    %v6946 = vrot.slane %v6517, 2
    %v6947 = vsel %vm6856, %v6944, %v6946
    %v6948 = vrot.slane %v6518, 2
    %v6949 = vsel %vm6856, %v6946, %v6948
    %v6950 = vrot.slane %v6519, 2
    %v6951 = vsel %vm6856, %v6948, %v6950
    %v6952 = vrot.slane %v6520, 2
    %v6953 = vsel %vm6856, %v6950, %v6952
    %v6954 = vrot.slane %v6521, 2
    %v6955 = vsel %vm6856, %v6952, %v6954
    %v6956 = vrot.slane %v6522, 2
    %v6957 = vsel %vm6856, %v6954, %v6956
    %v6958 = vrot.slane %v6523, 2
    %v6959 = vsel %vm6856, %v6956, %v6958
    %v6960 = vrot.slane %v6524, 2
    %v6961 = vsel %vm6856, %v6958, %v6960
    %v6962 = vrot.slane %v6525, 2
    %v6963 = vsel %vm6856, %v6960, %v6962
    %v6964 = vrot.slane %v6526, 2
    %v6965 = vsel %vm6856, %v6962, %v6964
    %v6966 = vrot.slane %v6527, 2
    %v6967 = vsel %vm6856, %v6964, %v6966
    %v6968 = vrot.slane %v6528, 2
    %v6969 = vsel %vm6856, %v6966, %v6968
    %v6970 = vrot.slane %v6529, 2
    %v6971 = vsel %vm6856, %v6968, %v6970
    %v6972 = vrot.slane %v6530, 2
    %v6973 = vsel %vm6856, %v6970, %v6972
    %v6974 = vrot.slane %v6531, 2
    %v6975 = vsel %vm6856, %v6972, %v6974
    %v6976 = vrot.slane %v6532, 2
    %v6977 = vsel %vm6856, %v6974, %v6976
    %v6978 = vrot.slane %v6533, 2
    %v6979 = vsel %vm6856, %v6976, %v6978
    %v6980 = vrot.slane %v6534, 2
    %v6981 = vsel %vm6856, %v6978, %v6980
    %v6982 = vrot.slane %v6535, 2
    %v6983 = vsel %vm6856, %v6980, %v6982
    %v7048 = vsel %vm6856, %v6982, 0.0
    %v7049 = vmax.f32 %v6792, %v6859
    %v7050 = vmax.f32 %v6793, %v6861
    %v7051 = vmax.f32 %v6794, %v6863
    %v7052 = vmax.f32 %v6795, %v6865
    %v7053 = vmax.f32 %v6796, %v6867
    %v7054 = vmax.f32 %v6797, %v6869
    %v7055 = vmax.f32 %v6798, %v6871
    %v7056 = vmax.f32 %v6799, %v6873
    %v7057 = vmax.f32 %v6800, %v6875
    %v7058 = vmax.f32 %v6801, %v6877
    %v7059 = vmax.f32 %v6802, %v6879
    %v7060 = vmax.f32 %v6803, %v6881
    %v7061 = vmax.f32 %v6804, %v6883
    %v7062 = vmax.f32 %v6805, %v6885
    %v7063 = vmax.f32 %v6806, %v6887
    %v7064 = vmax.f32 %v6807, %v6889
    %v7065 = vmax.f32 %v6808, %v6891
    %v7066 = vmax.f32 %v6809, %v6893
    %v7067 = vmax.f32 %v6810, %v6895
    %v7068 = vmax.f32 %v6811, %v6897
    %v7069 = vmax.f32 %v6812, %v6899
    %v7070 = vmax.f32 %v6813, %v6901
    %v7071 = vmax.f32 %v6814, %v6903
    %v7072 = vmax.f32 %v6815, %v6905
    %v7073 = vmax.f32 %v6816, %v6907
    %v7074 = vmax.f32 %v6817, %v6909
    %v7075 = vmax.f32 %v6818, %v6911
    %v7076 = vmax.f32 %v6819, %v6913
    %v7077 = vmax.f32 %v6820, %v6915
    %v7078 = vmax.f32 %v6821, %v6917
    %v7079 = vmax.f32 %v6822, %v6919
    %v7080 = vmax.f32 %v6823, %v6921
    %v7081 = vmax.f32 %v6824, %v6923
    %v7082 = vmax.f32 %v6825, %v6925
    %v7083 = vmax.f32 %v6826, %v6927
    %v7084 = vmax.f32 %v6827, %v6929
    %v7085 = vmax.f32 %v6828, %v6931
    %v7086 = vmax.f32 %v6829, %v6933
    %v7087 = vmax.f32 %v6830, %v6935
    %v7088 = vmax.f32 %v6831, %v6937
    %v7089 = vmax.f32 %v6832, %v6939
    %v7090 = vmax.f32 %v6833, %v6941
    %v7091 = vmax.f32 %v6834, %v6943
    %v7092 = vmax.f32 %v6835, %v6945
    %v7093 = vmax.f32 %v6836, %v6947
    %v7094 = vmax.f32 %v6837, %v6949
    %v7095 = vmax.f32 %v6838, %v6951
    %v7096 = vmax.f32 %v6839, %v6953
    %v7097 = vmax.f32 %v6840, %v6955
    %v7098 = vmax.f32 %v6841, %v6957
    %v7099 = vmax.f32 %v6842, %v6959
    %v7100 = vmax.f32 %v6843, %v6961
    %v7101 = vmax.f32 %v6844, %v6963
    %v7102 = vmax.f32 %v6845, %v6965
    %v7103 = vmax.f32 %v6846, %v6967
    %v7104 = vmax.f32 %v6847, %v6969
    %v7105 = vmax.f32 %v6848, %v6971
    %v7106 = vmax.f32 %v6849, %v6973
    %v7107 = vmax.f32 %v6850, %v6975
    %v7108 = vmax.f32 %v6851, %v6977
    %v7109 = vmax.f32 %v6852, %v6979
    %v7110 = vmax.f32 %v6853, %v6981
    %v7111 = vmax.f32 %v6854, %v6983
    %v7112 = vmax.f32 %v6855, %v7048
    %v7113 = vmax.f32 %v7049, %v7051
    %v7114 = vmax.f32 %v7050, %v7052
    %v7115 = vmax.f32 %v7051, %v7053
    %v7116 = vmax.f32 %v7052, %v7054
    %v7117 = vmax.f32 %v7053, %v7055
    %v7118 = vmax.f32 %v7054, %v7056
    %v7119 = vmax.f32 %v7055, %v7057
    %v7120 = vmax.f32 %v7056, %v7058
    %v7121 = vmax.f32 %v7057, %v7059
    %v7122 = vmax.f32 %v7058, %v7060
    %v7123 = vmax.f32 %v7059, %v7061
    %v7124 = vmax.f32 %v7060, %v7062
    %v7125 = vmax.f32 %v7061, %v7063
    %v7126 = vmax.f32 %v7062, %v7064
    %v7127 = vmax.f32 %v7063, %v7065
    %v7128 = vmax.f32 %v7064, %v7066
    %v7129 = vmax.f32 %v7065, %v7067
    %v7130 = vmax.f32 %v7066, %v7068
    %v7131 = vmax.f32 %v7067, %v7069
    %v7132 = vmax.f32 %v7068, %v7070
    %v7133 = vmax.f32 %v7069, %v7071
    %v7134 = vmax.f32 %v7070, %v7072
    %v7135 = vmax.f32 %v7071, %v7073
    %v7136 = vmax.f32 %v7072, %v7074
    %v7137 = vmax.f32 %v7073, %v7075
    %v7138 = vmax.f32 %v7074, %v7076
    %v7139 = vmax.f32 %v7075, %v7077
    %v7140 = vmax.f32 %v7076, %v7078
    %v7141 = vmax.f32 %v7077, %v7079
    %v7142 = vmax.f32 %v7078, %v7080
    %v7143 = vmax.f32 %v7079, %v7081
    %v7144 = vmax.f32 %v7080, %v7082
    %v7145 = vmax.f32 %v7081, %v7083
    %v7146 = vmax.f32 %v7082, %v7084
    %v7147 = vmax.f32 %v7083, %v7085
    %v7148 = vmax.f32 %v7084, %v7086
    %v7149 = vmax.f32 %v7085, %v7087
    %v7150 = vmax.f32 %v7086, %v7088
    %v7151 = vmax.f32 %v7087, %v7089
    %v7152 = vmax.f32 %v7088, %v7090
    %v7153 = vmax.f32 %v7089, %v7091
    %v7154 = vmax.f32 %v7090, %v7092
    %v7155 = vmax.f32 %v7091, %v7093
    %v7156 = vmax.f32 %v7092, %v7094
    %v7157 = vmax.f32 %v7093, %v7095
    %v7158 = vmax.f32 %v7094, %v7096
    %v7159 = vmax.f32 %v7095, %v7097
    %v7160 = vmax.f32 %v7096, %v7098
    %v7161 = vmax.f32 %v7097, %v7099
    %v7162 = vmax.f32 %v7098, %v7100
    %v7163 = vmax.f32 %v7099, %v7101
    %v7164 = vmax.f32 %v7100, %v7102
    %v7165 = vmax.f32 %v7101, %v7103
    %v7166 = vmax.f32 %v7102, %v7104
    %v7167 = vmax.f32 %v7103, %v7105
    %v7168 = vmax.f32 %v7104, %v7106
    %v7169 = vmax.f32 %v7105, %v7107
    %v7170 = vmax.f32 %v7106, %v7108
    %v7171 = vmax.f32 %v7107, %v7109
    %v7172 = vmax.f32 %v7108, %v7110
    %v7173 = vmax.f32 %v7109, %v7111
    %v7174 = vmax.f32 %v7110, %v7112
    %v7175 = vmax.f32 %v7111, 0.0
    %v7176 = vmax.f32 %v7112, 0.0
    %v7177 = vmax.f32 %v7113, %v7053
    %v7178 = vmax.f32 %v7114, %v7054
    %v7179 = vmax.f32 %v7115, %v7055
    %v7180 = vmax.f32 %v7116, %v7056
    %v7181 = vmax.f32 %v7117, %v7057
    %v7182 = vmax.f32 %v7118, %v7058
    %v7183 = vmax.f32 %v7119, %v7059
    %v7184 = vmax.f32 %v7120, %v7060
    %v7185 = vmax.f32 %v7121, %v7061
    %v7186 = vmax.f32 %v7122, %v7062
    %v7187 = vmax.f32 %v7123, %v7063
    %v7188 = vmax.f32 %v7124, %v7064
    %v7189 = vmax.f32 %v7125, %v7065
    %v7190 = vmax.f32 %v7126, %v7066
    %v7191 = vmax.f32 %v7127, %v7067
    %v7192 = vmax.f32 %v7128, %v7068
    %v7193 = vmax.f32 %v7129, %v7069
    %v7194 = vmax.f32 %v7130, %v7070
    %v7195 = vmax.f32 %v7131, %v7071
    %v7196 = vmax.f32 %v7132, %v7072
    %v7197 = vmax.f32 %v7133, %v7073
    %v7198 = vmax.f32 %v7134, %v7074
    %v7199 = vmax.f32 %v7135, %v7075
    %v7200 = vmax.f32 %v7136, %v7076
    %v7201 = vmax.f32 %v7137, %v7077
    %v7202 = vmax.f32 %v7138, %v7078
    %v7203 = vmax.f32 %v7139, %v7079
    %v7204 = vmax.f32 %v7140, %v7080
    %v7205 = vmax.f32 %v7141, %v7081
    %v7206 = vmax.f32 %v7142, %v7082
    %v7207 = vmax.f32 %v7143, %v7083
    %v7208 = vmax.f32 %v7144, %v7084
    %v7209 = vmax.f32 %v7145, %v7085
    %v7210 = vmax.f32 %v7146, %v7086
    %v7211 = vmax.f32 %v7147, %v7087
    %v7212 = vmax.f32 %v7148, %v7088
    %v7213 = vmax.f32 %v7149, %v7089
    %v7214 = vmax.f32 %v7150, %v7090
    %v7215 = vmax.f32 %v7151, %v7091
    %v7216 = vmax.f32 %v7152, %v7092
    %v7217 = vmax.f32 %v7153, %v7093
    %v7218 = vmax.f32 %v7154, %v7094
    %v7219 = vmax.f32 %v7155, %v7095
    %v7220 = vmax.f32 %v7156, %v7096
    %v7221 = vmax.f32 %v7157, %v7097
    %v7222 = vmax.f32 %v7158, %v7098
    %v7223 = vmax.f32 %v7159, %v7099
    %v7224 = vmax.f32 %v7160, %v7100
    %v7225 = vmax.f32 %v7161, %v7101
    %v7226 = vmax.f32 %v7162, %v7102
    %v7227 = vmax.f32 %v7163, %v7103
    %v7228 = vmax.f32 %v7164, %v7104
    %v7229 = vmax.f32 %v7165, %v7105
    %v7230 = vmax.f32 %v7166, %v7106
    %v7231 = vmax.f32 %v7167, %v7107
    %v7232 = vmax.f32 %v7168, %v7108
    %v7233 = vmax.f32 %v7169, %v7109
    %v7234 = vmax.f32 %v7170, %v7110
    %v7235 = vmax.f32 %v7171, %v7111
    %v7236 = vmax.f32 %v7172, %v7112
    %v7237 = vmax.f32 %v7173, 0.0
    %v7238 = vmax.f32 %v7174, 0.0
    %v7239 = vmax.f32 %v7175, 0.0
    %v7240 = vmax.f32 %v7176, 0.0
    %v7241 = vld [vmem:[%s4] sm:$0xff]
    %v7242 = vld [vmem:[%s4 + $0x8] sm:$0xff]
    %v7243 = vld [vmem:[%s4 + $0x10] sm:$0xff]
    %v7244 = vld [vmem:[%s4 + $0x18] sm:$0xff]
    %v7245 = vld [vmem:[%s4 + $0x20] sm:$0xff]
    %v7246 = vld [vmem:[%s4 + $0x28] sm:$0xff]
    %v7247 = vld [vmem:[%s4 + $0x30] sm:$0xff]
    %v7248 = vld [vmem:[%s4 + $0x38] sm:$0xff]
    %v7249 = vld [vmem:[%s4 + $0x40] sm:$0xff]
    %v7250 = vld [vmem:[%s4 + $0x48] sm:$0xff]
    %v7251 = vld [vmem:[%s4 + $0x50] sm:$0xff]
    %v7252 = vld [vmem:[%s4 + $0x58] sm:$0xff]
    %v7253 = vld [vmem:[%s4 + $0x60] sm:$0xff]
    %v7254 = vld [vmem:[%s4 + $0x68] sm:$0xff]
    %v7255 = vld [vmem:[%s4 + $0x70] sm:$0xff]
    %v7256 = vld [vmem:[%s4 + $0x78] sm:$0xff]
    %v7257 = vld [vmem:[%s4 + $0x80] sm:$0xff]
    %v7258 = vld [vmem:[%s4 + $0x88] sm:$0xff]
    %v7259 = vld [vmem:[%s4 + $0x90] sm:$0xff]
    %v7260 = vld [vmem:[%s4 + $0x98] sm:$0xff]
    %v7261 = vld [vmem:[%s4 + $0xa0] sm:$0xff]
    %v7262 = vld [vmem:[%s4 + $0xa8] sm:$0xff]
    %v7263 = vld [vmem:[%s4 + $0xb0] sm:$0xff]
    %v7264 = vld [vmem:[%s4 + $0xb8] sm:$0xff]
    %v7265 = vld [vmem:[%s4 + $0xc0] sm:$0xff]
    %v7266 = vld [vmem:[%s4 + $0xc8] sm:$0xff]
    %v7267 = vld [vmem:[%s4 + $0xd0] sm:$0xff]
    %v7268 = vld [vmem:[%s4 + $0xd8] sm:$0xff]
    %v7269 = vld [vmem:[%s4 + $0xe0] sm:$0xff]
    %v7270 = vld [vmem:[%s4 + $0xe8] sm:$0xff]
    %v7271 = vld [vmem:[%s4 + $0xf0] sm:$0xff]
    %v7272 = vld [vmem:[%s4 + $0xf8] sm:$0xff]
    %v7273 = vld [vmem:[%s4 + $0x100] sm:$0xff]
    %v7274 = vld [vmem:[%s4 + $0x108] sm:$0xff]
    %v7275 = vld [vmem:[%s4 + $0x110] sm:$0xff]
    %v7276 = vld [vmem:[%s4 + $0x118] sm:$0xff]
    %v7277 = vld [vmem:[%s4 + $0x120] sm:$0xff]
    %v7278 = vld [vmem:[%s4 + $0x128] sm:$0xff]
    %v7279 = vld [vmem:[%s4 + $0x130] sm:$0xff]
    %v7280 = vld [vmem:[%s4 + $0x138] sm:$0xff]
    %v7281 = vld [vmem:[%s4 + $0x140] sm:$0xff]
    %v7282 = vld [vmem:[%s4 + $0x148] sm:$0xff]
    %v7283 = vld [vmem:[%s4 + $0x150] sm:$0xff]
    %v7284 = vld [vmem:[%s4 + $0x158] sm:$0xff]
    %v7285 = vld [vmem:[%s4 + $0x160] sm:$0xff]
    %v7286 = vld [vmem:[%s4 + $0x168] sm:$0xff]
    %v7287 = vld [vmem:[%s4 + $0x170] sm:$0xff]
    %v7288 = vld [vmem:[%s4 + $0x178] sm:$0xff]
    %v7289 = vld [vmem:[%s4 + $0x180] sm:$0x3]
    %v7290 = vld [vmem:[%s4 + $0x188] sm:$0x3]
    %v7291 = vld [vmem:[%s4 + $0x190] sm:$0x3]
    %v7292 = vld [vmem:[%s4 + $0x198] sm:$0x3]
    %7293 = vmatpush.msra.mxu0 %v7192
    %7294 = vmatpush.msra.mxu0 %v7191
    %7295 = vmatpush.msra.mxu0 %v7190
    %7296 = vmatpush.msra.mxu0 %v7189
    %7297 = vmatpush.msra.mxu0 %v7188
    %7298 = vmatpush.msra.mxu0 %v7187
    %7299 = vmatpush.msra.mxu0 %v7186
    %7300 = vmatpush.msra.mxu0 %v7185
    %7301 = vmatpush.msra.mxu0 %v7184
    %7302 = vmatpush.msra.mxu0 %v7183
    %7303 = vmatpush.msra.mxu0 %v7182
    %7304 = vmatpush.msra.mxu0 %v7181
    %7305 = vmatpush.msra.mxu0 %v7180
    %7306 = vmatpush.msra.mxu0 %v7179
    %7307 = vmatpush.msra.mxu0 %v7178
    %7308 = vmatpush.msra.mxu0 %v7177
    %7309 = vmatmul.f32.gmra.mxu0 %v7241
    %v7310 = vpop.f32.mrf.mxu0
    %v7311 = vadd.f32 0.0, %v7310
    %7312 = vmatmul.f32.gmra.mxu0 %v7245
    %v7313 = vpop.f32.mrf.mxu0
    %v7314 = vadd.f32 0.0, %v7313
    %7315 = vmatmul.f32.gmra.mxu0 %v7249
    %v7316 = vpop.f32.mrf.mxu0
    %v7317 = vadd.f32 0.0, %v7316
    %7318 = vmatmul.f32.gmra.mxu0 %v7253
    %v7319 = vpop.f32.mrf.mxu0
    %v7320 = vadd.f32 0.0, %v7319
    %7321 = vmatmul.f32.gmra.mxu0 %v7257
    %v7322 = vpop.f32.mrf.mxu0
    %v7323 = vadd.f32 0.0, %v7322
    %7324 = vmatmul.f32.gmra.mxu0 %v7261
    %v7325 = vpop.f32.mrf.mxu0
    %v7326 = vadd.f32 0.0, %v7325
    %7327 = vmatmul.f32.gmra.mxu0 %v7265
    %v7328 = vpop.f32.mrf.mxu0
    %v7329 = vadd.f32 0.0, %v7328
    %7330 = vmatmul.f32.gmra.mxu0 %v7269
    %v7331 = vpop.f32.mrf.mxu0
    %v7332 = vadd.f32 0.0, %v7331
    %7333 = vmatmul.f32.gmra.mxu0 %v7273
    %v7334 = vpop.f32.mrf.mxu0
    %v7335 = vadd.f32 0.0, %v7334
    %7336 = vmatmul.f32.gmra.mxu0 %v7277
    %v7337 = vpop.f32.mrf.mxu0
    %v7338 = vadd.f32 0.0, %v7337
    %7339 = vmatmul.f32.gmra.mxu0 %v7281
    %v7340 = vpop.f32.mrf.mxu0
    %v7341 = vadd.f32 0.0, %v7340
    %7342 = vmatmul.f32.gmra.mxu0 %v7285
    %v7343 = vpop.f32.mrf.mxu0
    %v7344 = vadd.f32 0.0, %v7343
    %7345 = vmatmul.f32.gmra.mxu0 %v7289
    %v7346 = vpop.f32.mrf.mxu0
    %v7347 = vadd.f32 0.0, %v7346
    %7348 = vdwg.mxu0
    %7349 = vmatpush.msra.mxu0 %v7208
    %7350 = vmatpush.msra.mxu0 %v7207
    %7351 = vmatpush.msra.mxu0 %v7206
    %7352 = vmatpush.msra.mxu0 %v7205
    %7353 = vmatpush.msra.mxu0 %v7204
    %7354 = vmatpush.msra.mxu0 %v7203
    %7355 = vmatpush.msra.mxu0 %v7202
    %7356 = vmatpush.msra.mxu0 %v7201
    %7357 = vmatpush.msra.mxu0 %v7200
    %7358 = vmatpush.msra.mxu0 %v7199
    %7359 = vmatpush.msra.mxu0 %v7198
    %7360 = vmatpush.msra.mxu0 %v7197
    %7361 = vmatpush.msra.mxu0 %v7196
    %7362 = vmatpush.msra.mxu0 %v7195
    %7363 = vmatpush.msra.mxu0 %v7194
    %7364 = vmatpush.msra.mxu0 %v7193
    %7365 = vmatmul.f32.gmra.mxu0 %v7242
    %v7366 = vpop.f32.mrf.mxu0
    %v7367 = vadd.f32 %v7311, %v7366
    %7368 = vmatmul.f32.gmra.mxu0 %v7246
    %v7369 = vpop.f32.mrf.mxu0
    %v7370 = vadd.f32 %v7314, %v7369
    %7371 = vmatmul.f32.gmra.mxu0 %v7250
    %v7372 = vpop.f32.mrf.mxu0
    %v7373 = vadd.f32 %v7317, %v7372
    %7374 = vmatmul.f32.gmra.mxu0 %v7254
    %v7375 = vpop.f32.mrf.mxu0
    %v7376 = vadd.f32 %v7320, %v7375
    %7377 = vmatmul.f32.gmra.mxu0 %v7258
    %v7378 = vpop.f32.mrf.mxu0
    %v7379 = vadd.f32 %v7323, %v7378
    %7380 = vmatmul.f32.gmra.mxu0 %v7262
    %v7381 = vpop.f32.mrf.mxu0
    %v7382 = vadd.f32 %v7326, %v7381
    %7383 = vmatmul.f32.gmra.mxu0 %v7266
    %v7384 = vpop.f32.mrf.mxu0
    %v7385 = vadd.f32 %v7329, %v7384
    %7386 = vmatmul.f32.gmra.mxu0 %v7270
    %v7387 = vpop.f32.mrf.mxu0
    %v7388 = vadd.f32 %v7332, %v7387
    %7389 = vmatmul.f32.gmra.mxu0 %v7274
    %v7390 = vpop.f32.mrf.mxu0
    %v7391 = vadd.f32 %v7335, %v7390
    %7392 = vmatmul.f32.gmra.mxu0 %v7278
    %v7393 = vpop.f32.mrf.mxu0
    %v7394 = vadd.f32 %v7338, %v7393
    %7395 = vmatmul.f32.gmra.mxu0 %v7282
    %v7396 = vpop.f32.mrf.mxu0
    %v7397 = vadd.f32 %v7341, %v7396
    %7398 = vmatmul.f32.gmra.mxu0 %v7286
    %v7399 = vpop.f32.mrf.mxu0
    %v7400 = vadd.f32 %v7344, %v7399
    %7401 = vmatmul.f32.gmra.mxu0 %v7290
    %v7402 = vpop.f32.mrf.mxu0
    %v7403 = vadd.f32 %v7347, %v7402
    %7404 = vdwg.mxu0
    %7405 = vmatpush.msra.mxu0 %v7224
    %7406 = vmatpush.msra.mxu0 %v7223
    %7407 = vmatpush.msra.mxu0 %v7222
    %7408 = vmatpush.msra.mxu0 %v7221
    %7409 = vmatpush.msra.mxu0 %v7220
    %7410 = vmatpush.msra.mxu0 %v7219
    %7411 = vmatpush.msra.mxu0 %v7218
    %7412 = vmatpush.msra.mxu0 %v7217
    %7413 = vmatpush.msra.mxu0 %v7216
    %7414 = vmatpush.msra.mxu0 %v7215
    %7415 = vmatpush.msra.mxu0 %v7214
    %7416 = vmatpush.msra.mxu0 %v7213
    %7417 = vmatpush.msra.mxu0 %v7212
    %7418 = vmatpush.msra.mxu0 %v7211
    %7419 = vmatpush.msra.mxu0 %v7210
    %7420 = vmatpush.msra.mxu0 %v7209
    %7421 = vmatmul.f32.gmra.mxu0 %v7243
    %v7422 = vpop.f32.mrf.mxu0
    %v7423 = vadd.f32 %v7367, %v7422
    %7424 = vmatmul.f32.gmra.mxu0 %v7247
    %v7425 = vpop.f32.mrf.mxu0
    %v7426 = vadd.f32 %v7370, %v7425
    %7427 = vmatmul.f32.gmra.mxu0 %v7251
    %v7428 = vpop.f32.mrf.mxu0
    %v7429 = vadd.f32 %v7373, %v7428
    %7430 = vmatmul.f32.gmra.mxu0 %v7255
    %v7431 = vpop.f32.mrf.mxu0
    %v7432 = vadd.f32 %v7376, %v7431
    %7433 = vmatmul.f32.gmra.mxu0 %v7259
    %v7434 = vpop.f32.mrf.mxu0
    %v7435 = vadd.f32 %v7379, %v7434
    %7436 = vmatmul.f32.gmra.mxu0 %v7263
    %v7437 = vpop.f32.mrf.mxu0
    %v7438 = vadd.f32 %v7382, %v7437
    %7439 = vmatmul.f32.gmra.mxu0 %v7267
    %v7440 = vpop.f32.mrf.mxu0
    %v7441 = vadd.f32 %v7385, %v7440
    %7442 = vmatmul.f32.gmra.mxu0 %v7271
    %v7443 = vpop.f32.mrf.mxu0
    %v7444 = vadd.f32 %v7388, %v7443
    %7445 = vmatmul.f32.gmra.mxu0 %v7275
    %v7446 = vpop.f32.mrf.mxu0
    %v7447 = vadd.f32 %v7391, %v7446
    %7448 = vmatmul.f32.gmra.mxu0 %v7279
    %v7449 = vpop.f32.mrf.mxu0
    %v7450 = vadd.f32 %v7394, %v7449
    %7451 = vmatmul.f32.gmra.mxu0 %v7283
    %v7452 = vpop.f32.mrf.mxu0
    %v7453 = vadd.f32 %v7397, %v7452
    %7454 = vmatmul.f32.gmra.mxu0 %v7287
    %v7455 = vpop.f32.mrf.mxu0
    %v7456 = vadd.f32 %v7400, %v7455
    %7457 = vmatmul.f32.gmra.mxu0 %v7291
    %v7458 = vpop.f32.mrf.mxu0
    %v7459 = vadd.f32 %v7403, %v7458
    %7460 = vdwg.mxu0
    %7461 = vmatpush.msra.mxu0 %v7240
    %7462 = vmatpush.msra.mxu0 %v7239
    %7463 = vmatpush.msra.mxu0 %v7238
    %7464 = vmatpush.msra.mxu0 %v7237
    %7465 = vmatpush.msra.mxu0 %v7236
    %7466 = vmatpush.msra.mxu0 %v7235
    %7467 = vmatpush.msra.mxu0 %v7234
    %7468 = vmatpush.msra.mxu0 %v7233
    %7469 = vmatpush.msra.mxu0 %v7232
    %7470 = vmatpush.msra.mxu0 %v7231
    %7471 = vmatpush.msra.mxu0 %v7230
    %7472 = vmatpush.msra.mxu0 %v7229
    %7473 = vmatpush.msra.mxu0 %v7228
    %7474 = vmatpush.msra.mxu0 %v7227
    %7475 = vmatpush.msra.mxu0 %v7226
    %7476 = vmatpush.msra.mxu0 %v7225
    %7477 = vmatmul.f32.gmra.mxu0 %v7244
    %v7478 = vpop.f32.mrf.mxu0
    %v7479 = vadd.f32 %v7423, %v7478
    %7480 = vmatmul.f32.gmra.mxu0 %v7248
    %v7481 = vpop.f32.mrf.mxu0
    %v7482 = vadd.f32 %v7426, %v7481
    %7483 = vmatmul.f32.gmra.mxu0 %v7252
    %v7484 = vpop.f32.mrf.mxu0
    %v7485 = vadd.f32 %v7429, %v7484
    %7486 = vmatmul.f32.gmra.mxu0 %v7256
    %v7487 = vpop.f32.mrf.mxu0
    %v7488 = vadd.f32 %v7432, %v7487
    %7489 = vmatmul.f32.gmra.mxu0 %v7260
    %v7490 = vpop.f32.mrf.mxu0
    %v7491 = vadd.f32 %v7435, %v7490
    %7492 = vmatmul.f32.gmra.mxu0 %v7264
    %v7493 = vpop.f32.mrf.mxu0
    %v7494 = vadd.f32 %v7438, %v7493
    %7495 = vmatmul.f32.gmra.mxu0 %v7268
    %v7496 = vpop.f32.mrf.mxu0
    %v7497 = vadd.f32 %v7441, %v7496
    %7498 = vmatmul.f32.gmra.mxu0 %v7272
    %v7499 = vpop.f32.mrf.mxu0
    %v7500 = vadd.f32 %v7444, %v7499
    %7501 = vmatmul.f32.gmra.mxu0 %v7276
    %v7502 = vpop.f32.mrf.mxu0
    %v7503 = vadd.f32 %v7447, %v7502
    %7504 = vmatmul.f32.gmra.mxu0 %v7280
    %v7505 = vpop.f32.mrf.mxu0
    %v7506 = vadd.f32 %v7450, %v7505
    %7507 = vmatmul.f32.gmra.mxu0 %v7284
    %v7508 = vpop.f32.mrf.mxu0
    %v7509 = vadd.f32 %v7453, %v7508
    %7510 = vmatmul.f32.gmra.mxu0 %v7288
    %v7511 = vpop.f32.mrf.mxu0
    %v7512 = vadd.f32 %v7456, %v7511
    %7513 = vmatmul.f32.gmra.mxu0 %v7292
    %v7514 = vpop.f32.mrf.mxu0
    %v7515 = vadd.f32 %v7459, %v7514
    %7516 = vdwg.mxu0
    %v7517 = vld [vmem:[%s7] sm:$0xff]
    %v7518 = vld [vmem:[%s7 + $0x8] sm:$0xff]
    %v7519 = vld [vmem:[%s7 + $0x10] sm:$0xff]
    %v7520 = vld [vmem:[%s7 + $0x18] sm:$0xff]
    %v7521 = vld [vmem:[%s7 + $0x20] sm:$0xff]
    %v7522 = vld [vmem:[%s7 + $0x28] sm:$0xff]
    %v7523 = vld [vmem:[%s7 + $0x30] sm:$0xff]
    %v7524 = vld [vmem:[%s7 + $0x38] sm:$0xff]
    %v7525 = vld [vmem:[%s7 + $0x40] sm:$0xff]
    %v7526 = vld [vmem:[%s7 + $0x48] sm:$0xff]
    %v7527 = vld [vmem:[%s7 + $0x50] sm:$0xff]
    %v7528 = vld [vmem:[%s7 + $0x58] sm:$0xff]
    %v7529 = vld [vmem:[%s7 + $0x60] sm:$0x3]
    %7531 = vset.pattern.permute.xlu0 0
    %7532 = vperm.xlu0 %7531, %v7517
    %v7533 = vpop.permute.xlu0 %7532
    %7536 = vset.pattern.permute.xlu0 0
    %7537 = vperm.xlu0 %7536, %v7518
    %v7538 = vpop.permute.xlu0 %7537
    %7541 = vset.pattern.permute.xlu0 0
    %7542 = vperm.xlu0 %7541, %v7519
    %v7543 = vpop.permute.xlu0 %7542
    %7546 = vset.pattern.permute.xlu0 0
    %7547 = vperm.xlu0 %7546, %v7520
    %v7548 = vpop.permute.xlu0 %7547
    %7551 = vset.pattern.permute.xlu0 0
    %7552 = vperm.xlu0 %7551, %v7521
    %v7553 = vpop.permute.xlu0 %7552
    %7556 = vset.pattern.permute.xlu0 0
    %7557 = vperm.xlu0 %7556, %v7522
    %v7558 = vpop.permute.xlu0 %7557
    %7561 = vset.pattern.permute.xlu0 0
    %7562 = vperm.xlu0 %7561, %v7523
    %v7563 = vpop.permute.xlu0 %7562
    %7566 = vset.pattern.permute.xlu0 0
    %7567 = vperm.xlu0 %7566, %v7524
    %v7568 = vpop.permute.xlu0 %7567
    %7571 = vset.pattern.permute.xlu0 0
    %7572 = vperm.xlu0 %7571, %v7525
    %v7573 = vpop.permute.xlu0 %7572
    %7576 = vset.pattern.permute.xlu0 0
    %7577 = vperm.xlu0 %7576, %v7526
    %v7578 = vpop.permute.xlu0 %7577
    %7581 = vset.pattern.permute.xlu0 0
    %7582 = vperm.xlu0 %7581, %v7527
    %v7583 = vpop.permute.xlu0 %7582
    %7586 = vset.pattern.permute.xlu0 0
    %7587 = vperm.xlu0 %7586, %v7528
    %v7588 = vpop.permute.xlu0 %7587
    %7591 = vset.pattern.permute.xlu0 0
    %7592 = vperm.xlu0 %7591, %v7529
    %v7593 = vpop.permute.xlu0 %7592
    %v7595 = vmul.f32 %v7533, 0.0
    %v7596 = vmul.f32 %v7479, %v7538
    %v7597 = vmul.f32 %v7482, %v7543
    %v7598 = vmul.f32 %v7485, %v7548
    %v7599 = vmul.f32 %v7488, %v7553
    %v7600 = vmul.f32 %v7491, %v7558
    %v7601 = vmul.f32 %v7494, %v7563
    %v7602 = vmul.f32 %v7497, %v7568
    %v7603 = vmul.f32 %v7500, %v7573
    %v7604 = vmul.f32 %v7503, %v7578
    %v7605 = vmul.f32 %v7506, %v7583
    %v7606 = vmul.f32 %v7509, %v7588
    %v7607 = vmul.f32 %v7512, %v7593
    %v7620 = vrot.slane %v7479, 1
    %v7621 = vrot.slane %v7482, 1
    %v7622 = vsel %vm1134, %v7620, %v7621
    %v7623 = vrot.slane %v7485, 1
    %v7624 = vsel %vm1134, %v7621, %v7623
    %v7625 = vrot.slane %v7488, 1
    %v7626 = vsel %vm1134, %v7623, %v7625
    %v7627 = vrot.slane %v7491, 1
    %v7628 = vsel %vm1134, %v7625, %v7627
    %v7629 = vrot.slane %v7494, 1
    %v7630 = vsel %vm1134, %v7627, %v7629
    %v7631 = vrot.slane %v7497, 1
    %v7632 = vsel %vm1134, %v7629, %v7631
    %v7633 = vrot.slane %v7500, 1
    %v7634 = vsel %vm1134, %v7631, %v7633
    %v7635 = vrot.slane %v7503, 1
    %v7636 = vsel %vm1134, %v7633, %v7635
    %v7637 = vrot.slane %v7506, 1
    %v7638 = vsel %vm1134, %v7635, %v7637
    %v7639 = vrot.slane %v7509, 1
    %v7640 = vsel %vm1134, %v7637, %v7639
    %v7641 = vrot.slane %v7512, 1
    %v7642 = vsel %vm1134, %v7639, %v7641
    %v7656 = vsel %vm1134, 0.0, %v7620
    %7657 = vset.pattern.permute.xlu0 1
    %7658 = vperm.xlu0 %7657, %v7517
    %v7659 = vpop.permute.xlu0 %7658
    %7661 = vset.pattern.permute.xlu0 1
    %7662 = vperm.xlu0 %7661, %v7518
    %v7663 = vpop.permute.xlu0 %7662
    %7665 = vset.pattern.permute.xlu0 1
    %7666 = vperm.xlu0 %7665, %v7519
    %v7667 = vpop.permute.xlu0 %7666
    %7669 = vset.pattern.permute.xlu0 1
    %7670 = vperm.xlu0 %7669, %v7520
    %v7671 = vpop.permute.xlu0 %7670
    %7673 = vset.pattern.permute.xlu0 1
    %7674 = vperm.xlu0 %7673, %v7521
    %v7675 = vpop.permute.xlu0 %7674
    %7677 = vset.pattern.permute.xlu0 1
    %7678 = vperm.xlu0 %7677, %v7522
    %v7679 = vpop.permute.xlu0 %7678
    %7681 = vset.pattern.permute.xlu0 1
    %7682 = vperm.xlu0 %7681, %v7523
    %v7683 = vpop.permute.xlu0 %7682
    %7685 = vset.pattern.permute.xlu0 1
    %7686 = vperm.xlu0 %7685, %v7524
    %v7687 = vpop.permute.xlu0 %7686
    %7689 = vset.pattern.permute.xlu0 1
    %7690 = vperm.xlu0 %7689, %v7525
    %v7691 = vpop.permute.xlu0 %7690
    %7693 = vset.pattern.permute.xlu0 1
    %7694 = vperm.xlu0 %7693, %v7526
    %v7695 = vpop.permute.xlu0 %7694
    %7697 = vset.pattern.permute.xlu0 1
    %7698 = vperm.xlu0 %7697, %v7527
    %v7699 = vpop.permute.xlu0 %7698
    %7701 = vset.pattern.permute.xlu0 1
    %7702 = vperm.xlu0 %7701, %v7528
    %v7703 = vpop.permute.xlu0 %7702
    %7705 = vset.pattern.permute.xlu0 1
    %7706 = vperm.xlu0 %7705, %v7529
    %v7707 = vpop.permute.xlu0 %7706
    %v7709 = vmul.f32 %v7656, %v7659
    %v7710 = vmul.f32 %v7622, %v7663
    %v7711 = vmul.f32 %v7624, %v7667
    %v7712 = vmul.f32 %v7626, %v7671
    %v7713 = vmul.f32 %v7628, %v7675
    %v7714 = vmul.f32 %v7630, %v7679
    %v7715 = vmul.f32 %v7632, %v7683
    %v7716 = vmul.f32 %v7634, %v7687
    %v7717 = vmul.f32 %v7636, %v7691
    %v7718 = vmul.f32 %v7638, %v7695
    %v7719 = vmul.f32 %v7640, %v7699
    %v7720 = vmul.f32 %v7642, %v7703
    %v7721 = vmul.f32 %v7641, %v7707
    %v7722 = vrot.slane %v7479, 2
    %v7723 = vrot.slane %v7482, 2
    %v7724 = vsel %vm6856, %v7722, %v7723
    %v7725 = vrot.slane %v7485, 2
    %v7726 = vsel %vm6856, %v7723, %v7725
    %v7727 = vrot.slane %v7488, 2
    %v7728 = vsel %vm6856, %v7725, %v7727
    %v7729 = vrot.slane %v7491, 2
    %v7730 = vsel %vm6856, %v7727, %v7729
    %v7731 = vrot.slane %v7494, 2
    %v7732 = vsel %vm6856, %v7729, %v7731
    %v7733 = vrot.slane %v7497, 2
    %v7734 = vsel %vm6856, %v7731, %v7733
    %v7735 = vrot.slane %v7500, 2
    %v7736 = vsel %vm6856, %v7733, %v7735
    %v7737 = vrot.slane %v7503, 2
    %v7738 = vsel %vm6856, %v7735, %v7737
    %v7739 = vrot.slane %v7506, 2
    %v7740 = vsel %vm6856, %v7737, %v7739
    %v7741 = vrot.slane %v7509, 2
    %v7742 = vsel %vm6856, %v7739, %v7741
    %v7743 = vrot.slane %v7512, 2
    %v7744 = vsel %vm6856, %v7741, %v7743
    %v7758 = vsel %vm6856, 0.0, %v7722
    %7759 = vset.pattern.permute.xlu0 2
    %7760 = vperm.xlu0 %7759, %v7517
    %v7761 = vpop.permute.xlu0 %7760
    %7763 = vset.pattern.permute.xlu0 2
    %7764 = vperm.xlu0 %7763, %v7518
    %v7765 = vpop.permute.xlu0 %7764
    %7767 = vset.pattern.permute.xlu0 2
    %7768 = vperm.xlu0 %7767, %v7519
    %v7769 = vpop.permute.xlu0 %7768
    %7771 = vset.pattern.permute.xlu0 2
    %7772 = vperm.xlu0 %7771, %v7520
    %v7773 = vpop.permute.xlu0 %7772
    %7775 = vset.pattern.permute.xlu0 2
    %7776 = vperm.xlu0 %7775, %v7521
    %v7777 = vpop.permute.xlu0 %7776
    %7779 = vset.pattern.permute.xlu0 2
    %7780 = vperm.xlu0 %7779, %v7522
    %v7781 = vpop.permute.xlu0 %7780
    %7783 = vset.pattern.permute.xlu0 2
    %7784 = vperm.xlu0 %7783, %v7523
    %v7785 = vpop.permute.xlu0 %7784
    %7787 = vset.pattern.permute.xlu0 2
    %7788 = vperm.xlu0 %7787, %v7524
    %v7789 = vpop.permute.xlu0 %7788
    %7791 = vset.pattern.permute.xlu0 2
    %7792 = vperm.xlu0 %7791, %v7525
    %v7793 = vpop.permute.xlu0 %7792
    %7795 = vset.pattern.permute.xlu0 2
    %7796 = vperm.xlu0 %7795, %v7526
    %v7797 = vpop.permute.xlu0 %7796
    %7799 = vset.pattern.permute.xlu0 2
    %7800 = vperm.xlu0 %7799, %v7527
    %v7801 = vpop.permute.xlu0 %7800
    %7803 = vset.pattern.permute.xlu0 2
    %7804 = vperm.xlu0 %7803, %v7528
    %v7805 = vpop.permute.xlu0 %7804
    %7807 = vset.pattern.permute.xlu0 2
    %7808 = vperm.xlu0 %7807, %v7529
    %v7809 = vpop.permute.xlu0 %7808
    %v7811 = vmul.f32 %v7758, %v7761
    %v7812 = vmul.f32 %v7724, %v7765
    %v7813 = vmul.f32 %v7726, %v7769
    %v7814 = vmul.f32 %v7728, %v7773
    %v7815 = vmul.f32 %v7730, %v7777
    %v7816 = vmul.f32 %v7732, %v7781
    %v7817 = vmul.f32 %v7734, %v7785
    %v7818 = vmul.f32 %v7736, %v7789
    %v7819 = vmul.f32 %v7738, %v7793
    %v7820 = vmul.f32 %v7740, %v7797
    %v7821 = vmul.f32 %v7742, %v7801
    %v7822 = vmul.f32 %v7744, %v7805
    %v7823 = vmul.f32 %v7743, %v7809
    %v7825 = vrot.slane %v7479, 7
    %v7826 = vrot.slane %v7482, 7
    %v7827 = vsel %vm178, %v7825, %v7826
    %v7828 = vrot.slane %v7485, 7
    %v7829 = vsel %vm178, %v7826, %v7828
    %v7830 = vrot.slane %v7488, 7
    %v7831 = vsel %vm178, %v7828, %v7830
    %v7832 = vrot.slane %v7491, 7
    %v7833 = vsel %vm178, %v7830, %v7832
    %v7834 = vrot.slane %v7494, 7
    %v7835 = vsel %vm178, %v7832, %v7834
    %v7836 = vrot.slane %v7497, 7
    %v7837 = vsel %vm178, %v7834, %v7836
    %v7838 = vrot.slane %v7500, 7
    %v7839 = vsel %vm178, %v7836, %v7838
    %v7840 = vrot.slane %v7503, 7
    %v7841 = vsel %vm178, %v7838, %v7840
    %v7842 = vrot.slane %v7506, 7
    %v7843 = vsel %vm178, %v7840, %v7842
    %v7844 = vrot.slane %v7509, 7
    %v7845 = vsel %vm178, %v7842, %v7844
    %v7846 = vrot.slane %v7512, 7
    %v7847 = vsel %vm178, %v7844, %v7846
    %v7848 = vrot.slane %v7515, 7
    %v7849 = vsel %vm178, %v7846, %v7848
    %v7863 = vsel %vm178, 0.0, %v7825
    %7864 = vset.pattern.permute.xlu0 3
    %7865 = vperm.xlu0 %7864, %v7517
    %v7866 = vpop.permute.xlu0 %7865
    %7868 = vset.pattern.permute.xlu0 3
    %7869 = vperm.xlu0 %7868, %v7518
    %v7870 = vpop.permute.xlu0 %7869
    %7872 = vset.pattern.permute.xlu0 3
    %7873 = vperm.xlu0 %7872, %v7519
    %v7874 = vpop.permute.xlu0 %7873
    %7876 = vset.pattern.permute.xlu0 3
    %7877 = vperm.xlu0 %7876, %v7520
    %v7878 = vpop.permute.xlu0 %7877
    %7880 = vset.pattern.permute.xlu0 3
    %7881 = vperm.xlu0 %7880, %v7521
    %v7882 = vpop.permute.xlu0 %7881
    %7884 = vset.pattern.permute.xlu0 3
    %7885 = vperm.xlu0 %7884, %v7522
    %v7886 = vpop.permute.xlu0 %7885
    %7888 = vset.pattern.permute.xlu0 3
    %7889 = vperm.xlu0 %7888, %v7523
    %v7890 = vpop.permute.xlu0 %7889
    %7892 = vset.pattern.permute.xlu0 3
    %7893 = vperm.xlu0 %7892, %v7524
    %v7894 = vpop.permute.xlu0 %7893
    %7896 = vset.pattern.permute.xlu0 3
    %7897 = vperm.xlu0 %7896, %v7525
    %v7898 = vpop.permute.xlu0 %7897
    %7900 = vset.pattern.permute.xlu0 3
    %7901 = vperm.xlu0 %7900, %v7526
    %v7902 = vpop.permute.xlu0 %7901
    %7904 = vset.pattern.permute.xlu0 3
    %7905 = vperm.xlu0 %7904, %v7527
    %v7906 = vpop.permute.xlu0 %7905
    %7908 = vset.pattern.permute.xlu0 3
    %7909 = vperm.xlu0 %7908, %v7528
    %v7910 = vpop.permute.xlu0 %7909
    %7912 = vset.pattern.permute.xlu0 3
    %7913 = vperm.xlu0 %7912, %v7529
    %v7914 = vpop.permute.xlu0 %7913
    %v7916 = vmul.f32 %v7863, %v7866
    %v7917 = vmul.f32 %v7827, %v7870
    %v7918 = vmul.f32 %v7829, %v7874
    %v7919 = vmul.f32 %v7831, %v7878
    %v7920 = vmul.f32 %v7833, %v7882
    %v7921 = vmul.f32 %v7835, %v7886
    %v7922 = vmul.f32 %v7837, %v7890
    %v7923 = vmul.f32 %v7839, %v7894
    %v7924 = vmul.f32 %v7841, %v7898
    %v7925 = vmul.f32 %v7843, %v7902
    %v7926 = vmul.f32 %v7845, %v7906
    %v7927 = vmul.f32 %v7847, %v7910
    %v7928 = vmul.f32 %v7849, %v7914
    %7929 = vset.pattern.permute.xlu0 4
    %7930 = vperm.xlu0 %7929, %v7517
    %v7931 = vpop.permute.xlu0 %7930
    %7933 = vset.pattern.permute.xlu0 4
    %7934 = vperm.xlu0 %7933, %v7518
    %v7935 = vpop.permute.xlu0 %7934
    %7937 = vset.pattern.permute.xlu0 4
    %7938 = vperm.xlu0 %7937, %v7519
    %v7939 = vpop.permute.xlu0 %7938
    %7941 = vset.pattern.permute.xlu0 4
    %7942 = vperm.xlu0 %7941, %v7520
    %v7943 = vpop.permute.xlu0 %7942
    %7945 = vset.pattern.permute.xlu0 4
    %7946 = vperm.xlu0 %7945, %v7521
    %v7947 = vpop.permute.xlu0 %7946
    %7949 = vset.pattern.permute.xlu0 4
    %7950 = vperm.xlu0 %7949, %v7522
    %v7951 = vpop.permute.xlu0 %7950
    %7953 = vset.pattern.permute.xlu0 4
    %7954 = vperm.xlu0 %7953, %v7523
    %v7955 = vpop.permute.xlu0 %7954
    %7957 = vset.pattern.permute.xlu0 4
    %7958 = vperm.xlu0 %7957, %v7524
    %v7959 = vpop.permute.xlu0 %7958
    %7961 = vset.pattern.permute.xlu0 4
    %7962 = vperm.xlu0 %7961, %v7525
    %v7963 = vpop.permute.xlu0 %7962
    %7965 = vset.pattern.permute.xlu0 4
    %7966 = vperm.xlu0 %7965, %v7526
    %v7967 = vpop.permute.xlu0 %7966
    %7969 = vset.pattern.permute.xlu0 4
    %7970 = vperm.xlu0 %7969, %v7527
    %v7971 = vpop.permute.xlu0 %7970
    %7973 = vset.pattern.permute.xlu0 4
    %7974 = vperm.xlu0 %7973, %v7528
    %v7975 = vpop.permute.xlu0 %7974
    %7977 = vset.pattern.permute.xlu0 4
    %7978 = vperm.xlu0 %7977, %v7529
    %v7979 = vpop.permute.xlu0 %7978
    %v7981 = vmul.f32 %v7479, %v7931
    %v7982 = vmul.f32 %v7482, %v7935
    %v7983 = vmul.f32 %v7485, %v7939
    %v7984 = vmul.f32 %v7488, %v7943
    %v7985 = vmul.f32 %v7491, %v7947
    %v7986 = vmul.f32 %v7494, %v7951
    %v7987 = vmul.f32 %v7497, %v7955
    %v7988 = vmul.f32 %v7500, %v7959
    %v7989 = vmul.f32 %v7503, %v7963
    %v7990 = vmul.f32 %v7506, %v7967
    %v7991 = vmul.f32 %v7509, %v7971
    %v7992 = vmul.f32 %v7512, %v7975
    %v7993 = vmul.f32 %v7515, %v7979
    %v7994 = vrot.slane %v7515, 1
    %v7995 = vsel %vm1134, %v7641, %v7994
    %v7998 = vsel %vm178, %v7994, 0.0
    %7999 = vset.pattern.permute.xlu0 5
    %8000 = vperm.xlu0 %7999, %v7517
    %v8001 = vpop.permute.xlu0 %8000
    %8003 = vset.pattern.permute.xlu0 5
    %8004 = vperm.xlu0 %8003, %v7518
    %v8005 = vpop.permute.xlu0 %8004
    %8007 = vset.pattern.permute.xlu0 5
    %8008 = vperm.xlu0 %8007, %v7519
    %v8009 = vpop.permute.xlu0 %8008
    %8011 = vset.pattern.permute.xlu0 5
    %8012 = vperm.xlu0 %8011, %v7520
    %v8013 = vpop.permute.xlu0 %8012
    %8015 = vset.pattern.permute.xlu0 5
    %8016 = vperm.xlu0 %8015, %v7521
    %v8017 = vpop.permute.xlu0 %8016
    %8019 = vset.pattern.permute.xlu0 5
    %8020 = vperm.xlu0 %8019, %v7522
    %v8021 = vpop.permute.xlu0 %8020
    %8023 = vset.pattern.permute.xlu0 5
    %8024 = vperm.xlu0 %8023, %v7523
    %v8025 = vpop.permute.xlu0 %8024
    %8027 = vset.pattern.permute.xlu0 5
    %8028 = vperm.xlu0 %8027, %v7524
    %v8029 = vpop.permute.xlu0 %8028
    %8031 = vset.pattern.permute.xlu0 5
    %8032 = vperm.xlu0 %8031, %v7525
    %v8033 = vpop.permute.xlu0 %8032
    %8035 = vset.pattern.permute.xlu0 5
    %8036 = vperm.xlu0 %8035, %v7526
    %v8037 = vpop.permute.xlu0 %8036
    %8039 = vset.pattern.permute.xlu0 5
    %8040 = vperm.xlu0 %8039, %v7527
    %v8041 = vpop.permute.xlu0 %8040
    %8043 = vset.pattern.permute.xlu0 5
    %8044 = vperm.xlu0 %8043, %v7528
    %v8045 = vpop.permute.xlu0 %8044
    %8047 = vset.pattern.permute.xlu0 5
    %8048 = vperm.xlu0 %8047, %v7529
    %v8049 = vpop.permute.xlu0 %8048
    %v8051 = vmul.f32 %v7622, %v8001
    %v8052 = vmul.f32 %v7624, %v8005
    %v8053 = vmul.f32 %v7626, %v8009
    %v8054 = vmul.f32 %v7628, %v8013
    %v8055 = vmul.f32 %v7630, %v8017
    %v8056 = vmul.f32 %v7632, %v8021
    %v8057 = vmul.f32 %v7634, %v8025
    %v8058 = vmul.f32 %v7636, %v8029
    %v8059 = vmul.f32 %v7638, %v8033
    %v8060 = vmul.f32 %v7640, %v8037
    %v8061 = vmul.f32 %v7642, %v8041
    %v8062 = vmul.f32 %v7995, %v8045
    %v8063 = vmul.f32 %v7998, %v8049
    %v8064 = vrot.slane %v7479, 6
    %v8065 = vrot.slane %v7482, 6
    %v8066 = vsel %vm6299, %v8064, %v8065
    %v8067 = vrot.slane %v7485, 6
    %v8068 = vsel %vm6299, %v8065, %v8067
    %v8069 = vrot.slane %v7488, 6
    %v8070 = vsel %vm6299, %v8067, %v8069
    %v8071 = vrot.slane %v7491, 6
    %v8072 = vsel %vm6299, %v8069, %v8071
    %v8073 = vrot.slane %v7494, 6
    %v8074 = vsel %vm6299, %v8071, %v8073
    %v8075 = vrot.slane %v7497, 6
    %v8076 = vsel %vm6299, %v8073, %v8075
    %v8077 = vrot.slane %v7500, 6
    %v8078 = vsel %vm6299, %v8075, %v8077
    %v8079 = vrot.slane %v7503, 6
    %v8080 = vsel %vm6299, %v8077, %v8079
    %v8081 = vrot.slane %v7506, 6
    %v8082 = vsel %vm6299, %v8079, %v8081
    %v8083 = vrot.slane %v7509, 6
    %v8084 = vsel %vm6299, %v8081, %v8083
    %v8085 = vrot.slane %v7512, 6
    %v8086 = vsel %vm6299, %v8083, %v8085
    %v8087 = vrot.slane %v7515, 6
    %v8088 = vsel %vm6299, %v8085, %v8087
    %vm8101 = vcmask 1043456
    %v8102 = vsel %vm8101, %v8088, 0.0
    %8103 = vset.pattern.permute.xlu0 6
    %8104 = vperm.xlu0 %8103, %v7517
    %v8105 = vpop.permute.xlu0 %8104
    %8107 = vset.pattern.permute.xlu0 6
    %8108 = vperm.xlu0 %8107, %v7518
    %v8109 = vpop.permute.xlu0 %8108
    %8111 = vset.pattern.permute.xlu0 6
    %8112 = vperm.xlu0 %8111, %v7519
    %v8113 = vpop.permute.xlu0 %8112
    %8115 = vset.pattern.permute.xlu0 6
    %8116 = vperm.xlu0 %8115, %v7520
    %v8117 = vpop.permute.xlu0 %8116
    %8119 = vset.pattern.permute.xlu0 6
    %8120 = vperm.xlu0 %8119, %v7521
    %v8121 = vpop.permute.xlu0 %8120
    %8123 = vset.pattern.permute.xlu0 6
    %8124 = vperm.xlu0 %8123, %v7522
    %v8125 = vpop.permute.xlu0 %8124
    %8127 = vset.pattern.permute.xlu0 6
    %8128 = vperm.xlu0 %8127, %v7523
    %v8129 = vpop.permute.xlu0 %8128
    %8131 = vset.pattern.permute.xlu0 6
    %8132 = vperm.xlu0 %8131, %v7524
    %v8133 = vpop.permute.xlu0 %8132
    %8135 = vset.pattern.permute.xlu0 6
    %8136 = vperm.xlu0 %8135, %v7525
    %v8137 = vpop.permute.xlu0 %8136
    %8139 = vset.pattern.permute.xlu0 6
    %8140 = vperm.xlu0 %8139, %v7526
    %v8141 = vpop.permute.xlu0 %8140
    %8143 = vset.pattern.permute.xlu0 6
    %8144 = vperm.xlu0 %8143, %v7527
    %v8145 = vpop.permute.xlu0 %8144
    %8147 = vset.pattern.permute.xlu0 6
    %8148 = vperm.xlu0 %8147, %v7528
    %v8149 = vpop.permute.xlu0 %8148
    %8151 = vset.pattern.permute.xlu0 6
    %8152 = vperm.xlu0 %8151, %v7529
    %v8153 = vpop.permute.xlu0 %8152
    %v8155 = vmul.f32 %v8066, %v8105
    %v8156 = vmul.f32 %v8068, %v8109
    %v8157 = vmul.f32 %v8070, %v8113
    %v8158 = vmul.f32 %v8072, %v8117
    %v8159 = vmul.f32 %v8074, %v8121
    %v8160 = vmul.f32 %v8076, %v8125
    %v8161 = vmul.f32 %v8078, %v8129
    %v8162 = vmul.f32 %v8080, %v8133
    %v8163 = vmul.f32 %v8082, %v8137
    %v8164 = vmul.f32 %v8084, %v8141
    %v8165 = vmul.f32 %v8086, %v8145
    %v8166 = vmul.f32 %v8102, %v8149
    %v8167 = vmul.f32 %v8153, 0.0
    %vm8168 = vcmask 1042432
    %v8169 = vsel %vm8168, %v7849, 0.0
    %8170 = vset.pattern.permute.xlu0 7
    %8171 = vperm.xlu0 %8170, %v7517
    %v8172 = vpop.permute.xlu0 %8171
    %8174 = vset.pattern.permute.xlu0 7
    %8175 = vperm.xlu0 %8174, %v7518
    %v8176 = vpop.permute.xlu0 %8175
    %8178 = vset.pattern.permute.xlu0 7
    %8179 = vperm.xlu0 %8178, %v7519
    %v8180 = vpop.permute.xlu0 %8179
    %8182 = vset.pattern.permute.xlu0 7
    %8183 = vperm.xlu0 %8182, %v7520
    %v8184 = vpop.permute.xlu0 %8183
    %8186 = vset.pattern.permute.xlu0 7
    %8187 = vperm.xlu0 %8186, %v7521
    %v8188 = vpop.permute.xlu0 %8187
    %8190 = vset.pattern.permute.xlu0 7
    %8191 = vperm.xlu0 %8190, %v7522
    %v8192 = vpop.permute.xlu0 %8191
    %8194 = vset.pattern.permute.xlu0 7
    %8195 = vperm.xlu0 %8194, %v7523
    %v8196 = vpop.permute.xlu0 %8195
    %8198 = vset.pattern.permute.xlu0 7
    %8199 = vperm.xlu0 %8198, %v7524
    %v8200 = vpop.permute.xlu0 %8199
    %8202 = vset.pattern.permute.xlu0 7
    %8203 = vperm.xlu0 %8202, %v7525
    %v8204 = vpop.permute.xlu0 %8203
    %8206 = vset.pattern.permute.xlu0 7
    %8207 = vperm.xlu0 %8206, %v7526
    %v8208 = vpop.permute.xlu0 %8207
    %8210 = vset.pattern.permute.xlu0 7
    %8211 = vperm.xlu0 %8210, %v7527
    %v8212 = vpop.permute.xlu0 %8211
    %8214 = vset.pattern.permute.xlu0 7
    %8215 = vperm.xlu0 %8214, %v7528
    %v8216 = vpop.permute.xlu0 %8215
    %8218 = vset.pattern.permute.xlu0 7
    %8219 = vperm.xlu0 %8218, %v7529
    %v8220 = vpop.permute.xlu0 %8219
    %v8222 = vmul.f32 %v7827, %v8172
    %v8223 = vmul.f32 %v7829, %v8176
    %v8224 = vmul.f32 %v7831, %v8180
    %v8225 = vmul.f32 %v7833, %v8184
    %v8226 = vmul.f32 %v7835, %v8188
    %v8227 = vmul.f32 %v7837, %v8192
    %v8228 = vmul.f32 %v7839, %v8196
    %v8229 = vmul.f32 %v7841, %v8200
    %v8230 = vmul.f32 %v7843, %v8204
    %v8231 = vmul.f32 %v7845, %v8208
    %v8232 = vmul.f32 %v7847, %v8212
    %v8233 = vmul.f32 %v8169, %v8216
    %v8234 = vmul.f32 %v8220, 0.0
    %v8235 = vsel %vm6299, %v7515, 0.0
    %8236 = vset.pattern.permute.xlu0 8
    %8237 = vperm.xlu0 %8236, %v7517
    %v8238 = vpop.permute.xlu0 %8237
    %8240 = vset.pattern.permute.xlu0 8
    %8241 = vperm.xlu0 %8240, %v7518
    %v8242 = vpop.permute.xlu0 %8241
    %8244 = vset.pattern.permute.xlu0 8
    %8245 = vperm.xlu0 %8244, %v7519
    %v8246 = vpop.permute.xlu0 %8245
    %8248 = vset.pattern.permute.xlu0 8
    %8249 = vperm.xlu0 %8248, %v7520
    %v8250 = vpop.permute.xlu0 %8249
    %8252 = vset.pattern.permute.xlu0 8
    %8253 = vperm.xlu0 %8252, %v7521
    %v8254 = vpop.permute.xlu0 %8253
    %8256 = vset.pattern.permute.xlu0 8
    %8257 = vperm.xlu0 %8256, %v7522
    %v8258 = vpop.permute.xlu0 %8257
    %8260 = vset.pattern.permute.xlu0 8
    %8261 = vperm.xlu0 %8260, %v7523
    %v8262 = vpop.permute.xlu0 %8261
    %8264 = vset.pattern.permute.xlu0 8
    %8265 = vperm.xlu0 %8264, %v7524
    %v8266 = vpop.permute.xlu0 %8265
    %8268 = vset.pattern.permute.xlu0 8
    %8269 = vperm.xlu0 %8268, %v7525
    %v8270 = vpop.permute.xlu0 %8269
    %8272 = vset.pattern.permute.xlu0 8
    %8273 = vperm.xlu0 %8272, %v7526
    %v8274 = vpop.permute.xlu0 %8273
    %8276 = vset.pattern.permute.xlu0 8
    %8277 = vperm.xlu0 %8276, %v7527
    %v8278 = vpop.permute.xlu0 %8277
    %8280 = vset.pattern.permute.xlu0 8
    %8281 = vperm.xlu0 %8280, %v7528
    %v8282 = vpop.permute.xlu0 %8281
    %8284 = vset.pattern.permute.xlu0 8
    %8285 = vperm.xlu0 %8284, %v7529
    %v8286 = vpop.permute.xlu0 %8285
    %v8288 = vmul.f32 %v7482, %v8238
    %v8289 = vmul.f32 %v7485, %v8242
    %v8290 = vmul.f32 %v7488, %v8246
    %v8291 = vmul.f32 %v7491, %v8250
    %v8292 = vmul.f32 %v7494, %v8254
    %v8293 = vmul.f32 %v7497, %v8258
    %v8294 = vmul.f32 %v7500, %v8262
    %v8295 = vmul.f32 %v7503, %v8266
    %v8296 = vmul.f32 %v7506, %v8270
    %v8297 = vmul.f32 %v7509, %v8274
    %v8298 = vmul.f32 %v7512, %v8278
    %v8299 = vmul.f32 %v8235, %v8282
    %v8300 = vmul.f32 %v8286, 0.0
    %8314 = vrot.lane.b32.xlu0 %v7709, 8
    %v8315 = vpop.permute.xlu0 %8314
    %8316 = vrot.lane.b32.xlu0 %v7710, 8
    %v8317 = vpop.permute.xlu0 %8316
    %8318 = vrot.lane.b32.xlu0 %v7711, 8
    %v8319 = vpop.permute.xlu0 %8318
    %8320 = vrot.lane.b32.xlu0 %v7712, 8
    %v8321 = vpop.permute.xlu0 %8320
    %8322 = vrot.lane.b32.xlu0 %v7713, 8
    %v8323 = vpop.permute.xlu0 %8322
    %8324 = vrot.lane.b32.xlu0 %v7714, 8
    %v8325 = vpop.permute.xlu0 %8324
    %8326 = vrot.lane.b32.xlu0 %v7715, 8
    %v8327 = vpop.permute.xlu0 %8326
    %8328 = vrot.lane.b32.xlu0 %v7716, 8
    %v8329 = vpop.permute.xlu0 %8328
    %8330 = vrot.lane.b32.xlu0 %v7717, 8
    %v8331 = vpop.permute.xlu0 %8330
    %8332 = vrot.lane.b32.xlu0 %v7718, 8
    %v8333 = vpop.permute.xlu0 %8332
    %8334 = vrot.lane.b32.xlu0 %v7719, 8
    %v8335 = vpop.permute.xlu0 %8334
    %8336 = vrot.lane.b32.xlu0 %v7720, 8
    %v8337 = vpop.permute.xlu0 %8336
    %8338 = vrot.lane.b32.xlu0 %v7721, 8
    %v8339 = vpop.permute.xlu0 %8338
    %8366 = vrot.lane.b32.xlu0 %v7811, 16
    %v8367 = vpop.permute.xlu0 %8366
    %8368 = vrot.lane.b32.xlu0 %v7812, 16
    %v8369 = vpop.permute.xlu0 %8368
    %8370 = vrot.lane.b32.xlu0 %v7813, 16
    %v8371 = vpop.permute.xlu0 %8370
    %8372 = vrot.lane.b32.xlu0 %v7814, 16
    %v8373 = vpop.permute.xlu0 %8372
    %8374 = vrot.lane.b32.xlu0 %v7815, 16
    %v8375 = vpop.permute.xlu0 %8374
    %8376 = vrot.lane.b32.xlu0 %v7816, 16
    %v8377 = vpop.permute.xlu0 %8376
    %8378 = vrot.lane.b32.xlu0 %v7817, 16
    %v8379 = vpop.permute.xlu0 %8378
    %8380 = vrot.lane.b32.xlu0 %v7818, 16
    %v8381 = vpop.permute.xlu0 %8380
    %8382 = vrot.lane.b32.xlu0 %v7819, 16
    %v8383 = vpop.permute.xlu0 %8382
    %8384 = vrot.lane.b32.xlu0 %v7820, 16
    %v8385 = vpop.permute.xlu0 %8384
    %8386 = vrot.lane.b32.xlu0 %v7821, 16
    %v8387 = vpop.permute.xlu0 %8386
    %8388 = vrot.lane.b32.xlu0 %v7822, 16
    %v8389 = vpop.permute.xlu0 %8388
    %8390 = vrot.lane.b32.xlu0 %v7823, 16
    %v8391 = vpop.permute.xlu0 %8390
    %8418 = vrot.lane.b32.xlu0 %v7916, 24
    %v8419 = vpop.permute.xlu0 %8418
    %8420 = vrot.lane.b32.xlu0 %v7917, 24
    %v8421 = vpop.permute.xlu0 %8420
    %8422 = vrot.lane.b32.xlu0 %v7918, 24
    %v8423 = vpop.permute.xlu0 %8422
    %8424 = vrot.lane.b32.xlu0 %v7919, 24
    %v8425 = vpop.permute.xlu0 %8424
    %8426 = vrot.lane.b32.xlu0 %v7920, 24
    %v8427 = vpop.permute.xlu0 %8426
    %8428 = vrot.lane.b32.xlu0 %v7921, 24
    %v8429 = vpop.permute.xlu0 %8428
    %8430 = vrot.lane.b32.xlu0 %v7922, 24
    %v8431 = vpop.permute.xlu0 %8430
    %8432 = vrot.lane.b32.xlu0 %v7923, 24
    %v8433 = vpop.permute.xlu0 %8432
    %8434 = vrot.lane.b32.xlu0 %v7924, 24
    %v8435 = vpop.permute.xlu0 %8434
    %8436 = vrot.lane.b32.xlu0 %v7925, 24
    %v8437 = vpop.permute.xlu0 %8436
    %8438 = vrot.lane.b32.xlu0 %v7926, 24
    %v8439 = vpop.permute.xlu0 %8438
    %8440 = vrot.lane.b32.xlu0 %v7927, 24
    %v8441 = vpop.permute.xlu0 %8440
    %8442 = vrot.lane.b32.xlu0 %v7928, 24
    %v8443 = vpop.permute.xlu0 %8442
    %8470 = vrot.lane.b32.xlu0 %v7981, 32
    %v8471 = vpop.permute.xlu0 %8470
    %8472 = vrot.lane.b32.xlu0 %v7982, 32
    %v8473 = vpop.permute.xlu0 %8472
    %8474 = vrot.lane.b32.xlu0 %v7983, 32
    %v8475 = vpop.permute.xlu0 %8474
    %8476 = vrot.lane.b32.xlu0 %v7984, 32
    %v8477 = vpop.permute.xlu0 %8476
    %8478 = vrot.lane.b32.xlu0 %v7985, 32
    %v8479 = vpop.permute.xlu0 %8478
    %8480 = vrot.lane.b32.xlu0 %v7986, 32
    %v8481 = vpop.permute.xlu0 %8480
    %8482 = vrot.lane.b32.xlu0 %v7987, 32
    %v8483 = vpop.permute.xlu0 %8482
    %8484 = vrot.lane.b32.xlu0 %v7988, 32
    %v8485 = vpop.permute.xlu0 %8484
    %8486 = vrot.lane.b32.xlu0 %v7989, 32
    %v8487 = vpop.permute.xlu0 %8486
    %8488 = vrot.lane.b32.xlu0 %v7990, 32
    %v8489 = vpop.permute.xlu0 %8488
    %8490 = vrot.lane.b32.xlu0 %v7991, 32
    %v8491 = vpop.permute.xlu0 %8490
    %8492 = vrot.lane.b32.xlu0 %v7992, 32
    %v8493 = vpop.permute.xlu0 %8492
    %8494 = vrot.lane.b32.xlu0 %v7993, 32
    %v8495 = vpop.permute.xlu0 %8494
    %8522 = vrot.lane.b32.xlu0 %v8051, 40
    %v8523 = vpop.permute.xlu0 %8522
    %8524 = vrot.lane.b32.xlu0 %v8052, 40
    %v8525 = vpop.permute.xlu0 %8524
    %8526 = vrot.lane.b32.xlu0 %v8053, 40
    %v8527 = vpop.permute.xlu0 %8526
    %8528 = vrot.lane.b32.xlu0 %v8054, 40
    %v8529 = vpop.permute.xlu0 %8528
    %8530 = vrot.lane.b32.xlu0 %v8055, 40
    %v8531 = vpop.permute.xlu0 %8530
    %8532 = vrot.lane.b32.xlu0 %v8056, 40
    %v8533 = vpop.permute.xlu0 %8532
    %8534 = vrot.lane.b32.xlu0 %v8057, 40
    %v8535 = vpop.permute.xlu0 %8534
    %8536 = vrot.lane.b32.xlu0 %v8058, 40
    %v8537 = vpop.permute.xlu0 %8536
    %8538 = vrot.lane.b32.xlu0 %v8059, 40
    %v8539 = vpop.permute.xlu0 %8538
    %8540 = vrot.lane.b32.xlu0 %v8060, 40
    %v8541 = vpop.permute.xlu0 %8540
    %8542 = vrot.lane.b32.xlu0 %v8061, 40
    %v8543 = vpop.permute.xlu0 %8542
    %8544 = vrot.lane.b32.xlu0 %v8062, 40
    %v8545 = vpop.permute.xlu0 %8544
    %8546 = vrot.lane.b32.xlu0 %v8063, 40
    %v8547 = vpop.permute.xlu0 %8546
    %8574 = vrot.lane.b32.xlu0 %v8155, 48
    %v8575 = vpop.permute.xlu0 %8574
    %8576 = vrot.lane.b32.xlu0 %v8156, 48
    %v8577 = vpop.permute.xlu0 %8576
    %8578 = vrot.lane.b32.xlu0 %v8157, 48
    %v8579 = vpop.permute.xlu0 %8578
    %8580 = vrot.lane.b32.xlu0 %v8158, 48
    %v8581 = vpop.permute.xlu0 %8580
    %8582 = vrot.lane.b32.xlu0 %v8159, 48
    %v8583 = vpop.permute.xlu0 %8582
    %8584 = vrot.lane.b32.xlu0 %v8160, 48
    %v8585 = vpop.permute.xlu0 %8584
    %8586 = vrot.lane.b32.xlu0 %v8161, 48
    %v8587 = vpop.permute.xlu0 %8586
    %8588 = vrot.lane.b32.xlu0 %v8162, 48
    %v8589 = vpop.permute.xlu0 %8588
    %8590 = vrot.lane.b32.xlu0 %v8163, 48
    %v8591 = vpop.permute.xlu0 %8590
    %8592 = vrot.lane.b32.xlu0 %v8164, 48
    %v8593 = vpop.permute.xlu0 %8592
    %8594 = vrot.lane.b32.xlu0 %v8165, 48
    %v8595 = vpop.permute.xlu0 %8594
    %8596 = vrot.lane.b32.xlu0 %v8166, 48
    %v8597 = vpop.permute.xlu0 %8596
    %8598 = vrot.lane.b32.xlu0 %v8167, 48
    %v8599 = vpop.permute.xlu0 %8598
    %8626 = vrot.lane.b32.xlu0 %v8222, 56
    %v8627 = vpop.permute.xlu0 %8626
    %8628 = vrot.lane.b32.xlu0 %v8223, 56
    %v8629 = vpop.permute.xlu0 %8628
    %8630 = vrot.lane.b32.xlu0 %v8224, 56
    %v8631 = vpop.permute.xlu0 %8630
    %8632 = vrot.lane.b32.xlu0 %v8225, 56
    %v8633 = vpop.permute.xlu0 %8632
    %8634 = vrot.lane.b32.xlu0 %v8226, 56
    %v8635 = vpop.permute.xlu0 %8634
    %8636 = vrot.lane.b32.xlu0 %v8227, 56
    %v8637 = vpop.permute.xlu0 %8636
    %8638 = vrot.lane.b32.xlu0 %v8228, 56
    %v8639 = vpop.permute.xlu0 %8638
    %8640 = vrot.lane.b32.xlu0 %v8229, 56
    %v8641 = vpop.permute.xlu0 %8640
    %8642 = vrot.lane.b32.xlu0 %v8230, 56
    %v8643 = vpop.permute.xlu0 %8642
    %8644 = vrot.lane.b32.xlu0 %v8231, 56
    %v8645 = vpop.permute.xlu0 %8644
    %8646 = vrot.lane.b32.xlu0 %v8232, 56
    %v8647 = vpop.permute.xlu0 %8646
    %8648 = vrot.lane.b32.xlu0 %v8233, 56
    %v8649 = vpop.permute.xlu0 %8648
    %8650 = vrot.lane.b32.xlu0 %v8234, 56
    %v8651 = vpop.permute.xlu0 %8650
    %8678 = vrot.lane.b32.xlu0 %v8288, 64
    %v8679 = vpop.permute.xlu0 %8678
    %8680 = vrot.lane.b32.xlu0 %v8289, 64
    %v8681 = vpop.permute.xlu0 %8680
    %8682 = vrot.lane.b32.xlu0 %v8290, 64
    %v8683 = vpop.permute.xlu0 %8682
    %8684 = vrot.lane.b32.xlu0 %v8291, 64
    %v8685 = vpop.permute.xlu0 %8684
    %8686 = vrot.lane.b32.xlu0 %v8292, 64
    %v8687 = vpop.permute.xlu0 %8686
    %8688 = vrot.lane.b32.xlu0 %v8293, 64
    %v8689 = vpop.permute.xlu0 %8688
    %8690 = vrot.lane.b32.xlu0 %v8294, 64
    %v8691 = vpop.permute.xlu0 %8690
    %8692 = vrot.lane.b32.xlu0 %v8295, 64
    %v8693 = vpop.permute.xlu0 %8692
    %8694 = vrot.lane.b32.xlu0 %v8296, 64
    %v8695 = vpop.permute.xlu0 %8694
    %8696 = vrot.lane.b32.xlu0 %v8297, 64
    %v8697 = vpop.permute.xlu0 %8696
    %8698 = vrot.lane.b32.xlu0 %v8298, 64
    %v8699 = vpop.permute.xlu0 %8698
    %8700 = vrot.lane.b32.xlu0 %v8299, 64
    %v8701 = vpop.permute.xlu0 %8700
    %8702 = vrot.lane.b32.xlu0 %v8300, 64
    %v8703 = vpop.permute.xlu0 %8702
    %v8717 = vsel %vm5691, %v7595, %v8315
    %v8718 = vsel %vm5691, %v7596, %v8317
    %v8719 = vsel %vm5691, %v7597, %v8319
    %v8720 = vsel %vm5691, %v7598, %v8321
    %v8721 = vsel %vm5691, %v7599, %v8323
    %v8722 = vsel %vm5691, %v7600, %v8325
    %v8723 = vsel %vm5691, %v7601, %v8327
    %v8724 = vsel %vm5691, %v7602, %v8329
    %v8725 = vsel %vm5691, %v7603, %v8331
    %v8726 = vsel %vm5691, %v7604, %v8333
    %v8727 = vsel %vm5691, %v7605, %v8335
    %v8728 = vsel %vm5691, %v7606, %v8337
    %v8729 = vsel %vm5691, %v7607, %v8339
    %v8730 = vsel %vm5821, %v8717, %v8367
    %v8731 = vsel %vm5821, %v8718, %v8369
    %v8732 = vsel %vm5821, %v8719, %v8371
    %v8733 = vsel %vm5821, %v8720, %v8373
    %v8734 = vsel %vm5821, %v8721, %v8375
    %v8735 = vsel %vm5821, %v8722, %v8377
    %v8736 = vsel %vm5821, %v8723, %v8379
    %v8737 = vsel %vm5821, %v8724, %v8381
    %v8738 = vsel %vm5821, %v8725, %v8383
    %v8739 = vsel %vm5821, %v8726, %v8385
    %v8740 = vsel %vm5821, %v8727, %v8387
    %v8741 = vsel %vm5821, %v8728, %v8389
    %v8742 = vsel %vm5821, %v8729, %v8391
    %v8743 = vsel %vm5951, %v8730, %v8419
    %v8744 = vsel %vm5951, %v8731, %v8421
    %v8745 = vsel %vm5951, %v8732, %v8423
    %v8746 = vsel %vm5951, %v8733, %v8425
    %v8747 = vsel %vm5951, %v8734, %v8427
    %v8748 = vsel %vm5951, %v8735, %v8429
    %v8749 = vsel %vm5951, %v8736, %v8431
    %v8750 = vsel %vm5951, %v8737, %v8433
    %v8751 = vsel %vm5951, %v8738, %v8435
    %v8752 = vsel %vm5951, %v8739, %v8437
    %v8753 = vsel %vm5951, %v8740, %v8439
    %v8754 = vsel %vm5951, %v8741, %v8441
    %v8755 = vsel %vm5951, %v8742, %v8443
    %v8756 = vsel %vm6081, %v8743, %v8471
    %v8757 = vsel %vm6081, %v8744, %v8473
    %v8758 = vsel %vm6081, %v8745, %v8475
    %v8759 = vsel %vm6081, %v8746, %v8477
    %v8760 = vsel %vm6081, %v8747, %v8479
    %v8761 = vsel %vm6081, %v8748, %v8481
    %v8762 = vsel %vm6081, %v8749, %v8483
    %v8763 = vsel %vm6081, %v8750, %v8485
    %v8764 = vsel %vm6081, %v8751, %v8487
    %v8765 = vsel %vm6081, %v8752, %v8489
    %v8766 = vsel %vm6081, %v8753, %v8491
    %v8767 = vsel %vm6081, %v8754, %v8493
    %v8768 = vsel %vm6081, %v8755, %v8495
    %vm8769 = vcmask 326656
    %v8770 = vsel %vm8769, %v8756, %v8523
    %v8771 = vsel %vm8769, %v8757, %v8525
    %v8772 = vsel %vm8769, %v8758, %v8527
    %v8773 = vsel %vm8769, %v8759, %v8529
    %v8774 = vsel %vm8769, %v8760, %v8531
    %v8775 = vsel %vm8769, %v8761, %v8533
    %v8776 = vsel %vm8769, %v8762, %v8535
    %v8777 = vsel %vm8769, %v8763, %v8537
    %v8778 = vsel %vm8769, %v8764, %v8539
    %v8779 = vsel %vm8769, %v8765, %v8541
    %v8780 = vsel %vm8769, %v8766, %v8543
    %v8781 = vsel %vm8769, %v8767, %v8545
    %v8782 = vsel %vm8769, %v8768, %v8547
    %vm8783 = vcmask 392192
    %v8784 = vsel %vm8783, %v8770, %v8575
    %v8785 = vsel %vm8783, %v8771, %v8577
    %v8786 = vsel %vm8783, %v8772, %v8579
    %v8787 = vsel %vm8783, %v8773, %v8581
    %v8788 = vsel %vm8783, %v8774, %v8583
    %v8789 = vsel %vm8783, %v8775, %v8585
    %v8790 = vsel %vm8783, %v8776, %v8587
    %v8791 = vsel %vm8783, %v8777, %v8589
    %v8792 = vsel %vm8783, %v8778, %v8591
    %v8793 = vsel %vm8783, %v8779, %v8593
    %v8794 = vsel %vm8783, %v8780, %v8595
    %v8795 = vsel %vm8783, %v8781, %v8597
    %v8796 = vsel %vm8783, %v8782, %v8599
    %vm8797 = vcmask 457728
    %v8798 = vsel %vm8797, %v8784, %v8627
    %v8799 = vsel %vm8797, %v8785, %v8629
    %v8800 = vsel %vm8797, %v8786, %v8631
    %v8801 = vsel %vm8797, %v8787, %v8633
    %v8802 = vsel %vm8797, %v8788, %v8635
    %v8803 = vsel %vm8797, %v8789, %v8637
    %v8804 = vsel %vm8797, %v8790, %v8639
    %v8805 = vsel %vm8797, %v8791, %v8641
    %v8806 = vsel %vm8797, %v8792, %v8643
    %v8807 = vsel %vm8797, %v8793, %v8645
    %v8808 = vsel %vm8797, %v8794, %v8647
    %v8809 = vsel %vm8797, %v8795, %v8649
    %v8810 = vsel %vm8797, %v8796, %v8651
    %vm8811 = vcmask 523264
    %v8812 = vsel %vm8811, %v8798, %v8679
    %v8813 = vsel %vm8811, %v8799, %v8681
    %v8814 = vsel %vm8811, %v8800, %v8683
    %v8815 = vsel %vm8811, %v8801, %v8685
    %v8816 = vsel %vm8811, %v8802, %v8687
    %v8817 = vsel %vm8811, %v8803, %v8689
    %v8818 = vsel %vm8811, %v8804, %v8691
    %v8819 = vsel %vm8811, %v8805, %v8693
    %v8820 = vsel %vm8811, %v8806, %v8695
    %v8821 = vsel %vm8811, %v8807, %v8697
    %v8822 = vsel %vm8811, %v8808, %v8699
    %v8823 = vsel %vm8811, %v8809, %v8701
    %v8824 = vsel %vm8811, %v8810, %v8703
    %v8825 = vpack.c.bf16 %v8813, %v8812
    %v8826 = vpack.c.bf16 %v8815, %v8814
    %v8827 = vpack.c.bf16 %v8817, %v8816
    %v8828 = vpack.c.bf16 %v8819, %v8818
    %v8829 = vpack.c.bf16 %v8821, %v8820
    %v8830 = vpack.c.bf16 %v8823, %v8822
    %v8831 = vpack.c.bf16 %v8824, %v8824
    %v8832 = vld [vmem:[%s5] sm:$0xf]
    %v8833 = vld [vmem:[%s5 + $0x4] sm:$0xf]
    %v8834 = vld [vmem:[%s5 + $0x8] sm:$0xf]
    %v8835 = vld [vmem:[%s5 + $0xc] sm:$0xf]
    %v8836 = vld [vmem:[%s5 + $0x10] sm:$0xf]
    %v8837 = vld [vmem:[%s5 + $0x14] sm:$0xf]
    %v8838 = vld [vmem:[%s5 + $0x18] sm:$0xf]
    %v8839 = vld [vmem:[%s5 + $0x1c] sm:$0xf]
    %v8840 = vld [vmem:[%s5 + $0x20] sm:$0xf]
    %v8841 = vld [vmem:[%s6] sm:$0x1]
    %v8843 = vperm.slane %v8841, 0
    %v8854 = vunpack.c.l.b16 %v8832
    %v8855 = vunpack.c.l.b16 %v8833
    %v8856 = vunpack.c.l.b16 %v8834
    %v8857 = vunpack.c.l.b16 %v8835
    %v8858 = vunpack.c.l.b16 %v8836
    %v8859 = vunpack.c.l.b16 %v8837
    %v8860 = vunpack.c.l.b16 %v8838
    %v8861 = vunpack.c.l.b16 %v8839
    %v8862 = vunpack.c.l.b16 %v8840
    %v8863 = vpack.c.b16 %v8855, %v8854
    %v8864 = vpack.c.b16 %v8857, %v8856
    %v8865 = vpack.c.b16 %v8859, %v8858
    %v8866 = vpack.c.b16 %v8861, %v8860
    %v8867 = vpack.c.b16 %v8862, %v8862
    %vm8872 = vcmask 588800
    %v8874 = vsel %vm8872, %v8825, 0
    %v8877 = vsel %vm8872, %v8826, 0
    %v8880 = vsel %vm8872, %v8827, 0
    %v8883 = vsel %vm8872, %v8828, 0
    %v8886 = vsel %vm8872, %v8829, 0
    %v8889 = vsel %vm8872, %v8830, 0
    %v8892 = vsel %vm8872, %v8831, 0
    %v8895 = vsel %vm8101, %v8867, 0
    %8897 = vmatpush.bf16.msra.mxu0 0
    %8898 = vmatpush.bf16.msra.mxu0 0
    %8899 = vmatpush.bf16.msra.mxu0 0
    %8900 = vmatpush.bf16.msra.mxu0 %v8895
    %8901 = vmatpush.bf16.msra.mxu0 %v8866
    %8902 = vmatpush.bf16.msra.mxu0 %v8865
    %8903 = vmatpush.bf16.msra.mxu0 %v8864
    %8904 = vmatpush.bf16.msra.mxu0 %v8863
    %8905 = vmatmul.bf16.gmra.mxu0 %v8874
    %v8906 = vpop.f32.mrf.mxu0
    %v8907 = vadd.f32 %v8843, %v8906
    %v8908 = vpop.f32.mrf.mxu0
    %v8909 = vadd.f32 %v8843, %v8908
    %8910 = vmatmul.bf16.gmra.mxu0 %v8877
    %v8911 = vpop.f32.mrf.mxu0
    %v8912 = vadd.f32 %v8843, %v8911
    %v8913 = vpop.f32.mrf.mxu0
    %v8914 = vadd.f32 %v8843, %v8913
    %8915 = vmatmul.bf16.gmra.mxu0 %v8880
    %v8916 = vpop.f32.mrf.mxu0
    %v8917 = vadd.f32 %v8843, %v8916
    %v8918 = vpop.f32.mrf.mxu0
    %v8919 = vadd.f32 %v8843, %v8918
    %8920 = vmatmul.bf16.gmra.mxu0 %v8883
    %v8921 = vpop.f32.mrf.mxu0
    %v8922 = vadd.f32 %v8843, %v8921
    %v8923 = vpop.f32.mrf.mxu0
    %v8924 = vadd.f32 %v8843, %v8923
    %8925 = vmatmul.bf16.gmra.mxu0 %v8886
    %v8926 = vpop.f32.mrf.mxu0
    %v8927 = vadd.f32 %v8843, %v8926
    %v8928 = vpop.f32.mrf.mxu0
    %v8929 = vadd.f32 %v8843, %v8928
    %8930 = vmatmul.bf16.gmra.mxu0 %v8889
    %v8931 = vpop.f32.mrf.mxu0
    %v8932 = vadd.f32 %v8843, %v8931
    %v8933 = vpop.f32.mrf.mxu0
    %v8934 = vadd.f32 %v8843, %v8933
    %8935 = vmatmul.bf16.gmra.mxu0 %v8892
    %v8936 = vpop.f32.mrf.mxu0
    %v8937 = vadd.f32 %v8843, %v8936
    %v8938 = vpop.f32.mrf.mxu0
    %8939 = vdwg.mxu0
    %v8940 = vmax.f32 %v8907, 0.0
    %v8941 = vmax.f32 %v8909, 0.0
    %v8942 = vmax.f32 %v8912, 0.0
    %v8943 = vmax.f32 %v8914, 0.0
    %v8944 = vmax.f32 %v8917, 0.0
    %v8945 = vmax.f32 %v8919, 0.0
    %v8946 = vmax.f32 %v8922, 0.0
    %v8947 = vmax.f32 %v8924, 0.0
    %v8948 = vmax.f32 %v8927, 0.0
    %v8949 = vmax.f32 %v8929, 0.0
    %v8950 = vmax.f32 %v8932, 0.0
    %v8951 = vmax.f32 %v8934, 0.0
    %v8952 = vmax.f32 %v8937, 0.0
    %v8966 = vrot.slane %v8940, 1
    %v8967 = vrot.slane %v8941, 1
    %v8968 = vsel %vm1134, %v8966, %v8967
    %v8969 = vrot.slane %v8942, 1
    %v8970 = vsel %vm1134, %v8967, %v8969
    %v8971 = vrot.slane %v8943, 1
    %v8972 = vsel %vm1134, %v8969, %v8971
    %v8973 = vrot.slane %v8944, 1
    %v8974 = vsel %vm1134, %v8971, %v8973
    %v8975 = vrot.slane %v8945, 1
    %v8976 = vsel %vm1134, %v8973, %v8975
    %v8977 = vrot.slane %v8946, 1
    %v8978 = vsel %vm1134, %v8975, %v8977
    %v8979 = vrot.slane %v8947, 1
    %v8980 = vsel %vm1134, %v8977, %v8979
    %v8981 = vrot.slane %v8948, 1
    %v8982 = vsel %vm1134, %v8979, %v8981
    %v8983 = vrot.slane %v8949, 1
    %v8984 = vsel %vm1134, %v8981, %v8983
    %v8985 = vrot.slane %v8950, 1
    %v8986 = vsel %vm1134, %v8983, %v8985
    %v8987 = vrot.slane %v8951, 1
    %v8988 = vsel %vm1134, %v8985, %v8987
    %v8989 = vrot.slane %v8952, 1
    %v8990 = vsel %vm1134, %v8987, %v8989
    %v9004 = vsel %vm178, %v8989, 0.0
    %v9005 = vmax.f32 %v8940, %v8968
    %v9006 = vmax.f32 %v8941, %v8970
    %v9007 = vmax.f32 %v8942, %v8972
    %v9008 = vmax.f32 %v8943, %v8974
    %v9009 = vmax.f32 %v8944, %v8976
    %v9010 = vmax.f32 %v8945, %v8978
    %v9011 = vmax.f32 %v8946, %v8980
    %v9012 = vmax.f32 %v8947, %v8982
    %v9013 = vmax.f32 %v8948, %v8984
    %v9014 = vmax.f32 %v8949, %v8986
    %v9015 = vmax.f32 %v8950, %v8988
    %v9016 = vmax.f32 %v8951, %v8990
    %v9017 = vmax.f32 %v8952, %v9004
    %v9018 = vrot.slane %v8940, 2
    %v9019 = vrot.slane %v8941, 2
    %v9020 = vsel %vm6856, %v9018, %v9019
    %v9021 = vrot.slane %v8942, 2
    %v9022 = vsel %vm6856, %v9019, %v9021
    %v9023 = vrot.slane %v8943, 2
    %v9024 = vsel %vm6856, %v9021, %v9023
    %v9025 = vrot.slane %v8944, 2
    %v9026 = vsel %vm6856, %v9023, %v9025
    %v9027 = vrot.slane %v8945, 2
    %v9028 = vsel %vm6856, %v9025, %v9027
    %v9029 = vrot.slane %v8946, 2
    %v9030 = vsel %vm6856, %v9027, %v9029
    %v9031 = vrot.slane %v8947, 2
    %v9032 = vsel %vm6856, %v9029, %v9031
    %v9033 = vrot.slane %v8948, 2
    %v9034 = vsel %vm6856, %v9031, %v9033
    %v9035 = vrot.slane %v8949, 2
    %v9036 = vsel %vm6856, %v9033, %v9035
    %v9037 = vrot.slane %v8950, 2
    %v9038 = vsel %vm6856, %v9035, %v9037
    %v9039 = vrot.slane %v8951, 2
    %v9040 = vsel %vm6856, %v9037, %v9039
    %v9041 = vrot.slane %v8952, 2
    %v9042 = vsel %vm6856, %v9039, %v9041
    %v9055 = vmax.f32 %v9005, %v9020
    %v9056 = vmax.f32 %v9006, %v9022
    %v9057 = vmax.f32 %v9007, %v9024
    %v9058 = vmax.f32 %v9008, %v9026
    %v9059 = vmax.f32 %v9009, %v9028
    %v9060 = vmax.f32 %v9010, %v9030
    %v9061 = vmax.f32 %v9011, %v9032
    %v9062 = vmax.f32 %v9012, %v9034
    %v9063 = vmax.f32 %v9013, %v9036
    %v9064 = vmax.f32 %v9014, %v9038
    %v9065 = vmax.f32 %v9015, %v9040
    %v9066 = vmax.f32 %v9016, %v9042
    %v9067 = vmax.f32 %v9017, 0.0
    %v9081 = vrot.slane %v9055, 7
    %v9082 = vrot.slane %v9056, 7
    %v9083 = vsel %vm178, %v9081, %v9082
    %v9084 = vrot.slane %v9057, 7
    %v9085 = vsel %vm178, %v9082, %v9084
    %v9086 = vrot.slane %v9058, 7
    %v9087 = vsel %vm178, %v9084, %v9086
    %v9088 = vrot.slane %v9059, 7
    %v9089 = vsel %vm178, %v9086, %v9088
    %v9090 = vrot.slane %v9060, 7
    %v9091 = vsel %vm178, %v9088, %v9090
    %v9092 = vrot.slane %v9061, 7
    %v9093 = vsel %vm178, %v9090, %v9092
    %v9094 = vrot.slane %v9062, 7
    %v9095 = vsel %vm178, %v9092, %v9094
    %v9096 = vrot.slane %v9063, 7
    %v9097 = vsel %vm178, %v9094, %v9096
    %v9098 = vrot.slane %v9064, 7
    %v9099 = vsel %vm178, %v9096, %v9098
    %v9100 = vrot.slane %v9065, 7
    %v9101 = vsel %vm178, %v9098, %v9100
    %v9102 = vrot.slane %v9066, 7
    %v9103 = vsel %vm178, %v9100, %v9102
    %v9104 = vrot.slane %v9067, 7
    %v9105 = vsel %vm178, %v9102, %v9104
    %v9118 = vsel %vm8168, %v9105, 0.0
    %v9119 = vmax.f32 %v9055, %v9083
    %v9120 = vmax.f32 %v9056, %v9085
    %v9121 = vmax.f32 %v9057, %v9087
    %v9122 = vmax.f32 %v9058, %v9089
    %v9123 = vmax.f32 %v9059, %v9091
    %v9124 = vmax.f32 %v9060, %v9093
    %v9125 = vmax.f32 %v9061, %v9095
    %v9126 = vmax.f32 %v9062, %v9097
    %v9127 = vmax.f32 %v9063, %v9099
    %v9128 = vmax.f32 %v9064, %v9101
    %v9129 = vmax.f32 %v9065, %v9103
    %v9130 = vmax.f32 %v9066, %v9118
    %v9131 = vmax.f32 %v9067, 0.0
    %v9132 = vrot.slane %v9056, 6
    %v9133 = vrot.slane %v9057, 6
    %v9134 = vsel %vm6299, %v9132, %v9133
    %v9135 = vrot.slane %v9058, 6
    %v9136 = vsel %vm6299, %v9133, %v9135
    %v9137 = vrot.slane %v9059, 6
    %v9138 = vsel %vm6299, %v9135, %v9137
    %v9139 = vrot.slane %v9060, 6
    %v9140 = vsel %vm6299, %v9137, %v9139
    %v9141 = vrot.slane %v9061, 6
    %v9142 = vsel %vm6299, %v9139, %v9141
    %v9143 = vrot.slane %v9062, 6
    %v9144 = vsel %vm6299, %v9141, %v9143
    %v9145 = vrot.slane %v9063, 6
    %v9146 = vsel %vm6299, %v9143, %v9145
    %v9147 = vrot.slane %v9064, 6
    %v9148 = vsel %vm6299, %v9145, %v9147
    %v9149 = vrot.slane %v9065, 6
    %v9150 = vsel %vm6299, %v9147, %v9149
    %v9151 = vrot.slane %v9066, 6
    %v9152 = vsel %vm6299, %v9149, %v9151
    %v9153 = vrot.slane %v9067, 6
    %v9154 = vsel %vm6299, %v9151, %v9153
    %v9166 = vsel %vm8101, %v9154, 0.0
    %v9167 = vmax.f32 %v9119, %v9134
    %v9168 = vmax.f32 %v9120, %v9136
    %v9169 = vmax.f32 %v9121, %v9138
    %v9170 = vmax.f32 %v9122, %v9140
    %v9171 = vmax.f32 %v9123, %v9142
    %v9172 = vmax.f32 %v9124, %v9144
    %v9173 = vmax.f32 %v9125, %v9146
    %v9174 = vmax.f32 %v9126, %v9148
    %v9175 = vmax.f32 %v9127, %v9150
    %v9176 = vmax.f32 %v9128, %v9152
    %v9177 = vmax.f32 %v9129, %v9166
    %v9178 = vmax.f32 %v9130, 0.0
    %v9179 = vmax.f32 %v9131, 0.0
    %v9180 = vld [vmem:[%s8] sm:$0xff]
    %v9181 = vld [vmem:[%s8 + $0x8] sm:$0xff]
    %v9182 = vld [vmem:[%s8 + $0x10] sm:$0xff]
    %v9183 = vld [vmem:[%s8 + $0x18] sm:$0xff]
    %v9184 = vld [vmem:[%s8 + $0x20] sm:$0xff]
    %v9185 = vld [vmem:[%s8 + $0x28] sm:$0xff]
    %v9186 = vld [vmem:[%s8 + $0x30] sm:$0x3]
    %vm9187 = vcmask 801792
    %v9189 = vsel %vm9187, %v9180, 0
    %v9192 = vsel %vm9187, %v9181, 0
    %v9195 = vsel %vm9187, %v9182, 0
    %v9198 = vsel %vm9187, %v9183, 0
    %v9201 = vsel %vm9187, %v9184, 0
    %v9204 = vsel %vm9187, %v9185, 0
    %v9207 = vsel %vm9187, %v9186, 0
    %v9210 = vsel %vm6299, %v9179, 0
    %9212 = vmatpush.msra.mxu0 0.0
    %9213 = vmatpush.msra.mxu0 0.0
    %9214 = vmatpush.msra.mxu0 0.0
    %9215 = vmatpush.msra.mxu0 %v9210
    %9216 = vmatpush.msra.mxu0 %v9178
    %9217 = vmatpush.msra.mxu0 %v9177
    %9218 = vmatpush.msra.mxu0 %v9176
    %9219 = vmatpush.msra.mxu0 %v9175
    %9220 = vmatpush.msra.mxu0 %v9174
    %9221 = vmatpush.msra.mxu0 %v9173
    %9222 = vmatpush.msra.mxu0 %v9172
    %9223 = vmatpush.msra.mxu0 %v9171
    %9224 = vmatpush.msra.mxu0 %v9170
    %9225 = vmatpush.msra.mxu0 %v9169
    %9226 = vmatpush.msra.mxu0 %v9168
    %9227 = vmatpush.msra.mxu0 %v9167
    %9228 = vmatmul.f32.gmra.mxu0 %v9189
    %v9229 = vpop.f32.mrf.mxu0
    %v9230 = vadd.f32 0.0, %v9229
    %9231 = vmatmul.f32.gmra.mxu0 %v9192
    %v9232 = vpop.f32.mrf.mxu0
    %v9233 = vadd.f32 0.0, %v9232
    %9234 = vmatmul.f32.gmra.mxu0 %v9195
    %v9235 = vpop.f32.mrf.mxu0
    %v9236 = vadd.f32 0.0, %v9235
    %9237 = vmatmul.f32.gmra.mxu0 %v9198
    %v9238 = vpop.f32.mrf.mxu0
    %v9239 = vadd.f32 0.0, %v9238
    %9240 = vmatmul.f32.gmra.mxu0 %v9201
    %v9241 = vpop.f32.mrf.mxu0
    %v9242 = vadd.f32 0.0, %v9241
    %9243 = vmatmul.f32.gmra.mxu0 %v9204
    %v9244 = vpop.f32.mrf.mxu0
    %v9245 = vadd.f32 0.0, %v9244
    %9246 = vmatmul.f32.gmra.mxu0 %v9207
    %v9247 = vpop.f32.mrf.mxu0
    %v9248 = vadd.f32 0.0, %v9247
    %9249 = vdwg.mxu0
    %v9256 = vrot.slane %v9230, 2
    %v9257 = vrot.slane %v9233, 2
    %v9258 = vsel %vm6856, %v9256, %v9257
    %v9259 = vrot.slane %v9236, 2
    %v9260 = vsel %vm6856, %v9257, %v9259
    %v9261 = vrot.slane %v9239, 2
    %v9262 = vsel %vm6856, %v9259, %v9261
    %v9263 = vrot.slane %v9242, 2
    %v9264 = vsel %vm6856, %v9261, %v9263
    %v9265 = vrot.slane %v9245, 2
    %v9266 = vsel %vm6856, %v9263, %v9265
    %v9274 = vsel %vm6856, 0.0, %v9256
    %v9275 = vld [vmem:[%s11] sm:$0xff]
    %v9276 = vld [vmem:[%s11 + $0x8] sm:$0xff]
    %v9277 = vld [vmem:[%s11 + $0x10] sm:$0xff]
    %v9278 = vld [vmem:[%s11 + $0x18] sm:$0xff]
    %v9279 = vld [vmem:[%s11 + $0x20] sm:$0xff]
    %v9280 = vld [vmem:[%s11 + $0x28] sm:$0xff]
    %v9281 = vld [vmem:[%s11 + $0x30] sm:$0x3]
    %9283 = vset.pattern.permute.xlu0 0
    %9284 = vperm.xlu0 %9283, %v9275
    %v9285 = vpop.permute.xlu0 %9284
    %9288 = vset.pattern.permute.xlu0 0
    %9289 = vperm.xlu0 %9288, %v9276
    %v9290 = vpop.permute.xlu0 %9289
    %9293 = vset.pattern.permute.xlu0 0
    %9294 = vperm.xlu0 %9293, %v9277
    %v9295 = vpop.permute.xlu0 %9294
    %9298 = vset.pattern.permute.xlu0 0
    %9299 = vperm.xlu0 %9298, %v9278
    %v9300 = vpop.permute.xlu0 %9299
    %9303 = vset.pattern.permute.xlu0 0
    %9304 = vperm.xlu0 %9303, %v9279
    %v9305 = vpop.permute.xlu0 %9304
    %9308 = vset.pattern.permute.xlu0 0
    %9309 = vperm.xlu0 %9308, %v9280
    %v9310 = vpop.permute.xlu0 %9309
    %9313 = vset.pattern.permute.xlu0 0
    %9314 = vperm.xlu0 %9313, %v9281
    %v9315 = vpop.permute.xlu0 %9314
    %v9317 = vmul.f32 %v9274, %v9285
    %v9318 = vmul.f32 %v9258, %v9290
    %v9319 = vmul.f32 %v9260, %v9295
    %v9320 = vmul.f32 %v9262, %v9300
    %v9321 = vmul.f32 %v9264, %v9305
    %v9322 = vmul.f32 %v9266, %v9310
    %v9323 = vmul.f32 %v9265, %v9315
    %vm9324 = vcmask 1044480
    %v9325 = vrot.slane %v9230, 3
    %v9326 = vrot.slane %v9233, 3
    %v9327 = vsel %vm9324, %v9325, %v9326
    %v9328 = vrot.slane %v9236, 3
    %v9329 = vsel %vm9324, %v9326, %v9328
    %v9330 = vrot.slane %v9239, 3
    %v9331 = vsel %vm9324, %v9328, %v9330
    %v9332 = vrot.slane %v9242, 3
    %v9333 = vsel %vm9324, %v9330, %v9332
    %v9334 = vrot.slane %v9245, 3
    %v9335 = vsel %vm9324, %v9332, %v9334
    %v9343 = vsel %vm9324, 0.0, %v9325
    %9344 = vset.pattern.permute.xlu0 1
    %9345 = vperm.xlu0 %9344, %v9275
    %v9346 = vpop.permute.xlu0 %9345
    %9348 = vset.pattern.permute.xlu0 1
    %9349 = vperm.xlu0 %9348, %v9276
    %v9350 = vpop.permute.xlu0 %9349
    %9352 = vset.pattern.permute.xlu0 1
    %9353 = vperm.xlu0 %9352, %v9277
    %v9354 = vpop.permute.xlu0 %9353
    %9356 = vset.pattern.permute.xlu0 1
    %9357 = vperm.xlu0 %9356, %v9278
    %v9358 = vpop.permute.xlu0 %9357
    %9360 = vset.pattern.permute.xlu0 1
    %9361 = vperm.xlu0 %9360, %v9279
    %v9362 = vpop.permute.xlu0 %9361
    %9364 = vset.pattern.permute.xlu0 1
    %9365 = vperm.xlu0 %9364, %v9280
    %v9366 = vpop.permute.xlu0 %9365
    %9368 = vset.pattern.permute.xlu0 1
    %9369 = vperm.xlu0 %9368, %v9281
    %v9370 = vpop.permute.xlu0 %9369
    %v9372 = vmul.f32 %v9343, %v9346
    %v9373 = vmul.f32 %v9327, %v9350
    %v9374 = vmul.f32 %v9329, %v9354
    %v9375 = vmul.f32 %v9331, %v9358
    %v9376 = vmul.f32 %v9333, %v9362
    %v9377 = vmul.f32 %v9335, %v9366
    %v9378 = vmul.f32 %v9334, %v9370
    %v9379 = vrot.slane %v9230, 4
    %v9380 = vrot.slane %v9233, 4
    %v9381 = vsel %vm8101, %v9379, %v9380
    %v9382 = vrot.slane %v9236, 4
    %v9383 = vsel %vm8101, %v9380, %v9382
    %v9384 = vrot.slane %v9239, 4
    %v9385 = vsel %vm8101, %v9382, %v9384
    %v9386 = vrot.slane %v9242, 4
    %v9387 = vsel %vm8101, %v9384, %v9386
    %v9388 = vrot.slane %v9245, 4
    %v9389 = vsel %vm8101, %v9386, %v9388
    %v9397 = vsel %vm8101, 0.0, %v9379
    %9398 = vset.pattern.permute.xlu0 2
    %9399 = vperm.xlu0 %9398, %v9275
    %v9400 = vpop.permute.xlu0 %9399
    %9402 = vset.pattern.permute.xlu0 2
    %9403 = vperm.xlu0 %9402, %v9276
    %v9404 = vpop.permute.xlu0 %9403
    %9406 = vset.pattern.permute.xlu0 2
    %9407 = vperm.xlu0 %9406, %v9277
    %v9408 = vpop.permute.xlu0 %9407
    %9410 = vset.pattern.permute.xlu0 2
    %9411 = vperm.xlu0 %9410, %v9278
    %v9412 = vpop.permute.xlu0 %9411
    %9414 = vset.pattern.permute.xlu0 2
    %9415 = vperm.xlu0 %9414, %v9279
    %v9416 = vpop.permute.xlu0 %9415
    %9418 = vset.pattern.permute.xlu0 2
    %9419 = vperm.xlu0 %9418, %v9280
    %v9420 = vpop.permute.xlu0 %9419
    %9422 = vset.pattern.permute.xlu0 2
    %9423 = vperm.xlu0 %9422, %v9281
    %v9424 = vpop.permute.xlu0 %9423
    %v9426 = vmul.f32 %v9397, %v9400
    %v9427 = vmul.f32 %v9381, %v9404
    %v9428 = vmul.f32 %v9383, %v9408
    %v9429 = vmul.f32 %v9385, %v9412
    %v9430 = vmul.f32 %v9387, %v9416
    %v9431 = vmul.f32 %v9389, %v9420
    %v9432 = vmul.f32 %v9388, %v9424
    %v9434 = vrot.slane %v9230, 7
    %v9435 = vrot.slane %v9233, 7
    %v9436 = vsel %vm178, %v9434, %v9435
    %v9437 = vrot.slane %v9236, 7
    %v9438 = vsel %vm178, %v9435, %v9437
    %v9439 = vrot.slane %v9239, 7
    %v9440 = vsel %vm178, %v9437, %v9439
    %v9441 = vrot.slane %v9242, 7
    %v9442 = vsel %vm178, %v9439, %v9441
    %v9443 = vrot.slane %v9245, 7
    %v9444 = vsel %vm178, %v9441, %v9443
    %v9445 = vrot.slane %v9248, 7
    %v9446 = vsel %vm178, %v9443, %v9445
    %v9454 = vsel %vm178, 0.0, %v9434
    %9455 = vset.pattern.permute.xlu0 3
    %9456 = vperm.xlu0 %9455, %v9275
    %v9457 = vpop.permute.xlu0 %9456
    %9459 = vset.pattern.permute.xlu0 3
    %9460 = vperm.xlu0 %9459, %v9276
    %v9461 = vpop.permute.xlu0 %9460
    %9463 = vset.pattern.permute.xlu0 3
    %9464 = vperm.xlu0 %9463, %v9277
    %v9465 = vpop.permute.xlu0 %9464
    %9467 = vset.pattern.permute.xlu0 3
    %9468 = vperm.xlu0 %9467, %v9278
    %v9469 = vpop.permute.xlu0 %9468
    %9471 = vset.pattern.permute.xlu0 3
    %9472 = vperm.xlu0 %9471, %v9279
    %v9473 = vpop.permute.xlu0 %9472
    %9475 = vset.pattern.permute.xlu0 3
    %9476 = vperm.xlu0 %9475, %v9280
    %v9477 = vpop.permute.xlu0 %9476
    %9479 = vset.pattern.permute.xlu0 3
    %9480 = vperm.xlu0 %9479, %v9281
    %v9481 = vpop.permute.xlu0 %9480
    %v9483 = vmul.f32 %v9454, %v9457
    %v9484 = vmul.f32 %v9436, %v9461
    %v9485 = vmul.f32 %v9438, %v9465
    %v9486 = vmul.f32 %v9440, %v9469
    %v9487 = vmul.f32 %v9442, %v9473
    %v9488 = vmul.f32 %v9444, %v9477
    %v9489 = vmul.f32 %v9446, %v9481
    %9490 = vset.pattern.permute.xlu0 4
    %9491 = vperm.xlu0 %9490, %v9275
    %v9492 = vpop.permute.xlu0 %9491
    %9494 = vset.pattern.permute.xlu0 4
    %9495 = vperm.xlu0 %9494, %v9276
    %v9496 = vpop.permute.xlu0 %9495
    %9498 = vset.pattern.permute.xlu0 4
    %9499 = vperm.xlu0 %9498, %v9277
    %v9500 = vpop.permute.xlu0 %9499
    %9502 = vset.pattern.permute.xlu0 4
    %9503 = vperm.xlu0 %9502, %v9278
    %v9504 = vpop.permute.xlu0 %9503
    %9506 = vset.pattern.permute.xlu0 4
    %9507 = vperm.xlu0 %9506, %v9279
    %v9508 = vpop.permute.xlu0 %9507
    %9510 = vset.pattern.permute.xlu0 4
    %9511 = vperm.xlu0 %9510, %v9280
    %v9512 = vpop.permute.xlu0 %9511
    %9514 = vset.pattern.permute.xlu0 4
    %9515 = vperm.xlu0 %9514, %v9281
    %v9516 = vpop.permute.xlu0 %9515
    %v9518 = vmul.f32 %v9230, %v9492
    %v9519 = vmul.f32 %v9233, %v9496
    %v9520 = vmul.f32 %v9236, %v9500
    %v9521 = vmul.f32 %v9239, %v9504
    %v9522 = vmul.f32 %v9242, %v9508
    %v9523 = vmul.f32 %v9245, %v9512
    %v9524 = vmul.f32 %v9248, %v9516
    %v9525 = vrot.slane %v9230, 1
    %v9526 = vrot.slane %v9233, 1
    %v9527 = vsel %vm1134, %v9525, %v9526
    %v9528 = vrot.slane %v9236, 1
    %v9529 = vsel %vm1134, %v9526, %v9528
    %v9530 = vrot.slane %v9239, 1
    %v9531 = vsel %vm1134, %v9528, %v9530
    %v9532 = vrot.slane %v9242, 1
    %v9533 = vsel %vm1134, %v9530, %v9532
    %v9534 = vrot.slane %v9245, 1
    %v9535 = vsel %vm1134, %v9532, %v9534
    %v9536 = vrot.slane %v9248, 1
    %v9537 = vsel %vm1134, %v9534, %v9536
    %v9545 = vsel %vm178, %v9536, 0.0
    %9546 = vset.pattern.permute.xlu0 5
    %9547 = vperm.xlu0 %9546, %v9275
    %v9548 = vpop.permute.xlu0 %9547
    %9550 = vset.pattern.permute.xlu0 5
    %9551 = vperm.xlu0 %9550, %v9276
    %v9552 = vpop.permute.xlu0 %9551
    %9554 = vset.pattern.permute.xlu0 5
    %9555 = vperm.xlu0 %9554, %v9277
    %v9556 = vpop.permute.xlu0 %9555
    %9558 = vset.pattern.permute.xlu0 5
    %9559 = vperm.xlu0 %9558, %v9278
    %v9560 = vpop.permute.xlu0 %9559
    %9562 = vset.pattern.permute.xlu0 5
    %9563 = vperm.xlu0 %9562, %v9279
    %v9564 = vpop.permute.xlu0 %9563
    %9566 = vset.pattern.permute.xlu0 5
    %9567 = vperm.xlu0 %9566, %v9280
    %v9568 = vpop.permute.xlu0 %9567
    %9570 = vset.pattern.permute.xlu0 5
    %9571 = vperm.xlu0 %9570, %v9281
    %v9572 = vpop.permute.xlu0 %9571
    %v9574 = vmul.f32 %v9527, %v9548
    %v9575 = vmul.f32 %v9529, %v9552
    %v9576 = vmul.f32 %v9531, %v9556
    %v9577 = vmul.f32 %v9533, %v9560
    %v9578 = vmul.f32 %v9535, %v9564
    %v9579 = vmul.f32 %v9537, %v9568
    %v9580 = vmul.f32 %v9545, %v9572
    %v9581 = vrot.slane %v9248, 4
    %v9582 = vsel %vm8101, %v9388, %v9581
    %v9584 = vsel %vm6856, %v9582, 0.0
    %9585 = vset.pattern.permute.xlu0 6
    %9586 = vperm.xlu0 %9585, %v9275
    %v9587 = vpop.permute.xlu0 %9586
    %9589 = vset.pattern.permute.xlu0 6
    %9590 = vperm.xlu0 %9589, %v9276
    %v9591 = vpop.permute.xlu0 %9590
    %9593 = vset.pattern.permute.xlu0 6
    %9594 = vperm.xlu0 %9593, %v9277
    %v9595 = vpop.permute.xlu0 %9594
    %9597 = vset.pattern.permute.xlu0 6
    %9598 = vperm.xlu0 %9597, %v9278
    %v9599 = vpop.permute.xlu0 %9598
    %9601 = vset.pattern.permute.xlu0 6
    %9602 = vperm.xlu0 %9601, %v9279
    %v9603 = vpop.permute.xlu0 %9602
    %9605 = vset.pattern.permute.xlu0 6
    %9606 = vperm.xlu0 %9605, %v9280
    %v9607 = vpop.permute.xlu0 %9606
    %9609 = vset.pattern.permute.xlu0 6
    %9610 = vperm.xlu0 %9609, %v9281
    %v9611 = vpop.permute.xlu0 %9610
    %v9613 = vmul.f32 %v9381, %v9587
    %v9614 = vmul.f32 %v9383, %v9591
    %v9615 = vmul.f32 %v9385, %v9595
    %v9616 = vmul.f32 %v9387, %v9599
    %v9617 = vmul.f32 %v9389, %v9603
    %v9618 = vmul.f32 %v9584, %v9607
    %v9619 = vmul.f32 %v9611, 0.0
    %v9620 = vrot.slane %v9230, 5
    %v9621 = vrot.slane %v9233, 5
    %v9622 = vsel %vm8168, %v9620, %v9621
    %v9623 = vrot.slane %v9236, 5
    %v9624 = vsel %vm8168, %v9621, %v9623
    %v9625 = vrot.slane %v9239, 5
    %v9626 = vsel %vm8168, %v9623, %v9625
    %v9627 = vrot.slane %v9242, 5
    %v9628 = vsel %vm8168, %v9625, %v9627
    %v9629 = vrot.slane %v9245, 5
    %v9630 = vsel %vm8168, %v9627, %v9629
    %v9631 = vrot.slane %v9248, 5
    %v9632 = vsel %vm8168, %v9629, %v9631
    %v9639 = vsel %vm9324, %v9632, 0.0
    %9640 = vset.pattern.permute.xlu0 7
    %9641 = vperm.xlu0 %9640, %v9275
    %v9642 = vpop.permute.xlu0 %9641
    %9644 = vset.pattern.permute.xlu0 7
    %9645 = vperm.xlu0 %9644, %v9276
    %v9646 = vpop.permute.xlu0 %9645
    %9648 = vset.pattern.permute.xlu0 7
    %9649 = vperm.xlu0 %9648, %v9277
    %v9650 = vpop.permute.xlu0 %9649
    %9652 = vset.pattern.permute.xlu0 7
    %9653 = vperm.xlu0 %9652, %v9278
    %v9654 = vpop.permute.xlu0 %9653
    %9656 = vset.pattern.permute.xlu0 7
    %9657 = vperm.xlu0 %9656, %v9279
    %v9658 = vpop.permute.xlu0 %9657
    %9660 = vset.pattern.permute.xlu0 7
    %9661 = vperm.xlu0 %9660, %v9280
    %v9662 = vpop.permute.xlu0 %9661
    %9664 = vset.pattern.permute.xlu0 7
    %9665 = vperm.xlu0 %9664, %v9281
    %v9666 = vpop.permute.xlu0 %9665
    %v9668 = vmul.f32 %v9622, %v9642
    %v9669 = vmul.f32 %v9624, %v9646
    %v9670 = vmul.f32 %v9626, %v9650
    %v9671 = vmul.f32 %v9628, %v9654
    %v9672 = vmul.f32 %v9630, %v9658
    %v9673 = vmul.f32 %v9639, %v9662
    %v9674 = vmul.f32 %v9666, 0.0
    %v9675 = vrot.slane %v9230, 6
    %v9676 = vrot.slane %v9233, 6
    %v9677 = vsel %vm6299, %v9675, %v9676
    %v9678 = vrot.slane %v9236, 6
    %v9679 = vsel %vm6299, %v9676, %v9678
    %v9680 = vrot.slane %v9239, 6
    %v9681 = vsel %vm6299, %v9678, %v9680
    %v9682 = vrot.slane %v9242, 6
    %v9683 = vsel %vm6299, %v9680, %v9682
    %v9684 = vrot.slane %v9245, 6
    %v9685 = vsel %vm6299, %v9682, %v9684
    %v9686 = vrot.slane %v9248, 6
    %v9687 = vsel %vm6299, %v9684, %v9686
    %v9694 = vsel %vm8101, %v9687, 0.0
    %9695 = vset.pattern.permute.xlu0 8
    %9696 = vperm.xlu0 %9695, %v9275
    %v9697 = vpop.permute.xlu0 %9696
    %9699 = vset.pattern.permute.xlu0 8
    %9700 = vperm.xlu0 %9699, %v9276
    %v9701 = vpop.permute.xlu0 %9700
    %9703 = vset.pattern.permute.xlu0 8
    %9704 = vperm.xlu0 %9703, %v9277
    %v9705 = vpop.permute.xlu0 %9704
    %9707 = vset.pattern.permute.xlu0 8
    %9708 = vperm.xlu0 %9707, %v9278
    %v9709 = vpop.permute.xlu0 %9708
    %9711 = vset.pattern.permute.xlu0 8
    %9712 = vperm.xlu0 %9711, %v9279
    %v9713 = vpop.permute.xlu0 %9712
    %9715 = vset.pattern.permute.xlu0 8
    %9716 = vperm.xlu0 %9715, %v9280
    %v9717 = vpop.permute.xlu0 %9716
    %9719 = vset.pattern.permute.xlu0 8
    %9720 = vperm.xlu0 %9719, %v9281
    %v9721 = vpop.permute.xlu0 %9720
    %v9723 = vmul.f32 %v9677, %v9697
    %v9724 = vmul.f32 %v9679, %v9701
    %v9725 = vmul.f32 %v9681, %v9705
    %v9726 = vmul.f32 %v9683, %v9709
    %v9727 = vmul.f32 %v9685, %v9713
    %v9728 = vmul.f32 %v9694, %v9717
    %v9729 = vmul.f32 %v9721, 0.0
    %9737 = vrot.lane.b32.xlu0 %v9372, 8
    %v9738 = vpop.permute.xlu0 %9737
    %9739 = vrot.lane.b32.xlu0 %v9373, 8
    %v9740 = vpop.permute.xlu0 %9739
    %9741 = vrot.lane.b32.xlu0 %v9374, 8
    %v9742 = vpop.permute.xlu0 %9741
    %9743 = vrot.lane.b32.xlu0 %v9375, 8
    %v9744 = vpop.permute.xlu0 %9743
    %9745 = vrot.lane.b32.xlu0 %v9376, 8
    %v9746 = vpop.permute.xlu0 %9745
    %9747 = vrot.lane.b32.xlu0 %v9377, 8
    %v9748 = vpop.permute.xlu0 %9747
    %9749 = vrot.lane.b32.xlu0 %v9378, 8
    %v9750 = vpop.permute.xlu0 %9749
    %9765 = vrot.lane.b32.xlu0 %v9426, 16
    %v9766 = vpop.permute.xlu0 %9765
    %9767 = vrot.lane.b32.xlu0 %v9427, 16
    %v9768 = vpop.permute.xlu0 %9767
    %9769 = vrot.lane.b32.xlu0 %v9428, 16
    %v9770 = vpop.permute.xlu0 %9769
    %9771 = vrot.lane.b32.xlu0 %v9429, 16
    %v9772 = vpop.permute.xlu0 %9771
    %9773 = vrot.lane.b32.xlu0 %v9430, 16
    %v9774 = vpop.permute.xlu0 %9773
    %9775 = vrot.lane.b32.xlu0 %v9431, 16
    %v9776 = vpop.permute.xlu0 %9775
    %9777 = vrot.lane.b32.xlu0 %v9432, 16
    %v9778 = vpop.permute.xlu0 %9777
    %9793 = vrot.lane.b32.xlu0 %v9483, 24
    %v9794 = vpop.permute.xlu0 %9793
    %9795 = vrot.lane.b32.xlu0 %v9484, 24
    %v9796 = vpop.permute.xlu0 %9795
    %9797 = vrot.lane.b32.xlu0 %v9485, 24
    %v9798 = vpop.permute.xlu0 %9797
    %9799 = vrot.lane.b32.xlu0 %v9486, 24
    %v9800 = vpop.permute.xlu0 %9799
    %9801 = vrot.lane.b32.xlu0 %v9487, 24
    %v9802 = vpop.permute.xlu0 %9801
    %9803 = vrot.lane.b32.xlu0 %v9488, 24
    %v9804 = vpop.permute.xlu0 %9803
    %9805 = vrot.lane.b32.xlu0 %v9489, 24
    %v9806 = vpop.permute.xlu0 %9805
    %9821 = vrot.lane.b32.xlu0 %v9518, 32
    %v9822 = vpop.permute.xlu0 %9821
    %9823 = vrot.lane.b32.xlu0 %v9519, 32
    %v9824 = vpop.permute.xlu0 %9823
    %9825 = vrot.lane.b32.xlu0 %v9520, 32
    %v9826 = vpop.permute.xlu0 %9825
    %9827 = vrot.lane.b32.xlu0 %v9521, 32
    %v9828 = vpop.permute.xlu0 %9827
    %9829 = vrot.lane.b32.xlu0 %v9522, 32
    %v9830 = vpop.permute.xlu0 %9829
    %9831 = vrot.lane.b32.xlu0 %v9523, 32
    %v9832 = vpop.permute.xlu0 %9831
    %9833 = vrot.lane.b32.xlu0 %v9524, 32
    %v9834 = vpop.permute.xlu0 %9833
    %9849 = vrot.lane.b32.xlu0 %v9574, 40
    %v9850 = vpop.permute.xlu0 %9849
    %9851 = vrot.lane.b32.xlu0 %v9575, 40
    %v9852 = vpop.permute.xlu0 %9851
    %9853 = vrot.lane.b32.xlu0 %v9576, 40
    %v9854 = vpop.permute.xlu0 %9853
    %9855 = vrot.lane.b32.xlu0 %v9577, 40
    %v9856 = vpop.permute.xlu0 %9855
    %9857 = vrot.lane.b32.xlu0 %v9578, 40
    %v9858 = vpop.permute.xlu0 %9857
    %9859 = vrot.lane.b32.xlu0 %v9579, 40
    %v9860 = vpop.permute.xlu0 %9859
    %9861 = vrot.lane.b32.xlu0 %v9580, 40
    %v9862 = vpop.permute.xlu0 %9861
    %9877 = vrot.lane.b32.xlu0 %v9613, 48
    %v9878 = vpop.permute.xlu0 %9877
    %9879 = vrot.lane.b32.xlu0 %v9614, 48
    %v9880 = vpop.permute.xlu0 %9879
    %9881 = vrot.lane.b32.xlu0 %v9615, 48
    %v9882 = vpop.permute.xlu0 %9881
    %9883 = vrot.lane.b32.xlu0 %v9616, 48
    %v9884 = vpop.permute.xlu0 %9883
    %9885 = vrot.lane.b32.xlu0 %v9617, 48
    %v9886 = vpop.permute.xlu0 %9885
    %9887 = vrot.lane.b32.xlu0 %v9618, 48
    %v9888 = vpop.permute.xlu0 %9887
    %9889 = vrot.lane.b32.xlu0 %v9619, 48
    %v9890 = vpop.permute.xlu0 %9889
    %9905 = vrot.lane.b32.xlu0 %v9668, 56
    %v9906 = vpop.permute.xlu0 %9905
    %9907 = vrot.lane.b32.xlu0 %v9669, 56
    %v9908 = vpop.permute.xlu0 %9907
    %9909 = vrot.lane.b32.xlu0 %v9670, 56
    %v9910 = vpop.permute.xlu0 %9909
    %9911 = vrot.lane.b32.xlu0 %v9671, 56
    %v9912 = vpop.permute.xlu0 %9911
    %9913 = vrot.lane.b32.xlu0 %v9672, 56
    %v9914 = vpop.permute.xlu0 %9913
    %9915 = vrot.lane.b32.xlu0 %v9673, 56
    %v9916 = vpop.permute.xlu0 %9915
    %9917 = vrot.lane.b32.xlu0 %v9674, 56
    %v9918 = vpop.permute.xlu0 %9917
    %9933 = vrot.lane.b32.xlu0 %v9723, 64
    %v9934 = vpop.permute.xlu0 %9933
    %9935 = vrot.lane.b32.xlu0 %v9724, 64
    %v9936 = vpop.permute.xlu0 %9935
    %9937 = vrot.lane.b32.xlu0 %v9725, 64
    %v9938 = vpop.permute.xlu0 %9937
    %9939 = vrot.lane.b32.xlu0 %v9726, 64
    %v9940 = vpop.permute.xlu0 %9939
    %9941 = vrot.lane.b32.xlu0 %v9727, 64
    %v9942 = vpop.permute.xlu0 %9941
    %9943 = vrot.lane.b32.xlu0 %v9728, 64
    %v9944 = vpop.permute.xlu0 %9943
    %9945 = vrot.lane.b32.xlu0 %v9729, 64
    %v9946 = vpop.permute.xlu0 %9945
    %v9954 = vsel %vm5691, %v9317, %v9738
    %v9955 = vsel %vm5691, %v9318, %v9740
    %v9956 = vsel %vm5691, %v9319, %v9742
    %v9957 = vsel %vm5691, %v9320, %v9744
    %v9958 = vsel %vm5691, %v9321, %v9746
    %v9959 = vsel %vm5691, %v9322, %v9748
    %v9960 = vsel %vm5691, %v9323, %v9750
    %v9961 = vsel %vm5821, %v9954, %v9766
    %v9962 = vsel %vm5821, %v9955, %v9768
    %v9963 = vsel %vm5821, %v9956, %v9770
    %v9964 = vsel %vm5821, %v9957, %v9772
    %v9965 = vsel %vm5821, %v9958, %v9774
    %v9966 = vsel %vm5821, %v9959, %v9776
    %v9967 = vsel %vm5821, %v9960, %v9778
    %v9968 = vsel %vm5951, %v9961, %v9794
    %v9969 = vsel %vm5951, %v9962, %v9796
    %v9970 = vsel %vm5951, %v9963, %v9798
    %v9971 = vsel %vm5951, %v9964, %v9800
    %v9972 = vsel %vm5951, %v9965, %v9802
    %v9973 = vsel %vm5951, %v9966, %v9804
    %v9974 = vsel %vm5951, %v9967, %v9806
    %v9975 = vsel %vm6081, %v9968, %v9822
    %v9976 = vsel %vm6081, %v9969, %v9824
    %v9977 = vsel %vm6081, %v9970, %v9826
    %v9978 = vsel %vm6081, %v9971, %v9828
    %v9979 = vsel %vm6081, %v9972, %v9830
    %v9980 = vsel %vm6081, %v9973, %v9832
    %v9981 = vsel %vm6081, %v9974, %v9834
    %v9982 = vsel %vm8769, %v9975, %v9850
    %v9983 = vsel %vm8769, %v9976, %v9852
    %v9984 = vsel %vm8769, %v9977, %v9854
    %v9985 = vsel %vm8769, %v9978, %v9856
    %v9986 = vsel %vm8769, %v9979, %v9858
    %v9987 = vsel %vm8769, %v9980, %v9860
    %v9988 = vsel %vm8769, %v9981, %v9862
    %v9989 = vsel %vm8783, %v9982, %v9878
    %v9990 = vsel %vm8783, %v9983, %v9880
    %v9991 = vsel %vm8783, %v9984, %v9882
    %v9992 = vsel %vm8783, %v9985, %v9884
    %v9993 = vsel %vm8783, %v9986, %v9886
    %v9994 = vsel %vm8783, %v9987, %v9888
    %v9995 = vsel %vm8783, %v9988, %v9890
    %v9996 = vsel %vm8797, %v9989, %v9906
    %v9997 = vsel %vm8797, %v9990, %v9908
    %v9998 = vsel %vm8797, %v9991, %v9910
    %v9999 = vsel %vm8797, %v9992, %v9912
    %v10000 = vsel %vm8797, %v9993, %v9914
    %v10001 = vsel %vm8797, %v9994, %v9916
    %v10002 = vsel %vm8797, %v9995, %v9918
    %v10003 = vsel %vm8811, %v9996, %v9934
    %v10004 = vsel %vm8811, %v9997, %v9936
    %v10005 = vsel %vm8811, %v9998, %v9938
    %v10006 = vsel %vm8811, %v9999, %v9940
    %v10007 = vsel %vm8811, %v10000, %v9942
    %v10008 = vsel %vm8811, %v10001, %v9944
    %v10009 = vsel %vm8811, %v10002, %v9946
    %v10010 = vpack.c.bf16 %v10004, %v10003
    %v10011 = vpack.c.bf16 %v10006, %v10005
    %v10012 = vpack.c.bf16 %v10008, %v10007
    %v10013 = vpack.c.bf16 %v10009, %v10009
    %v10014 = vld [vmem:[%s9] sm:$0xf]
    %v10015 = vld [vmem:[%s9 + $0x4] sm:$0xf]
    %v10016 = vld [vmem:[%s9 + $0x8] sm:$0xf]
    %v10017 = vld [vmem:[%s9 + $0xc] sm:$0xf]
    %v10018 = vld [vmem:[%s9 + $0x10] sm:$0xf]
    %v10019 = vld [vmem:[%s9 + $0x14] sm:$0xf]
    %v10020 = vld [vmem:[%s9 + $0x18] sm:$0xf]
    %v10021 = vld [vmem:[%s9 + $0x1c] sm:$0xf]
    %v10022 = vld [vmem:[%s9 + $0x20] sm:$0xf]
    %v10023 = vld [vmem:[%s10] sm:$0x1]
    %v10025 = vperm.slane %v10023, 0
    %v10036 = vunpack.c.l.b16 %v10014
    %v10037 = vunpack.c.l.b16 %v10015
    %v10038 = vunpack.c.l.b16 %v10016
    %v10039 = vunpack.c.l.b16 %v10017
    %v10040 = vunpack.c.l.b16 %v10018
    %v10041 = vunpack.c.l.b16 %v10019
    %v10042 = vunpack.c.l.b16 %v10020
    %v10043 = vunpack.c.l.b16 %v10021
    %v10044 = vunpack.c.l.b16 %v10022
    %v10045 = vpack.c.b16 %v10037, %v10036
    %v10046 = vpack.c.b16 %v10039, %v10038
    %v10047 = vpack.c.b16 %v10041, %v10040
    %v10048 = vpack.c.b16 %v10043, %v10042
    %v10049 = vpack.c.b16 %v10044, %v10044
    %v10055 = vsel %vm8872, %v10010, 0
    %v10058 = vsel %vm8872, %v10011, 0
    %v10061 = vsel %vm8872, %v10012, 0
    %v10064 = vsel %vm8872, %v10013, 0
    %v10067 = vsel %vm8101, %v10049, 0
    %10069 = vmatpush.bf16.msra.mxu0 0
    %10070 = vmatpush.bf16.msra.mxu0 0
    %10071 = vmatpush.bf16.msra.mxu0 0
    %10072 = vmatpush.bf16.msra.mxu0 %v10067
    %10073 = vmatpush.bf16.msra.mxu0 %v10048
    %10074 = vmatpush.bf16.msra.mxu0 %v10047
    %10075 = vmatpush.bf16.msra.mxu0 %v10046
    %10076 = vmatpush.bf16.msra.mxu0 %v10045
    %10077 = vmatmul.bf16.gmra.mxu0 %v10055
    %v10078 = vpop.f32.mrf.mxu0
    %v10079 = vadd.f32 %v10025, %v10078
    %v10080 = vpop.f32.mrf.mxu0
    %v10081 = vadd.f32 %v10025, %v10080
    %10082 = vmatmul.bf16.gmra.mxu0 %v10058
    %v10083 = vpop.f32.mrf.mxu0
    %v10084 = vadd.f32 %v10025, %v10083
    %v10085 = vpop.f32.mrf.mxu0
    %v10086 = vadd.f32 %v10025, %v10085
    %10087 = vmatmul.bf16.gmra.mxu0 %v10061
    %v10088 = vpop.f32.mrf.mxu0
    %v10089 = vadd.f32 %v10025, %v10088
    %v10090 = vpop.f32.mrf.mxu0
    %v10091 = vadd.f32 %v10025, %v10090
    %10092 = vmatmul.bf16.gmra.mxu0 %v10064
    %v10093 = vpop.f32.mrf.mxu0
    %v10094 = vadd.f32 %v10025, %v10093
    %v10095 = vpop.f32.mrf.mxu0
    %10096 = vdwg.mxu0
    %v10097 = vmax.f32 %v10079, 0.0
    %v10098 = vmax.f32 %v10081, 0.0
    %v10099 = vmax.f32 %v10084, 0.0
    %v10100 = vmax.f32 %v10086, 0.0
    %v10101 = vmax.f32 %v10089, 0.0
    %v10102 = vmax.f32 %v10091, 0.0
    %v10103 = vmax.f32 %v10094, 0.0
    %v10111 = vrot.slane %v10097, 1
    %v10112 = vrot.slane %v10098, 1
    %v10113 = vsel %vm1134, %v10111, %v10112
    %v10114 = vrot.slane %v10099, 1
    %v10115 = vsel %vm1134, %v10112, %v10114
    %v10116 = vrot.slane %v10100, 1
    %v10117 = vsel %vm1134, %v10114, %v10116
    %v10118 = vrot.slane %v10101, 1
    %v10119 = vsel %vm1134, %v10116, %v10118
    %v10120 = vrot.slane %v10102, 1
    %v10121 = vsel %vm1134, %v10118, %v10120
    %v10122 = vrot.slane %v10103, 1
    %v10123 = vsel %vm1134, %v10120, %v10122
    %v10131 = vsel %vm178, %v10122, 0.0
    %v10132 = vmax.f32 %v10097, %v10113
    %v10133 = vmax.f32 %v10098, %v10115
    %v10134 = vmax.f32 %v10099, %v10117
    %v10135 = vmax.f32 %v10100, %v10119
    %v10136 = vmax.f32 %v10101, %v10121
    %v10137 = vmax.f32 %v10102, %v10123
    %v10138 = vmax.f32 %v10103, %v10131
    %v10139 = vrot.slane %v10097, 2
    %v10140 = vrot.slane %v10098, 2
    %v10141 = vsel %vm6856, %v10139, %v10140
    %v10142 = vrot.slane %v10099, 2
    %v10143 = vsel %vm6856, %v10140, %v10142
    %v10144 = vrot.slane %v10100, 2
    %v10145 = vsel %vm6856, %v10142, %v10144
    %v10146 = vrot.slane %v10101, 2
    %v10147 = vsel %vm6856, %v10144, %v10146
    %v10148 = vrot.slane %v10102, 2
    %v10149 = vsel %vm6856, %v10146, %v10148
    %v10150 = vrot.slane %v10103, 2
    %v10151 = vsel %vm6856, %v10148, %v10150
    %v10158 = vmax.f32 %v10132, %v10141
    %v10159 = vmax.f32 %v10133, %v10143
    %v10160 = vmax.f32 %v10134, %v10145
    %v10161 = vmax.f32 %v10135, %v10147
    %v10162 = vmax.f32 %v10136, %v10149
    %v10163 = vmax.f32 %v10137, %v10151
    %v10164 = vmax.f32 %v10138, 0.0
    %v10172 = vrot.slane %v10158, 5
    %v10173 = vrot.slane %v10159, 5
    %v10174 = vsel %vm8168, %v10172, %v10173
    %v10175 = vrot.slane %v10160, 5
    %v10176 = vsel %vm8168, %v10173, %v10175
    %v10177 = vrot.slane %v10161, 5
    %v10178 = vsel %vm8168, %v10175, %v10177
    %v10179 = vrot.slane %v10162, 5
    %v10180 = vsel %vm8168, %v10177, %v10179
    %v10181 = vrot.slane %v10163, 5
    %v10182 = vsel %vm8168, %v10179, %v10181
    %v10183 = vrot.slane %v10164, 5
    %v10184 = vsel %vm8168, %v10181, %v10183
    %v10191 = vsel %vm9324, %v10184, 0.0
    %v10192 = vmax.f32 %v10158, %v10174
    %v10193 = vmax.f32 %v10159, %v10176
    %v10194 = vmax.f32 %v10160, %v10178
    %v10195 = vmax.f32 %v10161, %v10180
    %v10196 = vmax.f32 %v10162, %v10182
    %v10197 = vmax.f32 %v10163, %v10191
    %v10198 = vmax.f32 %v10164, 0.0
    %v10199 = vrot.slane %v10159, 2
    %v10200 = vrot.slane %v10160, 2
    %v10201 = vsel %vm6856, %v10199, %v10200
    %v10202 = vrot.slane %v10161, 2
    %v10203 = vsel %vm6856, %v10200, %v10202
    %v10204 = vrot.slane %v10162, 2
    %v10205 = vsel %vm6856, %v10202, %v10204
    %v10206 = vrot.slane %v10163, 2
    %v10207 = vsel %vm6856, %v10204, %v10206
    %v10208 = vrot.slane %v10164, 2
    %v10209 = vsel %vm6856, %v10206, %v10208
    %v10215 = vmax.f32 %v10192, %v10201
    %v10216 = vmax.f32 %v10193, %v10203
    %v10217 = vmax.f32 %v10194, %v10205
    %v10218 = vmax.f32 %v10195, %v10207
    %v10219 = vmax.f32 %v10196, %v10209
    %v10220 = vmax.f32 %v10197, 0.0
    %v10221 = vmax.f32 %v10198, 0.0
    %v10222 = vld [vmem:[%s12] sm:$0xff]
    %vm10223 = vcmask 408576
    %v10225 = vsel %vm10223, %v10222, 0
    %v10228 = vsel %vm6299, %v10221, 0
    %10230 = vmatpush.msra.mxu0 0.0
    %10231 = vmatpush.msra.mxu0 0.0
    %10232 = vmatpush.msra.mxu0 0.0
    %10233 = vmatpush.msra.mxu0 0.0
    %10234 = vmatpush.msra.mxu0 0.0
    %10235 = vmatpush.msra.mxu0 0.0
    %10236 = vmatpush.msra.mxu0 0.0
    %10237 = vmatpush.msra.mxu0 0.0
    %10238 = vmatpush.msra.mxu0 0.0
    %10239 = vmatpush.msra.mxu0 %v10228
    %10240 = vmatpush.msra.mxu0 %v10220
    %10241 = vmatpush.msra.mxu0 %v10219
    %10242 = vmatpush.msra.mxu0 %v10218
    %10243 = vmatpush.msra.mxu0 %v10217
    %10244 = vmatpush.msra.mxu0 %v10216
    %10245 = vmatpush.msra.mxu0 %v10215
    %10246 = vmatmul.f32.gmra.mxu0 %v10225
    %v10247 = vpop.f32.mrf.mxu0
    %v10248 = vadd.f32 0.0, %v10247
    %10249 = vdwg.mxu0
    %v10251 = vrot.slane %v10248, 1
    %10252 = vrot.lane.b32.xlu0 %v10251, 8
    %v10253 = vpop.permute.xlu0 %10252
    %v10255 = vrot.slane %v10248, 2
    %10256 = vrot.lane.b32.xlu0 %v10255, 16
    %v10257 = vpop.permute.xlu0 %10256
    %v10259 = vrot.slane %v10248, 3
    %10260 = vrot.lane.b32.xlu0 %v10259, 24
    %v10261 = vpop.permute.xlu0 %10260
    %v10263 = vsel %vm5691, %v10248, %v10253
    %v10264 = vsel %vm5821, %v10263, %v10257
    %v10265 = vsel %vm5951, %v10264, %v10261
    %v10267 = vrot.slane %v10265, 3
    %v10269 = vsel %vm178, %v10265, %v10267
    %v10270 = vpack.c.bf16 %v10269, %v10269
    %v10271 = vld [vmem:[%s13] sm:$0xf]
    %v10272 = vld [vmem:[%s13 + $0x4] sm:$0xf]
    %v10273 = vld [vmem:[%s13 + $0x8] sm:$0xf]
    %v10274 = vld [vmem:[%s13 + $0xc] sm:$0xf]
    %v10275 = vld [vmem:[%s14] sm:$0x1]
    %v10277 = vperm.slane %v10275, 0
    %v10283 = vunpack.c.l.b16 %v10271
    %v10284 = vunpack.c.l.b16 %v10272
    %v10285 = vunpack.c.l.b16 %v10273
    %v10286 = vunpack.c.l.b16 %v10274
    %v10287 = vpack.c.b16 %v10284, %v10283
    %v10288 = vpack.c.b16 %v10286, %v10285
    %v10292 = vsel %vm6081, %v10270, 0
    %10294 = vmatpush.bf16.msra.mxu0 0
    %10295 = vmatpush.bf16.msra.mxu0 0
    %10296 = vmatpush.bf16.msra.mxu0 0
    %10297 = vmatpush.bf16.msra.mxu0 0
    %10298 = vmatpush.bf16.msra.mxu0 0
    %10299 = vmatpush.bf16.msra.mxu0 0
    %10300 = vmatpush.bf16.msra.mxu0 %v10288
    %10301 = vmatpush.bf16.msra.mxu0 %v10287
    %10302 = vmatmul.bf16.gmra.mxu0 %v10292
    %v10303 = vpop.f32.mrf.mxu0
    %v10304 = vadd.f32 %v10277, %v10303
    %v10305 = vpop.f32.mrf.mxu0
    %10306 = vdwg.mxu0
    %vm10307 = vcmask 25600
    %10308 = vst.msk [vmem:[#allocation2] sm:$0x3] %vm10307, %v10304
    // Predicated region
    $region62: #{tpu_custom_call.1} parent=1 // pred_check
      _
    $region63: #{tpu_custom_call.1} parent=1 // pred_check_branch
      %10310 = sbr.rel (0) target = $region65
    $region64: #{tpu_custom_call.1} parent=1 // pred_region
      %10312 = vsyncadd [#allocation3], 0
      %s10314 = sshll.u32 [#allocation2], 4
      %s10315 = int_to_ptr.vmem [resolvable:$true] %s10314
      %s10316 = sshll.u32 %s15, 4
      %s10317 = int_to_ptr.hbm [resolvable:$true] %s10316
      %10319 = dma.vmem_to_hbm [thread:$0]  %s10315, 32, %s10317, [#allocation3]
    $region65: #{tpu_custom_call.1} parent=1 // pred_fallthru
      _
    // Predicated region
    $region66: #{tpu_custom_call.1} parent=1 // pred_check
      _
    $region67: #{tpu_custom_call.1} parent=1 // pred_check_branch
      %10321 = sbr.rel (0) target = $region69
    $region68: #{tpu_custom_call.1} parent=1 // pred_region
      %10323 = dma.done [#allocation3], 32
    $region69: #{tpu_custom_call.1} parent=1 // pred_fallthru
      _
    %10324 = vsyncpa [#allocation3], 1

</llo_original>
